<compile_context>
chip_gen: v6e
topology: v6e:2x2x1
jax: 0.10.0
libtpu: 0.0.40
codegen_flags: <defaults>
</compile_context>

<pallas_src>
import functools
import math

import jax
import jax.numpy as jnp
from jax import lax
from jax.experimental import pallas as pl
from jax.experimental.pallas import tpu as pltpu

F32 = jnp.float32
BF16 = jnp.bfloat16
_VMEM_LIMIT = 32 * 1024 * 1024


# ----------------------------------------------------------------------------- helpers
def _round_up(x, m):
    return (x + m - 1) // m * m


def _pick_block(n, max_b=64, min_b=8):
    """Block size that is a sublane multiple and yields >=2 blocks when possible."""
    half = _round_up(max(n // 2, 1), min_b)
    return max(min_b, min(max_b, half))


def _layer_norm(x, g, b, eps=1e-5):
    # one-pass variance: half the cross-lane reductions of the two-pass form
    mu = jnp.mean(x, axis=-1, keepdims=True)
    ms = jnp.mean(x * x, axis=-1, keepdims=True)
    var = jnp.maximum(ms - mu * mu, 0.0)
    return (x - mu) * lax.rsqrt(var + eps) * g + b


# ----------------------------------------------------------------------------- kernel 1
# Word encoder: grid = (word blocks [parallel], layers [arbitrary/streamed]).
# The residual stream for a word block lives in VMEM scratch across the layer
# axis; per-layer weights are streamed (double-buffered) through VMEM.  The
# final LN + char sum-pool writes the word vectors on the last layer only.
def _word_encoder_kernel(x_ref, mask_ref,
                         wqkv_ref, bqkv_ref, wo_ref, bo_ref,
                         w1_ref, b1_ref, w2_ref, b2_ref,
                         g1_ref, be1_ref, g2_ref, be2_ref,
                         gf_ref, bf_ref, word_ref, x_acc, *, n_heads):
    TB, C, D = x_ref.shape
    N = TB * C
    dk = D // n_heads
    scale = 1.0 / math.sqrt(dk)
    li = pl.program_id(1)
    n_layers = pl.num_programs(1)

    @pl.when(li == 0)
    def _():
        x_acc[...] = x_ref[...].astype(F32).reshape(N, D)

    x2d = x_acc[...]
    neg_mask = (mask_ref[...].astype(F32) - 1.0) * 1e9                   # (TB, C, C)

    # --- sublayer 1: pre-LN masked multi-head self-attention + residual.
    # Heads are accumulated through their W_o slice -> no H-way lane concat.
    xn = _layer_norm(x2d, g1_ref[...], be1_ref[...])
    qkv = jnp.dot(xn.astype(BF16), wqkv_ref[...],
                  preferred_element_type=F32) + bqkv_ref[...]            # (N, 3D)
    q = qkv[:, :D].reshape(TB, C, D).astype(BF16)
    k = qkv[:, D:2 * D].reshape(TB, C, D).astype(BF16)
    v = qkv[:, 2 * D:].reshape(TB, C, D).astype(BF16)
    attn = jnp.zeros((N, D), F32)
    for hh in range(n_heads):
        sl = slice(hh * dk, (hh + 1) * dk)
        s = jnp.einsum('bqd,bkd->bqk', q[:, :, sl], k[:, :, sl],
                       preferred_element_type=F32) * scale + neg_mask
        p = jnp.exp(s - jnp.max(s, axis=-1, keepdims=True))
        p = p * pl.reciprocal(jnp.sum(p, axis=-1, keepdims=True), approx=True)
        o = jnp.einsum('bqk,bkd->bqd', p.astype(BF16), v[:, :, sl],
                       preferred_element_type=F32)                       # (TB, C, dk)
        attn += jnp.dot(o.reshape(N, dk).astype(BF16), wo_ref[sl, :],
                        preferred_element_type=F32)
    x2d = x2d + attn + bo_ref[...]

    # --- sublayer 2: pre-LN position-wise FFN + residual
    xn2 = _layer_norm(x2d, g2_ref[...], be2_ref[...])
    hdn = jnp.maximum(
        jnp.dot(xn2.astype(BF16), w1_ref[...], preferred_element_type=F32)
        + b1_ref[...], 0.0)
    ff = jnp.dot(hdn.astype(BF16), w2_ref[...],
                 preferred_element_type=F32) + b2_ref[...]
    x2d = x2d + ff
    x_acc[...] = x2d

    @pl.when(li == n_layers - 1)
    def _():
        xf = _layer_norm(x_acc[...], gf_ref[...], bf_ref[...])
        word_ref[...] = jnp.sum(xf.reshape(TB, C, D), axis=1).astype(word_ref.dtype)


def word_encoder(x_char, mask, params, n_heads):
    Bp, C, D = x_char.shape
    L = params["enc_wqkv"].shape[0]
    d_ff = params["enc_w1"].shape[-1]
    TB = _pick_block(Bp, max_b=64)
    Bpad = _round_up(Bp, TB)
    if Bpad != Bp:
        x_char = jnp.pad(x_char, ((0, Bpad - Bp), (0, 0), (0, 0)))
        mask = jnp.pad(mask, ((0, Bpad - Bp), (0, 0), (0, 0)), constant_values=1.0)

    def wspec(shape):   # per-layer streamed tensor: squeeze layer dim, index by l
        nd = len(shape)
        return pl.BlockSpec((None,) + tuple(shape[1:]),
                            lambda i, l: (l,) + (0,) * (nd - 1))

    w_bf = lambda k: params[k].astype(BF16)
    weights = (w_bf("enc_wqkv"), params["enc_bqkv"], w_bf("enc_wo"), params["enc_bo"],
               w_bf("enc_w1"), params["enc_b1"], w_bf("enc_w2"), params["enc_b2"],
               params["enc_g1"], params["enc_be1"], params["enc_g2"], params["enc_be2"],
               params["enc_gf"], params["enc_bf"])
    w_specs = [wspec(w.shape) for w in weights[:-2]] + [
        pl.BlockSpec(params["enc_gf"].shape, lambda i, l: (0, 0)),
        pl.BlockSpec(params["enc_bf"].shape, lambda i, l: (0, 0))]

    n_tok = Bpad * C
    flops_layer = (2 * n_tok * D * 3 * D + 2 * n_tok * D * D + 4 * n_tok * D * d_ff
                   + 4 * Bpad * n_heads * C * C * (D // n_heads))
    cost = pl.CostEstimate(
        flops=int(L * flops_layer),
        transcendentals=int(L * Bpad * n_heads * C * C),
        bytes_accessed=int(4 * (x_char.size + mask.size + Bpad * D)
                           + 2 * sum(w.size for w in weights)))

    word = pl.pallas_call(
        functools.partial(_word_encoder_kernel, n_heads=n_heads),
        out_shape=jax.ShapeDtypeStruct((Bpad, D), F32),
        grid=(Bpad // TB, L),
        in_specs=[pl.BlockSpec((TB, C, D), lambda i, l: (i, 0, 0)),
                  pl.BlockSpec((TB, C, C), lambda i, l: (i, 0, 0))] + w_specs,
        out_specs=pl.BlockSpec((TB, D), lambda i, l: (i, 0)),
        scratch_shapes=[pltpu.VMEM((TB * C, D), F32)],
        compiler_params=pltpu.CompilerParams(
            dimension_semantics=("parallel", "arbitrary"),
            vmem_limit_bytes=_VMEM_LIMIT),
        cost_estimate=cost,
    )(x_char, mask, *weights)
    return word[:Bp]


# ----------------------------------------------------------------------------- kernel 2
# Prediction head: row-blocked (parallel) x vocab-tiled (arbitrary) matmul with an
# online max/sum accumulator.  Emits raw logits + per-row logsumexp; the cheap
# final (y - lse) normalization is done by XLA (fused with the output reshape).
def _head_logits_kernel(x_ref, w_ref, b_ref, y_ref, lse_ref, m_sc, l_sc):
    j = pl.program_id(1)

    @pl.when(j == 0)
    def _():
        m_sc[...] = jnp.full(m_sc.shape, -jnp.inf, m_sc.dtype)
        l_sc[...] = jnp.zeros(l_sc.shape, l_sc.dtype)

    y = jnp.dot(x_ref[...].astype(BF16), w_ref[...],
                preferred_element_type=F32) + b_ref[...]
    y_ref[...] = y
    m_prev = m_sc[...]
    m_new = jnp.maximum(m_prev, jnp.max(y, axis=-1, keepdims=True))
    l_sc[...] = (l_sc[...] * jnp.exp(m_prev - m_new)
                 + jnp.sum(jnp.exp(y - m_new), axis=-1, keepdims=True))
    m_sc[...] = m_new

    @pl.when(j == pl.num_programs(1) - 1)
    def _():
        lse_ref[...] = m_sc[...] + jnp.log(l_sc[...])


def linear_logsoftmax(x, w, b, *, max_rows=512, vocab_block=512):
    """log_softmax(x @ w + b, axis=-1) with vocab-tiled, lane-dense panels."""
    R, Din = x.shape
    Dout = w.shape[1]
    Rp = _round_up(R, 8)
    Rb = Rp if Rp <= max_rows else max_rows
    Rp = _round_up(Rp, Rb)
    if Rp != R:
        x = jnp.pad(x, ((0, Rp - R), (0, 0)))
    Dp = _round_up(Dout, 128)
    Vb = Dp if Dp <= vocab_block else vocab_block
    Dp = _round_up(Dp, Vb)
    if Dp != Dout:
        w = jnp.pad(w, ((0, 0), (0, Dp - Dout)))
        b = jnp.pad(b, ((0, 0), (0, Dp - Dout)), constant_values=-1e30)
    w = w.astype(BF16)

    cost = pl.CostEstimate(flops=int(2 * Rp * Din * Dp),
                           transcendentals=int(Rp * Dp),
                           bytes_accessed=int(4 * (Rp * Din + Rp * Dp + Rp) + 2 * Din * Dp))
    y, lse = pl.pallas_call(
        _head_logits_kernel,
        out_shape=(jax.ShapeDtypeStruct((Rp, Dp), F32),
                   jax.ShapeDtypeStruct((Rp, 1), F32)),
        grid=(Rp // Rb, Dp // Vb),
        in_specs=[pl.BlockSpec((Rb, Din), lambda i, j: (i, 0)),
                  pl.BlockSpec((Din, Vb), lambda i, j: (0, j)),
                  pl.BlockSpec((1, Vb), lambda i, j: (0, j))],
        out_specs=(pl.BlockSpec((Rb, Vb), lambda i, j: (i, j)),
                   pl.BlockSpec((Rb, 1), lambda i, j: (i, 0))),
        scratch_shapes=[pltpu.VMEM((Rb, 1), F32), pltpu.VMEM((Rb, 1), F32)],
        compiler_params=pltpu.CompilerParams(
            dimension_semantics=("parallel", "arbitrary"),
            vmem_limit_bytes=_VMEM_LIMIT),
        cost_estimate=cost,
    )(x, w, b)
    # TODO(synk): final normalization (y - lse) left to XLA fusion; a revisiting
    # second Pallas pass would avoid re-reading y for very large vocabularies.
    return (y - lse)[:R, :Dout]


# ----------------------------------------------------------------------------- kernel 3
# GRU (PyTorch gate order r, z, n).  Input gates are computed in-kernel as one
# big matmul (never hit HBM); the batch axis is tiled into parallel grid blocks;
# only h @ W_hh stays on the serial per-step path.
def _gru_kernel(x_ref, h0_ref, wih_ref, whh_ref, bih_ref, bhh_ref,
                out_ref, gi_sc, *, d, unroll):
    T, Bb, D = x_ref.shape
    gi = jnp.dot(x_ref[...].reshape(T * Bb, D), wih_ref[...],
                 preferred_element_type=F32) + bih_ref[...]
    gi_sc[...] = gi.reshape(T, Bb, 3 * d)
    whh = whh_ref[...]
    bhh = bhh_ref[...]

    def step(t, h):
        gi_t = gi_sc[t]
        gh = jnp.dot(h.astype(BF16), whh, preferred_element_type=F32) + bhh
        r = jax.nn.sigmoid(gi_t[:, :d] + gh[:, :d])
        z = jax.nn.sigmoid(gi_t[:, d:2 * d] + gh[:, d:2 * d])
        n = jnp.tanh(gi_t[:, 2 * d:] + r * gh[:, 2 * d:])
        h_new = (1.0 - z) * n + z * h
        out_ref[t] = h_new.astype(out_ref.dtype)
        return h_new

    lax.fori_loop(0, T, step, h0_ref[...].astype(F32), unroll=unroll)


def gru_layer(x_tm, h0, params):
    T, Bp, D = x_tm.shape
    Bb = _pick_block(Bp, max_b=64)
    Bpad = _round_up(Bp, Bb)
    if Bpad != Bp:
        x_tm = jnp.pad(x_tm, ((0, 0), (0, Bpad - Bp), (0, 0)))
        h0 = jnp.pad(h0, ((0, Bpad - Bp), (0, 0)))
    wih = params["gru_wih"].astype(BF16)
    whh = params["gru_whh"].astype(BF16)
    out = pl.pallas_call(
        functools.partial(_gru_kernel, d=D, unroll=min(T, 8)),
        out_shape=jax.ShapeDtypeStruct((T, Bpad, D), F32),
        grid=(Bpad // Bb,),
        in_specs=[pl.BlockSpec((T, Bb, D), lambda i: (0, i, 0)),
                  pl.BlockSpec((Bb, D), lambda i: (i, 0)),
                  pl.BlockSpec(wih.shape, lambda i: (0, 0)),
                  pl.BlockSpec(whh.shape, lambda i: (0, 0)),
                  pl.BlockSpec((1, 3 * D), lambda i: (0, 0)),
                  pl.BlockSpec((1, 3 * D), lambda i: (0, 0))],
        out_specs=pl.BlockSpec((T, Bb, D), lambda i: (0, i, 0)),
        scratch_shapes=[pltpu.VMEM((T, Bb, 3 * D), F32)],
        compiler_params=pltpu.CompilerParams(
            dimension_semantics=("parallel",), vmem_limit_bytes=_VMEM_LIMIT),
    )(x_tm.astype(BF16), h0, wih, whh, params["gru_bih"], params["gru_bhh"])
    return out[:, :Bp]


# ----------------------------------------------------------------------------- kernel 4
# Bidirectional LSTM (PyTorch gate order i, f, g, o), zero init state.  The two
# directions form a "parallel" grid axis (both TCs on v7x); the input-to-hidden
# matmul is fused in-kernel and gates stay in VMEM; time-major I/O.
def _bilstm_kernel(x_ref, wih_ref, whh_ref, b_ref, out_ref, hn_ref, cn_ref,
                   g_sc, *, dh, unroll):
    T, B, D = x_ref.shape
    g = jnp.dot(x_ref[...].reshape(T * B, D), wih_ref[...],
                preferred_element_type=F32) + b_ref[...]
    g_sc[...] = g.reshape(T, B, 4 * dh)
    whh = whh_ref[...]
    backward = pl.program_id(0) == 1

    def step(s, carry):
        h, c = carry
        t = jnp.where(backward, T - 1 - s, s)
        gt = g_sc[t] + jnp.dot(h.astype(BF16), whh, preferred_element_type=F32)
        i_g = jax.nn.sigmoid(gt[:, :dh])
        f_g = jax.nn.sigmoid(gt[:, dh:2 * dh])
        g_g = jnp.tanh(gt[:, 2 * dh:3 * dh])
        o_g = jax.nn.sigmoid(gt[:, 3 * dh:])
        c_new = f_g * c + i_g * g_g
        h_new = o_g * jnp.tanh(c_new)
        out_ref[t] = h_new.astype(out_ref.dtype)
        return h_new, c_new

    z = jnp.zeros((B, dh), F32)
    h, c = lax.fori_loop(0, T, step, (z, z), unroll=unroll)
    hn_ref[...] = h.astype(hn_ref.dtype)
    cn_ref[...] = c.astype(cn_ref.dtype)


def bilstm_layer(word_tm, params, dh):
    T, B, D = word_tm.shape
    Bpad = _round_up(B, 8)                       # sublane-dense recurrence stores
    if Bpad != B:
        word_tm = jnp.pad(word_tm, ((0, 0), (0, Bpad - B), (0, 0)))
    wih = jnp.stack([params["lstm_wih_f"], params["lstm_wih_b"]]).astype(BF16)
    whh = jnp.stack([params["lstm_whh_f"], params["lstm_whh_b"]]).astype(BF16)
    bias = jnp.stack([params["lstm_bi_f"] + params["lstm_bh_f"],
                      params["lstm_bi_b"] + params["lstm_bh_b"]])
    out, hn, cn = pl.pallas_call(
        functools.partial(_bilstm_kernel, dh=dh, unroll=min(T, 8)),
        out_shape=(jax.ShapeDtypeStruct((2, T, Bpad, dh), F32),
                   jax.ShapeDtypeStruct((2, Bpad, dh), F32),
                   jax.ShapeDtypeStruct((2, Bpad, dh), F32)),
        grid=(2,),
        in_specs=[pl.BlockSpec((T, Bpad, D), lambda d_: (0, 0, 0)),
                  pl.BlockSpec((None, D, 4 * dh), lambda d_: (d_, 0, 0)),
                  pl.BlockSpec((None, dh, 4 * dh), lambda d_: (d_, 0, 0)),
                  pl.BlockSpec((None, 1, 4 * dh), lambda d_: (d_, 0, 0))],
        out_specs=(pl.BlockSpec((None, T, Bpad, dh), lambda d_: (d_, 0, 0, 0)),
                   pl.BlockSpec((None, Bpad, dh), lambda d_: (d_, 0, 0)),
                   pl.BlockSpec((None, Bpad, dh), lambda d_: (d_, 0, 0))),
        scratch_shapes=[pltpu.VMEM((T, Bpad, 4 * dh), F32)],
        compiler_params=pltpu.CompilerParams(
            dimension_semantics=("parallel",), vmem_limit_bytes=_VMEM_LIMIT),
    )(word_tm.astype(BF16), wih, whh, bias)
    return out[:, :, :B], hn[:, :B], cn[:, :B]


# ----------------------------------------------------------------------------- params
def init_params(key, char_vocab, d_emb, n_layers, d_hidden, vocab):
    keys = iter(jax.random.split(key, 64))

    def nrm(shape, scale=0.05):
        return (scale * jax.random.normal(next(keys), shape)).astype(F32)

    d_ff = 4 * d_emb
    L = n_layers
    p = {"emb": nrm((char_vocab, d_emb), 0.1)}
    # encoder layers: stacked on a leading layer axis, streamed per layer
    p["enc_wqkv"] = nrm((L, d_emb, 3 * d_emb))
    p["enc_bqkv"] = jnp.zeros((L, 1, 3 * d_emb), F32)
    p["enc_wo"] = nrm((L, d_emb, d_emb))
    p["enc_bo"] = jnp.zeros((L, 1, d_emb), F32)
    p["enc_w1"] = nrm((L, d_emb, d_ff))
    p["enc_b1"] = jnp.zeros((L, 1, d_ff), F32)
    p["enc_w2"] = nrm((L, d_ff, d_emb))
    p["enc_b2"] = jnp.zeros((L, 1, d_emb), F32)
    p["enc_g1"] = jnp.ones((L, 1, d_emb), F32)
    p["enc_be1"] = jnp.zeros((L, 1, d_emb), F32)
    p["enc_g2"] = jnp.ones((L, 1, d_emb), F32)
    p["enc_be2"] = jnp.zeros((L, 1, d_emb), F32)
    p["enc_gf"] = jnp.ones((1, d_emb), F32)
    p["enc_bf"] = jnp.zeros((1, d_emb), F32)
    # seq_rnn (GRU): hidden == d_emb, gate order (r, z, n)
    p["gru_wih"] = nrm((d_emb, 3 * d_emb))
    p["gru_whh"] = nrm((d_emb, 3 * d_emb))
    p["gru_bih"] = jnp.zeros((1, 3 * d_emb), F32)
    p["gru_bhh"] = jnp.zeros((1, 3 * d_emb), F32)
    # bidirectional LSTM: gate order (i, f, g, o)
    for d_ in ("f", "b"):
        p[f"lstm_wih_{d_}"] = nrm((d_emb, 4 * d_hidden))
        p[f"lstm_whh_{d_}"] = nrm((d_hidden, 4 * d_hidden))
        p[f"lstm_bi_{d_}"] = jnp.zeros((1, 4 * d_hidden), F32)
        p[f"lstm_bh_{d_}"] = jnp.zeros((1, 4 * d_hidden), F32)
    p["pred_w"] = nrm((2 * d_hidden, vocab))
    p["pred_b"] = jnp.zeros((1, vocab), F32)
    p["seq_pred_w"] = nrm((d_emb, char_vocab))
    p["seq_pred_b"] = jnp.zeros((1, char_vocab), F32)
    return p


# ----------------------------------------------------------------------------- forward
def mude_forward(params, input_ids, mask, n_heads):
    bs, l, c = input_ids.shape
    d_emb = params["emb"].shape[1]
    Bp = bs * l
    T = c - 1

    # character embeddings (gather - XLA glue)
    x_char = params["emb"][input_ids].reshape(Bp, c, d_emb)              # (Bp, c, d)
    mask_flat = mask.reshape(Bp, c, c).astype(F32)

    # fused, layer-streamed word encoder -> word representations (Bp, d)
    word = word_encoder(x_char, mask_flat, params, n_heads)

    # ---- char-level GRU (seq_rnn); h0 = word representation.
    # GRU input is gathered directly in time-major order, so neither the input
    # nor the 3x larger gate tensor ever needs an HBM transpose.
    ids_tm = input_ids[:, :, :-1].reshape(Bp, T).T                       # (T, Bp)
    x_gru_tm = params["emb"][ids_tm]                                     # (T, Bp, d)
    seq_h_tm = gru_layer(x_gru_tm, word, params)                         # (T, Bp, d)
    char_vocab = params["seq_pred_w"].shape[1]
    seq_logits = linear_logsoftmax(seq_h_tm.reshape(T * Bp, d_emb),
                                   params["seq_pred_w"], params["seq_pred_b"])
    seq_output = seq_logits.reshape(T, bs, l, char_vocab).transpose(1, 2, 0, 3)

    # ---- word-level bidirectional LSTM (dropout = identity in eval)
    d_hidden = params["lstm_whh_f"].shape[0]
    word_tm = word.reshape(bs, l, d_emb).transpose(1, 0, 2)              # (l, bs, d)
    out2, hn, cn = bilstm_layer(word_tm, params, d_hidden)
    lstm_tm = jnp.concatenate([out2[0], out2[1]], axis=-1)               # (l, bs, 2H)
    vocab = params["pred_w"].shape[1]
    logits = linear_logsoftmax(lstm_tm.reshape(l * bs, 2 * d_hidden),
                               params["pred_w"], params["pred_b"])
    output = logits.reshape(l, bs, vocab).transpose(1, 0, 2)

    return output, (hn, cn), seq_output


# ----------------------------------------------------------------------------- main
if __name__ == "__main__":
    char_vocab_size, d_emb, n_heads, n_layers = 16, 32, 4, 2
    d_hidden, vocab_size = 32, 64
    bs, l, c = 2, 8, 8

    key = jax.random.PRNGKey(0)
    kp, ki = jax.random.split(key)
    params = init_params(kp, char_vocab_size, d_emb, n_layers, d_hidden, vocab_size)

    input_ids = jax.random.randint(ki, (bs, l, c), 0, char_vocab_size, dtype=jnp.int32)
    mask = jnp.ones((bs, l, c, c), jnp.float32)

    fwd = jax.jit(mude_forward, static_argnums=(3,))
    output, hidden, seq_output = fwd(params, input_ids, mask, n_heads)
    jax.block_until_ready((output, hidden, seq_output))

    assert output.shape == (bs, l, vocab_size)
    assert hidden[0].shape == (2, bs, d_hidden) and hidden[1].shape == (2, bs, d_hidden)
    assert seq_output.shape == (bs, l, c - 1, char_vocab_size)
    assert bool(jnp.all(jnp.isfinite(output))) and bool(jnp.all(jnp.isfinite(seq_output)))
    print("KERNEL_OK")
</pallas_src>

<mosaic_0001>
module attributes {stable_mosaic.version = 11 : i64} {
  func.func @_word_encoder_kernel(%arg0: i32, %arg1: i32, %arg2: memref<8x8x32xf32, #tpu.memory_space<vmem>>, %arg3: memref<8x8x8xf32, #tpu.memory_space<vmem>>, %arg4: memref<1x32x96xbf16, #tpu.memory_space<vmem>>, %arg5: memref<1x1x96xf32, #tpu.memory_space<vmem>>, %arg6: memref<1x32x32xbf16, #tpu.memory_space<vmem>>, %arg7: memref<1x1x32xf32, #tpu.memory_space<vmem>>, %arg8: memref<1x32x128xbf16, #tpu.memory_space<vmem>>, %arg9: memref<1x1x128xf32, #tpu.memory_space<vmem>>, %arg10: memref<1x128x32xbf16, #tpu.memory_space<vmem>>, %arg11: memref<1x1x32xf32, #tpu.memory_space<vmem>>, %arg12: memref<1x1x32xf32, #tpu.memory_space<vmem>>, %arg13: memref<1x1x32xf32, #tpu.memory_space<vmem>>, %arg14: memref<1x1x32xf32, #tpu.memory_space<vmem>>, %arg15: memref<1x1x32xf32, #tpu.memory_space<vmem>>, %arg16: memref<1x32xf32, #tpu.memory_space<vmem>>, %arg17: memref<1x32xf32, #tpu.memory_space<vmem>>, %arg18: memref<8x32xf32, #tpu.memory_space<vmem>>, %arg19: memref<64x32xf32, #tpu.memory_space<vmem>>) attributes {dimension_semantics = [#tpu.dimension_semantics<parallel>, #tpu.dimension_semantics<arbitrary>], iteration_bounds = array<i64: 2, 2>, scalar_prefetch = 0 : i64, scratch_operands = 1 : i64, tpu.core_type = #tpu.core_type<tc>, window_params = [{transform_indices = @transform_0, window_bounds = array<i64: 8, 8, 32>}, {transform_indices = @transform_1, window_bounds = array<i64: 8, 8, 8>}, {transform_indices = @transform_2, window_bounds = array<i64: 1, 32, 96>}, {transform_indices = @transform_3, window_bounds = array<i64: 1, 1, 96>}, {transform_indices = @transform_4, window_bounds = array<i64: 1, 32, 32>}, {transform_indices = @transform_5, window_bounds = array<i64: 1, 1, 32>}, {transform_indices = @transform_6, window_bounds = array<i64: 1, 32, 128>}, {transform_indices = @transform_7, window_bounds = array<i64: 1, 1, 128>}, {transform_indices = @transform_8, window_bounds = array<i64: 1, 128, 32>}, {transform_indices = @transform_9, window_bounds = array<i64: 1, 1, 32>}, {transform_indices = @transform_10, window_bounds = array<i64: 1, 1, 32>}, {transform_indices = @transform_11, window_bounds = array<i64: 1, 1, 32>}, {transform_indices = @transform_12, window_bounds = array<i64: 1, 1, 32>}, {transform_indices = @transform_13, window_bounds = array<i64: 1, 1, 32>}, {pipeline_mode = #tpu.pipeline_mode<synchronous>, transform_indices = @transform_14, window_bounds = array<i64: 1, 32>}, {pipeline_mode = #tpu.pipeline_mode<synchronous>, transform_indices = @transform_15, window_bounds = array<i64: 1, 32>}, {transform_indices = @transform_16, window_bounds = array<i64: 8, 32>}]} {
    %c0_i32 = arith.constant 0 : i32
    %0 = arith.cmpi eq, %arg1, %c0_i32 : i32
    %1 = arith.extui %0 : i1 to i32
    %c0_i32_0 = arith.constant 0 : i32
    %2 = arith.cmpi ne, %1, %c0_i32_0 : i32
    scf.if %2 {
      %c0_92 = arith.constant 0 : index
      %c0_93 = arith.constant 0 : index
      %c0_94 = arith.constant 0 : index
      %211 = vector.load %arg2[%c0_92, %c0_93, %c0_94] : memref<8x8x32xf32, #tpu.memory_space<vmem>>, vector<8x8x32xf32>
      %212 = vector.shape_cast %211 : vector<8x8x32xf32> to vector<64x32xf32>
      %c0_95 = arith.constant 0 : index
      %c0_96 = arith.constant 0 : index
      %213 = vector.load %arg19[%c0_95, %c0_96] : memref<64x32xf32, #tpu.memory_space<vmem>>, vector<64x32xf32>
      tpu.vector_store %arg19[%c0_95, %c0_96], %212 {strides = array<i32>} : memref<64x32xf32, #tpu.memory_space<vmem>>, vector<64x32xf32>,
    } else {
    }
    %c0 = arith.constant 0 : index
    %c0_1 = arith.constant 0 : index
    %3 = vector.load %arg19[%c0, %c0_1] : memref<64x32xf32, #tpu.memory_space<vmem>>, vector<64x32xf32>
    %c0_2 = arith.constant 0 : index
    %c0_3 = arith.constant 0 : index
    %c0_4 = arith.constant 0 : index
    %4 = vector.load %arg3[%c0_2, %c0_3, %c0_4] : memref<8x8x8xf32, #tpu.memory_space<vmem>>, vector<8x8x8xf32>
    %cst = arith.constant 1.000000e+00 : f32
    %5 = vector.broadcast %cst : f32 to vector<8x8x8xf32>
    %6 = arith.subf %4, %5 : vector<8x8x8xf32>
    %cst_5 = arith.constant 1.000000e+09 : f32
    %7 = vector.broadcast %cst_5 : f32 to vector<8x8x8xf32>
    %8 = arith.mulf %6, %7 : vector<8x8x8xf32>
    %c0_6 = arith.constant 0 : index
    %c0_7 = arith.constant 0 : index
    %c0_8 = arith.constant 0 : index
    %9 = vector.load %arg12[%c0_6, %c0_7, %c0_8] : memref<1x1x32xf32, #tpu.memory_space<vmem>>, vector<1x1x32xf32>
    %10 = vector.shape_cast %9 : vector<1x1x32xf32> to vector<1x32xf32>
    %c0_9 = arith.constant 0 : index
    %c0_10 = arith.constant 0 : index
    %c0_11 = arith.constant 0 : index
    %11 = vector.load %arg13[%c0_9, %c0_10, %c0_11] : memref<1x1x32xf32, #tpu.memory_space<vmem>>, vector<1x1x32xf32>
    %12 = vector.shape_cast %11 : vector<1x1x32xf32> to vector<1x32xf32>
    %cst_12 = arith.constant dense<0.000000e+00> : vector<64xf32>
    %13 = vector.multi_reduction <add>, %3, %cst_12 [1] : vector<64x32xf32> to vector<64xf32>
    %14 = vector.shape_cast %13 : vector<64xf32> to vector<64x1xf32>
    %cst_13 = arith.constant 3.200000e+01 : f32
    %15 = vector.broadcast %cst_13 : f32 to vector<64x1xf32>
    %16 = arith.divf %14, %15 : vector<64x1xf32>
    %17 = arith.mulf %3, %3 : vector<64x32xf32>
    %cst_14 = arith.constant dense<0.000000e+00> : vector<64xf32>
    %18 = vector.multi_reduction <add>, %17, %cst_14 [1] : vector<64x32xf32> to vector<64xf32>
    %19 = vector.shape_cast %18 : vector<64xf32> to vector<64x1xf32>
    %cst_15 = arith.constant 3.200000e+01 : f32
    %20 = vector.broadcast %cst_15 : f32 to vector<64x1xf32>
    %21 = arith.divf %19, %20 : vector<64x1xf32>
    %22 = arith.mulf %16, %16 : vector<64x1xf32>
    %23 = arith.subf %21, %22 : vector<64x1xf32>
    %cst_16 = arith.constant 0.000000e+00 : f32
    %24 = vector.broadcast %cst_16 : f32 to vector<64x1xf32>
    %25 = arith.maximumf %23, %24 : vector<64x1xf32>
    %26 = vector.broadcast %16 : vector<64x1xf32> to vector<64x32xf32>
    %27 = arith.subf %3, %26 : vector<64x32xf32>
    %cst_17 = arith.constant 9.99999974E-6 : f32
    %28 = vector.broadcast %cst_17 : f32 to vector<64x1xf32>
    %29 = arith.addf %25, %28 : vector<64x1xf32>
    %30 = math.rsqrt %29 : vector<64x1xf32>
    %31 = vector.broadcast %30 : vector<64x1xf32> to vector<64x32xf32>
    %32 = arith.mulf %27, %31 : vector<64x32xf32>
    %33 = vector.broadcast %10 : vector<1x32xf32> to vector<64x32xf32>
    %34 = arith.mulf %32, %33 : vector<64x32xf32>
    %35 = vector.broadcast %12 : vector<1x32xf32> to vector<64x32xf32>
    %36 = arith.addf %34, %35 : vector<64x32xf32>
    %37 = arith.truncf %36 : vector<64x32xf32> to vector<64x32xbf16>
    %c0_18 = arith.constant 0 : index
    %c0_19 = arith.constant 0 : index
    %c0_20 = arith.constant 0 : index
    %38 = vector.load %arg4[%c0_18, %c0_19, %c0_20] : memref<1x32x96xbf16, #tpu.memory_space<vmem>>, vector<1x32x96xbf16>
    %39 = vector.shape_cast %38 : vector<1x32x96xbf16> to vector<32x96xbf16>
    %cst_21 = arith.constant dense<0.000000e+00> : vector<64x96xf32>
    %40 = tpu.matmul %37, %39, %cst_21 {dimension_numbers = #tpu.dot_dimension_numbers<[1], [0], [0], [1], [0, 0, 1, 1], [], []>} : vector<64x32xbf16>, vector<32x96xbf16>, vector<64x96xf32> -> vector<64x96xf32>
    %c0_22 = arith.constant 0 : index
    %c0_23 = arith.constant 0 : index
    %c0_24 = arith.constant 0 : index
    %41 = vector.load %arg5[%c0_22, %c0_23, %c0_24] : memref<1x1x96xf32, #tpu.memory_space<vmem>>, vector<1x1x96xf32>
    %42 = vector.shape_cast %41 : vector<1x1x96xf32> to vector<1x96xf32>
    %43 = vector.broadcast %42 : vector<1x96xf32> to vector<64x96xf32>
    %44 = arith.addf %40, %43 : vector<64x96xf32>
    %45 = vector.extract_strided_slice %44 {offsets = [0, 0], sizes = [64, 32], strides = [1, 1]} : vector<64x96xf32> to vector<64x32xf32>
    %46 = vector.shape_cast %45 : vector<64x32xf32> to vector<8x8x32xf32>
    %47 = arith.truncf %46 : vector<8x8x32xf32> to vector<8x8x32xbf16>
    %48 = vector.extract_strided_slice %44 {offsets = [0, 32], sizes = [64, 32], strides = [1, 1]} : vector<64x96xf32> to vector<64x32xf32>
    %49 = vector.shape_cast %48 : vector<64x32xf32> to vector<8x8x32xf32>
    %50 = arith.truncf %49 : vector<8x8x32xf32> to vector<8x8x32xbf16>
    %51 = vector.extract_strided_slice %44 {offsets = [0, 64], sizes = [64, 32], strides = [1, 1]} : vector<64x96xf32> to vector<64x32xf32>
    %52 = vector.shape_cast %51 : vector<64x32xf32> to vector<8x8x32xf32>
    %53 = arith.truncf %52 : vector<8x8x32xf32> to vector<8x8x32xbf16>
    %cst_25 = arith.constant 0.000000e+00 : f32
    %54 = vector.broadcast %cst_25 : f32 to vector<64x32xf32>
    %55 = vector.extract_strided_slice %47 {offsets = [0, 0, 0], sizes = [8, 8, 8], strides = [1, 1, 1]} : vector<8x8x32xbf16> to vector<8x8x8xbf16>
    %56 = vector.extract_strided_slice %50 {offsets = [0, 0, 0], sizes = [8, 8, 8], strides = [1, 1, 1]} : vector<8x8x32xbf16> to vector<8x8x8xbf16>
    "tpu.trace_start"() <{level = 10 : i32, message = "bqd,bkd->bqk"}> : () -> ()
    %cst_26 = arith.constant dense<0.000000e+00> : vector<8x8x8xf32>
    %57 = tpu.matmul %55, %56, %cst_26 {dimension_numbers = #tpu.dot_dimension_numbers<[2], [2], [1], [1], [0, 0, 0, 1, 1, 1], [0], [0]>} : vector<8x8x8xbf16>, vector<8x8x8xbf16>, vector<8x8x8xf32> -> vector<8x8x8xf32>
    "tpu.trace_stop"() : () -> ()
    %cst_27 = arith.constant 0.353553385 : f32
    %58 = vector.broadcast %cst_27 : f32 to vector<8x8x8xf32>
    %59 = arith.mulf %57, %58 : vector<8x8x8xf32>
    %60 = arith.addf %59, %8 : vector<8x8x8xf32>
    %cst_28 = arith.constant dense<0xFF800000> : vector<8x8xf32>
    %61 = vector.multi_reduction <maximumf>, %60, %cst_28 [2] : vector<8x8x8xf32> to vector<8x8xf32>
    %62 = vector.shape_cast %61 : vector<8x8xf32> to vector<8x8x1xf32>
    %63 = vector.broadcast %62 : vector<8x8x1xf32> to vector<8x8x8xf32>
    %64 = arith.subf %60, %63 : vector<8x8x8xf32>
    %65 = math.exp %64 : vector<8x8x8xf32>
    %cst_29 = arith.constant dense<0.000000e+00> : vector<8x8xf32>
    %66 = vector.multi_reduction <add>, %65, %cst_29 [2] : vector<8x8x8xf32> to vector<8x8xf32>
    %67 = vector.shape_cast %66 : vector<8x8xf32> to vector<8x8x1xf32>
    %68 = tpu.reciprocal %67 {approx = true} : vector<8x8x1xf32> -> vector<8x8x1xf32>
    %69 = vector.broadcast %68 : vector<8x8x1xf32> to vector<8x8x8xf32>
    %70 = arith.mulf %65, %69 : vector<8x8x8xf32>
    %71 = arith.truncf %70 : vector<8x8x8xf32> to vector<8x8x8xbf16>
    %72 = vector.extract_strided_slice %53 {offsets = [0, 0, 0], sizes = [8, 8, 8], strides = [1, 1, 1]} : vector<8x8x32xbf16> to vector<8x8x8xbf16>
    "tpu.trace_start"() <{level = 10 : i32, message = "bqk,bkd->bqd"}> : () -> ()
    %cst_30 = arith.constant dense<0.000000e+00> : vector<8x8x8xf32>
    %73 = tpu.matmul %71, %72, %cst_30 {dimension_numbers = #tpu.dot_dimension_numbers<[2], [1], [1], [2], [0, 0, 0, 1, 1, 2], [0], [0]>} : vector<8x8x8xbf16>, vector<8x8x8xbf16>, vector<8x8x8xf32> -> vector<8x8x8xf32>
    "tpu.trace_stop"() : () -> ()
    %74 = vector.shape_cast %73 : vector<8x8x8xf32> to vector<64x8xf32>
    %75 = arith.truncf %74 : vector<64x8xf32> to vector<64x8xbf16>
    %c0_31 = arith.constant 0 : index
    %c0_32 = arith.constant 0 : index
    %c0_33 = arith.constant 0 : index
    %76 = vector.load %arg6[%c0_31, %c0_32, %c0_33] : memref<1x32x32xbf16, #tpu.memory_space<vmem>>, vector<1x8x32xbf16>
    %77 = vector.shape_cast %76 : vector<1x8x32xbf16> to vector<8x32xbf16>
    %cst_34 = arith.constant dense<0.000000e+00> : vector<64x32xf32>
    %78 = tpu.matmul %75, %77, %cst_34 {dimension_numbers = #tpu.dot_dimension_numbers<[1], [0], [0], [1], [0, 0, 1, 1], [], []>} : vector<64x8xbf16>, vector<8x32xbf16>, vector<64x32xf32> -> vector<64x32xf32>
    %79 = arith.addf %54, %78 : vector<64x32xf32>
    %80 = vector.extract_strided_slice %47 {offsets = [0, 0, 8], sizes = [8, 8, 8], strides = [1, 1, 1]} : vector<8x8x32xbf16> to vector<8x8x8xbf16>
    %81 = vector.extract_strided_slice %50 {offsets = [0, 0, 8], sizes = [8, 8, 8], strides = [1, 1, 1]} : vector<8x8x32xbf16> to vector<8x8x8xbf16>
    "tpu.trace_start"() <{level = 10 : i32, message = "bqd,bkd->bqk"}> : () -> ()
    %cst_35 = arith.constant dense<0.000000e+00> : vector<8x8x8xf32>
    %82 = tpu.matmul %80, %81, %cst_35 {dimension_numbers = #tpu.dot_dimension_numbers<[2], [2], [1], [1], [0, 0, 0, 1, 1, 1], [0], [0]>} : vector<8x8x8xbf16>, vector<8x8x8xbf16>, vector<8x8x8xf32> -> vector<8x8x8xf32>
    "tpu.trace_stop"() : () -> ()
    %cst_36 = arith.constant 0.353553385 : f32
    %83 = vector.broadcast %cst_36 : f32 to vector<8x8x8xf32>
    %84 = arith.mulf %82, %83 : vector<8x8x8xf32>
    %85 = arith.addf %84, %8 : vector<8x8x8xf32>
    %cst_37 = arith.constant dense<0xFF800000> : vector<8x8xf32>
    %86 = vector.multi_reduction <maximumf>, %85, %cst_37 [2] : vector<8x8x8xf32> to vector<8x8xf32>
    %87 = vector.shape_cast %86 : vector<8x8xf32> to vector<8x8x1xf32>
    %88 = vector.broadcast %87 : vector<8x8x1xf32> to vector<8x8x8xf32>
    %89 = arith.subf %85, %88 : vector<8x8x8xf32>
    %90 = math.exp %89 : vector<8x8x8xf32>
    %cst_38 = arith.constant dense<0.000000e+00> : vector<8x8xf32>
    %91 = vector.multi_reduction <add>, %90, %cst_38 [2] : vector<8x8x8xf32> to vector<8x8xf32>
    %92 = vector.shape_cast %91 : vector<8x8xf32> to vector<8x8x1xf32>
    %93 = tpu.reciprocal %92 {approx = true} : vector<8x8x1xf32> -> vector<8x8x1xf32>
    %94 = vector.broadcast %93 : vector<8x8x1xf32> to vector<8x8x8xf32>
    %95 = arith.mulf %90, %94 : vector<8x8x8xf32>
    %96 = arith.truncf %95 : vector<8x8x8xf32> to vector<8x8x8xbf16>
    %97 = vector.extract_strided_slice %53 {offsets = [0, 0, 8], sizes = [8, 8, 8], strides = [1, 1, 1]} : vector<8x8x32xbf16> to vector<8x8x8xbf16>
    "tpu.trace_start"() <{level = 10 : i32, message = "bqk,bkd->bqd"}> : () -> ()
    %cst_39 = arith.constant dense<0.000000e+00> : vector<8x8x8xf32>
    %98 = tpu.matmul %96, %97, %cst_39 {dimension_numbers = #tpu.dot_dimension_numbers<[2], [1], [1], [2], [0, 0, 0, 1, 1, 2], [0], [0]>} : vector<8x8x8xbf16>, vector<8x8x8xbf16>, vector<8x8x8xf32> -> vector<8x8x8xf32>
    "tpu.trace_stop"() : () -> ()
    %99 = vector.shape_cast %98 : vector<8x8x8xf32> to vector<64x8xf32>
    %100 = arith.truncf %99 : vector<64x8xf32> to vector<64x8xbf16>
    %c0_40 = arith.constant 0 : index
    %c8 = arith.constant 8 : index
    %c0_41 = arith.constant 0 : index
    %101 = vector.load %arg6[%c0_40, %c8, %c0_41] : memref<1x32x32xbf16, #tpu.memory_space<vmem>>, vector<1x8x32xbf16>
    %102 = vector.shape_cast %101 : vector<1x8x32xbf16> to vector<8x32xbf16>
    %cst_42 = arith.constant dense<0.000000e+00> : vector<64x32xf32>
    %103 = tpu.matmul %100, %102, %cst_42 {dimension_numbers = #tpu.dot_dimension_numbers<[1], [0], [0], [1], [0, 0, 1, 1], [], []>} : vector<64x8xbf16>, vector<8x32xbf16>, vector<64x32xf32> -> vector<64x32xf32>
    %104 = arith.addf %79, %103 : vector<64x32xf32>
    %105 = vector.extract_strided_slice %47 {offsets = [0, 0, 16], sizes = [8, 8, 8], strides = [1, 1, 1]} : vector<8x8x32xbf16> to vector<8x8x8xbf16>
    %106 = vector.extract_strided_slice %50 {offsets = [0, 0, 16], sizes = [8, 8, 8], strides = [1, 1, 1]} : vector<8x8x32xbf16> to vector<8x8x8xbf16>
    "tpu.trace_start"() <{level = 10 : i32, message = "bqd,bkd->bqk"}> : () -> ()
    %cst_43 = arith.constant dense<0.000000e+00> : vector<8x8x8xf32>
    %107 = tpu.matmul %105, %106, %cst_43 {dimension_numbers = #tpu.dot_dimension_numbers<[2], [2], [1], [1], [0, 0, 0, 1, 1, 1], [0], [0]>} : vector<8x8x8xbf16>, vector<8x8x8xbf16>, vector<8x8x8xf32> -> vector<8x8x8xf32>
    "tpu.trace_stop"() : () -> ()
    %cst_44 = arith.constant 0.353553385 : f32
    %108 = vector.broadcast %cst_44 : f32 to vector<8x8x8xf32>
    %109 = arith.mulf %107, %108 : vector<8x8x8xf32>
    %110 = arith.addf %109, %8 : vector<8x8x8xf32>
    %cst_45 = arith.constant dense<0xFF800000> : vector<8x8xf32>
    %111 = vector.multi_reduction <maximumf>, %110, %cst_45 [2] : vector<8x8x8xf32> to vector<8x8xf32>
    %112 = vector.shape_cast %111 : vector<8x8xf32> to vector<8x8x1xf32>
    %113 = vector.broadcast %112 : vector<8x8x1xf32> to vector<8x8x8xf32>
    %114 = arith.subf %110, %113 : vector<8x8x8xf32>
    %115 = math.exp %114 : vector<8x8x8xf32>
    %cst_46 = arith.constant dense<0.000000e+00> : vector<8x8xf32>
    %116 = vector.multi_reduction <add>, %115, %cst_46 [2] : vector<8x8x8xf32> to vector<8x8xf32>
    %117 = vector.shape_cast %116 : vector<8x8xf32> to vector<8x8x1xf32>
    %118 = tpu.reciprocal %117 {approx = true} : vector<8x8x1xf32> -> vector<8x8x1xf32>
    %119 = vector.broadcast %118 : vector<8x8x1xf32> to vector<8x8x8xf32>
    %120 = arith.mulf %115, %119 : vector<8x8x8xf32>
    %121 = arith.truncf %120 : vector<8x8x8xf32> to vector<8x8x8xbf16>
    %122 = vector.extract_strided_slice %53 {offsets = [0, 0, 16], sizes = [8, 8, 8], strides = [1, 1, 1]} : vector<8x8x32xbf16> to vector<8x8x8xbf16>
    "tpu.trace_start"() <{level = 10 : i32, message = "bqk,bkd->bqd"}> : () -> ()
    %cst_47 = arith.constant dense<0.000000e+00> : vector<8x8x8xf32>
    %123 = tpu.matmul %121, %122, %cst_47 {dimension_numbers = #tpu.dot_dimension_numbers<[2], [1], [1], [2], [0, 0, 0, 1, 1, 2], [0], [0]>} : vector<8x8x8xbf16>, vector<8x8x8xbf16>, vector<8x8x8xf32> -> vector<8x8x8xf32>
    "tpu.trace_stop"() : () -> ()
    %124 = vector.shape_cast %123 : vector<8x8x8xf32> to vector<64x8xf32>
    %125 = arith.truncf %124 : vector<64x8xf32> to vector<64x8xbf16>
    %c0_48 = arith.constant 0 : index
    %c16 = arith.constant 16 : index
    %c0_49 = arith.constant 0 : index
    %126 = vector.load %arg6[%c0_48, %c16, %c0_49] : memref<1x32x32xbf16, #tpu.memory_space<vmem>>, vector<1x8x32xbf16>
    %127 = vector.shape_cast %126 : vector<1x8x32xbf16> to vector<8x32xbf16>
    %cst_50 = arith.constant dense<0.000000e+00> : vector<64x32xf32>
    %128 = tpu.matmul %125, %127, %cst_50 {dimension_numbers = #tpu.dot_dimension_numbers<[1], [0], [0], [1], [0, 0, 1, 1], [], []>} : vector<64x8xbf16>, vector<8x32xbf16>, vector<64x32xf32> -> vector<64x32xf32>
    %129 = arith.addf %104, %128 : vector<64x32xf32>
    %130 = vector.extract_strided_slice %47 {offsets = [0, 0, 24], sizes = [8, 8, 8], strides = [1, 1, 1]} : vector<8x8x32xbf16> to vector<8x8x8xbf16>
    %131 = vector.extract_strided_slice %50 {offsets = [0, 0, 24], sizes = [8, 8, 8], strides = [1, 1, 1]} : vector<8x8x32xbf16> to vector<8x8x8xbf16>
    "tpu.trace_start"() <{level = 10 : i32, message = "bqd,bkd->bqk"}> : () -> ()
    %cst_51 = arith.constant dense<0.000000e+00> : vector<8x8x8xf32>
    %132 = tpu.matmul %130, %131, %cst_51 {dimension_numbers = #tpu.dot_dimension_numbers<[2], [2], [1], [1], [0, 0, 0, 1, 1, 1], [0], [0]>} : vector<8x8x8xbf16>, vector<8x8x8xbf16>, vector<8x8x8xf32> -> vector<8x8x8xf32>
    "tpu.trace_stop"() : () -> ()
    %cst_52 = arith.constant 0.353553385 : f32
    %133 = vector.broadcast %cst_52 : f32 to vector<8x8x8xf32>
    %134 = arith.mulf %132, %133 : vector<8x8x8xf32>
    %135 = arith.addf %134, %8 : vector<8x8x8xf32>
    %cst_53 = arith.constant dense<0xFF800000> : vector<8x8xf32>
    %136 = vector.multi_reduction <maximumf>, %135, %cst_53 [2] : vector<8x8x8xf32> to vector<8x8xf32>
    %137 = vector.shape_cast %136 : vector<8x8xf32> to vector<8x8x1xf32>
    %138 = vector.broadcast %137 : vector<8x8x1xf32> to vector<8x8x8xf32>
    %139 = arith.subf %135, %138 : vector<8x8x8xf32>
    %140 = math.exp %139 : vector<8x8x8xf32>
    %cst_54 = arith.constant dense<0.000000e+00> : vector<8x8xf32>
    %141 = vector.multi_reduction <add>, %140, %cst_54 [2] : vector<8x8x8xf32> to vector<8x8xf32>
    %142 = vector.shape_cast %141 : vector<8x8xf32> to vector<8x8x1xf32>
    %143 = tpu.reciprocal %142 {approx = true} : vector<8x8x1xf32> -> vector<8x8x1xf32>
    %144 = vector.broadcast %143 : vector<8x8x1xf32> to vector<8x8x8xf32>
    %145 = arith.mulf %140, %144 : vector<8x8x8xf32>
    %146 = arith.truncf %145 : vector<8x8x8xf32> to vector<8x8x8xbf16>
    %147 = vector.extract_strided_slice %53 {offsets = [0, 0, 24], sizes = [8, 8, 8], strides = [1, 1, 1]} : vector<8x8x32xbf16> to vector<8x8x8xbf16>
    "tpu.trace_start"() <{level = 10 : i32, message = "bqk,bkd->bqd"}> : () -> ()
    %cst_55 = arith.constant dense<0.000000e+00> : vector<8x8x8xf32>
    %148 = tpu.matmul %146, %147, %cst_55 {dimension_numbers = #tpu.dot_dimension_numbers<[2], [1], [1], [2], [0, 0, 0, 1, 1, 2], [0], [0]>} : vector<8x8x8xbf16>, vector<8x8x8xbf16>, vector<8x8x8xf32> -> vector<8x8x8xf32>
    "tpu.trace_stop"() : () -> ()
    %149 = vector.shape_cast %148 : vector<8x8x8xf32> to vector<64x8xf32>
    %150 = arith.truncf %149 : vector<64x8xf32> to vector<64x8xbf16>
    %c0_56 = arith.constant 0 : index
    %c24 = arith.constant 24 : index
    %c0_57 = arith.constant 0 : index
    %151 = vector.load %arg6[%c0_56, %c24, %c0_57] : memref<1x32x32xbf16, #tpu.memory_space<vmem>>, vector<1x8x32xbf16>
    %152 = vector.shape_cast %151 : vector<1x8x32xbf16> to vector<8x32xbf16>
    %cst_58 = arith.constant dense<0.000000e+00> : vector<64x32xf32>
    %153 = tpu.matmul %150, %152, %cst_58 {dimension_numbers = #tpu.dot_dimension_numbers<[1], [0], [0], [1], [0, 0, 1, 1], [], []>} : vector<64x8xbf16>, vector<8x32xbf16>, vector<64x32xf32> -> vector<64x32xf32>
    %154 = arith.addf %129, %153 : vector<64x32xf32>
    %155 = arith.addf %3, %154 : vector<64x32xf32>
    %c0_59 = arith.constant 0 : index
    %c0_60 = arith.constant 0 : index
    %c0_61 = arith.constant 0 : index
    %156 = vector.load %arg7[%c0_59, %c0_60, %c0_61] : memref<1x1x32xf32, #tpu.memory_space<vmem>>, vector<1x1x32xf32>
    %157 = vector.shape_cast %156 : vector<1x1x32xf32> to vector<1x32xf32>
    %158 = vector.broadcast %157 : vector<1x32xf32> to vector<64x32xf32>
    %159 = arith.addf %155, %158 : vector<64x32xf32>
    %c0_62 = arith.constant 0 : index
    %c0_63 = arith.constant 0 : index
    %c0_64 = arith.constant 0 : index
    %160 = vector.load %arg14[%c0_62, %c0_63, %c0_64] : memref<1x1x32xf32, #tpu.memory_space<vmem>>, vector<1x1x32xf32>
    %161 = vector.shape_cast %160 : vector<1x1x32xf32> to vector<1x32xf32>
    %c0_65 = arith.constant 0 : index
    %c0_66 = arith.constant 0 : index
    %c0_67 = arith.constant 0 : index
    %162 = vector.load %arg15[%c0_65, %c0_66, %c0_67] : memref<1x1x32xf32, #tpu.memory_space<vmem>>, vector<1x1x32xf32>
    %163 = vector.shape_cast %162 : vector<1x1x32xf32> to vector<1x32xf32>
    %cst_68 = arith.constant dense<0.000000e+00> : vector<64xf32>
    %164 = vector.multi_reduction <add>, %159, %cst_68 [1] : vector<64x32xf32> to vector<64xf32>
    %165 = vector.shape_cast %164 : vector<64xf32> to vector<64x1xf32>
    %cst_69 = arith.constant 3.200000e+01 : f32
    %166 = vector.broadcast %cst_69 : f32 to vector<64x1xf32>
    %167 = arith.divf %165, %166 : vector<64x1xf32>
    %168 = arith.mulf %159, %159 : vector<64x32xf32>
    %cst_70 = arith.constant dense<0.000000e+00> : vector<64xf32>
    %169 = vector.multi_reduction <add>, %168, %cst_70 [1] : vector<64x32xf32> to vector<64xf32>
    %170 = vector.shape_cast %169 : vector<64xf32> to vector<64x1xf32>
    %cst_71 = arith.constant 3.200000e+01 : f32
    %171 = vector.broadcast %cst_71 : f32 to vector<64x1xf32>
    %172 = arith.divf %170, %171 : vector<64x1xf32>
    %173 = arith.mulf %167, %167 : vector<64x1xf32>
    %174 = arith.subf %172, %173 : vector<64x1xf32>
    %cst_72 = arith.constant 0.000000e+00 : f32
    %175 = vector.broadcast %cst_72 : f32 to vector<64x1xf32>
    %176 = arith.maximumf %174, %175 : vector<64x1xf32>
    %177 = vector.broadcast %167 : vector<64x1xf32> to vector<64x32xf32>
    %178 = arith.subf %159, %177 : vector<64x32xf32>
    %cst_73 = arith.constant 9.99999974E-6 : f32
    %179 = vector.broadcast %cst_73 : f32 to vector<64x1xf32>
    %180 = arith.addf %176, %179 : vector<64x1xf32>
    %181 = math.rsqrt %180 : vector<64x1xf32>
    %182 = vector.broadcast %181 : vector<64x1xf32> to vector<64x32xf32>
    %183 = arith.mulf %178, %182 : vector<64x32xf32>
    %184 = vector.broadcast %161 : vector<1x32xf32> to vector<64x32xf32>
    %185 = arith.mulf %183, %184 : vector<64x32xf32>
    %186 = vector.broadcast %163 : vector<1x32xf32> to vector<64x32xf32>
    %187 = arith.addf %185, %186 : vector<64x32xf32>
    %188 = arith.truncf %187 : vector<64x32xf32> to vector<64x32xbf16>
    %c0_74 = arith.constant 0 : index
    %c0_75 = arith.constant 0 : index
    %c0_76 = arith.constant 0 : index
    %189 = vector.load %arg8[%c0_74, %c0_75, %c0_76] : memref<1x32x128xbf16, #tpu.memory_space<vmem>>, vector<1x32x128xbf16>
    %190 = vector.shape_cast %189 : vector<1x32x128xbf16> to vector<32x128xbf16>
    %cst_77 = arith.constant dense<0.000000e+00> : vector<64x128xf32>
    %191 = tpu.matmul %188, %190, %cst_77 {dimension_numbers = #tpu.dot_dimension_numbers<[1], [0], [0], [1], [0, 0, 1, 1], [], []>} : vector<64x32xbf16>, vector<32x128xbf16>, vector<64x128xf32> -> vector<64x128xf32>
    %c0_78 = arith.constant 0 : index
    %c0_79 = arith.constant 0 : index
    %c0_80 = arith.constant 0 : index
    %192 = vector.load %arg9[%c0_78, %c0_79, %c0_80] : memref<1x1x128xf32, #tpu.memory_space<vmem>>, vector<1x1x128xf32>
    %193 = vector.shape_cast %192 : vector<1x1x128xf32> to vector<1x128xf32>
    %194 = vector.broadcast %193 : vector<1x128xf32> to vector<64x128xf32>
    %195 = arith.addf %191, %194 : vector<64x128xf32>
    %cst_81 = arith.constant 0.000000e+00 : f32
    %196 = vector.broadcast %cst_81 : f32 to vector<64x128xf32>
    %197 = arith.maximumf %195, %196 : vector<64x128xf32>
    %198 = arith.truncf %197 : vector<64x128xf32> to vector<64x128xbf16>
    %c0_82 = arith.constant 0 : index
    %c0_83 = arith.constant 0 : index
    %c0_84 = arith.constant 0 : index
    %199 = vector.load %arg10[%c0_82, %c0_83, %c0_84] : memref<1x128x32xbf16, #tpu.memory_space<vmem>>, vector<1x128x32xbf16>
    %200 = vector.shape_cast %199 : vector<1x128x32xbf16> to vector<128x32xbf16>
    %cst_85 = arith.constant dense<0.000000e+00> : vector<64x32xf32>
    %201 = tpu.matmul %198, %200, %cst_85 {dimension_numbers = #tpu.dot_dimension_numbers<[1], [0], [0], [1], [0, 0, 1, 1], [], []>} : vector<64x128xbf16>, vector<128x32xbf16>, vector<64x32xf32> -> vector<64x32xf32>
    %c0_86 = arith.constant 0 : index
    %c0_87 = arith.constant 0 : index
    %c0_88 = arith.constant 0 : index
    %202 = vector.load %arg11[%c0_86, %c0_87, %c0_88] : memref<1x1x32xf32, #tpu.memory_space<vmem>>, vector<1x1x32xf32>
    %203 = vector.shape_cast %202 : vector<1x1x32xf32> to vector<1x32xf32>
    %204 = vector.broadcast %203 : vector<1x32xf32> to vector<64x32xf32>
    %205 = arith.addf %201, %204 : vector<64x32xf32>
    %206 = arith.addf %159, %205 : vector<64x32xf32>
    %c0_89 = arith.constant 0 : index
    %c0_90 = arith.constant 0 : index
    %207 = vector.load %arg19[%c0_89, %c0_90] : memref<64x32xf32, #tpu.memory_space<vmem>>, vector<64x32xf32>
    tpu.vector_store %arg19[%c0_89, %c0_90], %206 {strides = array<i32>} : memref<64x32xf32, #tpu.memory_space<vmem>>, vector<64x32xf32>,
    %c1_i32 = arith.constant 1 : i32
    %208 = arith.cmpi eq, %arg1, %c1_i32 : i32
    %209 = arith.extui %208 : i1 to i32
    %c0_i32_91 = arith.constant 0 : i32
    %210 = arith.cmpi ne, %209, %c0_i32_91 : i32
    scf.if %210 {
      %c0_92 = arith.constant 0 : index
      %c0_93 = arith.constant 0 : index
      %211 = vector.load %arg19[%c0_92, %c0_93] : memref<64x32xf32, #tpu.memory_space<vmem>>, vector<64x32xf32>
      %c0_94 = arith.constant 0 : index
      %c0_95 = arith.constant 0 : index
      %212 = vector.load %arg16[%c0_94, %c0_95] : memref<1x32xf32, #tpu.memory_space<vmem>>, vector<1x32xf32>
      %c0_96 = arith.constant 0 : index
      %c0_97 = arith.constant 0 : index
      %213 = vector.load %arg17[%c0_96, %c0_97] : memref<1x32xf32, #tpu.memory_space<vmem>>, vector<1x32xf32>
      %cst_98 = arith.constant dense<0.000000e+00> : vector<64xf32>
      %214 = vector.multi_reduction <add>, %211, %cst_98 [1] : vector<64x32xf32> to vector<64xf32>
      %215 = vector.shape_cast %214 : vector<64xf32> to vector<64x1xf32>
      %cst_99 = arith.constant 3.200000e+01 : f32
      %216 = vector.broadcast %cst_99 : f32 to vector<64x1xf32>
      %217 = arith.divf %215, %216 : vector<64x1xf32>
      %218 = arith.mulf %211, %211 : vector<64x32xf32>
      %cst_100 = arith.constant dense<0.000000e+00> : vector<64xf32>
      %219 = vector.multi_reduction <add>, %218, %cst_100 [1] : vector<64x32xf32> to vector<64xf32>
      %220 = vector.shape_cast %219 : vector<64xf32> to vector<64x1xf32>
      %cst_101 = arith.constant 3.200000e+01 : f32
      %221 = vector.broadcast %cst_101 : f32 to vector<64x1xf32>
      %222 = arith.divf %220, %221 : vector<64x1xf32>
      %223 = arith.mulf %217, %217 : vector<64x1xf32>
      %224 = arith.subf %222, %223 : vector<64x1xf32>
      %cst_102 = arith.constant 0.000000e+00 : f32
      %225 = vector.broadcast %cst_102 : f32 to vector<64x1xf32>
      %226 = arith.maximumf %224, %225 : vector<64x1xf32>
      %227 = vector.broadcast %217 : vector<64x1xf32> to vector<64x32xf32>
      %228 = arith.subf %211, %227 : vector<64x32xf32>
      %cst_103 = arith.constant 9.99999974E-6 : f32
      %229 = vector.broadcast %cst_103 : f32 to vector<64x1xf32>
      %230 = arith.addf %226, %229 : vector<64x1xf32>
      %231 = math.rsqrt %230 : vector<64x1xf32>
      %232 = vector.broadcast %231 : vector<64x1xf32> to vector<64x32xf32>
      %233 = arith.mulf %228, %232 : vector<64x32xf32>
      %234 = vector.broadcast %212 : vector<1x32xf32> to vector<64x32xf32>
      %235 = arith.mulf %233, %234 : vector<64x32xf32>
      %236 = vector.broadcast %213 : vector<1x32xf32> to vector<64x32xf32>
      %237 = arith.addf %235, %236 : vector<64x32xf32>
      %238 = vector.shape_cast %237 : vector<64x32xf32> to vector<8x8x32xf32>
      %cst_104 = arith.constant dense<0.000000e+00> : vector<8x32xf32>
      %239 = vector.multi_reduction <add>, %238, %cst_104 [1] : vector<8x8x32xf32> to vector<8x32xf32>
      %c0_105 = arith.constant 0 : index
      %c0_106 = arith.constant 0 : index
      %240 = vector.load %arg18[%c0_105, %c0_106] : memref<8x32xf32, #tpu.memory_space<vmem>>, vector<8x32xf32>
      tpu.vector_store %arg18[%c0_105, %c0_106], %239 {strides = array<i32>} : memref<8x32xf32, #tpu.memory_space<vmem>>, vector<8x32xf32>,
    } else {
    }
    return
  }
  func.func @transform_0(%arg0: i32, %arg1: i32) -> (i32, i32, i32) {
    %c0_i32 = arith.constant 0 : i32
    %c0_i32_0 = arith.constant 0 : i32
    %c0_i32_1 = arith.constant 0 : i32
    return %arg0, %c0_i32, %c0_i32_0 : i32, i32, i32
  }
  func.func @transform_1(%arg0: i32, %arg1: i32) -> (i32, i32, i32) {
    %c0_i32 = arith.constant 0 : i32
    %c0_i32_0 = arith.constant 0 : i32
    %c0_i32_1 = arith.constant 0 : i32
    return %arg0, %c0_i32, %c0_i32_0 : i32, i32, i32
  }
  func.func @transform_2(%arg0: i32, %arg1: i32) -> (i32, i32, i32) {
    %c0_i32 = arith.constant 0 : i32
    %c0_i32_0 = arith.constant 0 : i32
    %c0_i32_1 = arith.constant 0 : i32
    return %arg1, %c0_i32, %c0_i32_0 : i32, i32, i32
  }
  func.func @transform_3(%arg0: i32, %arg1: i32) -> (i32, i32, i32) {
    %c0_i32 = arith.constant 0 : i32
    %c0_i32_0 = arith.constant 0 : i32
    %c0_i32_1 = arith.constant 0 : i32
    return %arg1, %c0_i32, %c0_i32_0 : i32, i32, i32
  }
  func.func @transform_4(%arg0: i32, %arg1: i32) -> (i32, i32, i32) {
    %c0_i32 = arith.constant 0 : i32
    %c0_i32_0 = arith.constant 0 : i32
    %c0_i32_1 = arith.constant 0 : i32
    return %arg1, %c0_i32, %c0_i32_0 : i32, i32, i32
  }
  func.func @transform_5(%arg0: i32, %arg1: i32) -> (i32, i32, i32) {
    %c0_i32 = arith.constant 0 : i32
    %c0_i32_0 = arith.constant 0 : i32
    %c0_i32_1 = arith.constant 0 : i32
    return %arg1, %c0_i32, %c0_i32_0 : i32, i32, i32
  }
  func.func @transform_6(%arg0: i32, %arg1: i32) -> (i32, i32, i32) {
    %c0_i32 = arith.constant 0 : i32
    %c0_i32_0 = arith.constant 0 : i32
    %c0_i32_1 = arith.constant 0 : i32
    return %arg1, %c0_i32, %c0_i32_0 : i32, i32, i32
  }
  func.func @transform_7(%arg0: i32, %arg1: i32) -> (i32, i32, i32) {
    %c0_i32 = arith.constant 0 : i32
    %c0_i32_0 = arith.constant 0 : i32
    %c0_i32_1 = arith.constant 0 : i32
    return %arg1, %c0_i32, %c0_i32_0 : i32, i32, i32
  }
  func.func @transform_8(%arg0: i32, %arg1: i32) -> (i32, i32, i32) {
    %c0_i32 = arith.constant 0 : i32
    %c0_i32_0 = arith.constant 0 : i32
    %c0_i32_1 = arith.constant 0 : i32
    return %arg1, %c0_i32, %c0_i32_0 : i32, i32, i32
  }
  func.func @transform_9(%arg0: i32, %arg1: i32) -> (i32, i32, i32) {
    %c0_i32 = arith.constant 0 : i32
    %c0_i32_0 = arith.constant 0 : i32
    %c0_i32_1 = arith.constant 0 : i32
    return %arg1, %c0_i32, %c0_i32_0 : i32, i32, i32
  }
  func.func @transform_10(%arg0: i32, %arg1: i32) -> (i32, i32, i32) {
    %c0_i32 = arith.constant 0 : i32
    %c0_i32_0 = arith.constant 0 : i32
    %c0_i32_1 = arith.constant 0 : i32
    return %arg1, %c0_i32, %c0_i32_0 : i32, i32, i32
  }
  func.func @transform_11(%arg0: i32, %arg1: i32) -> (i32, i32, i32) {
    %c0_i32 = arith.constant 0 : i32
    %c0_i32_0 = arith.constant 0 : i32
    %c0_i32_1 = arith.constant 0 : i32
    return %arg1, %c0_i32, %c0_i32_0 : i32, i32, i32
  }
  func.func @transform_12(%arg0: i32, %arg1: i32) -> (i32, i32, i32) {
    %c0_i32 = arith.constant 0 : i32
    %c0_i32_0 = arith.constant 0 : i32
    %c0_i32_1 = arith.constant 0 : i32
    return %arg1, %c0_i32, %c0_i32_0 : i32, i32, i32
  }
  func.func @transform_13(%arg0: i32, %arg1: i32) -> (i32, i32, i32) {
    %c0_i32 = arith.constant 0 : i32
    %c0_i32_0 = arith.constant 0 : i32
    %c0_i32_1 = arith.constant 0 : i32
    return %arg1, %c0_i32, %c0_i32_0 : i32, i32, i32
  }
  func.func @transform_14(%arg0: i32, %arg1: i32) -> (i32, i32) {
    %c0_i32 = arith.constant 0 : i32
    %c0_i32_0 = arith.constant 0 : i32
    %c0_i32_1 = arith.constant 0 : i32
    return %c0_i32, %c0_i32_0 : i32, i32
  }
  func.func @transform_15(%arg0: i32, %arg1: i32) -> (i32, i32) {
    %c0_i32 = arith.constant 0 : i32
    %c0_i32_0 = arith.constant 0 : i32
    %c0_i32_1 = arith.constant 0 : i32
    return %c0_i32, %c0_i32_0 : i32, i32
  }
  func.func @transform_16(%arg0: i32, %arg1: i32) -> (i32, i32) {
    %c0_i32 = arith.constant 0 : i32
    %c0_i32_0 = arith.constant 0 : i32
    return %arg0, %c0_i32 : i32, i32
  }
}

module attributes {stable_mosaic.version = 11 : i64} {
  func.func @_bilstm_kernel(%arg0: i32, %arg1: memref<8x8x32xbf16, #tpu.memory_space<vmem>>, %arg2: memref<1x32x128xbf16, #tpu.memory_space<vmem>>, %arg3: memref<1x32x128xbf16, #tpu.memory_space<vmem>>, %arg4: memref<1x1x128xf32, #tpu.memory_space<vmem>>, %arg5: memref<1x8x8x32xf32, #tpu.memory_space<vmem>>, %arg6: memref<1x8x32xf32, #tpu.memory_space<vmem>>, %arg7: memref<1x8x32xf32, #tpu.memory_space<vmem>>, %arg8: memref<8x8x128xf32, #tpu.memory_space<vmem>>) attributes {dimension_semantics = [#tpu.dimension_semantics<parallel>], iteration_bounds = array<i64: 2>, scalar_prefetch = 0 : i64, scratch_operands = 1 : i64, tpu.core_type = #tpu.core_type<tc>, window_params = [{pipeline_mode = #tpu.pipeline_mode<synchronous>, transform_indices = @transform_0, window_bounds = array<i64: 8, 8, 32>}, {transform_indices = @transform_1, window_bounds = array<i64: 1, 32, 128>}, {transform_indices = @transform_2, window_bounds = array<i64: 1, 32, 128>}, {transform_indices = @transform_3, window_bounds = array<i64: 1, 1, 128>}, {transform_indices = @transform_4, window_bounds = array<i64: 1, 8, 8, 32>}, {transform_indices = @transform_5, window_bounds = array<i64: 1, 8, 32>}, {transform_indices = @transform_6, window_bounds = array<i64: 1, 8, 32>}]} {
    %c0 = arith.constant 0 : index
    %c0_0 = arith.constant 0 : index
    %c0_1 = arith.constant 0 : index
    %0 = vector.load %arg1[%c0, %c0_0, %c0_1] : memref<8x8x32xbf16, #tpu.memory_space<vmem>>, vector<8x8x32xbf16>
    %1 = vector.shape_cast %0 : vector<8x8x32xbf16> to vector<64x32xbf16>
    %c0_2 = arith.constant 0 : index
    %c0_3 = arith.constant 0 : index
    %c0_4 = arith.constant 0 : index
    %2 = vector.load %arg2[%c0_2, %c0_3, %c0_4] : memref<1x32x128xbf16, #tpu.memory_space<vmem>>, vector<1x32x128xbf16>
    %3 = vector.shape_cast %2 : vector<1x32x128xbf16> to vector<32x128xbf16>
    %cst = arith.constant dense<0.000000e+00> : vector<64x128xf32>
    %4 = tpu.matmul %1, %3, %cst {dimension_numbers = #tpu.dot_dimension_numbers<[1], [0], [0], [1], [0, 0, 1, 1], [], []>} : vector<64x32xbf16>, vector<32x128xbf16>, vector<64x128xf32> -> vector<64x128xf32>
    %c0_5 = arith.constant 0 : index
    %c0_6 = arith.constant 0 : index
    %c0_7 = arith.constant 0 : index
    %5 = vector.load %arg4[%c0_5, %c0_6, %c0_7] : memref<1x1x128xf32, #tpu.memory_space<vmem>>, vector<1x1x128xf32>
    %6 = vector.shape_cast %5 : vector<1x1x128xf32> to vector<1x128xf32>
    %7 = vector.broadcast %6 : vector<1x128xf32> to vector<64x128xf32>
    %8 = arith.addf %4, %7 : vector<64x128xf32>
    %9 = vector.shape_cast %8 : vector<64x128xf32> to vector<8x8x128xf32>
    %c0_8 = arith.constant 0 : index
    %c0_9 = arith.constant 0 : index
    %c0_10 = arith.constant 0 : index
    %10 = vector.load %arg8[%c0_8, %c0_9, %c0_10] : memref<8x8x128xf32, #tpu.memory_space<vmem>>, vector<8x8x128xf32>
    tpu.vector_store %arg8[%c0_8, %c0_9, %c0_10], %9 {strides = array<i32>} : memref<8x8x128xf32, #tpu.memory_space<vmem>>, vector<8x8x128xf32>,
    %c0_11 = arith.constant 0 : index
    %c0_12 = arith.constant 0 : index
    %c0_13 = arith.constant 0 : index
    %11 = vector.load %arg3[%c0_11, %c0_12, %c0_13] : memref<1x32x128xbf16, #tpu.memory_space<vmem>>, vector<1x32x128xbf16>
    %12 = vector.shape_cast %11 : vector<1x32x128xbf16> to vector<32x128xbf16>
    %c1_i32 = arith.constant 1 : i32
    %13 = arith.cmpi eq, %arg0, %c1_i32 : i32
    %cst_14 = arith.constant 0.000000e+00 : f32
    %14 = vector.broadcast %cst_14 : f32 to vector<8x32xf32>
    %c0_i32 = arith.constant 0 : i32
    %c7_i32 = arith.constant 7 : i32
    %15 = arith.subi %c7_i32, %c0_i32 : i32
    %16 = arith.select %13, %15, %c0_i32 : i32
    %17 = arith.index_cast %16 : i32 to index
    %c0_15 = arith.constant 0 : index
    %c0_16 = arith.constant 0 : index
    %18 = vector.load %arg8[%17, %c0_15, %c0_16] : memref<8x8x128xf32, #tpu.memory_space<vmem>>, vector<1x8x128xf32>
    %19 = vector.shape_cast %18 : vector<1x8x128xf32> to vector<8x128xf32>
    %20 = arith.truncf %14 : vector<8x32xf32> to vector<8x32xbf16>
    %cst_17 = arith.constant dense<0.000000e+00> : vector<8x128xf32>
    %21 = tpu.matmul %20, %12, %cst_17 {dimension_numbers = #tpu.dot_dimension_numbers<[1], [0], [0], [1], [0, 0, 1, 1], [], []>} : vector<8x32xbf16>, vector<32x128xbf16>, vector<8x128xf32> -> vector<8x128xf32>
    %22 = arith.addf %19, %21 : vector<8x128xf32>
    %23 = vector.extract_strided_slice %22 {offsets = [0, 0], sizes = [8, 32], strides = [1, 1]} : vector<8x128xf32> to vector<8x32xf32>
    %24 = arith.negf %23 : vector<8x32xf32>
    %25 = math.exp %24 : vector<8x32xf32>
    %cst_18 = arith.constant 1.000000e+00 : f32
    %26 = vector.broadcast %cst_18 : f32 to vector<8x32xf32>
    %27 = arith.addf %26, %25 : vector<8x32xf32>
    %28 = arith.divf %26, %27 : vector<8x32xf32>
    %29 = vector.extract_strided_slice %22 {offsets = [0, 32], sizes = [8, 32], strides = [1, 1]} : vector<8x128xf32> to vector<8x32xf32>
    %30 = arith.negf %29 : vector<8x32xf32>
    %31 = math.exp %30 : vector<8x32xf32>
    %cst_19 = arith.constant 1.000000e+00 : f32
    %32 = vector.broadcast %cst_19 : f32 to vector<8x32xf32>
    %33 = arith.addf %32, %31 : vector<8x32xf32>
    %34 = arith.divf %32, %33 : vector<8x32xf32>
    %35 = vector.extract_strided_slice %22 {offsets = [0, 64], sizes = [8, 32], strides = [1, 1]} : vector<8x128xf32> to vector<8x32xf32>
    %36 = math.tanh %35 : vector<8x32xf32>
    %37 = vector.extract_strided_slice %22 {offsets = [0, 96], sizes = [8, 32], strides = [1, 1]} : vector<8x128xf32> to vector<8x32xf32>
    %38 = arith.negf %37 : vector<8x32xf32>
    %39 = math.exp %38 : vector<8x32xf32>
    %cst_20 = arith.constant 1.000000e+00 : f32
    %40 = vector.broadcast %cst_20 : f32 to vector<8x32xf32>
    %41 = arith.addf %40, %39 : vector<8x32xf32>
    %42 = arith.divf %40, %41 : vector<8x32xf32>
    %43 = arith.mulf %34, %14 : vector<8x32xf32>
    %44 = arith.mulf %28, %36 : vector<8x32xf32>
    %45 = arith.addf %43, %44 : vector<8x32xf32>
    %46 = math.tanh %45 : vector<8x32xf32>
    %47 = arith.mulf %42, %46 : vector<8x32xf32>
    %c0_21 = arith.constant 0 : index
    %48 = arith.index_cast %16 : i32 to index
    %c0_22 = arith.constant 0 : index
    %c0_23 = arith.constant 0 : index
    %49 = vector.load %arg5[%c0_21, %48, %c0_22, %c0_23] : memref<1x8x8x32xf32, #tpu.memory_space<vmem>>, vector<1x1x8x32xf32>
    %50 = vector.shape_cast %49 : vector<1x1x8x32xf32> to vector<8x32xf32>
    %51 = vector.shape_cast %47 : vector<8x32xf32> to vector<1x1x8x32xf32>
    tpu.vector_store %arg5[%c0_21, %48, %c0_22, %c0_23], %51 {strides = array<i32>} : memref<1x8x8x32xf32, #tpu.memory_space<vmem>>, vector<1x1x8x32xf32>,
    %c1_i32_24 = arith.constant 1 : i32
    %c7_i32_25 = arith.constant 7 : i32
    %52 = arith.subi %c7_i32_25, %c1_i32_24 : i32
    %53 = arith.select %13, %52, %c1_i32_24 : i32
    %54 = arith.index_cast %53 : i32 to index
    %c0_26 = arith.constant 0 : index
    %c0_27 = arith.constant 0 : index
    %55 = vector.load %arg8[%54, %c0_26, %c0_27] : memref<8x8x128xf32, #tpu.memory_space<vmem>>, vector<1x8x128xf32>
    %56 = vector.shape_cast %55 : vector<1x8x128xf32> to vector<8x128xf32>
    %57 = arith.truncf %47 : vector<8x32xf32> to vector<8x32xbf16>
    %cst_28 = arith.constant dense<0.000000e+00> : vector<8x128xf32>
    %58 = tpu.matmul %57, %12, %cst_28 {dimension_numbers = #tpu.dot_dimension_numbers<[1], [0], [0], [1], [0, 0, 1, 1], [], []>} : vector<8x32xbf16>, vector<32x128xbf16>, vector<8x128xf32> -> vector<8x128xf32>
    %59 = arith.addf %56, %58 : vector<8x128xf32>
    %60 = vector.extract_strided_slice %59 {offsets = [0, 0], sizes = [8, 32], strides = [1, 1]} : vector<8x128xf32> to vector<8x32xf32>
    %61 = arith.negf %60 : vector<8x32xf32>
    %62 = math.exp %61 : vector<8x32xf32>
    %cst_29 = arith.constant 1.000000e+00 : f32
    %63 = vector.broadcast %cst_29 : f32 to vector<8x32xf32>
    %64 = arith.addf %63, %62 : vector<8x32xf32>
    %65 = arith.divf %63, %64 : vector<8x32xf32>
    %66 = vector.extract_strided_slice %59 {offsets = [0, 32], sizes = [8, 32], strides = [1, 1]} : vector<8x128xf32> to vector<8x32xf32>
    %67 = arith.negf %66 : vector<8x32xf32>
    %68 = math.exp %67 : vector<8x32xf32>
    %cst_30 = arith.constant 1.000000e+00 : f32
    %69 = vector.broadcast %cst_30 : f32 to vector<8x32xf32>
    %70 = arith.addf %69, %68 : vector<8x32xf32>
    %71 = arith.divf %69, %70 : vector<8x32xf32>
    %72 = vector.extract_strided_slice %59 {offsets = [0, 64], sizes = [8, 32], strides = [1, 1]} : vector<8x128xf32> to vector<8x32xf32>
    %73 = math.tanh %72 : vector<8x32xf32>
    %74 = vector.extract_strided_slice %59 {offsets = [0, 96], sizes = [8, 32], strides = [1, 1]} : vector<8x128xf32> to vector<8x32xf32>
    %75 = arith.negf %74 : vector<8x32xf32>
    %76 = math.exp %75 : vector<8x32xf32>
    %cst_31 = arith.constant 1.000000e+00 : f32
    %77 = vector.broadcast %cst_31 : f32 to vector<8x32xf32>
    %78 = arith.addf %77, %76 : vector<8x32xf32>
    %79 = arith.divf %77, %78 : vector<8x32xf32>
    %80 = arith.mulf %71, %45 : vector<8x32xf32>
    %81 = arith.mulf %65, %73 : vector<8x32xf32>
    %82 = arith.addf %80, %81 : vector<8x32xf32>
    %83 = math.tanh %82 : vector<8x32xf32>
    %84 = arith.mulf %79, %83 : vector<8x32xf32>
    %c0_32 = arith.constant 0 : index
    %85 = arith.index_cast %53 : i32 to index
    %c0_33 = arith.constant 0 : index
    %c0_34 = arith.constant 0 : index
    %86 = vector.load %arg5[%c0_32, %85, %c0_33, %c0_34] : memref<1x8x8x32xf32, #tpu.memory_space<vmem>>, vector<1x1x8x32xf32>
    %87 = vector.shape_cast %86 : vector<1x1x8x32xf32> to vector<8x32xf32>
    %88 = vector.shape_cast %84 : vector<8x32xf32> to vector<1x1x8x32xf32>
    tpu.vector_store %arg5[%c0_32, %85, %c0_33, %c0_34], %88 {strides = array<i32>} : memref<1x8x8x32xf32, #tpu.memory_space<vmem>>, vector<1x1x8x32xf32>,
    %c2_i32 = arith.constant 2 : i32
    %c7_i32_35 = arith.constant 7 : i32
    %89 = arith.subi %c7_i32_35, %c2_i32 : i32
    %90 = arith.select %13, %89, %c2_i32 : i32
    %91 = arith.index_cast %90 : i32 to index
    %c0_36 = arith.constant 0 : index
    %c0_37 = arith.constant 0 : index
    %92 = vector.load %arg8[%91, %c0_36, %c0_37] : memref<8x8x128xf32, #tpu.memory_space<vmem>>, vector<1x8x128xf32>
    %93 = vector.shape_cast %92 : vector<1x8x128xf32> to vector<8x128xf32>
    %94 = arith.truncf %84 : vector<8x32xf32> to vector<8x32xbf16>
    %cst_38 = arith.constant dense<0.000000e+00> : vector<8x128xf32>
    %95 = tpu.matmul %94, %12, %cst_38 {dimension_numbers = #tpu.dot_dimension_numbers<[1], [0], [0], [1], [0, 0, 1, 1], [], []>} : vector<8x32xbf16>, vector<32x128xbf16>, vector<8x128xf32> -> vector<8x128xf32>
    %96 = arith.addf %93, %95 : vector<8x128xf32>
    %97 = vector.extract_strided_slice %96 {offsets = [0, 0], sizes = [8, 32], strides = [1, 1]} : vector<8x128xf32> to vector<8x32xf32>
    %98 = arith.negf %97 : vector<8x32xf32>
    %99 = math.exp %98 : vector<8x32xf32>
    %cst_39 = arith.constant 1.000000e+00 : f32
    %100 = vector.broadcast %cst_39 : f32 to vector<8x32xf32>
    %101 = arith.addf %100, %99 : vector<8x32xf32>
    %102 = arith.divf %100, %101 : vector<8x32xf32>
    %103 = vector.extract_strided_slice %96 {offsets = [0, 32], sizes = [8, 32], strides = [1, 1]} : vector<8x128xf32> to vector<8x32xf32>
    %104 = arith.negf %103 : vector<8x32xf32>
    %105 = math.exp %104 : vector<8x32xf32>
    %cst_40 = arith.constant 1.000000e+00 : f32
    %106 = vector.broadcast %cst_40 : f32 to vector<8x32xf32>
    %107 = arith.addf %106, %105 : vector<8x32xf32>
    %108 = arith.divf %106, %107 : vector<8x32xf32>
    %109 = vector.extract_strided_slice %96 {offsets = [0, 64], sizes = [8, 32], strides = [1, 1]} : vector<8x128xf32> to vector<8x32xf32>
    %110 = math.tanh %109 : vector<8x32xf32>
    %111 = vector.extract_strided_slice %96 {offsets = [0, 96], sizes = [8, 32], strides = [1, 1]} : vector<8x128xf32> to vector<8x32xf32>
    %112 = arith.negf %111 : vector<8x32xf32>
    %113 = math.exp %112 : vector<8x32xf32>
    %cst_41 = arith.constant 1.000000e+00 : f32
    %114 = vector.broadcast %cst_41 : f32 to vector<8x32xf32>
    %115 = arith.addf %114, %113 : vector<8x32xf32>
    %116 = arith.divf %114, %115 : vector<8x32xf32>
    %117 = arith.mulf %108, %82 : vector<8x32xf32>
    %118 = arith.mulf %102, %110 : vector<8x32xf32>
    %119 = arith.addf %117, %118 : vector<8x32xf32>
    %120 = math.tanh %119 : vector<8x32xf32>
    %121 = arith.mulf %116, %120 : vector<8x32xf32>
    %c0_42 = arith.constant 0 : index
    %122 = arith.index_cast %90 : i32 to index
    %c0_43 = arith.constant 0 : index
    %c0_44 = arith.constant 0 : index
    %123 = vector.load %arg5[%c0_42, %122, %c0_43, %c0_44] : memref<1x8x8x32xf32, #tpu.memory_space<vmem>>, vector<1x1x8x32xf32>
    %124 = vector.shape_cast %123 : vector<1x1x8x32xf32> to vector<8x32xf32>
    %125 = vector.shape_cast %121 : vector<8x32xf32> to vector<1x1x8x32xf32>
    tpu.vector_store %arg5[%c0_42, %122, %c0_43, %c0_44], %125 {strides = array<i32>} : memref<1x8x8x32xf32, #tpu.memory_space<vmem>>, vector<1x1x8x32xf32>,
    %c3_i32 = arith.constant 3 : i32
    %c7_i32_45 = arith.constant 7 : i32
    %126 = arith.subi %c7_i32_45, %c3_i32 : i32
    %127 = arith.select %13, %126, %c3_i32 : i32
    %128 = arith.index_cast %127 : i32 to index
    %c0_46 = arith.constant 0 : index
    %c0_47 = arith.constant 0 : index
    %129 = vector.load %arg8[%128, %c0_46, %c0_47] : memref<8x8x128xf32, #tpu.memory_space<vmem>>, vector<1x8x128xf32>
    %130 = vector.shape_cast %129 : vector<1x8x128xf32> to vector<8x128xf32>
    %131 = arith.truncf %121 : vector<8x32xf32> to vector<8x32xbf16>
    %cst_48 = arith.constant dense<0.000000e+00> : vector<8x128xf32>
    %132 = tpu.matmul %131, %12, %cst_48 {dimension_numbers = #tpu.dot_dimension_numbers<[1], [0], [0], [1], [0, 0, 1, 1], [], []>} : vector<8x32xbf16>, vector<32x128xbf16>, vector<8x128xf32> -> vector<8x128xf32>
    %133 = arith.addf %130, %132 : vector<8x128xf32>
    %134 = vector.extract_strided_slice %133 {offsets = [0, 0], sizes = [8, 32], strides = [1, 1]} : vector<8x128xf32> to vector<8x32xf32>
    %135 = arith.negf %134 : vector<8x32xf32>
    %136 = math.exp %135 : vector<8x32xf32>
    %cst_49 = arith.constant 1.000000e+00 : f32
    %137 = vector.broadcast %cst_49 : f32 to vector<8x32xf32>
    %138 = arith.addf %137, %136 : vector<8x32xf32>
    %139 = arith.divf %137, %138 : vector<8x32xf32>
    %140 = vector.extract_strided_slice %133 {offsets = [0, 32], sizes = [8, 32], strides = [1, 1]} : vector<8x128xf32> to vector<8x32xf32>
    %141 = arith.negf %140 : vector<8x32xf32>
    %142 = math.exp %141 : vector<8x32xf32>
    %cst_50 = arith.constant 1.000000e+00 : f32
    %143 = vector.broadcast %cst_50 : f32 to vector<8x32xf32>
    %144 = arith.addf %143, %142 : vector<8x32xf32>
    %145 = arith.divf %143, %144 : vector<8x32xf32>
    %146 = vector.extract_strided_slice %133 {offsets = [0, 64], sizes = [8, 32], strides = [1, 1]} : vector<8x128xf32> to vector<8x32xf32>
    %147 = math.tanh %146 : vector<8x32xf32>
    %148 = vector.extract_strided_slice %133 {offsets = [0, 96], sizes = [8, 32], strides = [1, 1]} : vector<8x128xf32> to vector<8x32xf32>
    %149 = arith.negf %148 : vector<8x32xf32>
    %150 = math.exp %149 : vector<8x32xf32>
    %cst_51 = arith.constant 1.000000e+00 : f32
    %151 = vector.broadcast %cst_51 : f32 to vector<8x32xf32>
    %152 = arith.addf %151, %150 : vector<8x32xf32>
    %153 = arith.divf %151, %152 : vector<8x32xf32>
    %154 = arith.mulf %145, %119 : vector<8x32xf32>
    %155 = arith.mulf %139, %147 : vector<8x32xf32>
    %156 = arith.addf %154, %155 : vector<8x32xf32>
    %157 = math.tanh %156 : vector<8x32xf32>
    %158 = arith.mulf %153, %157 : vector<8x32xf32>
    %c0_52 = arith.constant 0 : index
    %159 = arith.index_cast %127 : i32 to index
    %c0_53 = arith.constant 0 : index
    %c0_54 = arith.constant 0 : index
    %160 = vector.load %arg5[%c0_52, %159, %c0_53, %c0_54] : memref<1x8x8x32xf32, #tpu.memory_space<vmem>>, vector<1x1x8x32xf32>
    %161 = vector.shape_cast %160 : vector<1x1x8x32xf32> to vector<8x32xf32>
    %162 = vector.shape_cast %158 : vector<8x32xf32> to vector<1x1x8x32xf32>
    tpu.vector_store %arg5[%c0_52, %159, %c0_53, %c0_54], %162 {strides = array<i32>} : memref<1x8x8x32xf32, #tpu.memory_space<vmem>>, vector<1x1x8x32xf32>,
    %c4_i32 = arith.constant 4 : i32
    %c7_i32_55 = arith.constant 7 : i32
    %163 = arith.subi %c7_i32_55, %c4_i32 : i32
    %164 = arith.select %13, %163, %c4_i32 : i32
    %165 = arith.index_cast %164 : i32 to index
    %c0_56 = arith.constant 0 : index
    %c0_57 = arith.constant 0 : index
    %166 = vector.load %arg8[%165, %c0_56, %c0_57] : memref<8x8x128xf32, #tpu.memory_space<vmem>>, vector<1x8x128xf32>
    %167 = vector.shape_cast %166 : vector<1x8x128xf32> to vector<8x128xf32>
    %168 = arith.truncf %158 : vector<8x32xf32> to vector<8x32xbf16>
    %cst_58 = arith.constant dense<0.000000e+00> : vector<8x128xf32>
    %169 = tpu.matmul %168, %12, %cst_58 {dimension_numbers = #tpu.dot_dimension_numbers<[1], [0], [0], [1], [0, 0, 1, 1], [], []>} : vector<8x32xbf16>, vector<32x128xbf16>, vector<8x128xf32> -> vector<8x128xf32>
    %170 = arith.addf %167, %169 : vector<8x128xf32>
    %171 = vector.extract_strided_slice %170 {offsets = [0, 0], sizes = [8, 32], strides = [1, 1]} : vector<8x128xf32> to vector<8x32xf32>
    %172 = arith.negf %171 : vector<8x32xf32>
    %173 = math.exp %172 : vector<8x32xf32>
    %cst_59 = arith.constant 1.000000e+00 : f32
    %174 = vector.broadcast %cst_59 : f32 to vector<8x32xf32>
    %175 = arith.addf %174, %173 : vector<8x32xf32>
    %176 = arith.divf %174, %175 : vector<8x32xf32>
    %177 = vector.extract_strided_slice %170 {offsets = [0, 32], sizes = [8, 32], strides = [1, 1]} : vector<8x128xf32> to vector<8x32xf32>
    %178 = arith.negf %177 : vector<8x32xf32>
    %179 = math.exp %178 : vector<8x32xf32>
    %cst_60 = arith.constant 1.000000e+00 : f32
    %180 = vector.broadcast %cst_60 : f32 to vector<8x32xf32>
    %181 = arith.addf %180, %179 : vector<8x32xf32>
    %182 = arith.divf %180, %181 : vector<8x32xf32>
    %183 = vector.extract_strided_slice %170 {offsets = [0, 64], sizes = [8, 32], strides = [1, 1]} : vector<8x128xf32> to vector<8x32xf32>
    %184 = math.tanh %183 : vector<8x32xf32>
    %185 = vector.extract_strided_slice %170 {offsets = [0, 96], sizes = [8, 32], strides = [1, 1]} : vector<8x128xf32> to vector<8x32xf32>
    %186 = arith.negf %185 : vector<8x32xf32>
    %187 = math.exp %186 : vector<8x32xf32>
    %cst_61 = arith.constant 1.000000e+00 : f32
    %188 = vector.broadcast %cst_61 : f32 to vector<8x32xf32>
    %189 = arith.addf %188, %187 : vector<8x32xf32>
    %190 = arith.divf %188, %189 : vector<8x32xf32>
    %191 = arith.mulf %182, %156 : vector<8x32xf32>
    %192 = arith.mulf %176, %184 : vector<8x32xf32>
    %193 = arith.addf %191, %192 : vector<8x32xf32>
    %194 = math.tanh %193 : vector<8x32xf32>
    %195 = arith.mulf %190, %194 : vector<8x32xf32>
    %c0_62 = arith.constant 0 : index
    %196 = arith.index_cast %164 : i32 to index
    %c0_63 = arith.constant 0 : index
    %c0_64 = arith.constant 0 : index
    %197 = vector.load %arg5[%c0_62, %196, %c0_63, %c0_64] : memref<1x8x8x32xf32, #tpu.memory_space<vmem>>, vector<1x1x8x32xf32>
    %198 = vector.shape_cast %197 : vector<1x1x8x32xf32> to vector<8x32xf32>
    %199 = vector.shape_cast %195 : vector<8x32xf32> to vector<1x1x8x32xf32>
    tpu.vector_store %arg5[%c0_62, %196, %c0_63, %c0_64], %199 {strides = array<i32>} : memref<1x8x8x32xf32, #tpu.memory_space<vmem>>, vector<1x1x8x32xf32>,
    %c5_i32 = arith.constant 5 : i32
    %c7_i32_65 = arith.constant 7 : i32
    %200 = arith.subi %c7_i32_65, %c5_i32 : i32
    %201 = arith.select %13, %200, %c5_i32 : i32
    %202 = arith.index_cast %201 : i32 to index
    %c0_66 = arith.constant 0 : index
    %c0_67 = arith.constant 0 : index
    %203 = vector.load %arg8[%202, %c0_66, %c0_67] : memref<8x8x128xf32, #tpu.memory_space<vmem>>, vector<1x8x128xf32>
    %204 = vector.shape_cast %203 : vector<1x8x128xf32> to vector<8x128xf32>
    %205 = arith.truncf %195 : vector<8x32xf32> to vector<8x32xbf16>
    %cst_68 = arith.constant dense<0.000000e+00> : vector<8x128xf32>
    %206 = tpu.matmul %205, %12, %cst_68 {dimension_numbers = #tpu.dot_dimension_numbers<[1], [0], [0], [1], [0, 0, 1, 1], [], []>} : vector<8x32xbf16>, vector<32x128xbf16>, vector<8x128xf32> -> vector<8x128xf32>
    %207 = arith.addf %204, %206 : vector<8x128xf32>
    %208 = vector.extract_strided_slice %207 {offsets = [0, 0], sizes = [8, 32], strides = [1, 1]} : vector<8x128xf32> to vector<8x32xf32>
    %209 = arith.negf %208 : vector<8x32xf32>
    %210 = math.exp %209 : vector<8x32xf32>
    %cst_69 = arith.constant 1.000000e+00 : f32
    %211 = vector.broadcast %cst_69 : f32 to vector<8x32xf32>
    %212 = arith.addf %211, %210 : vector<8x32xf32>
    %213 = arith.divf %211, %212 : vector<8x32xf32>
    %214 = vector.extract_strided_slice %207 {offsets = [0, 32], sizes = [8, 32], strides = [1, 1]} : vector<8x128xf32> to vector<8x32xf32>
    %215 = arith.negf %214 : vector<8x32xf32>
    %216 = math.exp %215 : vector<8x32xf32>
    %cst_70 = arith.constant 1.000000e+00 : f32
    %217 = vector.broadcast %cst_70 : f32 to vector<8x32xf32>
    %218 = arith.addf %217, %216 : vector<8x32xf32>
    %219 = arith.divf %217, %218 : vector<8x32xf32>
    %220 = vector.extract_strided_slice %207 {offsets = [0, 64], sizes = [8, 32], strides = [1, 1]} : vector<8x128xf32> to vector<8x32xf32>
    %221 = math.tanh %220 : vector<8x32xf32>
    %222 = vector.extract_strided_slice %207 {offsets = [0, 96], sizes = [8, 32], strides = [1, 1]} : vector<8x128xf32> to vector<8x32xf32>
    %223 = arith.negf %222 : vector<8x32xf32>
    %224 = math.exp %223 : vector<8x32xf32>
    %cst_71 = arith.constant 1.000000e+00 : f32
    %225 = vector.broadcast %cst_71 : f32 to vector<8x32xf32>
    %226 = arith.addf %225, %224 : vector<8x32xf32>
    %227 = arith.divf %225, %226 : vector<8x32xf32>
    %228 = arith.mulf %219, %193 : vector<8x32xf32>
    %229 = arith.mulf %213, %221 : vector<8x32xf32>
    %230 = arith.addf %228, %229 : vector<8x32xf32>
    %231 = math.tanh %230 : vector<8x32xf32>
    %232 = arith.mulf %227, %231 : vector<8x32xf32>
    %c0_72 = arith.constant 0 : index
    %233 = arith.index_cast %201 : i32 to index
    %c0_73 = arith.constant 0 : index
    %c0_74 = arith.constant 0 : index
    %234 = vector.load %arg5[%c0_72, %233, %c0_73, %c0_74] : memref<1x8x8x32xf32, #tpu.memory_space<vmem>>, vector<1x1x8x32xf32>
    %235 = vector.shape_cast %234 : vector<1x1x8x32xf32> to vector<8x32xf32>
    %236 = vector.shape_cast %232 : vector<8x32xf32> to vector<1x1x8x32xf32>
    tpu.vector_store %arg5[%c0_72, %233, %c0_73, %c0_74], %236 {strides = array<i32>} : memref<1x8x8x32xf32, #tpu.memory_space<vmem>>, vector<1x1x8x32xf32>,
    %c6_i32 = arith.constant 6 : i32
    %c7_i32_75 = arith.constant 7 : i32
    %237 = arith.subi %c7_i32_75, %c6_i32 : i32
    %238 = arith.select %13, %237, %c6_i32 : i32
    %239 = arith.index_cast %238 : i32 to index
    %c0_76 = arith.constant 0 : index
    %c0_77 = arith.constant 0 : index
    %240 = vector.load %arg8[%239, %c0_76, %c0_77] : memref<8x8x128xf32, #tpu.memory_space<vmem>>, vector<1x8x128xf32>
    %241 = vector.shape_cast %240 : vector<1x8x128xf32> to vector<8x128xf32>
    %242 = arith.truncf %232 : vector<8x32xf32> to vector<8x32xbf16>
    %cst_78 = arith.constant dense<0.000000e+00> : vector<8x128xf32>
    %243 = tpu.matmul %242, %12, %cst_78 {dimension_numbers = #tpu.dot_dimension_numbers<[1], [0], [0], [1], [0, 0, 1, 1], [], []>} : vector<8x32xbf16>, vector<32x128xbf16>, vector<8x128xf32> -> vector<8x128xf32>
    %244 = arith.addf %241, %243 : vector<8x128xf32>
    %245 = vector.extract_strided_slice %244 {offsets = [0, 0], sizes = [8, 32], strides = [1, 1]} : vector<8x128xf32> to vector<8x32xf32>
    %246 = arith.negf %245 : vector<8x32xf32>
    %247 = math.exp %246 : vector<8x32xf32>
    %cst_79 = arith.constant 1.000000e+00 : f32
    %248 = vector.broadcast %cst_79 : f32 to vector<8x32xf32>
    %249 = arith.addf %248, %247 : vector<8x32xf32>
    %250 = arith.divf %248, %249 : vector<8x32xf32>
    %251 = vector.extract_strided_slice %244 {offsets = [0, 32], sizes = [8, 32], strides = [1, 1]} : vector<8x128xf32> to vector<8x32xf32>
    %252 = arith.negf %251 : vector<8x32xf32>
    %253 = math.exp %252 : vector<8x32xf32>
    %cst_80 = arith.constant 1.000000e+00 : f32
    %254 = vector.broadcast %cst_80 : f32 to vector<8x32xf32>
    %255 = arith.addf %254, %253 : vector<8x32xf32>
    %256 = arith.divf %254, %255 : vector<8x32xf32>
    %257 = vector.extract_strided_slice %244 {offsets = [0, 64], sizes = [8, 32], strides = [1, 1]} : vector<8x128xf32> to vector<8x32xf32>
    %258 = math.tanh %257 : vector<8x32xf32>
    %259 = vector.extract_strided_slice %244 {offsets = [0, 96], sizes = [8, 32], strides = [1, 1]} : vector<8x128xf32> to vector<8x32xf32>
    %260 = arith.negf %259 : vector<8x32xf32>
    %261 = math.exp %260 : vector<8x32xf32>
    %cst_81 = arith.constant 1.000000e+00 : f32
    %262 = vector.broadcast %cst_81 : f32 to vector<8x32xf32>
    %263 = arith.addf %262, %261 : vector<8x32xf32>
    %264 = arith.divf %262, %263 : vector<8x32xf32>
    %265 = arith.mulf %256, %230 : vector<8x32xf32>
    %266 = arith.mulf %250, %258 : vector<8x32xf32>
    %267 = arith.addf %265, %266 : vector<8x32xf32>
    %268 = math.tanh %267 : vector<8x32xf32>
    %269 = arith.mulf %264, %268 : vector<8x32xf32>
    %c0_82 = arith.constant 0 : index
    %270 = arith.index_cast %238 : i32 to index
    %c0_83 = arith.constant 0 : index
    %c0_84 = arith.constant 0 : index
    %271 = vector.load %arg5[%c0_82, %270, %c0_83, %c0_84] : memref<1x8x8x32xf32, #tpu.memory_space<vmem>>, vector<1x1x8x32xf32>
    %272 = vector.shape_cast %271 : vector<1x1x8x32xf32> to vector<8x32xf32>
    %273 = vector.shape_cast %269 : vector<8x32xf32> to vector<1x1x8x32xf32>
    tpu.vector_store %arg5[%c0_82, %270, %c0_83, %c0_84], %273 {strides = array<i32>} : memref<1x8x8x32xf32, #tpu.memory_space<vmem>>, vector<1x1x8x32xf32>,
    %c7_i32_85 = arith.constant 7 : i32
    %c7_i32_86 = arith.constant 7 : i32
    %274 = arith.subi %c7_i32_86, %c7_i32_85 : i32
    %275 = arith.select %13, %274, %c7_i32_85 : i32
    %276 = arith.index_cast %275 : i32 to index
    %c0_87 = arith.constant 0 : index
    %c0_88 = arith.constant 0 : index
    %277 = vector.load %arg8[%276, %c0_87, %c0_88] : memref<8x8x128xf32, #tpu.memory_space<vmem>>, vector<1x8x128xf32>
    %278 = vector.shape_cast %277 : vector<1x8x128xf32> to vector<8x128xf32>
    %279 = arith.truncf %269 : vector<8x32xf32> to vector<8x32xbf16>
    %cst_89 = arith.constant dense<0.000000e+00> : vector<8x128xf32>
    %280 = tpu.matmul %279, %12, %cst_89 {dimension_numbers = #tpu.dot_dimension_numbers<[1], [0], [0], [1], [0, 0, 1, 1], [], []>} : vector<8x32xbf16>, vector<32x128xbf16>, vector<8x128xf32> -> vector<8x128xf32>
    %281 = arith.addf %278, %280 : vector<8x128xf32>
    %282 = vector.extract_strided_slice %281 {offsets = [0, 0], sizes = [8, 32], strides = [1, 1]} : vector<8x128xf32> to vector<8x32xf32>
    %283 = arith.negf %282 : vector<8x32xf32>
    %284 = math.exp %283 : vector<8x32xf32>
    %cst_90 = arith.constant 1.000000e+00 : f32
    %285 = vector.broadcast %cst_90 : f32 to vector<8x32xf32>
    %286 = arith.addf %285, %284 : vector<8x32xf32>
    %287 = arith.divf %285, %286 : vector<8x32xf32>
    %288 = vector.extract_strided_slice %281 {offsets = [0, 32], sizes = [8, 32], strides = [1, 1]} : vector<8x128xf32> to vector<8x32xf32>
    %289 = arith.negf %288 : vector<8x32xf32>
    %290 = math.exp %289 : vector<8x32xf32>
    %cst_91 = arith.constant 1.000000e+00 : f32
    %291 = vector.broadcast %cst_91 : f32 to vector<8x32xf32>
    %292 = arith.addf %291, %290 : vector<8x32xf32>
    %293 = arith.divf %291, %292 : vector<8x32xf32>
    %294 = vector.extract_strided_slice %281 {offsets = [0, 64], sizes = [8, 32], strides = [1, 1]} : vector<8x128xf32> to vector<8x32xf32>
    %295 = math.tanh %294 : vector<8x32xf32>
    %296 = vector.extract_strided_slice %281 {offsets = [0, 96], sizes = [8, 32], strides = [1, 1]} : vector<8x128xf32> to vector<8x32xf32>
    %297 = arith.negf %296 : vector<8x32xf32>
    %298 = math.exp %297 : vector<8x32xf32>
    %cst_92 = arith.constant 1.000000e+00 : f32
    %299 = vector.broadcast %cst_92 : f32 to vector<8x32xf32>
    %300 = arith.addf %299, %298 : vector<8x32xf32>
    %301 = arith.divf %299, %300 : vector<8x32xf32>
    %302 = arith.mulf %293, %267 : vector<8x32xf32>
    %303 = arith.mulf %287, %295 : vector<8x32xf32>
    %304 = arith.addf %302, %303 : vector<8x32xf32>
    %305 = math.tanh %304 : vector<8x32xf32>
    %306 = arith.mulf %301, %305 : vector<8x32xf32>
    %c0_93 = arith.constant 0 : index
    %307 = arith.index_cast %275 : i32 to index
    %c0_94 = arith.constant 0 : index
    %c0_95 = arith.constant 0 : index
    %308 = vector.load %arg5[%c0_93, %307, %c0_94, %c0_95] : memref<1x8x8x32xf32, #tpu.memory_space<vmem>>, vector<1x1x8x32xf32>
    %309 = vector.shape_cast %308 : vector<1x1x8x32xf32> to vector<8x32xf32>
    %310 = vector.shape_cast %306 : vector<8x32xf32> to vector<1x1x8x32xf32>
    tpu.vector_store %arg5[%c0_93, %307, %c0_94, %c0_95], %310 {strides = array<i32>} : memref<1x8x8x32xf32, #tpu.memory_space<vmem>>, vector<1x1x8x32xf32>,
    %c8_i32 = arith.constant 8 : i32
    %c0_96 = arith.constant 0 : index
    %c0_97 = arith.constant 0 : index
    %c0_98 = arith.constant 0 : index
    %311 = vector.load %arg6[%c0_96, %c0_97, %c0_98] : memref<1x8x32xf32, #tpu.memory_space<vmem>>, vector<1x8x32xf32>
    %312 = vector.shape_cast %311 : vector<1x8x32xf32> to vector<8x32xf32>
    %313 = vector.shape_cast %306 : vector<8x32xf32> to vector<1x8x32xf32>
    tpu.vector_store %arg6[%c0_96, %c0_97, %c0_98], %313 {strides = array<i32>} : memref<1x8x32xf32, #tpu.memory_space<vmem>>, vector<1x8x32xf32>,
    %c0_99 = arith.constant 0 : index
    %c0_100 = arith.constant 0 : index
    %c0_101 = arith.constant 0 : index
    %314 = vector.load %arg7[%c0_99, %c0_100, %c0_101] : memref<1x8x32xf32, #tpu.memory_space<vmem>>, vector<1x8x32xf32>
    %315 = vector.shape_cast %314 : vector<1x8x32xf32> to vector<8x32xf32>
    %316 = vector.shape_cast %304 : vector<8x32xf32> to vector<1x8x32xf32>
    tpu.vector_store %arg7[%c0_99, %c0_100, %c0_101], %316 {strides = array<i32>} : memref<1x8x32xf32, #tpu.memory_space<vmem>>, vector<1x8x32xf32>,
    return
  }
  func.func @transform_0(%arg0: i32) -> (i32, i32, i32) {
    %c0_i32 = arith.constant 0 : i32
    %c0_i32_0 = arith.constant 0 : i32
    %c0_i32_1 = arith.constant 0 : i32
    %c0_i32_2 = arith.constant 0 : i32
    return %c0_i32, %c0_i32_0, %c0_i32_1 : i32, i32, i32
  }
  func.func @transform_1(%arg0: i32) -> (i32, i32, i32) {
    %c0_i32 = arith.constant 0 : i32
    %c0_i32_0 = arith.constant 0 : i32
    %c0_i32_1 = arith.constant 0 : i32
    return %arg0, %c0_i32, %c0_i32_0 : i32, i32, i32
  }
  func.func @transform_2(%arg0: i32) -> (i32, i32, i32) {
    %c0_i32 = arith.constant 0 : i32
    %c0_i32_0 = arith.constant 0 : i32
    %c0_i32_1 = arith.constant 0 : i32
    return %arg0, %c0_i32, %c0_i32_0 : i32, i32, i32
  }
  func.func @transform_3(%arg0: i32) -> (i32, i32, i32) {
    %c0_i32 = arith.constant 0 : i32
    %c0_i32_0 = arith.constant 0 : i32
    %c0_i32_1 = arith.constant 0 : i32
    return %arg0, %c0_i32, %c0_i32_0 : i32, i32, i32
  }
  func.func @transform_4(%arg0: i32) -> (i32, i32, i32, i32) {
    %c0_i32 = arith.constant 0 : i32
    %c0_i32_0 = arith.constant 0 : i32
    %c0_i32_1 = arith.constant 0 : i32
    %c0_i32_2 = arith.constant 0 : i32
    return %arg0, %c0_i32, %c0_i32_0, %c0_i32_1 : i32, i32, i32, i32
  }
  func.func @transform_5(%arg0: i32) -> (i32, i32, i32) {
    %c0_i32 = arith.constant 0 : i32
    %c0_i32_0 = arith.constant 0 : i32
    %c0_i32_1 = arith.constant 0 : i32
    return %arg0, %c0_i32, %c0_i32_0 : i32, i32, i32
  }
  func.func @transform_6(%arg0: i32) -> (i32, i32, i32) {
    %c0_i32 = arith.constant 0 : i32
    %c0_i32_0 = arith.constant 0 : i32
    %c0_i32_1 = arith.constant 0 : i32
    return %arg0, %c0_i32, %c0_i32_0 : i32, i32, i32
  }
}

module attributes {stable_mosaic.version = 11 : i64} {
  func.func @_head_logits_kernel(%arg0: i32, %arg1: i32, %arg2: memref<16x64xf32, #tpu.memory_space<vmem>>, %arg3: memref<64x128xbf16, #tpu.memory_space<vmem>>, %arg4: memref<1x128xf32, #tpu.memory_space<vmem>>, %arg5: memref<16x128xf32, #tpu.memory_space<vmem>>, %arg6: memref<16x1xf32, #tpu.memory_space<vmem>>, %arg7: memref<16x1xf32, #tpu.memory_space<vmem>>, %arg8: memref<16x1xf32, #tpu.memory_space<vmem>>) attributes {dimension_semantics = [#tpu.dimension_semantics<parallel>, #tpu.dimension_semantics<arbitrary>], iteration_bounds = array<i64: 1, 1>, scalar_prefetch = 0 : i64, scratch_operands = 2 : i64, tpu.core_type = #tpu.core_type<tc>, window_params = [{transform_indices = @transform_0, window_bounds = array<i64: 16, 64>}, {transform_indices = @transform_1, window_bounds = array<i64: 64, 128>}, {transform_indices = @transform_2, window_bounds = array<i64: 1, 128>}, {transform_indices = @transform_3, window_bounds = array<i64: 16, 128>}, {transform_indices = @transform_4, window_bounds = array<i64: 16, 1>}]} {
    %c0_i32 = arith.constant 0 : i32
    %0 = arith.cmpi eq, %arg1, %c0_i32 : i32
    %1 = arith.extui %0 : i1 to i32
    %c0_i32_0 = arith.constant 0 : i32
    %2 = arith.cmpi ne, %1, %c0_i32_0 : i32
    scf.if %2 {
      %cst_20 = arith.constant 0xFF800000 : f32
      %30 = vector.broadcast %cst_20 : f32 to vector<16x1xf32>
      %c0_21 = arith.constant 0 : index
      %c0_22 = arith.constant 0 : index
      %31 = vector.load %arg7[%c0_21, %c0_22] : memref<16x1xf32, #tpu.memory_space<vmem>>, vector<16x1xf32>
      tpu.vector_store %arg7[%c0_21, %c0_22], %30 {strides = array<i32>} : memref<16x1xf32, #tpu.memory_space<vmem>>, vector<16x1xf32>,
      %cst_23 = arith.constant 0.000000e+00 : f32
      %32 = vector.broadcast %cst_23 : f32 to vector<16x1xf32>
      %c0_24 = arith.constant 0 : index
      %c0_25 = arith.constant 0 : index
      %33 = vector.load %arg8[%c0_24, %c0_25] : memref<16x1xf32, #tpu.memory_space<vmem>>, vector<16x1xf32>
      tpu.vector_store %arg8[%c0_24, %c0_25], %32 {strides = array<i32>} : memref<16x1xf32, #tpu.memory_space<vmem>>, vector<16x1xf32>,
    } else {
    }
    %c0 = arith.constant 0 : index
    %c0_1 = arith.constant 0 : index
    %3 = vector.load %arg2[%c0, %c0_1] : memref<16x64xf32, #tpu.memory_space<vmem>>, vector<16x64xf32>
    %4 = arith.truncf %3 : vector<16x64xf32> to vector<16x64xbf16>
    %c0_2 = arith.constant 0 : index
    %c0_3 = arith.constant 0 : index
    %5 = vector.load %arg3[%c0_2, %c0_3] : memref<64x128xbf16, #tpu.memory_space<vmem>>, vector<64x128xbf16>
    %cst = arith.constant dense<0.000000e+00> : vector<16x128xf32>
    %6 = tpu.matmul %4, %5, %cst {dimension_numbers = #tpu.dot_dimension_numbers<[1], [0], [0], [1], [0, 0, 1, 1], [], []>} : vector<16x64xbf16>, vector<64x128xbf16>, vector<16x128xf32> -> vector<16x128xf32>
    %c0_4 = arith.constant 0 : index
    %c0_5 = arith.constant 0 : index
    %7 = vector.load %arg4[%c0_4, %c0_5] : memref<1x128xf32, #tpu.memory_space<vmem>>, vector<1x128xf32>
    %8 = vector.broadcast %7 : vector<1x128xf32> to vector<16x128xf32>
    %9 = arith.addf %6, %8 : vector<16x128xf32>
    %c0_6 = arith.constant 0 : index
    %c0_7 = arith.constant 0 : index
    %10 = vector.load %arg5[%c0_6, %c0_7] : memref<16x128xf32, #tpu.memory_space<vmem>>, vector<16x128xf32>
    tpu.vector_store %arg5[%c0_6, %c0_7], %9 {strides = array<i32>} : memref<16x128xf32, #tpu.memory_space<vmem>>, vector<16x128xf32>,
    %c0_8 = arith.constant 0 : index
    %c0_9 = arith.constant 0 : index
    %11 = vector.load %arg7[%c0_8, %c0_9] : memref<16x1xf32, #tpu.memory_space<vmem>>, vector<16x1xf32>
    %cst_10 = arith.constant dense<0xFF800000> : vector<16xf32>
    %12 = vector.multi_reduction <maximumf>, %9, %cst_10 [1] : vector<16x128xf32> to vector<16xf32>
    %13 = vector.shape_cast %12 : vector<16xf32> to vector<16x1xf32>
    %14 = arith.maximumf %11, %13 : vector<16x1xf32>
    %c0_11 = arith.constant 0 : index
    %c0_12 = arith.constant 0 : index
    %15 = vector.load %arg8[%c0_11, %c0_12] : memref<16x1xf32, #tpu.memory_space<vmem>>, vector<16x1xf32>
    %16 = arith.subf %11, %14 : vector<16x1xf32>
    %17 = math.exp %16 : vector<16x1xf32>
    %18 = arith.mulf %15, %17 : vector<16x1xf32>
    %19 = vector.broadcast %14 : vector<16x1xf32> to vector<16x128xf32>
    %20 = arith.subf %9, %19 : vector<16x128xf32>
    %21 = math.exp %20 : vector<16x128xf32>
    %cst_13 = arith.constant dense<0.000000e+00> : vector<16xf32>
    %22 = vector.multi_reduction <add>, %21, %cst_13 [1] : vector<16x128xf32> to vector<16xf32>
    %23 = vector.shape_cast %22 : vector<16xf32> to vector<16x1xf32>
    %24 = arith.addf %18, %23 : vector<16x1xf32>
    %c0_14 = arith.constant 0 : index
    %c0_15 = arith.constant 0 : index
    %25 = vector.load %arg8[%c0_14, %c0_15] : memref<16x1xf32, #tpu.memory_space<vmem>>, vector<16x1xf32>
    tpu.vector_store %arg8[%c0_14, %c0_15], %24 {strides = array<i32>} : memref<16x1xf32, #tpu.memory_space<vmem>>, vector<16x1xf32>,
    %c0_16 = arith.constant 0 : index
    %c0_17 = arith.constant 0 : index
    %26 = vector.load %arg7[%c0_16, %c0_17] : memref<16x1xf32, #tpu.memory_space<vmem>>, vector<16x1xf32>
    tpu.vector_store %arg7[%c0_16, %c0_17], %14 {strides = array<i32>} : memref<16x1xf32, #tpu.memory_space<vmem>>, vector<16x1xf32>,
    %c0_i32_18 = arith.constant 0 : i32
    %27 = arith.cmpi eq, %arg1, %c0_i32_18 : i32
    %28 = arith.extui %27 : i1 to i32
    %c0_i32_19 = arith.constant 0 : i32
    %29 = arith.cmpi ne, %28, %c0_i32_19 : i32
    scf.if %29 {
      %c0_20 = arith.constant 0 : index
      %c0_21 = arith.constant 0 : index
      %30 = vector.load %arg7[%c0_20, %c0_21] : memref<16x1xf32, #tpu.memory_space<vmem>>, vector<16x1xf32>
      %c0_22 = arith.constant 0 : index
      %c0_23 = arith.constant 0 : index
      %31 = vector.load %arg8[%c0_22, %c0_23] : memref<16x1xf32, #tpu.memory_space<vmem>>, vector<16x1xf32>
      %32 = math.log %31 : vector<16x1xf32>
      %33 = arith.addf %30, %32 : vector<16x1xf32>
      %c0_24 = arith.constant 0 : index
      %c0_25 = arith.constant 0 : index
      %34 = vector.load %arg6[%c0_24, %c0_25] : memref<16x1xf32, #tpu.memory_space<vmem>>, vector<16x1xf32>
      tpu.vector_store %arg6[%c0_24, %c0_25], %33 {strides = array<i32>} : memref<16x1xf32, #tpu.memory_space<vmem>>, vector<16x1xf32>,
    } else {
    }
    return
  }
  func.func @transform_0(%arg0: i32, %arg1: i32) -> (i32, i32) {
    %c0_i32 = arith.constant 0 : i32
    %c0_i32_0 = arith.constant 0 : i32
    return %arg0, %c0_i32 : i32, i32
  }
  func.func @transform_1(%arg0: i32, %arg1: i32) -> (i32, i32) {
    %c0_i32 = arith.constant 0 : i32
    %c0_i32_0 = arith.constant 0 : i32
    return %c0_i32, %arg1 : i32, i32
  }
  func.func @transform_2(%arg0: i32, %arg1: i32) -> (i32, i32) {
    %c0_i32 = arith.constant 0 : i32
    %c0_i32_0 = arith.constant 0 : i32
    return %c0_i32, %arg1 : i32, i32
  }
  func.func @transform_3(%arg0: i32, %arg1: i32) -> (i32, i32) {
    %c0_i32 = arith.constant 0 : i32
    return %arg0, %arg1 : i32, i32
  }
  func.func @transform_4(%arg0: i32, %arg1: i32) -> (i32, i32) {
    %c0_i32 = arith.constant 0 : i32
    %c0_i32_0 = arith.constant 0 : i32
    return %arg0, %c0_i32 : i32, i32
  }
}

module attributes {stable_mosaic.version = 11 : i64} {
  func.func @_gru_kernel(%arg0: i32, %arg1: memref<7x8x32xbf16, #tpu.memory_space<vmem>>, %arg2: memref<8x32xf32, #tpu.memory_space<vmem>>, %arg3: memref<32x96xbf16, #tpu.memory_space<vmem>>, %arg4: memref<32x96xbf16, #tpu.memory_space<vmem>>, %arg5: memref<1x96xf32, #tpu.memory_space<vmem>>, %arg6: memref<1x96xf32, #tpu.memory_space<vmem>>, %arg7: memref<7x8x32xf32, #tpu.memory_space<vmem>>, %arg8: memref<7x8x96xf32, #tpu.memory_space<vmem>>) attributes {dimension_semantics = [#tpu.dimension_semantics<parallel>], iteration_bounds = array<i64: 2>, scalar_prefetch = 0 : i64, scratch_operands = 1 : i64, tpu.core_type = #tpu.core_type<tc>, window_params = [{transform_indices = @transform_0, window_bounds = array<i64: 7, 8, 32>}, {transform_indices = @transform_1, window_bounds = array<i64: 8, 32>}, {pipeline_mode = #tpu.pipeline_mode<synchronous>, transform_indices = @transform_2, window_bounds = array<i64: 32, 96>}, {pipeline_mode = #tpu.pipeline_mode<synchronous>, transform_indices = @transform_3, window_bounds = array<i64: 32, 96>}, {pipeline_mode = #tpu.pipeline_mode<synchronous>, transform_indices = @transform_4, window_bounds = array<i64: 1, 96>}, {pipeline_mode = #tpu.pipeline_mode<synchronous>, transform_indices = @transform_5, window_bounds = array<i64: 1, 96>}, {transform_indices = @transform_6, window_bounds = array<i64: 7, 8, 32>}]} {
    %c0 = arith.constant 0 : index
    %c0_0 = arith.constant 0 : index
    %c0_1 = arith.constant 0 : index
    %0 = vector.load %arg1[%c0, %c0_0, %c0_1] : memref<7x8x32xbf16, #tpu.memory_space<vmem>>, vector<7x8x32xbf16>
    %1 = vector.shape_cast %0 : vector<7x8x32xbf16> to vector<56x32xbf16>
    %c0_2 = arith.constant 0 : index
    %c0_3 = arith.constant 0 : index
    %2 = vector.load %arg3[%c0_2, %c0_3] : memref<32x96xbf16, #tpu.memory_space<vmem>>, vector<32x96xbf16>
    %cst = arith.constant dense<0.000000e+00> : vector<56x96xf32>
    %3 = tpu.matmul %1, %2, %cst {dimension_numbers = #tpu.dot_dimension_numbers<[1], [0], [0], [1], [0, 0, 1, 1], [], []>} : vector<56x32xbf16>, vector<32x96xbf16>, vector<56x96xf32> -> vector<56x96xf32>
    %c0_4 = arith.constant 0 : index
    %c0_5 = arith.constant 0 : index
    %4 = vector.load %arg5[%c0_4, %c0_5] : memref<1x96xf32, #tpu.memory_space<vmem>>, vector<1x96xf32>
    %5 = vector.broadcast %4 : vector<1x96xf32> to vector<56x96xf32>
    %6 = arith.addf %3, %5 : vector<56x96xf32>
    %7 = vector.shape_cast %6 : vector<56x96xf32> to vector<7x8x96xf32>
    %c0_6 = arith.constant 0 : index
    %c0_7 = arith.constant 0 : index
    %c0_8 = arith.constant 0 : index
    %8 = vector.load %arg8[%c0_6, %c0_7, %c0_8] : memref<7x8x96xf32, #tpu.memory_space<vmem>>, vector<7x8x96xf32>
    tpu.vector_store %arg8[%c0_6, %c0_7, %c0_8], %7 {strides = array<i32>} : memref<7x8x96xf32, #tpu.memory_space<vmem>>, vector<7x8x96xf32>,
    %c0_9 = arith.constant 0 : index
    %c0_10 = arith.constant 0 : index
    %9 = vector.load %arg4[%c0_9, %c0_10] : memref<32x96xbf16, #tpu.memory_space<vmem>>, vector<32x96xbf16>
    %c0_11 = arith.constant 0 : index
    %c0_12 = arith.constant 0 : index
    %10 = vector.load %arg6[%c0_11, %c0_12] : memref<1x96xf32, #tpu.memory_space<vmem>>, vector<1x96xf32>
    %c0_13 = arith.constant 0 : index
    %c0_14 = arith.constant 0 : index
    %11 = vector.load %arg2[%c0_13, %c0_14] : memref<8x32xf32, #tpu.memory_space<vmem>>, vector<8x32xf32>
    %c0_i32 = arith.constant 0 : i32
    %12 = arith.index_cast %c0_i32 : i32 to index
    %c0_15 = arith.constant 0 : index
    %c0_16 = arith.constant 0 : index
    %13 = vector.load %arg8[%12, %c0_15, %c0_16] : memref<7x8x96xf32, #tpu.memory_space<vmem>>, vector<1x8x96xf32>
    %14 = vector.shape_cast %13 : vector<1x8x96xf32> to vector<8x96xf32>
    %15 = arith.truncf %11 : vector<8x32xf32> to vector<8x32xbf16>
    %cst_17 = arith.constant dense<0.000000e+00> : vector<8x96xf32>
    %16 = tpu.matmul %15, %9, %cst_17 {dimension_numbers = #tpu.dot_dimension_numbers<[1], [0], [0], [1], [0, 0, 1, 1], [], []>} : vector<8x32xbf16>, vector<32x96xbf16>, vector<8x96xf32> -> vector<8x96xf32>
    %17 = vector.broadcast %10 : vector<1x96xf32> to vector<8x96xf32>
    %18 = arith.addf %16, %17 : vector<8x96xf32>
    %19 = vector.extract_strided_slice %14 {offsets = [0, 0], sizes = [8, 32], strides = [1, 1]} : vector<8x96xf32> to vector<8x32xf32>
    %20 = vector.extract_strided_slice %18 {offsets = [0, 0], sizes = [8, 32], strides = [1, 1]} : vector<8x96xf32> to vector<8x32xf32>
    %21 = arith.addf %19, %20 : vector<8x32xf32>
    %22 = arith.negf %21 : vector<8x32xf32>
    %23 = math.exp %22 : vector<8x32xf32>
    %cst_18 = arith.constant 1.000000e+00 : f32
    %24 = vector.broadcast %cst_18 : f32 to vector<8x32xf32>
    %25 = arith.addf %24, %23 : vector<8x32xf32>
    %26 = arith.divf %24, %25 : vector<8x32xf32>
    %27 = vector.extract_strided_slice %14 {offsets = [0, 32], sizes = [8, 32], strides = [1, 1]} : vector<8x96xf32> to vector<8x32xf32>
    %28 = vector.extract_strided_slice %18 {offsets = [0, 32], sizes = [8, 32], strides = [1, 1]} : vector<8x96xf32> to vector<8x32xf32>
    %29 = arith.addf %27, %28 : vector<8x32xf32>
    %30 = arith.negf %29 : vector<8x32xf32>
    %31 = math.exp %30 : vector<8x32xf32>
    %cst_19 = arith.constant 1.000000e+00 : f32
    %32 = vector.broadcast %cst_19 : f32 to vector<8x32xf32>
    %33 = arith.addf %32, %31 : vector<8x32xf32>
    %34 = arith.divf %32, %33 : vector<8x32xf32>
    %35 = vector.extract_strided_slice %14 {offsets = [0, 64], sizes = [8, 32], strides = [1, 1]} : vector<8x96xf32> to vector<8x32xf32>
    %36 = vector.extract_strided_slice %18 {offsets = [0, 64], sizes = [8, 32], strides = [1, 1]} : vector<8x96xf32> to vector<8x32xf32>
    %37 = arith.mulf %26, %36 : vector<8x32xf32>
    %38 = arith.addf %35, %37 : vector<8x32xf32>
    %39 = math.tanh %38 : vector<8x32xf32>
    %cst_20 = arith.constant 1.000000e+00 : f32
    %40 = vector.broadcast %cst_20 : f32 to vector<8x32xf32>
    %41 = arith.subf %40, %34 : vector<8x32xf32>
    %42 = arith.mulf %41, %39 : vector<8x32xf32>
    %43 = arith.mulf %34, %11 : vector<8x32xf32>
    %44 = arith.addf %42, %43 : vector<8x32xf32>
    %45 = arith.index_cast %c0_i32 : i32 to index
    %c0_21 = arith.constant 0 : index
    %c0_22 = arith.constant 0 : index
    %46 = vector.load %arg7[%45, %c0_21, %c0_22] : memref<7x8x32xf32, #tpu.memory_space<vmem>>, vector<1x8x32xf32>
    %47 = vector.shape_cast %46 : vector<1x8x32xf32> to vector<8x32xf32>
    %48 = vector.shape_cast %44 : vector<8x32xf32> to vector<1x8x32xf32>
    tpu.vector_store %arg7[%45, %c0_21, %c0_22], %48 {strides = array<i32>} : memref<7x8x32xf32, #tpu.memory_space<vmem>>, vector<1x8x32xf32>,
    %c1_i32 = arith.constant 1 : i32
    %49 = arith.index_cast %c1_i32 : i32 to index
    %c0_23 = arith.constant 0 : index
    %c0_24 = arith.constant 0 : index
    %50 = vector.load %arg8[%49, %c0_23, %c0_24] : memref<7x8x96xf32, #tpu.memory_space<vmem>>, vector<1x8x96xf32>
    %51 = vector.shape_cast %50 : vector<1x8x96xf32> to vector<8x96xf32>
    %52 = arith.truncf %44 : vector<8x32xf32> to vector<8x32xbf16>
    %cst_25 = arith.constant dense<0.000000e+00> : vector<8x96xf32>
    %53 = tpu.matmul %52, %9, %cst_25 {dimension_numbers = #tpu.dot_dimension_numbers<[1], [0], [0], [1], [0, 0, 1, 1], [], []>} : vector<8x32xbf16>, vector<32x96xbf16>, vector<8x96xf32> -> vector<8x96xf32>
    %54 = vector.broadcast %10 : vector<1x96xf32> to vector<8x96xf32>
    %55 = arith.addf %53, %54 : vector<8x96xf32>
    %56 = vector.extract_strided_slice %51 {offsets = [0, 0], sizes = [8, 32], strides = [1, 1]} : vector<8x96xf32> to vector<8x32xf32>
    %57 = vector.extract_strided_slice %55 {offsets = [0, 0], sizes = [8, 32], strides = [1, 1]} : vector<8x96xf32> to vector<8x32xf32>
    %58 = arith.addf %56, %57 : vector<8x32xf32>
    %59 = arith.negf %58 : vector<8x32xf32>
    %60 = math.exp %59 : vector<8x32xf32>
    %cst_26 = arith.constant 1.000000e+00 : f32
    %61 = vector.broadcast %cst_26 : f32 to vector<8x32xf32>
    %62 = arith.addf %61, %60 : vector<8x32xf32>
    %63 = arith.divf %61, %62 : vector<8x32xf32>
    %64 = vector.extract_strided_slice %51 {offsets = [0, 32], sizes = [8, 32], strides = [1, 1]} : vector<8x96xf32> to vector<8x32xf32>
    %65 = vector.extract_strided_slice %55 {offsets = [0, 32], sizes = [8, 32], strides = [1, 1]} : vector<8x96xf32> to vector<8x32xf32>
    %66 = arith.addf %64, %65 : vector<8x32xf32>
    %67 = arith.negf %66 : vector<8x32xf32>
    %68 = math.exp %67 : vector<8x32xf32>
    %cst_27 = arith.constant 1.000000e+00 : f32
    %69 = vector.broadcast %cst_27 : f32 to vector<8x32xf32>
    %70 = arith.addf %69, %68 : vector<8x32xf32>
    %71 = arith.divf %69, %70 : vector<8x32xf32>
    %72 = vector.extract_strided_slice %51 {offsets = [0, 64], sizes = [8, 32], strides = [1, 1]} : vector<8x96xf32> to vector<8x32xf32>
    %73 = vector.extract_strided_slice %55 {offsets = [0, 64], sizes = [8, 32], strides = [1, 1]} : vector<8x96xf32> to vector<8x32xf32>
    %74 = arith.mulf %63, %73 : vector<8x32xf32>
    %75 = arith.addf %72, %74 : vector<8x32xf32>
    %76 = math.tanh %75 : vector<8x32xf32>
    %cst_28 = arith.constant 1.000000e+00 : f32
    %77 = vector.broadcast %cst_28 : f32 to vector<8x32xf32>
    %78 = arith.subf %77, %71 : vector<8x32xf32>
    %79 = arith.mulf %78, %76 : vector<8x32xf32>
    %80 = arith.mulf %71, %44 : vector<8x32xf32>
    %81 = arith.addf %79, %80 : vector<8x32xf32>
    %82 = arith.index_cast %c1_i32 : i32 to index
    %c0_29 = arith.constant 0 : index
    %c0_30 = arith.constant 0 : index
    %83 = vector.load %arg7[%82, %c0_29, %c0_30] : memref<7x8x32xf32, #tpu.memory_space<vmem>>, vector<1x8x32xf32>
    %84 = vector.shape_cast %83 : vector<1x8x32xf32> to vector<8x32xf32>
    %85 = vector.shape_cast %81 : vector<8x32xf32> to vector<1x8x32xf32>
    tpu.vector_store %arg7[%82, %c0_29, %c0_30], %85 {strides = array<i32>} : memref<7x8x32xf32, #tpu.memory_space<vmem>>, vector<1x8x32xf32>,
    %c2_i32 = arith.constant 2 : i32
    %86 = arith.index_cast %c2_i32 : i32 to index
    %c0_31 = arith.constant 0 : index
    %c0_32 = arith.constant 0 : index
    %87 = vector.load %arg8[%86, %c0_31, %c0_32] : memref<7x8x96xf32, #tpu.memory_space<vmem>>, vector<1x8x96xf32>
    %88 = vector.shape_cast %87 : vector<1x8x96xf32> to vector<8x96xf32>
    %89 = arith.truncf %81 : vector<8x32xf32> to vector<8x32xbf16>
    %cst_33 = arith.constant dense<0.000000e+00> : vector<8x96xf32>
    %90 = tpu.matmul %89, %9, %cst_33 {dimension_numbers = #tpu.dot_dimension_numbers<[1], [0], [0], [1], [0, 0, 1, 1], [], []>} : vector<8x32xbf16>, vector<32x96xbf16>, vector<8x96xf32> -> vector<8x96xf32>
    %91 = vector.broadcast %10 : vector<1x96xf32> to vector<8x96xf32>
    %92 = arith.addf %90, %91 : vector<8x96xf32>
    %93 = vector.extract_strided_slice %88 {offsets = [0, 0], sizes = [8, 32], strides = [1, 1]} : vector<8x96xf32> to vector<8x32xf32>
    %94 = vector.extract_strided_slice %92 {offsets = [0, 0], sizes = [8, 32], strides = [1, 1]} : vector<8x96xf32> to vector<8x32xf32>
    %95 = arith.addf %93, %94 : vector<8x32xf32>
    %96 = arith.negf %95 : vector<8x32xf32>
    %97 = math.exp %96 : vector<8x32xf32>
    %cst_34 = arith.constant 1.000000e+00 : f32
    %98 = vector.broadcast %cst_34 : f32 to vector<8x32xf32>
    %99 = arith.addf %98, %97 : vector<8x32xf32>
    %100 = arith.divf %98, %99 : vector<8x32xf32>
    %101 = vector.extract_strided_slice %88 {offsets = [0, 32], sizes = [8, 32], strides = [1, 1]} : vector<8x96xf32> to vector<8x32xf32>
    %102 = vector.extract_strided_slice %92 {offsets = [0, 32], sizes = [8, 32], strides = [1, 1]} : vector<8x96xf32> to vector<8x32xf32>
    %103 = arith.addf %101, %102 : vector<8x32xf32>
    %104 = arith.negf %103 : vector<8x32xf32>
    %105 = math.exp %104 : vector<8x32xf32>
    %cst_35 = arith.constant 1.000000e+00 : f32
    %106 = vector.broadcast %cst_35 : f32 to vector<8x32xf32>
    %107 = arith.addf %106, %105 : vector<8x32xf32>
    %108 = arith.divf %106, %107 : vector<8x32xf32>
    %109 = vector.extract_strided_slice %88 {offsets = [0, 64], sizes = [8, 32], strides = [1, 1]} : vector<8x96xf32> to vector<8x32xf32>
    %110 = vector.extract_strided_slice %92 {offsets = [0, 64], sizes = [8, 32], strides = [1, 1]} : vector<8x96xf32> to vector<8x32xf32>
    %111 = arith.mulf %100, %110 : vector<8x32xf32>
    %112 = arith.addf %109, %111 : vector<8x32xf32>
    %113 = math.tanh %112 : vector<8x32xf32>
    %cst_36 = arith.constant 1.000000e+00 : f32
    %114 = vector.broadcast %cst_36 : f32 to vector<8x32xf32>
    %115 = arith.subf %114, %108 : vector<8x32xf32>
    %116 = arith.mulf %115, %113 : vector<8x32xf32>
    %117 = arith.mulf %108, %81 : vector<8x32xf32>
    %118 = arith.addf %116, %117 : vector<8x32xf32>
    %119 = arith.index_cast %c2_i32 : i32 to index
    %c0_37 = arith.constant 0 : index
    %c0_38 = arith.constant 0 : index
    %120 = vector.load %arg7[%119, %c0_37, %c0_38] : memref<7x8x32xf32, #tpu.memory_space<vmem>>, vector<1x8x32xf32>
    %121 = vector.shape_cast %120 : vector<1x8x32xf32> to vector<8x32xf32>
    %122 = vector.shape_cast %118 : vector<8x32xf32> to vector<1x8x32xf32>
    tpu.vector_store %arg7[%119, %c0_37, %c0_38], %122 {strides = array<i32>} : memref<7x8x32xf32, #tpu.memory_space<vmem>>, vector<1x8x32xf32>,
    %c3_i32 = arith.constant 3 : i32
    %123 = arith.index_cast %c3_i32 : i32 to index
    %c0_39 = arith.constant 0 : index
    %c0_40 = arith.constant 0 : index
    %124 = vector.load %arg8[%123, %c0_39, %c0_40] : memref<7x8x96xf32, #tpu.memory_space<vmem>>, vector<1x8x96xf32>
    %125 = vector.shape_cast %124 : vector<1x8x96xf32> to vector<8x96xf32>
    %126 = arith.truncf %118 : vector<8x32xf32> to vector<8x32xbf16>
    %cst_41 = arith.constant dense<0.000000e+00> : vector<8x96xf32>
    %127 = tpu.matmul %126, %9, %cst_41 {dimension_numbers = #tpu.dot_dimension_numbers<[1], [0], [0], [1], [0, 0, 1, 1], [], []>} : vector<8x32xbf16>, vector<32x96xbf16>, vector<8x96xf32> -> vector<8x96xf32>
    %128 = vector.broadcast %10 : vector<1x96xf32> to vector<8x96xf32>
    %129 = arith.addf %127, %128 : vector<8x96xf32>
    %130 = vector.extract_strided_slice %125 {offsets = [0, 0], sizes = [8, 32], strides = [1, 1]} : vector<8x96xf32> to vector<8x32xf32>
    %131 = vector.extract_strided_slice %129 {offsets = [0, 0], sizes = [8, 32], strides = [1, 1]} : vector<8x96xf32> to vector<8x32xf32>
    %132 = arith.addf %130, %131 : vector<8x32xf32>
    %133 = arith.negf %132 : vector<8x32xf32>
    %134 = math.exp %133 : vector<8x32xf32>
    %cst_42 = arith.constant 1.000000e+00 : f32
    %135 = vector.broadcast %cst_42 : f32 to vector<8x32xf32>
    %136 = arith.addf %135, %134 : vector<8x32xf32>
    %137 = arith.divf %135, %136 : vector<8x32xf32>
    %138 = vector.extract_strided_slice %125 {offsets = [0, 32], sizes = [8, 32], strides = [1, 1]} : vector<8x96xf32> to vector<8x32xf32>
    %139 = vector.extract_strided_slice %129 {offsets = [0, 32], sizes = [8, 32], strides = [1, 1]} : vector<8x96xf32> to vector<8x32xf32>
    %140 = arith.addf %138, %139 : vector<8x32xf32>
    %141 = arith.negf %140 : vector<8x32xf32>
    %142 = math.exp %141 : vector<8x32xf32>
    %cst_43 = arith.constant 1.000000e+00 : f32
    %143 = vector.broadcast %cst_43 : f32 to vector<8x32xf32>
    %144 = arith.addf %143, %142 : vector<8x32xf32>
    %145 = arith.divf %143, %144 : vector<8x32xf32>
    %146 = vector.extract_strided_slice %125 {offsets = [0, 64], sizes = [8, 32], strides = [1, 1]} : vector<8x96xf32> to vector<8x32xf32>
    %147 = vector.extract_strided_slice %129 {offsets = [0, 64], sizes = [8, 32], strides = [1, 1]} : vector<8x96xf32> to vector<8x32xf32>
    %148 = arith.mulf %137, %147 : vector<8x32xf32>
    %149 = arith.addf %146, %148 : vector<8x32xf32>
    %150 = math.tanh %149 : vector<8x32xf32>
    %cst_44 = arith.constant 1.000000e+00 : f32
    %151 = vector.broadcast %cst_44 : f32 to vector<8x32xf32>
    %152 = arith.subf %151, %145 : vector<8x32xf32>
    %153 = arith.mulf %152, %150 : vector<8x32xf32>
    %154 = arith.mulf %145, %118 : vector<8x32xf32>
    %155 = arith.addf %153, %154 : vector<8x32xf32>
    %156 = arith.index_cast %c3_i32 : i32 to index
    %c0_45 = arith.constant 0 : index
    %c0_46 = arith.constant 0 : index
    %157 = vector.load %arg7[%156, %c0_45, %c0_46] : memref<7x8x32xf32, #tpu.memory_space<vmem>>, vector<1x8x32xf32>
    %158 = vector.shape_cast %157 : vector<1x8x32xf32> to vector<8x32xf32>
    %159 = vector.shape_cast %155 : vector<8x32xf32> to vector<1x8x32xf32>
    tpu.vector_store %arg7[%156, %c0_45, %c0_46], %159 {strides = array<i32>} : memref<7x8x32xf32, #tpu.memory_space<vmem>>, vector<1x8x32xf32>,
    %c4_i32 = arith.constant 4 : i32
    %160 = arith.index_cast %c4_i32 : i32 to index
    %c0_47 = arith.constant 0 : index
    %c0_48 = arith.constant 0 : index
    %161 = vector.load %arg8[%160, %c0_47, %c0_48] : memref<7x8x96xf32, #tpu.memory_space<vmem>>, vector<1x8x96xf32>
    %162 = vector.shape_cast %161 : vector<1x8x96xf32> to vector<8x96xf32>
    %163 = arith.truncf %155 : vector<8x32xf32> to vector<8x32xbf16>
    %cst_49 = arith.constant dense<0.000000e+00> : vector<8x96xf32>
    %164 = tpu.matmul %163, %9, %cst_49 {dimension_numbers = #tpu.dot_dimension_numbers<[1], [0], [0], [1], [0, 0, 1, 1], [], []>} : vector<8x32xbf16>, vector<32x96xbf16>, vector<8x96xf32> -> vector<8x96xf32>
    %165 = vector.broadcast %10 : vector<1x96xf32> to vector<8x96xf32>
    %166 = arith.addf %164, %165 : vector<8x96xf32>
    %167 = vector.extract_strided_slice %162 {offsets = [0, 0], sizes = [8, 32], strides = [1, 1]} : vector<8x96xf32> to vector<8x32xf32>
    %168 = vector.extract_strided_slice %166 {offsets = [0, 0], sizes = [8, 32], strides = [1, 1]} : vector<8x96xf32> to vector<8x32xf32>
    %169 = arith.addf %167, %168 : vector<8x32xf32>
    %170 = arith.negf %169 : vector<8x32xf32>
    %171 = math.exp %170 : vector<8x32xf32>
    %cst_50 = arith.constant 1.000000e+00 : f32
    %172 = vector.broadcast %cst_50 : f32 to vector<8x32xf32>
    %173 = arith.addf %172, %171 : vector<8x32xf32>
    %174 = arith.divf %172, %173 : vector<8x32xf32>
    %175 = vector.extract_strided_slice %162 {offsets = [0, 32], sizes = [8, 32], strides = [1, 1]} : vector<8x96xf32> to vector<8x32xf32>
    %176 = vector.extract_strided_slice %166 {offsets = [0, 32], sizes = [8, 32], strides = [1, 1]} : vector<8x96xf32> to vector<8x32xf32>
    %177 = arith.addf %175, %176 : vector<8x32xf32>
    %178 = arith.negf %177 : vector<8x32xf32>
    %179 = math.exp %178 : vector<8x32xf32>
    %cst_51 = arith.constant 1.000000e+00 : f32
    %180 = vector.broadcast %cst_51 : f32 to vector<8x32xf32>
    %181 = arith.addf %180, %179 : vector<8x32xf32>
    %182 = arith.divf %180, %181 : vector<8x32xf32>
    %183 = vector.extract_strided_slice %162 {offsets = [0, 64], sizes = [8, 32], strides = [1, 1]} : vector<8x96xf32> to vector<8x32xf32>
    %184 = vector.extract_strided_slice %166 {offsets = [0, 64], sizes = [8, 32], strides = [1, 1]} : vector<8x96xf32> to vector<8x32xf32>
    %185 = arith.mulf %174, %184 : vector<8x32xf32>
    %186 = arith.addf %183, %185 : vector<8x32xf32>
    %187 = math.tanh %186 : vector<8x32xf32>
    %cst_52 = arith.constant 1.000000e+00 : f32
    %188 = vector.broadcast %cst_52 : f32 to vector<8x32xf32>
    %189 = arith.subf %188, %182 : vector<8x32xf32>
    %190 = arith.mulf %189, %187 : vector<8x32xf32>
    %191 = arith.mulf %182, %155 : vector<8x32xf32>
    %192 = arith.addf %190, %191 : vector<8x32xf32>
    %193 = arith.index_cast %c4_i32 : i32 to index
    %c0_53 = arith.constant 0 : index
    %c0_54 = arith.constant 0 : index
    %194 = vector.load %arg7[%193, %c0_53, %c0_54] : memref<7x8x32xf32, #tpu.memory_space<vmem>>, vector<1x8x32xf32>
    %195 = vector.shape_cast %194 : vector<1x8x32xf32> to vector<8x32xf32>
    %196 = vector.shape_cast %192 : vector<8x32xf32> to vector<1x8x32xf32>
    tpu.vector_store %arg7[%193, %c0_53, %c0_54], %196 {strides = array<i32>} : memref<7x8x32xf32, #tpu.memory_space<vmem>>, vector<1x8x32xf32>,
    %c5_i32 = arith.constant 5 : i32
    %197 = arith.index_cast %c5_i32 : i32 to index
    %c0_55 = arith.constant 0 : index
    %c0_56 = arith.constant 0 : index
    %198 = vector.load %arg8[%197, %c0_55, %c0_56] : memref<7x8x96xf32, #tpu.memory_space<vmem>>, vector<1x8x96xf32>
    %199 = vector.shape_cast %198 : vector<1x8x96xf32> to vector<8x96xf32>
    %200 = arith.truncf %192 : vector<8x32xf32> to vector<8x32xbf16>
    %cst_57 = arith.constant dense<0.000000e+00> : vector<8x96xf32>
    %201 = tpu.matmul %200, %9, %cst_57 {dimension_numbers = #tpu.dot_dimension_numbers<[1], [0], [0], [1], [0, 0, 1, 1], [], []>} : vector<8x32xbf16>, vector<32x96xbf16>, vector<8x96xf32> -> vector<8x96xf32>
    %202 = vector.broadcast %10 : vector<1x96xf32> to vector<8x96xf32>
    %203 = arith.addf %201, %202 : vector<8x96xf32>
    %204 = vector.extract_strided_slice %199 {offsets = [0, 0], sizes = [8, 32], strides = [1, 1]} : vector<8x96xf32> to vector<8x32xf32>
    %205 = vector.extract_strided_slice %203 {offsets = [0, 0], sizes = [8, 32], strides = [1, 1]} : vector<8x96xf32> to vector<8x32xf32>
    %206 = arith.addf %204, %205 : vector<8x32xf32>
    %207 = arith.negf %206 : vector<8x32xf32>
    %208 = math.exp %207 : vector<8x32xf32>
    %cst_58 = arith.constant 1.000000e+00 : f32
    %209 = vector.broadcast %cst_58 : f32 to vector<8x32xf32>
    %210 = arith.addf %209, %208 : vector<8x32xf32>
    %211 = arith.divf %209, %210 : vector<8x32xf32>
    %212 = vector.extract_strided_slice %199 {offsets = [0, 32], sizes = [8, 32], strides = [1, 1]} : vector<8x96xf32> to vector<8x32xf32>
    %213 = vector.extract_strided_slice %203 {offsets = [0, 32], sizes = [8, 32], strides = [1, 1]} : vector<8x96xf32> to vector<8x32xf32>
    %214 = arith.addf %212, %213 : vector<8x32xf32>
    %215 = arith.negf %214 : vector<8x32xf32>
    %216 = math.exp %215 : vector<8x32xf32>
    %cst_59 = arith.constant 1.000000e+00 : f32
    %217 = vector.broadcast %cst_59 : f32 to vector<8x32xf32>
    %218 = arith.addf %217, %216 : vector<8x32xf32>
    %219 = arith.divf %217, %218 : vector<8x32xf32>
    %220 = vector.extract_strided_slice %199 {offsets = [0, 64], sizes = [8, 32], strides = [1, 1]} : vector<8x96xf32> to vector<8x32xf32>
    %221 = vector.extract_strided_slice %203 {offsets = [0, 64], sizes = [8, 32], strides = [1, 1]} : vector<8x96xf32> to vector<8x32xf32>
    %222 = arith.mulf %211, %221 : vector<8x32xf32>
    %223 = arith.addf %220, %222 : vector<8x32xf32>
    %224 = math.tanh %223 : vector<8x32xf32>
    %cst_60 = arith.constant 1.000000e+00 : f32
    %225 = vector.broadcast %cst_60 : f32 to vector<8x32xf32>
    %226 = arith.subf %225, %219 : vector<8x32xf32>
    %227 = arith.mulf %226, %224 : vector<8x32xf32>
    %228 = arith.mulf %219, %192 : vector<8x32xf32>
    %229 = arith.addf %227, %228 : vector<8x32xf32>
    %230 = arith.index_cast %c5_i32 : i32 to index
    %c0_61 = arith.constant 0 : index
    %c0_62 = arith.constant 0 : index
    %231 = vector.load %arg7[%230, %c0_61, %c0_62] : memref<7x8x32xf32, #tpu.memory_space<vmem>>, vector<1x8x32xf32>
    %232 = vector.shape_cast %231 : vector<1x8x32xf32> to vector<8x32xf32>
    %233 = vector.shape_cast %229 : vector<8x32xf32> to vector<1x8x32xf32>
    tpu.vector_store %arg7[%230, %c0_61, %c0_62], %233 {strides = array<i32>} : memref<7x8x32xf32, #tpu.memory_space<vmem>>, vector<1x8x32xf32>,
    %c6_i32 = arith.constant 6 : i32
    %234 = arith.index_cast %c6_i32 : i32 to index
    %c0_63 = arith.constant 0 : index
    %c0_64 = arith.constant 0 : index
    %235 = vector.load %arg8[%234, %c0_63, %c0_64] : memref<7x8x96xf32, #tpu.memory_space<vmem>>, vector<1x8x96xf32>
    %236 = vector.shape_cast %235 : vector<1x8x96xf32> to vector<8x96xf32>
    %237 = arith.truncf %229 : vector<8x32xf32> to vector<8x32xbf16>
    %cst_65 = arith.constant dense<0.000000e+00> : vector<8x96xf32>
    %238 = tpu.matmul %237, %9, %cst_65 {dimension_numbers = #tpu.dot_dimension_numbers<[1], [0], [0], [1], [0, 0, 1, 1], [], []>} : vector<8x32xbf16>, vector<32x96xbf16>, vector<8x96xf32> -> vector<8x96xf32>
    %239 = vector.broadcast %10 : vector<1x96xf32> to vector<8x96xf32>
    %240 = arith.addf %238, %239 : vector<8x96xf32>
    %241 = vector.extract_strided_slice %236 {offsets = [0, 0], sizes = [8, 32], strides = [1, 1]} : vector<8x96xf32> to vector<8x32xf32>
    %242 = vector.extract_strided_slice %240 {offsets = [0, 0], sizes = [8, 32], strides = [1, 1]} : vector<8x96xf32> to vector<8x32xf32>
    %243 = arith.addf %241, %242 : vector<8x32xf32>
    %244 = arith.negf %243 : vector<8x32xf32>
    %245 = math.exp %244 : vector<8x32xf32>
    %cst_66 = arith.constant 1.000000e+00 : f32
    %246 = vector.broadcast %cst_66 : f32 to vector<8x32xf32>
    %247 = arith.addf %246, %245 : vector<8x32xf32>
    %248 = arith.divf %246, %247 : vector<8x32xf32>
    %249 = vector.extract_strided_slice %236 {offsets = [0, 32], sizes = [8, 32], strides = [1, 1]} : vector<8x96xf32> to vector<8x32xf32>
    %250 = vector.extract_strided_slice %240 {offsets = [0, 32], sizes = [8, 32], strides = [1, 1]} : vector<8x96xf32> to vector<8x32xf32>
    %251 = arith.addf %249, %250 : vector<8x32xf32>
    %252 = arith.negf %251 : vector<8x32xf32>
    %253 = math.exp %252 : vector<8x32xf32>
    %cst_67 = arith.constant 1.000000e+00 : f32
    %254 = vector.broadcast %cst_67 : f32 to vector<8x32xf32>
    %255 = arith.addf %254, %253 : vector<8x32xf32>
    %256 = arith.divf %254, %255 : vector<8x32xf32>
    %257 = vector.extract_strided_slice %236 {offsets = [0, 64], sizes = [8, 32], strides = [1, 1]} : vector<8x96xf32> to vector<8x32xf32>
    %258 = vector.extract_strided_slice %240 {offsets = [0, 64], sizes = [8, 32], strides = [1, 1]} : vector<8x96xf32> to vector<8x32xf32>
    %259 = arith.mulf %248, %258 : vector<8x32xf32>
    %260 = arith.addf %257, %259 : vector<8x32xf32>
    %261 = math.tanh %260 : vector<8x32xf32>
    %cst_68 = arith.constant 1.000000e+00 : f32
    %262 = vector.broadcast %cst_68 : f32 to vector<8x32xf32>
    %263 = arith.subf %262, %256 : vector<8x32xf32>
    %264 = arith.mulf %263, %261 : vector<8x32xf32>
    %265 = arith.mulf %256, %229 : vector<8x32xf32>
    %266 = arith.addf %264, %265 : vector<8x32xf32>
    %267 = arith.index_cast %c6_i32 : i32 to index
    %c0_69 = arith.constant 0 : index
    %c0_70 = arith.constant 0 : index
    %268 = vector.load %arg7[%267, %c0_69, %c0_70] : memref<7x8x32xf32, #tpu.memory_space<vmem>>, vector<1x8x32xf32>
    %269 = vector.shape_cast %268 : vector<1x8x32xf32> to vector<8x32xf32>
    %270 = vector.shape_cast %266 : vector<8x32xf32> to vector<1x8x32xf32>
    tpu.vector_store %arg7[%267, %c0_69, %c0_70], %270 {strides = array<i32>} : memref<7x8x32xf32, #tpu.memory_space<vmem>>, vector<1x8x32xf32>,
    %c7_i32 = arith.constant 7 : i32
    return
  }
  func.func @transform_0(%arg0: i32) -> (i32, i32, i32) {
    %c0_i32 = arith.constant 0 : i32
    %c0_i32_0 = arith.constant 0 : i32
    %c0_i32_1 = arith.constant 0 : i32
    return %c0_i32, %arg0, %c0_i32_0 : i32, i32, i32
  }
  func.func @transform_1(%arg0: i32) -> (i32, i32) {
    %c0_i32 = arith.constant 0 : i32
    %c0_i32_0 = arith.constant 0 : i32
    return %arg0, %c0_i32 : i32, i32
  }
  func.func @transform_2(%arg0: i32) -> (i32, i32) {
    %c0_i32 = arith.constant 0 : i32
    %c0_i32_0 = arith.constant 0 : i32
    %c0_i32_1 = arith.constant 0 : i32
    return %c0_i32, %c0_i32_0 : i32, i32
  }
  func.func @transform_3(%arg0: i32) -> (i32, i32) {
    %c0_i32 = arith.constant 0 : i32
    %c0_i32_0 = arith.constant 0 : i32
    %c0_i32_1 = arith.constant 0 : i32
    return %c0_i32, %c0_i32_0 : i32, i32
  }
  func.func @transform_4(%arg0: i32) -> (i32, i32) {
    %c0_i32 = arith.constant 0 : i32
    %c0_i32_0 = arith.constant 0 : i32
    %c0_i32_1 = arith.constant 0 : i32
    return %c0_i32, %c0_i32_0 : i32, i32
  }
  func.func @transform_5(%arg0: i32) -> (i32, i32) {
    %c0_i32 = arith.constant 0 : i32
    %c0_i32_0 = arith.constant 0 : i32
    %c0_i32_1 = arith.constant 0 : i32
    return %c0_i32, %c0_i32_0 : i32, i32
  }
  func.func @transform_6(%arg0: i32) -> (i32, i32, i32) {
    %c0_i32 = arith.constant 0 : i32
    %c0_i32_0 = arith.constant 0 : i32
    %c0_i32_1 = arith.constant 0 : i32
    return %c0_i32, %arg0, %c0_i32_0 : i32, i32, i32
  }
}

module attributes {stable_mosaic.version = 11 : i64} {
  func.func @_head_logits_kernel(%arg0: i32, %arg1: i32, %arg2: memref<112x32xf32, #tpu.memory_space<vmem>>, %arg3: memref<32x128xbf16, #tpu.memory_space<vmem>>, %arg4: memref<1x128xf32, #tpu.memory_space<vmem>>, %arg5: memref<112x128xf32, #tpu.memory_space<vmem>>, %arg6: memref<112x1xf32, #tpu.memory_space<vmem>>, %arg7: memref<112x1xf32, #tpu.memory_space<vmem>>, %arg8: memref<112x1xf32, #tpu.memory_space<vmem>>) attributes {dimension_semantics = [#tpu.dimension_semantics<parallel>, #tpu.dimension_semantics<arbitrary>], iteration_bounds = array<i64: 1, 1>, scalar_prefetch = 0 : i64, scratch_operands = 2 : i64, tpu.core_type = #tpu.core_type<tc>, window_params = [{transform_indices = @transform_0, window_bounds = array<i64: 112, 32>}, {transform_indices = @transform_1, window_bounds = array<i64: 32, 128>}, {transform_indices = @transform_2, window_bounds = array<i64: 1, 128>}, {transform_indices = @transform_3, window_bounds = array<i64: 112, 128>}, {transform_indices = @transform_4, window_bounds = array<i64: 112, 1>}]} {
    %c0_i32 = arith.constant 0 : i32
    %0 = arith.cmpi eq, %arg1, %c0_i32 : i32
    %1 = arith.extui %0 : i1 to i32
    %c0_i32_0 = arith.constant 0 : i32
    %2 = arith.cmpi ne, %1, %c0_i32_0 : i32
    scf.if %2 {
      %cst_20 = arith.constant 0xFF800000 : f32
      %30 = vector.broadcast %cst_20 : f32 to vector<112x1xf32>
      %c0_21 = arith.constant 0 : index
      %c0_22 = arith.constant 0 : index
      %31 = vector.load %arg7[%c0_21, %c0_22] : memref<112x1xf32, #tpu.memory_space<vmem>>, vector<112x1xf32>
      tpu.vector_store %arg7[%c0_21, %c0_22], %30 {strides = array<i32>} : memref<112x1xf32, #tpu.memory_space<vmem>>, vector<112x1xf32>,
      %cst_23 = arith.constant 0.000000e+00 : f32
      %32 = vector.broadcast %cst_23 : f32 to vector<112x1xf32>
      %c0_24 = arith.constant 0 : index
      %c0_25 = arith.constant 0 : index
      %33 = vector.load %arg8[%c0_24, %c0_25] : memref<112x1xf32, #tpu.memory_space<vmem>>, vector<112x1xf32>
      tpu.vector_store %arg8[%c0_24, %c0_25], %32 {strides = array<i32>} : memref<112x1xf32, #tpu.memory_space<vmem>>, vector<112x1xf32>,
    } else {
    }
    %c0 = arith.constant 0 : index
    %c0_1 = arith.constant 0 : index
    %3 = vector.load %arg2[%c0, %c0_1] : memref<112x32xf32, #tpu.memory_space<vmem>>, vector<112x32xf32>
    %4 = arith.truncf %3 : vector<112x32xf32> to vector<112x32xbf16>
    %c0_2 = arith.constant 0 : index
    %c0_3 = arith.constant 0 : index
    %5 = vector.load %arg3[%c0_2, %c0_3] : memref<32x128xbf16, #tpu.memory_space<vmem>>, vector<32x128xbf16>
    %cst = arith.constant dense<0.000000e+00> : vector<112x128xf32>
    %6 = tpu.matmul %4, %5, %cst {dimension_numbers = #tpu.dot_dimension_numbers<[1], [0], [0], [1], [0, 0, 1, 1], [], []>} : vector<112x32xbf16>, vector<32x128xbf16>, vector<112x128xf32> -> vector<112x128xf32>
    %c0_4 = arith.constant 0 : index
    %c0_5 = arith.constant 0 : index
    %7 = vector.load %arg4[%c0_4, %c0_5] : memref<1x128xf32, #tpu.memory_space<vmem>>, vector<1x128xf32>
    %8 = vector.broadcast %7 : vector<1x128xf32> to vector<112x128xf32>
    %9 = arith.addf %6, %8 : vector<112x128xf32>
    %c0_6 = arith.constant 0 : index
    %c0_7 = arith.constant 0 : index
    %10 = vector.load %arg5[%c0_6, %c0_7] : memref<112x128xf32, #tpu.memory_space<vmem>>, vector<112x128xf32>
    tpu.vector_store %arg5[%c0_6, %c0_7], %9 {strides = array<i32>} : memref<112x128xf32, #tpu.memory_space<vmem>>, vector<112x128xf32>,
    %c0_8 = arith.constant 0 : index
    %c0_9 = arith.constant 0 : index
    %11 = vector.load %arg7[%c0_8, %c0_9] : memref<112x1xf32, #tpu.memory_space<vmem>>, vector<112x1xf32>
    %cst_10 = arith.constant dense<0xFF800000> : vector<112xf32>
    %12 = vector.multi_reduction <maximumf>, %9, %cst_10 [1] : vector<112x128xf32> to vector<112xf32>
    %13 = vector.shape_cast %12 : vector<112xf32> to vector<112x1xf32>
    %14 = arith.maximumf %11, %13 : vector<112x1xf32>
    %c0_11 = arith.constant 0 : index
    %c0_12 = arith.constant 0 : index
    %15 = vector.load %arg8[%c0_11, %c0_12] : memref<112x1xf32, #tpu.memory_space<vmem>>, vector<112x1xf32>
    %16 = arith.subf %11, %14 : vector<112x1xf32>
    %17 = math.exp %16 : vector<112x1xf32>
    %18 = arith.mulf %15, %17 : vector<112x1xf32>
    %19 = vector.broadcast %14 : vector<112x1xf32> to vector<112x128xf32>
    %20 = arith.subf %9, %19 : vector<112x128xf32>
    %21 = math.exp %20 : vector<112x128xf32>
    %cst_13 = arith.constant dense<0.000000e+00> : vector<112xf32>
    %22 = vector.multi_reduction <add>, %21, %cst_13 [1] : vector<112x128xf32> to vector<112xf32>
    %23 = vector.shape_cast %22 : vector<112xf32> to vector<112x1xf32>
    %24 = arith.addf %18, %23 : vector<112x1xf32>
    %c0_14 = arith.constant 0 : index
    %c0_15 = arith.constant 0 : index
    %25 = vector.load %arg8[%c0_14, %c0_15] : memref<112x1xf32, #tpu.memory_space<vmem>>, vector<112x1xf32>
    tpu.vector_store %arg8[%c0_14, %c0_15], %24 {strides = array<i32>} : memref<112x1xf32, #tpu.memory_space<vmem>>, vector<112x1xf32>,
    %c0_16 = arith.constant 0 : index
    %c0_17 = arith.constant 0 : index
    %26 = vector.load %arg7[%c0_16, %c0_17] : memref<112x1xf32, #tpu.memory_space<vmem>>, vector<112x1xf32>
    tpu.vector_store %arg7[%c0_16, %c0_17], %14 {strides = array<i32>} : memref<112x1xf32, #tpu.memory_space<vmem>>, vector<112x1xf32>,
    %c0_i32_18 = arith.constant 0 : i32
    %27 = arith.cmpi eq, %arg1, %c0_i32_18 : i32
    %28 = arith.extui %27 : i1 to i32
    %c0_i32_19 = arith.constant 0 : i32
    %29 = arith.cmpi ne, %28, %c0_i32_19 : i32
    scf.if %29 {
      %c0_20 = arith.constant 0 : index
      %c0_21 = arith.constant 0 : index
      %30 = vector.load %arg7[%c0_20, %c0_21] : memref<112x1xf32, #tpu.memory_space<vmem>>, vector<112x1xf32>
      %c0_22 = arith.constant 0 : index
      %c0_23 = arith.constant 0 : index
      %31 = vector.load %arg8[%c0_22, %c0_23] : memref<112x1xf32, #tpu.memory_space<vmem>>, vector<112x1xf32>
      %32 = math.log %31 : vector<112x1xf32>
      %33 = arith.addf %30, %32 : vector<112x1xf32>
      %c0_24 = arith.constant 0 : index
      %c0_25 = arith.constant 0 : index
      %34 = vector.load %arg6[%c0_24, %c0_25] : memref<112x1xf32, #tpu.memory_space<vmem>>, vector<112x1xf32>
      tpu.vector_store %arg6[%c0_24, %c0_25], %33 {strides = array<i32>} : memref<112x1xf32, #tpu.memory_space<vmem>>, vector<112x1xf32>,
    } else {
    }
    return
  }
  func.func @transform_0(%arg0: i32, %arg1: i32) -> (i32, i32) {
    %c0_i32 = arith.constant 0 : i32
    %c0_i32_0 = arith.constant 0 : i32
    return %arg0, %c0_i32 : i32, i32
  }
  func.func @transform_1(%arg0: i32, %arg1: i32) -> (i32, i32) {
    %c0_i32 = arith.constant 0 : i32
    %c0_i32_0 = arith.constant 0 : i32
    return %c0_i32, %arg1 : i32, i32
  }
  func.func @transform_2(%arg0: i32, %arg1: i32) -> (i32, i32) {
    %c0_i32 = arith.constant 0 : i32
    %c0_i32_0 = arith.constant 0 : i32
    return %c0_i32, %arg1 : i32, i32
  }
  func.func @transform_3(%arg0: i32, %arg1: i32) -> (i32, i32) {
    %c0_i32 = arith.constant 0 : i32
    return %arg0, %arg1 : i32, i32
  }
  func.func @transform_4(%arg0: i32, %arg1: i32) -> (i32, i32) {
    %c0_i32 = arith.constant 0 : i32
    %c0_i32_0 = arith.constant 0 : i32
    return %arg0, %c0_i32 : i32, i32
  }
}

</mosaic_0001>

<llo_original>
// kernel: mude_forward.9
$region0: #{mude_forward.9}
  #allocation0 [shape = 'u32[]', space=smem, size = 0x4, offset = 0x4, fixed_abs, tag = 'smem constant byte address 0x4 - core index']
  #allocation1 [shape = 'u32[144,128]{1,0:T(1,128)}', space=vmem, size = 0x12000, scoped, tag = 'internal scratch']
  #allocation2 [shape = 'f32[16,1]{1,0:T(8,128)}', space=vmem, size = 0x2000, scoped, tag = 'scratch operand']
  #allocation3 [shape = 'f32[16,1]{1,0:T(8,128)}', space=vmem, size = 0x2000, scoped, tag = 'scratch operand']
  %s0 = inlined_call_operand.vmem [shape: f32[16,64], index: 0, kind: input, shape index: {}]
  %s1 = inlined_call_operand.vmem [shape: bf16[64,128], index: 1, kind: input, shape index: {}]
  %s2 = inlined_call_operand.vmem [shape: f32[1,128], index: 2, kind: input, shape index: {}]
  %s3 = inlined_call_operand.vmem [shape: f32[16,128], index: 3, kind: output, shape index: {0}]
  %s4 = inlined_call_operand.vmem [shape: f32[16,1], index: 4, kind: output, shape index: {1}]
  %5 = xla_tuple %s3, %s4
  %s6 = sld [smem:[#allocation0]]
  $region38: #{mude_forward.9} parent=0
    _
  %s8 = ssub.s32 1, %s6
  %s9 = scalar_select 0, %s8, %s6
  // Predicated region
  $region2: #{mude_forward.9} parent=0 // pred_check
    _
  $region3: #{mude_forward.9} parent=0 // pred_check_branch
    %11 = sbr.rel (0) target = $region5
  $region4: #{mude_forward.9} parent=0 // pred_region
    _
  $region5: #{mude_forward.9} parent=0 // pred_fallthru
    _
  // Predicated region
  $region6: #{mude_forward.9} parent=0 // pred_check
    _
  $region7: #{mude_forward.9} parent=0 // pred_check_branch
    %13 = sbr.rel (0) target = $region9
  $region8: #{mude_forward.9} parent=0 // pred_region
    _
  $region9: #{mude_forward.9} parent=0 // pred_fallthru
    _
  // Predicated region
  $region10: #{mude_forward.9} parent=0 // pred_check
    _
  $region11: #{mude_forward.9} parent=0 // pred_check_branch
    %15 = sbr.rel (0) target = $region13
  $region12: #{mude_forward.9} parent=0 // pred_region
    _
  $region13: #{mude_forward.9} parent=0 // pred_fallthru
    _
  %p17 = scmp.eq.s32.totalorder 0, 0
  // Predicated region
  $region14: #{mude_forward.9} parent=0 // pred_check
    %p18 = pneg %p17
  $region15: #{mude_forward.9} parent=0 // pred_check_branch
    %20 = sbr.rel (%p18) target = $region17
  $region16: #{mude_forward.9} parent=0 // pred_region
    %vm21 = vcmask 7168
    %22 = vst.msk [vmem:[#allocation2] sm:$0xff] %vm21, -inf
    %23 = vst.msk [vmem:[#allocation2 + $0x8] sm:$0xff] %vm21, -inf
    %24 = vst.msk [vmem:[#allocation3] sm:$0xff] %vm21, 0.0
    %25 = vst.msk [vmem:[#allocation3 + $0x8] sm:$0xff] %vm21, 0.0
  $region17: #{mude_forward.9} parent=0 // pred_fallthru
    _
  %v26 = vld [vmem:[%s0] sm:$0xff]
  %v27 = vld [vmem:[%s0 + $0x8] sm:$0xff]
  %v28 = vpack.c.bf16 %v27, %v26
  %v29 = vld [vmem:[%s1] sm:$0xf]
  %v30 = vld [vmem:[%s1 + $0x4] sm:$0xf]
  %v31 = vld [vmem:[%s1 + $0x8] sm:$0xf]
  %v32 = vld [vmem:[%s1 + $0xc] sm:$0xf]
  %v33 = vld [vmem:[%s1 + $0x10] sm:$0xf]
  %v34 = vld [vmem:[%s1 + $0x14] sm:$0xf]
  %v35 = vld [vmem:[%s1 + $0x18] sm:$0xf]
  %v36 = vld [vmem:[%s1 + $0x1c] sm:$0xf]
  %v37 = vld [vmem:[%s2] sm:$0x1]
  %v39 = vlaneseq
  %v40 = vshrl.u32 %v39, 7
  %v41 = vsub.s32 0, %v40
  %v42 = vrot.slane %v37, %v41
  %v52 = vunpack.c.l.b16 %v29
  %v53 = vunpack.c.l.b16 %v30
  %v54 = vunpack.c.l.b16 %v31
  %v55 = vunpack.c.l.b16 %v32
  %v56 = vunpack.c.l.b16 %v33
  %v57 = vunpack.c.l.b16 %v34
  %v58 = vunpack.c.l.b16 %v35
  %v59 = vunpack.c.l.b16 %v36
  %v60 = vpack.c.b16 %v53, %v52
  %v61 = vpack.c.b16 %v55, %v54
  %v62 = vpack.c.b16 %v57, %v56
  %v63 = vpack.c.b16 %v59, %v58
  %vm68 = vcmask 523264
  %v70 = vsel %vm68, %v28, 0
  %72 = vmatprep.subr.bf16.mxu0 0
  %73 = vmatpush1.bf16.msra.mxu0 0
  %74 = vmatprep.subr.bf16.mxu0 0
  %75 = vmatpush1.bf16.msra.mxu0 0
  %76 = vmatprep.subr.bf16.mxu0 0
  %77 = vmatpush1.bf16.msra.mxu0 0
  %78 = vmatprep.subr.bf16.mxu0 0
  %79 = vmatpush1.bf16.msra.mxu0 0
  %80 = vmatprep.subr.bf16.mxu0 0
  %81 = vmatpush1.bf16.msra.mxu0 %v63
  %82 = vmatprep.subr.bf16.mxu0 0
  %83 = vmatpush1.bf16.msra.mxu0 %v62
  %84 = vmatprep.subr.bf16.mxu0 0
  %85 = vmatpush1.bf16.msra.mxu0 %v61
  %86 = vmatprep.subr.bf16.mxu0 0
  %87 = vmatpush1.bf16.msra.mxu0 %v60
  %88 = vmatprep.subr.bf16.mxu0 0
  %89 = vmatpush2.bf16.msra.mxu0 0
  %90 = vmatprep.subr.bf16.mxu0 0
  %91 = vmatpush2.bf16.msra.mxu0 0
  %92 = vmatprep.subr.bf16.mxu0 0
  %93 = vmatpush2.bf16.msra.mxu0 0
  %94 = vmatprep.subr.bf16.mxu0 0
  %95 = vmatpush2.bf16.msra.mxu0 0
  %96 = vmatprep.subr.bf16.mxu0 0
  %97 = vmatpush2.bf16.msra.mxu0 0
  %98 = vmatprep.subr.bf16.mxu0 0
  %99 = vmatpush2.bf16.msra.mxu0 0
  %100 = vmatprep.subr.bf16.mxu0 0
  %101 = vmatpush2.bf16.msra.mxu0 0
  %102 = vmatprep.subr.bf16.mxu0 0
  %103 = vmatpush2.bf16.msra.mxu0 0
  %104 = vmatprep.mubr.bf16.mxu0 0
  %105 = vmatmul.mubr.bf16.gmra.mxu0 %v70
  %v106 = vpop.f32.mrf.mxu0
  %v107 = vadd.f32 %v42, %v106
  %v108 = vpop.f32.mrf.mxu0
  %v109 = vpop.f32.mrf.mxu0
  %v110 = vadd.f32 %v42, %v109
  %v111 = vpop.f32.mrf.mxu0
  %112 = vdwg.mxu0
  %113 = vst [vmem:[%s3] sm:$0xff] %v107
  %114 = vst [vmem:[%s3 + $0x8] sm:$0xff] %v110
  %v115 = vld [vmem:[#allocation2] sm:$0xff]
  %v116 = vld [vmem:[#allocation2 + $0x8] sm:$0xff]
  %117 = vmax.xlane.f32.xlu0 %v107
  %v118 = vpop.xlane.xlu0 %117
  %119 = vmax.xlane.f32.xlu0 %v110
  %v120 = vpop.xlane.xlu0 %119
  %v121 = vmax.f32 %v115, %v118
  %v122 = vmax.f32 %v116, %v120
  %v123 = vld [vmem:[#allocation3] sm:$0xff]
  %v124 = vld [vmem:[#allocation3 + $0x8] sm:$0xff]
  %v125 = vsub.f32 %v115, %v121
  %v126 = vsub.f32 %v116, %v122
  %v127 = vmul.f32 %v125, 1.442695
  %v128 = vpow.pop %v127
  %v129 = vmul.f32 %v126, 1.442695
  %v130 = vpow.pop %v129
  %v131 = vmul.f32 %v123, %v128
  %v132 = vmul.f32 %v124, %v130
  %134 = vset.pattern.permute.xlu0 0
  %135 = vperm.xlu0 %134, %v121
  %v136 = vpop.permute.xlu0 %135
  %139 = vset.pattern.permute.xlu0 0
  %140 = vperm.xlu0 %139, %v122
  %v141 = vpop.permute.xlu0 %140
  %v143 = vsub.f32 %v107, %v136
  %v144 = vsub.f32 %v110, %v141
  %v145 = vmul.f32 %v143, 1.442695
  %v146 = vpow.pop %v145
  %v147 = vmul.f32 %v144, 1.442695
  %v148 = vpow.pop %v147
  %149 = vadd.xlane.f32.xlu0 %v146
  %v150 = vpop.xlane.xlu0 %149
  %151 = vadd.xlane.f32.xlu0 %v148
  %v152 = vpop.xlane.xlu0 %151
  %v153 = vadd.f32 %v131, %v150
  %v154 = vadd.f32 %v132, %v152
  %vm155 = vcmask 7168
  %156 = vst.msk [vmem:[#allocation3] sm:$0xff] %vm155, %v153
  %157 = vst.msk [vmem:[#allocation3 + $0x8] sm:$0xff] %vm155, %v154
  %158 = vst.msk [vmem:[#allocation2] sm:$0xff] %vm155, %v121
  %159 = vst.msk [vmem:[#allocation2 + $0x8] sm:$0xff] %vm155, %v122
  // Predicated region
  $region18: #{mude_forward.9} parent=0 // pred_check
    %p160 = pneg %p17
  $region19: #{mude_forward.9} parent=0 // pred_check_branch
    %162 = sbr.rel (%p160) target = $region21
  $region20: #{mude_forward.9} parent=0 // pred_region
    %v163 = vld [vmem:[#allocation2] sm:$0xff]
    %v164 = vld [vmem:[#allocation2 + $0x8] sm:$0xff]
    %v165 = vld [vmem:[#allocation3] sm:$0xff]
    %v166 = vld [vmem:[#allocation3 + $0x8] sm:$0xff]
    %v167 = vlog2.pop %v165
    %v168 = vmul.f32 %v167, 0.6931472
    %v169 = vlog2.pop %v166
    %v170 = vmul.f32 %v169, 0.6931472
    %v171 = vadd.f32 %v163, %v168
    %v172 = vadd.f32 %v164, %v170
    %173 = vst.msk [vmem:[%s4] sm:$0xff] %vm155, %v171
    %174 = vst.msk [vmem:[%s4 + $0x8] sm:$0xff] %vm155, %v172
  $region21: #{mude_forward.9} parent=0 // pred_fallthru
    _
  // Predicated region
  $region22: #{mude_forward.9} parent=0 // pred_check
    _
  $region23: #{mude_forward.9} parent=0 // pred_check_branch
    %176 = sbr.rel (0) target = $region25
  $region24: #{mude_forward.9} parent=0 // pred_region
    _
  $region25: #{mude_forward.9} parent=0 // pred_fallthru
    _
  // Predicated region
  $region26: #{mude_forward.9} parent=0 // pred_check
    _
  $region27: #{mude_forward.9} parent=0 // pred_check_branch
    %178 = sbr.rel (0) target = $region29
  $region28: #{mude_forward.9} parent=0 // pred_region
    _
  $region29: #{mude_forward.9} parent=0 // pred_fallthru
    _
  // Predicated region
  $region30: #{mude_forward.9} parent=0 // pred_check
    _
  $region31: #{mude_forward.9} parent=0 // pred_check_branch
    %180 = sbr.rel (0) target = $region33
  $region32: #{mude_forward.9} parent=0 // pred_region
    _
  $region33: #{mude_forward.9} parent=0 // pred_fallthru
    _
  // Predicated region
  $region34: #{mude_forward.9} parent=0 // pred_check
    _
  $region35: #{mude_forward.9} parent=0 // pred_check_branch
    %182 = sbr.rel (0) target = $region37
  $region36: #{mude_forward.9} parent=0 // pred_region
    _
  $region37: #{mude_forward.9} parent=0 // pred_fallthru
    _

// kernel: mude_forward.8
$region0: #{mude_forward.8}
  #allocation0 [shape = 'u32[]', space=smem, size = 0x4, offset = 0x4, fixed_abs, tag = 'smem constant byte address 0x4 - core index']
  #allocation1 [shape = 'u32[144,128]{1,0:T(1,128)}', space=vmem, size = 0x12000, scoped, tag = 'internal scratch']
  #allocation2 [shape = 'f32[8,8,128]{2,1,0:T(8,128)}', space=vmem, size = 0x8000, scoped, tag = 'scratch operand']
  %s0 = inlined_call_operand.vmem [shape: bf16[8,8,32], index: 0, kind: input, shape index: {}]
  %s1 = inlined_call_operand.vmem [shape: bf16[2,32,128], index: 1, kind: input, shape index: {}]
  %s2 = inlined_call_operand.vmem [shape: bf16[2,32,128], index: 2, kind: input, shape index: {}]
  %s3 = inlined_call_operand.vmem [shape: f32[2,1,128], index: 3, kind: input, shape index: {}]
  %s4 = inlined_call_operand.vmem [shape: f32[2,8,8,32], index: 4, kind: output, shape index: {0}]
  %s5 = inlined_call_operand.vmem [shape: f32[2,8,32], index: 5, kind: output, shape index: {1}]
  %s6 = inlined_call_operand.vmem [shape: f32[2,8,32], index: 6, kind: output, shape index: {2}]
  %7 = xla_tuple %s4, %s5, %s6
  %s8 = sld [smem:[#allocation0]]
  $region65: #{mude_forward.8} parent=0
    _
  %s10 = ssub.s32 1, %s8
  %s11 = scalar_select 0, %s10, %s8
  loop: start=0, step=1, limit=4
  $region2: #{mude_forward.8} parent=0 // loop_pre_header
    _
  $region3: #{mude_forward.8} parent=0 // loop_header
    %s13 = sphi 0, %s17
    %p14 = scmp.ge.s32.totalorder %s13, 4
    %s21 = sphi 0, %s21
    %s23 = sphi 0, %s21
    %s24 = sphi 0, %s23
    %s38 = sphi 0, %s24
    %s44 = sphi 0, %s46
    %s47 = sphi 0, %s44
    %s48 = sphi 0, %s47
    %s64 = sphi 0, %s48
    %s70 = sphi 0, %s72
    %s73 = sphi 0, %s70
    %s74 = sphi 0, %s73
    %s90 = sphi 0, %s74
    %s96 = sphi 0, %s98
    %s99 = sphi 0, %s96
    %s100 = sphi 0, %s99
    %s116 = sphi 0, %s100
    %s122 = sphi 0, %s124
    %s125 = sphi 0, %s122
    %s126 = sphi 0, %s125
    %s142 = sphi 0, %s126
    %s148 = sphi 0, %s150
    %s151 = sphi 0, %s148
    %s152 = sphi 0, %s151
    %s168 = sphi 0, %s152
    %s174 = sphi 0, %s176
    %s177 = sphi 0, %s174
    %s178 = sphi 0, %s177
    %s194 = sphi 0, %s178
  $region4: #{mude_forward.8} parent=0 // loop_header_branch
    %16 = sbr.rel (%p14) target = $region8
  $region5: #{mude_forward.8} parent=0 // loop_body
    %s18 = ssub.s32 %s13, 1
    %s19 = ssub.s32 %s13, 2
    %s20 = sadd.s32 %s13, 1
    %s22 = sadd.s32 %s21, 1
    %p25 = scmp.eq.s32.totalorder %s13, 1
    %p26 = scmp.ne.s32.totalorder %s21, %s23
    %p27 = scmp.eq.s32.totalorder %s13, 0
    %p28 = por %p26, %p27
    %p29 = scmp.ne.s32.totalorder %s21, %s23
    %p30 = scmp.eq.s32.totalorder %s18, 1
    %p31 = por %p29, %p30
    %p32 = scmp.ne.s32.totalorder %s23, %s24
    %p33 = scmp.eq.s32.totalorder %s18, 0
    %p34 = por %p32, %p33
    %p35 = scmp.ne.s32.totalorder %s23, %s24
    %p36 = scmp.eq.s32.totalorder %s19, 1
    %p37 = por %p35, %p36
    %p39 = scmp.ne.s32.totalorder %s24, %s38
    %p40 = scmp.eq.s32.totalorder %s19, 0
    %p41 = por %p39, %p40
    %s42 = ssub.s32 %s13, %s20
    %p43 = scmp.eq.s32.totalorder %s42, 0
    %s45 = sadd.s32 %s44, 1
    %s46 = scalar_select %p43, %s44, %s45
    %p49 = pneg %p43
    %p50 = scmp.eq.s32.totalorder %s13, 1
    %p51 = por %p49, %p50
    %p52 = scmp.ne.s32.totalorder %s44, %s47
    %p53 = scmp.eq.s32.totalorder %s13, 0
    %p54 = por %p52, %p53
    %p55 = scmp.ne.s32.totalorder %s44, %s47
    %p56 = scmp.eq.s32.totalorder %s18, 1
    %p57 = por %p55, %p56
    %p58 = scmp.ne.s32.totalorder %s47, %s48
    %p59 = scmp.eq.s32.totalorder %s18, 0
    %p60 = por %p58, %p59
    %p61 = scmp.ne.s32.totalorder %s47, %s48
    %p62 = scmp.eq.s32.totalorder %s19, 1
    %p63 = por %p61, %p62
    %p65 = scmp.ne.s32.totalorder %s48, %s64
    %p66 = scmp.eq.s32.totalorder %s19, 0
    %p67 = por %p65, %p66
    %s68 = ssub.s32 %s13, %s20
    %p69 = scmp.eq.s32.totalorder %s68, 0
    %s71 = sadd.s32 %s70, 1
    %s72 = scalar_select %p69, %s70, %s71
    %p75 = pneg %p69
    %p76 = scmp.eq.s32.totalorder %s13, 1
    %p77 = por %p75, %p76
    %p78 = scmp.ne.s32.totalorder %s70, %s73
    %p79 = scmp.eq.s32.totalorder %s13, 0
    %p80 = por %p78, %p79
    %p81 = scmp.ne.s32.totalorder %s70, %s73
    %p82 = scmp.eq.s32.totalorder %s18, 1
    %p83 = por %p81, %p82
    %p84 = scmp.ne.s32.totalorder %s73, %s74
    %p85 = scmp.eq.s32.totalorder %s18, 0
    %p86 = por %p84, %p85
    %p87 = scmp.ne.s32.totalorder %s73, %s74
    %p88 = scmp.eq.s32.totalorder %s19, 1
    %p89 = por %p87, %p88
    %p91 = scmp.ne.s32.totalorder %s74, %s90
    %p92 = scmp.eq.s32.totalorder %s19, 0
    %p93 = por %p91, %p92
    %s94 = ssub.s32 %s13, %s20
    %p95 = scmp.eq.s32.totalorder %s94, 0
    %s97 = sadd.s32 %s96, 1
    %s98 = scalar_select %p95, %s96, %s97
    %p101 = pneg %p95
    %p102 = scmp.eq.s32.totalorder %s13, 1
    %p103 = por %p101, %p102
    %p104 = scmp.ne.s32.totalorder %s96, %s99
    %p105 = scmp.eq.s32.totalorder %s13, 0
    %p106 = por %p104, %p105
    %p107 = scmp.ne.s32.totalorder %s96, %s99
    %p108 = scmp.eq.s32.totalorder %s18, 1
    %p109 = por %p107, %p108
    %p110 = scmp.ne.s32.totalorder %s99, %s100
    %p111 = scmp.eq.s32.totalorder %s18, 0
    %p112 = por %p110, %p111
    %p113 = scmp.ne.s32.totalorder %s99, %s100
    %p114 = scmp.eq.s32.totalorder %s19, 1
    %p115 = por %p113, %p114
    %p117 = scmp.ne.s32.totalorder %s100, %s116
    %p118 = scmp.eq.s32.totalorder %s19, 0
    %p119 = por %p117, %p118
    %s120 = ssub.s32 %s13, %s20
    %p121 = scmp.eq.s32.totalorder %s120, 0
    %s123 = sadd.s32 %s122, 1
    %s124 = scalar_select %p121, %s122, %s123
    %p127 = pneg %p121
    %p128 = scmp.eq.s32.totalorder %s13, 1
    %p129 = por %p127, %p128
    %p130 = scmp.ne.s32.totalorder %s122, %s125
    %p131 = scmp.eq.s32.totalorder %s13, 0
    %p132 = por %p130, %p131
    %p133 = scmp.ne.s32.totalorder %s122, %s125
    %p134 = scmp.eq.s32.totalorder %s18, 1
    %p135 = por %p133, %p134
    %p136 = scmp.ne.s32.totalorder %s125, %s126
    %p137 = scmp.eq.s32.totalorder %s18, 0
    %p138 = por %p136, %p137
    %p139 = scmp.ne.s32.totalorder %s125, %s126
    %p140 = scmp.eq.s32.totalorder %s19, 1
    %p141 = por %p139, %p140
    %p143 = scmp.ne.s32.totalorder %s126, %s142
    %p144 = scmp.eq.s32.totalorder %s19, 0
    %p145 = por %p143, %p144
    %s146 = ssub.s32 %s13, %s20
    %p147 = scmp.eq.s32.totalorder %s146, 0
    %s149 = sadd.s32 %s148, 1
    %s150 = scalar_select %p147, %s148, %s149
    %p153 = pneg %p147
    %p154 = scmp.eq.s32.totalorder %s13, 1
    %p155 = por %p153, %p154
    %p156 = scmp.ne.s32.totalorder %s148, %s151
    %p157 = scmp.eq.s32.totalorder %s13, 0
    %p158 = por %p156, %p157
    %p159 = scmp.ne.s32.totalorder %s148, %s151
    %p160 = scmp.eq.s32.totalorder %s18, 1
    %p161 = por %p159, %p160
    %p162 = scmp.ne.s32.totalorder %s151, %s152
    %p163 = scmp.eq.s32.totalorder %s18, 0
    %p164 = por %p162, %p163
    %p165 = scmp.ne.s32.totalorder %s151, %s152
    %p166 = scmp.eq.s32.totalorder %s19, 1
    %p167 = por %p165, %p166
    %p169 = scmp.ne.s32.totalorder %s152, %s168
    %p170 = scmp.eq.s32.totalorder %s19, 0
    %p171 = por %p169, %p170
    %s172 = ssub.s32 %s13, %s20
    %p173 = scmp.eq.s32.totalorder %s172, 0
    %s175 = sadd.s32 %s174, 1
    %s176 = scalar_select %p173, %s174, %s175
    %p179 = pneg %p173
    %p180 = scmp.eq.s32.totalorder %s13, 1
    %p181 = por %p179, %p180
    %p182 = scmp.ne.s32.totalorder %s174, %s177
    %p183 = scmp.eq.s32.totalorder %s13, 0
    %p184 = por %p182, %p183
    %p185 = scmp.ne.s32.totalorder %s174, %s177
    %p186 = scmp.eq.s32.totalorder %s18, 1
    %p187 = por %p185, %p186
    %p188 = scmp.ne.s32.totalorder %s177, %s178
    %p189 = scmp.eq.s32.totalorder %s18, 0
    %p190 = por %p188, %p189
    %p191 = scmp.ne.s32.totalorder %s177, %s178
    %p192 = scmp.eq.s32.totalorder %s19, 1
    %p193 = por %p191, %p192
    %p195 = scmp.ne.s32.totalorder %s178, %s194
    %p196 = scmp.eq.s32.totalorder %s19, 0
    %p197 = por %p195, %p196
    %p198 = scmp.le.s32.totalorder 1, %s13
    %p199 = scmp.lt.s32.totalorder %s13, 3
    %p200 = pnand %p198, %p199
    %p201 = pneg %p200
    // Predicated region
    $region9: #{mude_forward.8} parent=5 // pred_check
      _
    $region10: #{mude_forward.8} parent=5 // pred_check_branch
      %203 = sbr.rel (%p200) target = $region12
    $region11: #{mude_forward.8} parent=5 // pred_region
      %s204 = ssub.s32 %s13, 1
      // Predicated region
      $region13: #{mude_forward.8} parent=11 // pred_check
        %p205 = pneg %p34
      $region14: #{mude_forward.8} parent=11 // pred_check_branch
        %207 = sbr.rel (%p205) target = $region16
      $region15: #{mude_forward.8} parent=11 // pred_region
        _
      $region16: #{mude_forward.8} parent=11 // pred_fallthru
        _
    $region12: #{mude_forward.8} parent=5 // pred_fallthru
      _
    %p208 = scmp.lt.s32.totalorder %s13, 2
    // Predicated region
    $region17: #{mude_forward.8} parent=5 // pred_check
      %p209 = pneg %p208
    $region18: #{mude_forward.8} parent=5 // pred_check_branch
      %211 = sbr.rel (%p209) target = $region20
    $region19: #{mude_forward.8} parent=5 // pred_region
      // Predicated region
      $region21: #{mude_forward.8} parent=19 // pred_check
        %p212 = pneg %p54
      $region22: #{mude_forward.8} parent=19 // pred_check_branch
        %214 = sbr.rel (%p212) target = $region24
      $region23: #{mude_forward.8} parent=19 // pred_region
        %p215 = scmp.lt.s32.totalorder %s13, 1
        %s216 = scalar_select %p215, %s13, 1
        %s217 = smul.addr %s216, 4
        %s218 = smul.addr %s217, 4
        %s219 = scalar_lea.vmem %s1, %s218
      $region24: #{mude_forward.8} parent=19 // pred_fallthru
        _
      // Predicated region
      $region25: #{mude_forward.8} parent=19 // pred_check
        %p220 = pneg %p80
      $region26: #{mude_forward.8} parent=19 // pred_check_branch
        %222 = sbr.rel (%p220) target = $region28
      $region27: #{mude_forward.8} parent=19 // pred_region
        %p223 = scmp.lt.s32.totalorder %s13, 1
        %s224 = scalar_select %p223, %s13, 1
        %s225 = smul.addr %s224, 4
        %s226 = smul.addr %s225, 4
        %s227 = scalar_lea.vmem %s2, %s226
      $region28: #{mude_forward.8} parent=19 // pred_fallthru
        _
      // Predicated region
      $region29: #{mude_forward.8} parent=19 // pred_check
        %p228 = pneg %p106
      $region30: #{mude_forward.8} parent=19 // pred_check_branch
        %230 = sbr.rel (%p228) target = $region32
      $region31: #{mude_forward.8} parent=19 // pred_region
        %p231 = scmp.lt.s32.totalorder %s13, 1
        %s232 = scalar_select %p231, %s13, 1
        %s233 = scalar_lea.vmem %s3, %s232
      $region32: #{mude_forward.8} parent=19 // pred_fallthru
        _
    $region20: #{mude_forward.8} parent=5 // pred_fallthru
      _
    %p234 = scmp.le.s32.totalorder 1, %s13
    %p235 = scmp.lt.s32.totalorder %s13, 3
    %p236 = pnand %p234, %p235
    %p237 = pneg %p236
    // Predicated region
    $region33: #{mude_forward.8} parent=5 // pred_check
      _
    $region34: #{mude_forward.8} parent=5 // pred_check_branch
      %239 = sbr.rel (%p236) target = $region36
    $region35: #{mude_forward.8} parent=5 // pred_region
      %s240 = ssub.s32 %s13, 1
      %p241 = pneg %p34
      %p242 = pneg %p31
      %p243 = scmp.lt.s32.totalorder %s18, 1
      %s244 = scalar_select %p243, %s18, 1
      %s245 = smul.addr %s244, 4
      %s246 = smul.addr %s245, 4
      %s247 = scalar_lea.vmem %s1, %s246
      %p248 = pneg %p60
      %p249 = pneg %p57
      %p250 = scmp.lt.s32.totalorder %s18, 1
      %s251 = scalar_select %p250, %s18, 1
      %s252 = smul.addr %s251, 4
      %s253 = smul.addr %s252, 4
      %s254 = scalar_lea.vmem %s2, %s253
      %p255 = pneg %p86
      %p256 = pneg %p83
      %p257 = scmp.lt.s32.totalorder %s18, 1
      %s258 = scalar_select %p257, %s18, 1
      %s259 = scalar_lea.vmem %s3, %s258
      %p260 = pneg %p112
      %p261 = pneg %p109
      %p262 = pneg %p138
      %p263 = pneg %p135
      %p264 = scmp.lt.s32.totalorder %s18, 1
      %s265 = scalar_select %p264, %s18, 1
      %s266 = smul.addr %s265, 8
      %s267 = smul.addr %s266, 8
      %s268 = scalar_lea.vmem %s4, %s267
      %p269 = pneg %p164
      %p270 = pneg %p161
      %p271 = scmp.lt.s32.totalorder %s18, 1
      %s272 = scalar_select %p271, %s18, 1
      %s273 = smul.addr %s272, 8
      %s274 = scalar_lea.vmem %s5, %s273
      %p275 = pneg %p190
      %p276 = pneg %p187
      %p277 = scmp.lt.s32.totalorder %s18, 1
      %s278 = scalar_select %p277, %s18, 1
      %s279 = smul.addr %s278, 8
      %s280 = scalar_lea.vmem %s6, %s279
      %p281 = scmp.lt.s32.totalorder %s18, 1
      %s282 = scalar_select %p281, %s18, 1
      %s283 = smul.addr %s282, 4
      %s284 = smul.addr %s283, 4
      %s285 = scalar_lea.vmem %s1, %s284
      %p286 = scmp.lt.s32.totalorder %s18, 1
      %s287 = scalar_select %p286, %s18, 1
      %s288 = smul.addr %s287, 4
      %s289 = smul.addr %s288, 4
      %s290 = scalar_lea.vmem %s2, %s289
      %p291 = scmp.lt.s32.totalorder %s18, 1
      %s292 = scalar_select %p291, %s18, 1
      %s293 = scalar_lea.vmem %s3, %s292
      %p294 = scmp.lt.s32.totalorder %s18, 1
      %s295 = scalar_select %p294, %s18, 1
      %s296 = smul.addr %s295, 8
      %s297 = smul.addr %s296, 8
      %s298 = scalar_lea.vmem %s4, %s297
      %p299 = scmp.lt.s32.totalorder %s18, 1
      %s300 = scalar_select %p299, %s18, 1
      %s301 = smul.addr %s300, 8
      %s302 = scalar_lea.vmem %s5, %s301
      %p303 = scmp.lt.s32.totalorder %s18, 1
      %s304 = scalar_select %p303, %s18, 1
      %s305 = smul.addr %s304, 8
      %s306 = scalar_lea.vmem %s6, %s305
      %v308 = vld [vmem:[%s0] sm:$0xf]
      %v309 = vld [vmem:[%s0 + $0x4] sm:$0xf]
      %v310 = vld [vmem:[%s0 + $0x8] sm:$0xf]
      %v311 = vld [vmem:[%s0 + $0xc] sm:$0xf]
      %v312 = vld [vmem:[%s0 + $0x10] sm:$0xf]
      %v313 = vld [vmem:[%s0 + $0x14] sm:$0xf]
      %v314 = vld [vmem:[%s0 + $0x18] sm:$0xf]
      %v315 = vld [vmem:[%s0 + $0x1c] sm:$0xf]
      %v316 = vld [vmem:[%s285] sm:$0xf]
      %v317 = vld [vmem:[%s285 + $0x4] sm:$0xf]
      %v318 = vld [vmem:[%s285 + $0x8] sm:$0xf]
      %v319 = vld [vmem:[%s285 + $0xc] sm:$0xf]
      %v320 = vld [vmem:[%s293] sm:$0x1]
      %v322 = vlaneseq
      %v323 = vshrl.u32 %v322, 7
      %v324 = vsub.s32 0, %v323
      %v325 = vrot.slane %v320, %v324
      %v335 = vunpack.c.l.b16 %v308
      %v336 = vunpack.c.l.b16 %v309
      %v337 = vunpack.c.l.b16 %v310
      %v338 = vunpack.c.l.b16 %v311
      %v339 = vunpack.c.l.b16 %v312
      %v340 = vunpack.c.l.b16 %v313
      %v341 = vunpack.c.l.b16 %v314
      %v342 = vunpack.c.l.b16 %v315
      %v343 = vpack.c.b16 %v336, %v335
      %v344 = vpack.c.b16 %v338, %v337
      %v345 = vpack.c.b16 %v340, %v339
      %v346 = vpack.c.b16 %v342, %v341
      %v351 = vunpack.c.l.b16 %v316
      %v352 = vunpack.c.l.b16 %v317
      %v353 = vunpack.c.l.b16 %v318
      %v354 = vunpack.c.l.b16 %v319
      %v355 = vpack.c.b16 %v352, %v351
      %v356 = vpack.c.b16 %v354, %v353
      %vm359 = vcmask 261120
      %v361 = vsel %vm359, %v343, 0
      %v364 = vsel %vm359, %v344, 0
      %v367 = vsel %vm359, %v345, 0
      %v370 = vsel %vm359, %v346, 0
      %372 = vmatprep.subr.bf16.mxu0 0
      %373 = vmatpush1.bf16.msra.mxu0 0
      %374 = vmatprep.subr.bf16.mxu0 0
      %375 = vmatpush1.bf16.msra.mxu0 0
      %376 = vmatprep.subr.bf16.mxu0 0
      %377 = vmatpush1.bf16.msra.mxu0 0
      %378 = vmatprep.subr.bf16.mxu0 0
      %379 = vmatpush1.bf16.msra.mxu0 0
      %380 = vmatprep.subr.bf16.mxu0 0
      %381 = vmatpush1.bf16.msra.mxu0 0
      %382 = vmatprep.subr.bf16.mxu0 0
      %383 = vmatpush1.bf16.msra.mxu0 0
      %384 = vmatprep.subr.bf16.mxu0 0
      %385 = vmatpush1.bf16.msra.mxu0 %v356
      %386 = vmatprep.subr.bf16.mxu0 0
      %387 = vmatpush1.bf16.msra.mxu0 %v355
      %388 = vmatprep.subr.bf16.mxu0 0
      %389 = vmatpush2.bf16.msra.mxu0 0
      %390 = vmatprep.subr.bf16.mxu0 0
      %391 = vmatpush2.bf16.msra.mxu0 0
      %392 = vmatprep.subr.bf16.mxu0 0
      %393 = vmatpush2.bf16.msra.mxu0 0
      %394 = vmatprep.subr.bf16.mxu0 0
      %395 = vmatpush2.bf16.msra.mxu0 0
      %396 = vmatprep.subr.bf16.mxu0 0
      %397 = vmatpush2.bf16.msra.mxu0 0
      %398 = vmatprep.subr.bf16.mxu0 0
      %399 = vmatpush2.bf16.msra.mxu0 0
      %400 = vmatprep.subr.bf16.mxu0 0
      %401 = vmatpush2.bf16.msra.mxu0 0
      %402 = vmatprep.subr.bf16.mxu0 0
      %403 = vmatpush2.bf16.msra.mxu0 0
      %404 = vmatprep.mubr.bf16.mxu0 0
      %405 = vmatmul.mubr.bf16.gmra.mxu0 %v361
      %v406 = vpop.f32.mrf.mxu0
      %v407 = vadd.f32 %v325, %v406
      %v408 = vpop.f32.mrf.mxu0
      %v409 = vpop.f32.mrf.mxu0
      %v410 = vadd.f32 %v325, %v409
      %v411 = vpop.f32.mrf.mxu0
      %412 = vmatprep.mubr.bf16.mxu0 0
      %413 = vmatmul.mubr.bf16.gmra.mxu0 %v364
      %v414 = vpop.f32.mrf.mxu0
      %v415 = vadd.f32 %v325, %v414
      %v416 = vpop.f32.mrf.mxu0
      %v417 = vpop.f32.mrf.mxu0
      %v418 = vadd.f32 %v325, %v417
      %v419 = vpop.f32.mrf.mxu0
      %420 = vmatprep.mubr.bf16.mxu0 0
      %421 = vmatmul.mubr.bf16.gmra.mxu0 %v367
      %v422 = vpop.f32.mrf.mxu0
      %v423 = vadd.f32 %v325, %v422
      %v424 = vpop.f32.mrf.mxu0
      %v425 = vpop.f32.mrf.mxu0
      %v426 = vadd.f32 %v325, %v425
      %v427 = vpop.f32.mrf.mxu0
      %428 = vmatprep.mubr.bf16.mxu0 0
      %429 = vmatmul.mubr.bf16.gmra.mxu0 %v370
      %v430 = vpop.f32.mrf.mxu0
      %v431 = vadd.f32 %v325, %v430
      %v432 = vpop.f32.mrf.mxu0
      %v433 = vpop.f32.mrf.mxu0
      %v434 = vadd.f32 %v325, %v433
      %v435 = vpop.f32.mrf.mxu0
      %436 = vdwg.mxu0
      %437 = vst [vmem:[#allocation2] sm:$0xff] %v407
      %438 = vst [vmem:[#allocation2 + $0x8] sm:$0xff] %v410
      %439 = vst [vmem:[#allocation2 + $0x10] sm:$0xff] %v415
      %440 = vst [vmem:[#allocation2 + $0x18] sm:$0xff] %v418
      %441 = vst [vmem:[#allocation2 + $0x20] sm:$0xff] %v423
      %442 = vst [vmem:[#allocation2 + $0x28] sm:$0xff] %v426
      %443 = vst [vmem:[#allocation2 + $0x30] sm:$0xff] %v431
      %444 = vst [vmem:[#allocation2 + $0x38] sm:$0xff] %v434
      %v445 = vld [vmem:[%s290] sm:$0xf]
      %v446 = vld [vmem:[%s290 + $0x4] sm:$0xf]
      %v447 = vld [vmem:[%s290 + $0x8] sm:$0xf]
      %v448 = vld [vmem:[%s290 + $0xc] sm:$0xf]
      %p449 = scmp.eq.s32.totalorder %s18, 1
      %s450 = scalar_select %p449, 7, 0
      %s451 = smul.u32 %s450, 8
      %s452 = scalar_lea.vmem [#allocation2], %s451
      %v453 = vld [vmem:[%s452] sm:$0xff]
      %v458 = vunpack.c.l.b16 %v445
      %v459 = vunpack.c.l.b16 %v446
      %v460 = vunpack.c.l.b16 %v447
      %v461 = vunpack.c.l.b16 %v448
      %v462 = vpack.c.b16 %v459, %v458
      %v463 = vpack.c.b16 %v461, %v460
      %v467 = vsel %vm359, 0, 0
      %469 = vmatprep.subr.bf16.mxu0 0
      %470 = vmatpush1.bf16.msra.mxu0 0
      %471 = vmatprep.subr.bf16.mxu0 0
      %472 = vmatpush1.bf16.msra.mxu0 0
      %473 = vmatprep.subr.bf16.mxu0 0
      %474 = vmatpush1.bf16.msra.mxu0 0
      %475 = vmatprep.subr.bf16.mxu0 0
      %476 = vmatpush1.bf16.msra.mxu0 0
      %477 = vmatprep.subr.bf16.mxu0 0
      %478 = vmatpush1.bf16.msra.mxu0 0
      %479 = vmatprep.subr.bf16.mxu0 0
      %480 = vmatpush1.bf16.msra.mxu0 0
      %481 = vmatprep.subr.bf16.mxu0 0
      %482 = vmatpush1.bf16.msra.mxu0 %v463
      %483 = vmatprep.subr.bf16.mxu0 0
      %484 = vmatpush1.bf16.msra.mxu0 %v462
      %485 = vmatprep.subr.bf16.mxu0 0
      %486 = vmatpush2.bf16.msra.mxu0 0
      %487 = vmatprep.subr.bf16.mxu0 0
      %488 = vmatpush2.bf16.msra.mxu0 0
      %489 = vmatprep.subr.bf16.mxu0 0
      %490 = vmatpush2.bf16.msra.mxu0 0
      %491 = vmatprep.subr.bf16.mxu0 0
      %492 = vmatpush2.bf16.msra.mxu0 0
      %493 = vmatprep.subr.bf16.mxu0 0
      %494 = vmatpush2.bf16.msra.mxu0 0
      %495 = vmatprep.subr.bf16.mxu0 0
      %496 = vmatpush2.bf16.msra.mxu0 0
      %497 = vmatprep.subr.bf16.mxu0 0
      %498 = vmatpush2.bf16.msra.mxu0 0
      %499 = vmatprep.subr.bf16.mxu0 0
      %500 = vmatpush2.bf16.msra.mxu0 0
      %501 = vmatprep.mubr.bf16.mxu0 0
      %502 = vmatmul.mubr.bf16.gmra.mxu0 %v467
      %v503 = vpop.f32.mrf.mxu0
      %v504 = vadd.f32 0.0, %v503
      %v505 = vpop.f32.mrf.mxu0
      %v506 = vpop.f32.mrf.mxu0
      %v507 = vpop.f32.mrf.mxu0
      %508 = vdwg.mxu0
      %v509 = vadd.f32 %v453, %v504
      %v510 = vxor.u32 %v509, 2147483648
      %v511 = vmul.f32 %v510, 1.442695
      %v512 = vpow.pop %v511
      %v513 = vadd.f32 %v512, 1.0
      %v514 = vrcp.pop %v513
      %v515 = vmul.f32 1.0, %v514
      %v516 = vtanh.pop %v509
      %v517 = vmul.f32 %v515, 0.0
      %519 = vrot.lane.b32.xlu0 %v516, 64
      %v520 = vpop.permute.xlu0 %519
      %v522 = vmul.f32 %v515, %v520
      %524 = vrot.lane.b32.xlu0 %v522, 32
      %v525 = vpop.permute.xlu0 %524
      %v527 = vadd.f32 %v517, %v525
      %v528 = vtanh.pop %v527
      %530 = vrot.lane.b32.xlu0 %v528, 64
      %v531 = vpop.permute.xlu0 %530
      %v533 = vmul.f32 %v515, %v531
      %535 = vrot.lane.b32.xlu0 %v533, 32
      %v536 = vpop.permute.xlu0 %535
      %s538 = scalar_lea.vmem %s298, %s451
      %539 = vst.msk [vmem:[%s538] sm:$0xff] %vm359, %v536
      %s540 = scalar_select %p449, 6, 1
      %s541 = smul.u32 %s540, 8
      %s542 = scalar_lea.vmem [#allocation2], %s541
      %v543 = vld [vmem:[%s542] sm:$0xff]
      %v544 = vpack.c.bf16 %v533, %v533
      %546 = vrot.lane.b32.xlu0 %v544, 32
      %v547 = vpop.permute.xlu0 %546
      %v549 = vsel %vm359, %v547, 0
      %551 = vmatprep.subr.bf16.mxu0 0
      %552 = vmatpush1.bf16.msra.mxu0 0
      %553 = vmatprep.subr.bf16.mxu0 0
      %554 = vmatpush1.bf16.msra.mxu0 0
      %555 = vmatprep.subr.bf16.mxu0 0
      %556 = vmatpush1.bf16.msra.mxu0 0
      %557 = vmatprep.subr.bf16.mxu0 0
      %558 = vmatpush1.bf16.msra.mxu0 0
      %559 = vmatprep.subr.bf16.mxu0 0
      %560 = vmatpush1.bf16.msra.mxu0 0
      %561 = vmatprep.subr.bf16.mxu0 0
      %562 = vmatpush1.bf16.msra.mxu0 0
      %563 = vmatprep.subr.bf16.mxu0 0
      %564 = vmatpush1.bf16.msra.mxu0 %v463
      %565 = vmatprep.subr.bf16.mxu0 0
      %566 = vmatpush1.bf16.msra.mxu0 %v462
      %567 = vmatprep.subr.bf16.mxu0 0
      %568 = vmatpush2.bf16.msra.mxu0 0
      %569 = vmatprep.subr.bf16.mxu0 0
      %570 = vmatpush2.bf16.msra.mxu0 0
      %571 = vmatprep.subr.bf16.mxu0 0
      %572 = vmatpush2.bf16.msra.mxu0 0
      %573 = vmatprep.subr.bf16.mxu0 0
      %574 = vmatpush2.bf16.msra.mxu0 0
      %575 = vmatprep.subr.bf16.mxu0 0
      %576 = vmatpush2.bf16.msra.mxu0 0
      %577 = vmatprep.subr.bf16.mxu0 0
      %578 = vmatpush2.bf16.msra.mxu0 0
      %579 = vmatprep.subr.bf16.mxu0 0
      %580 = vmatpush2.bf16.msra.mxu0 0
      %581 = vmatprep.subr.bf16.mxu0 0
      %582 = vmatpush2.bf16.msra.mxu0 0
      %583 = vmatprep.mubr.bf16.mxu0 0
      %584 = vmatmul.mubr.bf16.gmra.mxu0 %v549
      %v585 = vpop.f32.mrf.mxu0
      %v586 = vadd.f32 0.0, %v585
      %v587 = vpop.f32.mrf.mxu0
      %v588 = vpop.f32.mrf.mxu0
      %v589 = vpop.f32.mrf.mxu0
      %590 = vdwg.mxu0
      %v591 = vadd.f32 %v543, %v586
      %v592 = vxor.u32 %v591, 2147483648
      %v593 = vmul.f32 %v592, 1.442695
      %v594 = vpow.pop %v593
      %v595 = vadd.f32 %v594, 1.0
      %v596 = vrcp.pop %v595
      %v597 = vmul.f32 1.0, %v596
      %v598 = vtanh.pop %v591
      %v599 = vmul.f32 %v597, %v527
      %601 = vrot.lane.b32.xlu0 %v598, 64
      %v602 = vpop.permute.xlu0 %601
      %v604 = vmul.f32 %v597, %v602
      %606 = vrot.lane.b32.xlu0 %v604, 32
      %v607 = vpop.permute.xlu0 %606
      %v609 = vadd.f32 %v599, %v607
      %v610 = vtanh.pop %v609
      %612 = vrot.lane.b32.xlu0 %v610, 64
      %v613 = vpop.permute.xlu0 %612
      %v615 = vmul.f32 %v597, %v613
      %617 = vrot.lane.b32.xlu0 %v615, 32
      %v618 = vpop.permute.xlu0 %617
      %s620 = scalar_lea.vmem %s298, %s541
      %621 = vst.msk [vmem:[%s620] sm:$0xff] %vm359, %v618
      %s622 = scalar_select %p449, 5, 2
      %s623 = smul.u32 %s622, 8
      %s624 = scalar_lea.vmem [#allocation2], %s623
      %v625 = vld [vmem:[%s624] sm:$0xff]
      %v626 = vpack.c.bf16 %v615, %v615
      %628 = vrot.lane.b32.xlu0 %v626, 32
      %v629 = vpop.permute.xlu0 %628
      %v631 = vsel %vm359, %v629, 0
      %633 = vmatprep.subr.bf16.mxu0 0
      %634 = vmatpush1.bf16.msra.mxu0 0
      %635 = vmatprep.subr.bf16.mxu0 0
      %636 = vmatpush1.bf16.msra.mxu0 0
      %637 = vmatprep.subr.bf16.mxu0 0
      %638 = vmatpush1.bf16.msra.mxu0 0
      %639 = vmatprep.subr.bf16.mxu0 0
      %640 = vmatpush1.bf16.msra.mxu0 0
      %641 = vmatprep.subr.bf16.mxu0 0
      %642 = vmatpush1.bf16.msra.mxu0 0
      %643 = vmatprep.subr.bf16.mxu0 0
      %644 = vmatpush1.bf16.msra.mxu0 0
      %645 = vmatprep.subr.bf16.mxu0 0
      %646 = vmatpush1.bf16.msra.mxu0 %v463
      %647 = vmatprep.subr.bf16.mxu0 0
      %648 = vmatpush1.bf16.msra.mxu0 %v462
      %649 = vmatprep.subr.bf16.mxu0 0
      %650 = vmatpush2.bf16.msra.mxu0 0
      %651 = vmatprep.subr.bf16.mxu0 0
      %652 = vmatpush2.bf16.msra.mxu0 0
      %653 = vmatprep.subr.bf16.mxu0 0
      %654 = vmatpush2.bf16.msra.mxu0 0
      %655 = vmatprep.subr.bf16.mxu0 0
      %656 = vmatpush2.bf16.msra.mxu0 0
      %657 = vmatprep.subr.bf16.mxu0 0
      %658 = vmatpush2.bf16.msra.mxu0 0
      %659 = vmatprep.subr.bf16.mxu0 0
      %660 = vmatpush2.bf16.msra.mxu0 0
      %661 = vmatprep.subr.bf16.mxu0 0
      %662 = vmatpush2.bf16.msra.mxu0 0
      %663 = vmatprep.subr.bf16.mxu0 0
      %664 = vmatpush2.bf16.msra.mxu0 0
      %665 = vmatprep.mubr.bf16.mxu0 0
      %666 = vmatmul.mubr.bf16.gmra.mxu0 %v631
      %v667 = vpop.f32.mrf.mxu0
      %v668 = vadd.f32 0.0, %v667
      %v669 = vpop.f32.mrf.mxu0
      %v670 = vpop.f32.mrf.mxu0
      %v671 = vpop.f32.mrf.mxu0
      %672 = vdwg.mxu0
      %v673 = vadd.f32 %v625, %v668
      %v674 = vxor.u32 %v673, 2147483648
      %v675 = vmul.f32 %v674, 1.442695
      %v676 = vpow.pop %v675
      %v677 = vadd.f32 %v676, 1.0
      %v678 = vrcp.pop %v677
      %v679 = vmul.f32 1.0, %v678
      %v680 = vtanh.pop %v673
      %v681 = vmul.f32 %v679, %v609
      %683 = vrot.lane.b32.xlu0 %v680, 64
      %v684 = vpop.permute.xlu0 %683
      %v686 = vmul.f32 %v679, %v684
      %688 = vrot.lane.b32.xlu0 %v686, 32
      %v689 = vpop.permute.xlu0 %688
      %v691 = vadd.f32 %v681, %v689
      %v692 = vtanh.pop %v691
      %694 = vrot.lane.b32.xlu0 %v692, 64
      %v695 = vpop.permute.xlu0 %694
      %v697 = vmul.f32 %v679, %v695
      %699 = vrot.lane.b32.xlu0 %v697, 32
      %v700 = vpop.permute.xlu0 %699
      %s702 = scalar_lea.vmem %s298, %s623
      %703 = vst.msk [vmem:[%s702] sm:$0xff] %vm359, %v700
      %s704 = scalar_select %p449, 4, 3
      %s705 = smul.u32 %s704, 8
      %s706 = scalar_lea.vmem [#allocation2], %s705
      %v707 = vld [vmem:[%s706] sm:$0xff]
      %v708 = vpack.c.bf16 %v697, %v697
      %710 = vrot.lane.b32.xlu0 %v708, 32
      %v711 = vpop.permute.xlu0 %710
      %v713 = vsel %vm359, %v711, 0
      %715 = vmatprep.subr.bf16.mxu0 0
      %716 = vmatpush1.bf16.msra.mxu0 0
      %717 = vmatprep.subr.bf16.mxu0 0
      %718 = vmatpush1.bf16.msra.mxu0 0
      %719 = vmatprep.subr.bf16.mxu0 0
      %720 = vmatpush1.bf16.msra.mxu0 0
      %721 = vmatprep.subr.bf16.mxu0 0
      %722 = vmatpush1.bf16.msra.mxu0 0
      %723 = vmatprep.subr.bf16.mxu0 0
      %724 = vmatpush1.bf16.msra.mxu0 0
      %725 = vmatprep.subr.bf16.mxu0 0
      %726 = vmatpush1.bf16.msra.mxu0 0
      %727 = vmatprep.subr.bf16.mxu0 0
      %728 = vmatpush1.bf16.msra.mxu0 %v463
      %729 = vmatprep.subr.bf16.mxu0 0
      %730 = vmatpush1.bf16.msra.mxu0 %v462
      %731 = vmatprep.subr.bf16.mxu0 0
      %732 = vmatpush2.bf16.msra.mxu0 0
      %733 = vmatprep.subr.bf16.mxu0 0
      %734 = vmatpush2.bf16.msra.mxu0 0
      %735 = vmatprep.subr.bf16.mxu0 0
      %736 = vmatpush2.bf16.msra.mxu0 0
      %737 = vmatprep.subr.bf16.mxu0 0
      %738 = vmatpush2.bf16.msra.mxu0 0
      %739 = vmatprep.subr.bf16.mxu0 0
      %740 = vmatpush2.bf16.msra.mxu0 0
      %741 = vmatprep.subr.bf16.mxu0 0
      %742 = vmatpush2.bf16.msra.mxu0 0
      %743 = vmatprep.subr.bf16.mxu0 0
      %744 = vmatpush2.bf16.msra.mxu0 0
      %745 = vmatprep.subr.bf16.mxu0 0
      %746 = vmatpush2.bf16.msra.mxu0 0
      %747 = vmatprep.mubr.bf16.mxu0 0
      %748 = vmatmul.mubr.bf16.gmra.mxu0 %v713
      %v749 = vpop.f32.mrf.mxu0
      %v750 = vadd.f32 0.0, %v749
      %v751 = vpop.f32.mrf.mxu0
      %v752 = vpop.f32.mrf.mxu0
      %v753 = vpop.f32.mrf.mxu0
      %754 = vdwg.mxu0
      %v755 = vadd.f32 %v707, %v750
      %v756 = vxor.u32 %v755, 2147483648
      %v757 = vmul.f32 %v756, 1.442695
      %v758 = vpow.pop %v757
      %v759 = vadd.f32 %v758, 1.0
      %v760 = vrcp.pop %v759
      %v761 = vmul.f32 1.0, %v760
      %v762 = vtanh.pop %v755
      %v763 = vmul.f32 %v761, %v691
      %765 = vrot.lane.b32.xlu0 %v762, 64
      %v766 = vpop.permute.xlu0 %765
      %v768 = vmul.f32 %v761, %v766
      %770 = vrot.lane.b32.xlu0 %v768, 32
      %v771 = vpop.permute.xlu0 %770
      %v773 = vadd.f32 %v763, %v771
      %v774 = vtanh.pop %v773
      %776 = vrot.lane.b32.xlu0 %v774, 64
      %v777 = vpop.permute.xlu0 %776
      %v779 = vmul.f32 %v761, %v777
      %781 = vrot.lane.b32.xlu0 %v779, 32
      %v782 = vpop.permute.xlu0 %781
      %s784 = scalar_lea.vmem %s298, %s705
      %785 = vst.msk [vmem:[%s784] sm:$0xff] %vm359, %v782
      %s786 = scalar_select %p449, 3, 4
      %s787 = smul.u32 %s786, 8
      %s788 = scalar_lea.vmem [#allocation2], %s787
      %v789 = vld [vmem:[%s788] sm:$0xff]
      %v790 = vpack.c.bf16 %v779, %v779
      %792 = vrot.lane.b32.xlu0 %v790, 32
      %v793 = vpop.permute.xlu0 %792
      %v795 = vsel %vm359, %v793, 0
      %797 = vmatprep.subr.bf16.mxu0 0
      %798 = vmatpush1.bf16.msra.mxu0 0
      %799 = vmatprep.subr.bf16.mxu0 0
      %800 = vmatpush1.bf16.msra.mxu0 0
      %801 = vmatprep.subr.bf16.mxu0 0
      %802 = vmatpush1.bf16.msra.mxu0 0
      %803 = vmatprep.subr.bf16.mxu0 0
      %804 = vmatpush1.bf16.msra.mxu0 0
      %805 = vmatprep.subr.bf16.mxu0 0
      %806 = vmatpush1.bf16.msra.mxu0 0
      %807 = vmatprep.subr.bf16.mxu0 0
      %808 = vmatpush1.bf16.msra.mxu0 0
      %809 = vmatprep.subr.bf16.mxu0 0
      %810 = vmatpush1.bf16.msra.mxu0 %v463
      %811 = vmatprep.subr.bf16.mxu0 0
      %812 = vmatpush1.bf16.msra.mxu0 %v462
      %813 = vmatprep.subr.bf16.mxu0 0
      %814 = vmatpush2.bf16.msra.mxu0 0
      %815 = vmatprep.subr.bf16.mxu0 0
      %816 = vmatpush2.bf16.msra.mxu0 0
      %817 = vmatprep.subr.bf16.mxu0 0
      %818 = vmatpush2.bf16.msra.mxu0 0
      %819 = vmatprep.subr.bf16.mxu0 0
      %820 = vmatpush2.bf16.msra.mxu0 0
      %821 = vmatprep.subr.bf16.mxu0 0
      %822 = vmatpush2.bf16.msra.mxu0 0
      %823 = vmatprep.subr.bf16.mxu0 0
      %824 = vmatpush2.bf16.msra.mxu0 0
      %825 = vmatprep.subr.bf16.mxu0 0
      %826 = vmatpush2.bf16.msra.mxu0 0
      %827 = vmatprep.subr.bf16.mxu0 0
      %828 = vmatpush2.bf16.msra.mxu0 0
      %829 = vmatprep.mubr.bf16.mxu0 0
      %830 = vmatmul.mubr.bf16.gmra.mxu0 %v795
      %v831 = vpop.f32.mrf.mxu0
      %v832 = vadd.f32 0.0, %v831
      %v833 = vpop.f32.mrf.mxu0
      %v834 = vpop.f32.mrf.mxu0
      %v835 = vpop.f32.mrf.mxu0
      %836 = vdwg.mxu0
      %v837 = vadd.f32 %v789, %v832
      %v838 = vxor.u32 %v837, 2147483648
      %v839 = vmul.f32 %v838, 1.442695
      %v840 = vpow.pop %v839
      %v841 = vadd.f32 %v840, 1.0
      %v842 = vrcp.pop %v841
      %v843 = vmul.f32 1.0, %v842
      %v844 = vtanh.pop %v837
      %v845 = vmul.f32 %v843, %v773
      %847 = vrot.lane.b32.xlu0 %v844, 64
      %v848 = vpop.permute.xlu0 %847
      %v850 = vmul.f32 %v843, %v848
      %852 = vrot.lane.b32.xlu0 %v850, 32
      %v853 = vpop.permute.xlu0 %852
      %v855 = vadd.f32 %v845, %v853
      %v856 = vtanh.pop %v855
      %858 = vrot.lane.b32.xlu0 %v856, 64
      %v859 = vpop.permute.xlu0 %858
      %v861 = vmul.f32 %v843, %v859
      %863 = vrot.lane.b32.xlu0 %v861, 32
      %v864 = vpop.permute.xlu0 %863
      %s866 = scalar_lea.vmem %s298, %s787
      %867 = vst.msk [vmem:[%s866] sm:$0xff] %vm359, %v864
      %s868 = scalar_select %p449, 2, 5
      %s869 = smul.u32 %s868, 8
      %s870 = scalar_lea.vmem [#allocation2], %s869
      %v871 = vld [vmem:[%s870] sm:$0xff]
      %v872 = vpack.c.bf16 %v861, %v861
      %874 = vrot.lane.b32.xlu0 %v872, 32
      %v875 = vpop.permute.xlu0 %874
      %v877 = vsel %vm359, %v875, 0
      %879 = vmatprep.subr.bf16.mxu0 0
      %880 = vmatpush1.bf16.msra.mxu0 0
      %881 = vmatprep.subr.bf16.mxu0 0
      %882 = vmatpush1.bf16.msra.mxu0 0
      %883 = vmatprep.subr.bf16.mxu0 0
      %884 = vmatpush1.bf16.msra.mxu0 0
      %885 = vmatprep.subr.bf16.mxu0 0
      %886 = vmatpush1.bf16.msra.mxu0 0
      %887 = vmatprep.subr.bf16.mxu0 0
      %888 = vmatpush1.bf16.msra.mxu0 0
      %889 = vmatprep.subr.bf16.mxu0 0
      %890 = vmatpush1.bf16.msra.mxu0 0
      %891 = vmatprep.subr.bf16.mxu0 0
      %892 = vmatpush1.bf16.msra.mxu0 %v463
      %893 = vmatprep.subr.bf16.mxu0 0
      %894 = vmatpush1.bf16.msra.mxu0 %v462
      %895 = vmatprep.subr.bf16.mxu0 0
      %896 = vmatpush2.bf16.msra.mxu0 0
      %897 = vmatprep.subr.bf16.mxu0 0
      %898 = vmatpush2.bf16.msra.mxu0 0
      %899 = vmatprep.subr.bf16.mxu0 0
      %900 = vmatpush2.bf16.msra.mxu0 0
      %901 = vmatprep.subr.bf16.mxu0 0
      %902 = vmatpush2.bf16.msra.mxu0 0
      %903 = vmatprep.subr.bf16.mxu0 0
      %904 = vmatpush2.bf16.msra.mxu0 0
      %905 = vmatprep.subr.bf16.mxu0 0
      %906 = vmatpush2.bf16.msra.mxu0 0
      %907 = vmatprep.subr.bf16.mxu0 0
      %908 = vmatpush2.bf16.msra.mxu0 0
      %909 = vmatprep.subr.bf16.mxu0 0
      %910 = vmatpush2.bf16.msra.mxu0 0
      %911 = vmatprep.mubr.bf16.mxu0 0
      %912 = vmatmul.mubr.bf16.gmra.mxu0 %v877
      %v913 = vpop.f32.mrf.mxu0
      %v914 = vadd.f32 0.0, %v913
      %v915 = vpop.f32.mrf.mxu0
      %v916 = vpop.f32.mrf.mxu0
      %v917 = vpop.f32.mrf.mxu0
      %918 = vdwg.mxu0
      %v919 = vadd.f32 %v871, %v914
      %v920 = vxor.u32 %v919, 2147483648
      %v921 = vmul.f32 %v920, 1.442695
      %v922 = vpow.pop %v921
      %v923 = vadd.f32 %v922, 1.0
      %v924 = vrcp.pop %v923
      %v925 = vmul.f32 1.0, %v924
      %v926 = vtanh.pop %v919
      %v927 = vmul.f32 %v925, %v855
      %929 = vrot.lane.b32.xlu0 %v926, 64
      %v930 = vpop.permute.xlu0 %929
      %v932 = vmul.f32 %v925, %v930
      %934 = vrot.lane.b32.xlu0 %v932, 32
      %v935 = vpop.permute.xlu0 %934
      %v937 = vadd.f32 %v927, %v935
      %v938 = vtanh.pop %v937
      %940 = vrot.lane.b32.xlu0 %v938, 64
      %v941 = vpop.permute.xlu0 %940
      %v943 = vmul.f32 %v925, %v941
      %945 = vrot.lane.b32.xlu0 %v943, 32
      %v946 = vpop.permute.xlu0 %945
      %s948 = scalar_lea.vmem %s298, %s869
      %949 = vst.msk [vmem:[%s948] sm:$0xff] %vm359, %v946
      %s950 = scalar_select %p449, 1, 6
      %s951 = smul.u32 %s950, 8
      %s952 = scalar_lea.vmem [#allocation2], %s951
      %v953 = vld [vmem:[%s952] sm:$0xff]
      %v954 = vpack.c.bf16 %v943, %v943
      %956 = vrot.lane.b32.xlu0 %v954, 32
      %v957 = vpop.permute.xlu0 %956
      %v959 = vsel %vm359, %v957, 0
      %961 = vmatprep.subr.bf16.mxu0 0
      %962 = vmatpush1.bf16.msra.mxu0 0
      %963 = vmatprep.subr.bf16.mxu0 0
      %964 = vmatpush1.bf16.msra.mxu0 0
      %965 = vmatprep.subr.bf16.mxu0 0
      %966 = vmatpush1.bf16.msra.mxu0 0
      %967 = vmatprep.subr.bf16.mxu0 0
      %968 = vmatpush1.bf16.msra.mxu0 0
      %969 = vmatprep.subr.bf16.mxu0 0
      %970 = vmatpush1.bf16.msra.mxu0 0
      %971 = vmatprep.subr.bf16.mxu0 0
      %972 = vmatpush1.bf16.msra.mxu0 0
      %973 = vmatprep.subr.bf16.mxu0 0
      %974 = vmatpush1.bf16.msra.mxu0 %v463
      %975 = vmatprep.subr.bf16.mxu0 0
      %976 = vmatpush1.bf16.msra.mxu0 %v462
      %977 = vmatprep.subr.bf16.mxu0 0
      %978 = vmatpush2.bf16.msra.mxu0 0
      %979 = vmatprep.subr.bf16.mxu0 0
      %980 = vmatpush2.bf16.msra.mxu0 0
      %981 = vmatprep.subr.bf16.mxu0 0
      %982 = vmatpush2.bf16.msra.mxu0 0
      %983 = vmatprep.subr.bf16.mxu0 0
      %984 = vmatpush2.bf16.msra.mxu0 0
      %985 = vmatprep.subr.bf16.mxu0 0
      %986 = vmatpush2.bf16.msra.mxu0 0
      %987 = vmatprep.subr.bf16.mxu0 0
      %988 = vmatpush2.bf16.msra.mxu0 0
      %989 = vmatprep.subr.bf16.mxu0 0
      %990 = vmatpush2.bf16.msra.mxu0 0
      %991 = vmatprep.subr.bf16.mxu0 0
      %992 = vmatpush2.bf16.msra.mxu0 0
      %993 = vmatprep.mubr.bf16.mxu0 0
      %994 = vmatmul.mubr.bf16.gmra.mxu0 %v959
      %v995 = vpop.f32.mrf.mxu0
      %v996 = vadd.f32 0.0, %v995
      %v997 = vpop.f32.mrf.mxu0
      %v998 = vpop.f32.mrf.mxu0
      %v999 = vpop.f32.mrf.mxu0
      %1000 = vdwg.mxu0
      %v1001 = vadd.f32 %v953, %v996
      %v1002 = vxor.u32 %v1001, 2147483648
      %v1003 = vmul.f32 %v1002, 1.442695
      %v1004 = vpow.pop %v1003
      %v1005 = vadd.f32 %v1004, 1.0
      %v1006 = vrcp.pop %v1005
      %v1007 = vmul.f32 1.0, %v1006
      %v1008 = vtanh.pop %v1001
      %v1009 = vmul.f32 %v1007, %v937
      %1011 = vrot.lane.b32.xlu0 %v1008, 64
      %v1012 = vpop.permute.xlu0 %1011
      %v1014 = vmul.f32 %v1007, %v1012
      %1016 = vrot.lane.b32.xlu0 %v1014, 32
      %v1017 = vpop.permute.xlu0 %1016
      %v1019 = vadd.f32 %v1009, %v1017
      %v1020 = vtanh.pop %v1019
      %1022 = vrot.lane.b32.xlu0 %v1020, 64
      %v1023 = vpop.permute.xlu0 %1022
      %v1025 = vmul.f32 %v1007, %v1023
      %1027 = vrot.lane.b32.xlu0 %v1025, 32
      %v1028 = vpop.permute.xlu0 %1027
      %s1030 = scalar_lea.vmem %s298, %s951
      %1031 = vst.msk [vmem:[%s1030] sm:$0xff] %vm359, %v1028
      %s1032 = scalar_select %p449, 0, 7
      %s1033 = smul.u32 %s1032, 8
      %s1034 = scalar_lea.vmem [#allocation2], %s1033
      %v1035 = vld [vmem:[%s1034] sm:$0xff]
      %v1036 = vpack.c.bf16 %v1025, %v1025
      %1038 = vrot.lane.b32.xlu0 %v1036, 32
      %v1039 = vpop.permute.xlu0 %1038
      %v1041 = vsel %vm359, %v1039, 0
      %1043 = vmatprep.subr.bf16.mxu0 0
      %1044 = vmatpush1.bf16.msra.mxu0 0
      %1045 = vmatprep.subr.bf16.mxu0 0
      %1046 = vmatpush1.bf16.msra.mxu0 0
      %1047 = vmatprep.subr.bf16.mxu0 0
      %1048 = vmatpush1.bf16.msra.mxu0 0
      %1049 = vmatprep.subr.bf16.mxu0 0
      %1050 = vmatpush1.bf16.msra.mxu0 0
      %1051 = vmatprep.subr.bf16.mxu0 0
      %1052 = vmatpush1.bf16.msra.mxu0 0
      %1053 = vmatprep.subr.bf16.mxu0 0
      %1054 = vmatpush1.bf16.msra.mxu0 0
      %1055 = vmatprep.subr.bf16.mxu0 0
      %1056 = vmatpush1.bf16.msra.mxu0 %v463
      %1057 = vmatprep.subr.bf16.mxu0 0
      %1058 = vmatpush1.bf16.msra.mxu0 %v462
      %1059 = vmatprep.subr.bf16.mxu0 0
      %1060 = vmatpush2.bf16.msra.mxu0 0
      %1061 = vmatprep.subr.bf16.mxu0 0
      %1062 = vmatpush2.bf16.msra.mxu0 0
      %1063 = vmatprep.subr.bf16.mxu0 0
      %1064 = vmatpush2.bf16.msra.mxu0 0
      %1065 = vmatprep.subr.bf16.mxu0 0
      %1066 = vmatpush2.bf16.msra.mxu0 0
      %1067 = vmatprep.subr.bf16.mxu0 0
      %1068 = vmatpush2.bf16.msra.mxu0 0
      %1069 = vmatprep.subr.bf16.mxu0 0
      %1070 = vmatpush2.bf16.msra.mxu0 0
      %1071 = vmatprep.subr.bf16.mxu0 0
      %1072 = vmatpush2.bf16.msra.mxu0 0
      %1073 = vmatprep.subr.bf16.mxu0 0
      %1074 = vmatpush2.bf16.msra.mxu0 0
      %1075 = vmatprep.mubr.bf16.mxu0 0
      %1076 = vmatmul.mubr.bf16.gmra.mxu0 %v1041
      %v1077 = vpop.f32.mrf.mxu0
      %v1078 = vadd.f32 0.0, %v1077
      %v1079 = vpop.f32.mrf.mxu0
      %v1080 = vpop.f32.mrf.mxu0
      %v1081 = vpop.f32.mrf.mxu0
      %1082 = vdwg.mxu0
      %v1083 = vadd.f32 %v1035, %v1078
      %v1084 = vxor.u32 %v1083, 2147483648
      %v1085 = vmul.f32 %v1084, 1.442695
      %v1086 = vpow.pop %v1085
      %v1087 = vadd.f32 %v1086, 1.0
      %v1088 = vrcp.pop %v1087
      %v1089 = vmul.f32 1.0, %v1088
      %v1090 = vtanh.pop %v1083
      %v1091 = vmul.f32 %v1089, %v1019
      %1093 = vrot.lane.b32.xlu0 %v1090, 64
      %v1094 = vpop.permute.xlu0 %1093
      %v1096 = vmul.f32 %v1089, %v1094
      %1098 = vrot.lane.b32.xlu0 %v1096, 32
      %v1099 = vpop.permute.xlu0 %1098
      %v1101 = vadd.f32 %v1091, %v1099
      %v1102 = vtanh.pop %v1101
      %1104 = vrot.lane.b32.xlu0 %v1102, 64
      %v1105 = vpop.permute.xlu0 %1104
      %v1107 = vmul.f32 %v1089, %v1105
      %1109 = vrot.lane.b32.xlu0 %v1107, 32
      %v1110 = vpop.permute.xlu0 %1109
      %s1112 = scalar_lea.vmem %s298, %s1033
      %1113 = vst.msk [vmem:[%s1112] sm:$0xff] %vm359, %v1110
      %1114 = vst.msk [vmem:[%s302] sm:$0xff] %vm359, %v1110
      %1116 = vrot.lane.b32.xlu0 %v1101, 96
      %v1117 = vpop.permute.xlu0 %1116
      %1119 = vst.msk [vmem:[%s306] sm:$0xff] %vm359, %v1117
      %p1120 = scmp.lt.s32.totalorder %s18, 1
      %s1121 = scalar_select %p1120, %s18, 1
      %s1122 = smul.addr %s1121, 8
      %s1123 = smul.addr %s1122, 8
      %s1124 = scalar_lea.vmem %s4, %s1123
      %p1125 = scmp.lt.s32.totalorder %s18, 1
      %s1126 = scalar_select %p1125, %s18, 1
      %s1127 = smul.addr %s1126, 8
      %s1128 = scalar_lea.vmem %s5, %s1127
      %p1129 = scmp.lt.s32.totalorder %s18, 1
      %s1130 = scalar_select %p1129, %s18, 1
      %s1131 = smul.addr %s1130, 8
      %s1132 = scalar_lea.vmem %s6, %s1131
      // Predicated region
      $region37: #{mude_forward.8} parent=35 // pred_check
        %p1133 = pneg %p135
      $region38: #{mude_forward.8} parent=35 // pred_check_branch
        %1135 = sbr.rel (%p1133) target = $region40
      $region39: #{mude_forward.8} parent=35 // pred_region
        _
      $region40: #{mude_forward.8} parent=35 // pred_fallthru
        _
      // Predicated region
      $region41: #{mude_forward.8} parent=35 // pred_check
        %p1136 = pneg %p161
      $region42: #{mude_forward.8} parent=35 // pred_check_branch
        %1138 = sbr.rel (%p1136) target = $region44
      $region43: #{mude_forward.8} parent=35 // pred_region
        _
      $region44: #{mude_forward.8} parent=35 // pred_fallthru
        _
      // Predicated region
      $region45: #{mude_forward.8} parent=35 // pred_check
        %p1139 = pneg %p187
      $region46: #{mude_forward.8} parent=35 // pred_check_branch
        %1141 = sbr.rel (%p1139) target = $region48
      $region47: #{mude_forward.8} parent=35 // pred_region
        _
      $region48: #{mude_forward.8} parent=35 // pred_fallthru
        _
    $region36: #{mude_forward.8} parent=5 // pred_fallthru
      _
    %p1142 = scmp.le.s32.totalorder 2, %s13
    // Predicated region
    $region49: #{mude_forward.8} parent=5 // pred_check
      %p1143 = pneg %p1142
    $region50: #{mude_forward.8} parent=5 // pred_check_branch
      %1145 = sbr.rel (%p1143) target = $region52
    $region51: #{mude_forward.8} parent=5 // pred_region
      %s1146 = ssub.s32 %s13, 2
      // Predicated region
      $region53: #{mude_forward.8} parent=51 // pred_check
        %p1147 = pneg %p141
      $region54: #{mude_forward.8} parent=51 // pred_check_branch
        %1149 = sbr.rel (%p1147) target = $region56
      $region55: #{mude_forward.8} parent=51 // pred_region
        %p1150 = scmp.lt.s32.totalorder %s19, 1
        %s1151 = scalar_select %p1150, %s19, 1
        %s1152 = smul.addr %s1151, 8
        %s1153 = smul.addr %s1152, 8
        %s1154 = scalar_lea.vmem %s4, %s1153
      $region56: #{mude_forward.8} parent=51 // pred_fallthru
        _
      // Predicated region
      $region57: #{mude_forward.8} parent=51 // pred_check
        %p1155 = pneg %p167
      $region58: #{mude_forward.8} parent=51 // pred_check_branch
        %1157 = sbr.rel (%p1155) target = $region60
      $region59: #{mude_forward.8} parent=51 // pred_region
        %p1158 = scmp.lt.s32.totalorder %s19, 1
        %s1159 = scalar_select %p1158, %s19, 1
        %s1160 = smul.addr %s1159, 8
        %s1161 = scalar_lea.vmem %s5, %s1160
      $region60: #{mude_forward.8} parent=51 // pred_fallthru
        _
      // Predicated region
      $region61: #{mude_forward.8} parent=51 // pred_check
        %p1162 = pneg %p193
      $region62: #{mude_forward.8} parent=51 // pred_check_branch
        %1164 = sbr.rel (%p1162) target = $region64
      $region63: #{mude_forward.8} parent=51 // pred_region
        %p1165 = scmp.lt.s32.totalorder %s19, 1
        %s1166 = scalar_select %p1165, %s19, 1
        %s1167 = smul.addr %s1166, 8
        %s1168 = scalar_lea.vmem %s6, %s1167
      $region64: #{mude_forward.8} parent=51 // pred_fallthru
        _
    $region52: #{mude_forward.8} parent=5 // pred_fallthru
      _
  $region6: #{mude_forward.8} parent=0 // loop_footer
    %s17 = sadd.s32 1, %s13
  $region7: #{mude_forward.8} parent=0 // loop_footer_branch
    %12 = sbr.rel target = $region3
  $region8: #{mude_forward.8} parent=0 // loop_exit
    _

// kernel: mude_forward.6
$region0: #{mude_forward.6}
  #allocation0 [shape = 'u32[]', space=smem, size = 0x4, offset = 0x4, fixed_abs, tag = 'smem constant byte address 0x4 - core index']
  #allocation1 [shape = 'u32[144,128]{1,0:T(1,128)}', space=vmem, size = 0x12000, scoped, tag = 'internal scratch']
  #allocation2 [shape = 'f32[7,8,96]{2,1,0:T(8,128)}', space=vmem, size = 0x7000, scoped, tag = 'scratch operand']
  %s0 = inlined_call_operand.vmem [shape: bf16[7,16,32], index: 0, kind: input, shape index: {}]
  %s1 = inlined_call_operand.vmem [shape: f32[16,32], index: 1, kind: input, shape index: {}]
  %s2 = inlined_call_operand.vmem [shape: bf16[32,96], index: 2, kind: input, shape index: {}]
  %s3 = inlined_call_operand.vmem [shape: bf16[32,96], index: 3, kind: input, shape index: {}]
  %s4 = inlined_call_operand.vmem [shape: f32[1,96], index: 4, kind: input, shape index: {}]
  %s5 = inlined_call_operand.vmem [shape: f32[1,96], index: 5, kind: input, shape index: {}]
  %s6 = inlined_call_operand.vmem [shape: f32[7,16,32], index: 6, kind: output, shape index: {}]
  %s7 = sld [smem:[#allocation0]]
  $region132: #{mude_forward.6} parent=0
    _
  %s9 = ssub.s32 1, %s7
  %s10 = scalar_select 0, %s9, %s7
  $region1: #{mude_forward.6} parent=0
    #allocation3 [shape = 'u8[28672]{0}', space=vmem, size = 0x7000, scoped, tag = 'input window, operand 0']
    #allocation4 [shape = 'u8[57344]{0}', space=vmem, size = 0xe000, scoped, tag = 'output window, operand 0']
    loop: start=0, step=1, limit=4
    $region2: #{mude_forward.6} parent=1 // loop_pre_header
      _
    $region3: #{mude_forward.6} parent=1 // loop_header
      %s12 = sphi 0, %s16
      %p13 = scmp.ge.s32.totalorder %s12, 4
      %s22 = sphi 0, %s24
      %s25 = sphi 0, %s22
      %s26 = sphi 0, %s25
      %s42 = sphi 0, %s26
      %s48 = sphi 0, %s50
      %s51 = sphi 0, %s48
      %s52 = sphi 0, %s51
      %s68 = sphi 0, %s52
      %s72 = sphi 0, %s72
      %s74 = sphi 0, %s72
      %s75 = sphi 0, %s74
      %s89 = sphi 0, %s75
      %s93 = sphi 0, %s93
      %s95 = sphi 0, %s93
      %s96 = sphi 0, %s95
      %s110 = sphi 0, %s96
      %s114 = sphi 0, %s114
      %s116 = sphi 0, %s114
      %s117 = sphi 0, %s116
      %s131 = sphi 0, %s117
      %s135 = sphi 0, %s135
      %s137 = sphi 0, %s135
      %s138 = sphi 0, %s137
      %s152 = sphi 0, %s138
      %s158 = sphi 0, %s160
      %s161 = sphi 0, %s158
      %s162 = sphi 0, %s161
      %s178 = sphi 0, %s162
    $region4: #{mude_forward.6} parent=1 // loop_header_branch
      %15 = sbr.rel (%p13) target = $region8
    $region5: #{mude_forward.6} parent=1 // loop_body
      %s17 = ssub.s32 %s12, 1
      %s18 = ssub.s32 %s12, 2
      %s19 = sadd.s32 %s12, 1
      %s20 = ssub.s32 %s12, %s19
      %p21 = scmp.eq.s32.totalorder %s20, 0
      %s23 = sadd.s32 %s22, 1
      %s24 = scalar_select %p21, %s22, %s23
      %p27 = pneg %p21
      %p28 = scmp.eq.s32.totalorder %s12, 1
      %p29 = por %p27, %p28
      %p30 = scmp.ne.s32.totalorder %s22, %s25
      %p31 = scmp.eq.s32.totalorder %s12, 0
      %p32 = por %p30, %p31
      %p33 = scmp.ne.s32.totalorder %s22, %s25
      %p34 = scmp.eq.s32.totalorder %s17, 1
      %p35 = por %p33, %p34
      %p36 = scmp.ne.s32.totalorder %s25, %s26
      %p37 = scmp.eq.s32.totalorder %s17, 0
      %p38 = por %p36, %p37
      %p39 = scmp.ne.s32.totalorder %s25, %s26
      %p40 = scmp.eq.s32.totalorder %s18, 1
      %p41 = por %p39, %p40
      %p43 = scmp.ne.s32.totalorder %s26, %s42
      %p44 = scmp.eq.s32.totalorder %s18, 0
      %p45 = por %p43, %p44
      %s46 = ssub.s32 %s12, %s19
      %p47 = scmp.eq.s32.totalorder %s46, 0
      %s49 = sadd.s32 %s48, 1
      %s50 = scalar_select %p47, %s48, %s49
      %p53 = pneg %p47
      %p54 = scmp.eq.s32.totalorder %s12, 1
      %p55 = por %p53, %p54
      %p56 = scmp.ne.s32.totalorder %s48, %s51
      %p57 = scmp.eq.s32.totalorder %s12, 0
      %p58 = por %p56, %p57
      %p59 = scmp.ne.s32.totalorder %s48, %s51
      %p60 = scmp.eq.s32.totalorder %s17, 1
      %p61 = por %p59, %p60
      %p62 = scmp.ne.s32.totalorder %s51, %s52
      %p63 = scmp.eq.s32.totalorder %s17, 0
      %p64 = por %p62, %p63
      %p65 = scmp.ne.s32.totalorder %s51, %s52
      %p66 = scmp.eq.s32.totalorder %s18, 1
      %p67 = por %p65, %p66
      %p69 = scmp.ne.s32.totalorder %s52, %s68
      %p70 = scmp.eq.s32.totalorder %s18, 0
      %p71 = por %p69, %p70
      %s73 = sadd.s32 %s72, 1
      %p76 = scmp.eq.s32.totalorder %s12, 1
      %p77 = scmp.ne.s32.totalorder %s72, %s74
      %p78 = scmp.eq.s32.totalorder %s12, 0
      %p79 = por %p77, %p78
      %p80 = scmp.ne.s32.totalorder %s72, %s74
      %p81 = scmp.eq.s32.totalorder %s17, 1
      %p82 = por %p80, %p81
      %p83 = scmp.ne.s32.totalorder %s74, %s75
      %p84 = scmp.eq.s32.totalorder %s17, 0
      %p85 = por %p83, %p84
      %p86 = scmp.ne.s32.totalorder %s74, %s75
      %p87 = scmp.eq.s32.totalorder %s18, 1
      %p88 = por %p86, %p87
      %p90 = scmp.ne.s32.totalorder %s75, %s89
      %p91 = scmp.eq.s32.totalorder %s18, 0
      %p92 = por %p90, %p91
      %s94 = sadd.s32 %s93, 1
      %p97 = scmp.eq.s32.totalorder %s12, 1
      %p98 = scmp.ne.s32.totalorder %s93, %s95
      %p99 = scmp.eq.s32.totalorder %s12, 0
      %p100 = por %p98, %p99
      %p101 = scmp.ne.s32.totalorder %s93, %s95
      %p102 = scmp.eq.s32.totalorder %s17, 1
      %p103 = por %p101, %p102
      %p104 = scmp.ne.s32.totalorder %s95, %s96
      %p105 = scmp.eq.s32.totalorder %s17, 0
      %p106 = por %p104, %p105
      %p107 = scmp.ne.s32.totalorder %s95, %s96
      %p108 = scmp.eq.s32.totalorder %s18, 1
      %p109 = por %p107, %p108
      %p111 = scmp.ne.s32.totalorder %s96, %s110
      %p112 = scmp.eq.s32.totalorder %s18, 0
      %p113 = por %p111, %p112
      %s115 = sadd.s32 %s114, 1
      %p118 = scmp.eq.s32.totalorder %s12, 1
      %p119 = scmp.ne.s32.totalorder %s114, %s116
      %p120 = scmp.eq.s32.totalorder %s12, 0
      %p121 = por %p119, %p120
      %p122 = scmp.ne.s32.totalorder %s114, %s116
      %p123 = scmp.eq.s32.totalorder %s17, 1
      %p124 = por %p122, %p123
      %p125 = scmp.ne.s32.totalorder %s116, %s117
      %p126 = scmp.eq.s32.totalorder %s17, 0
      %p127 = por %p125, %p126
      %p128 = scmp.ne.s32.totalorder %s116, %s117
      %p129 = scmp.eq.s32.totalorder %s18, 1
      %p130 = por %p128, %p129
      %p132 = scmp.ne.s32.totalorder %s117, %s131
      %p133 = scmp.eq.s32.totalorder %s18, 0
      %p134 = por %p132, %p133
      %s136 = sadd.s32 %s135, 1
      %p139 = scmp.eq.s32.totalorder %s12, 1
      %p140 = scmp.ne.s32.totalorder %s135, %s137
      %p141 = scmp.eq.s32.totalorder %s12, 0
      %p142 = por %p140, %p141
      %p143 = scmp.ne.s32.totalorder %s135, %s137
      %p144 = scmp.eq.s32.totalorder %s17, 1
      %p145 = por %p143, %p144
      %p146 = scmp.ne.s32.totalorder %s137, %s138
      %p147 = scmp.eq.s32.totalorder %s17, 0
      %p148 = por %p146, %p147
      %p149 = scmp.ne.s32.totalorder %s137, %s138
      %p150 = scmp.eq.s32.totalorder %s18, 1
      %p151 = por %p149, %p150
      %p153 = scmp.ne.s32.totalorder %s138, %s152
      %p154 = scmp.eq.s32.totalorder %s18, 0
      %p155 = por %p153, %p154
      %s156 = ssub.s32 %s12, %s19
      %p157 = scmp.eq.s32.totalorder %s156, 0
      %s159 = sadd.s32 %s158, 1
      %s160 = scalar_select %p157, %s158, %s159
      %p163 = pneg %p157
      %p164 = scmp.eq.s32.totalorder %s12, 1
      %p165 = por %p163, %p164
      %p166 = scmp.ne.s32.totalorder %s158, %s161
      %p167 = scmp.eq.s32.totalorder %s12, 0
      %p168 = por %p166, %p167
      %p169 = scmp.ne.s32.totalorder %s158, %s161
      %p170 = scmp.eq.s32.totalorder %s17, 1
      %p171 = por %p169, %p170
      %p172 = scmp.ne.s32.totalorder %s161, %s162
      %p173 = scmp.eq.s32.totalorder %s17, 0
      %p174 = por %p172, %p173
      %p175 = scmp.ne.s32.totalorder %s161, %s162
      %p176 = scmp.eq.s32.totalorder %s18, 1
      %p177 = por %p175, %p176
      %p179 = scmp.ne.s32.totalorder %s162, %s178
      %p180 = scmp.eq.s32.totalorder %s18, 0
      %p181 = por %p179, %p180
      %p182 = scmp.le.s32.totalorder 1, %s12
      %p183 = scmp.lt.s32.totalorder %s12, 3
      %p184 = pnand %p182, %p183
      %p185 = pneg %p184
      // Predicated region
      $region9: #{mude_forward.6} parent=5 // pred_check
        _
      $region10: #{mude_forward.6} parent=5 // pred_check_branch
        %187 = sbr.rel (%p184) target = $region12
      $region11: #{mude_forward.6} parent=5 // pred_region
        %s188 = ssub.s32 %s12, 1
        // Predicated region
        $region13: #{mude_forward.6} parent=11 // pred_check
          %p189 = pneg %p85
        $region14: #{mude_forward.6} parent=11 // pred_check_branch
          %191 = sbr.rel (%p189) target = $region16
        $region15: #{mude_forward.6} parent=11 // pred_region
          _
        $region16: #{mude_forward.6} parent=11 // pred_fallthru
          _
        // Predicated region
        $region17: #{mude_forward.6} parent=11 // pred_check
          %p192 = pneg %p106
        $region18: #{mude_forward.6} parent=11 // pred_check_branch
          %194 = sbr.rel (%p192) target = $region20
        $region19: #{mude_forward.6} parent=11 // pred_region
          _
        $region20: #{mude_forward.6} parent=11 // pred_fallthru
          _
        // Predicated region
        $region21: #{mude_forward.6} parent=11 // pred_check
          %p195 = pneg %p127
        $region22: #{mude_forward.6} parent=11 // pred_check_branch
          %197 = sbr.rel (%p195) target = $region24
        $region23: #{mude_forward.6} parent=11 // pred_region
          _
        $region24: #{mude_forward.6} parent=11 // pred_fallthru
          _
        // Predicated region
        $region25: #{mude_forward.6} parent=11 // pred_check
          %p198 = pneg %p148
        $region26: #{mude_forward.6} parent=11 // pred_check_branch
          %200 = sbr.rel (%p198) target = $region28
        $region27: #{mude_forward.6} parent=11 // pred_region
          _
        $region28: #{mude_forward.6} parent=11 // pred_fallthru
          _
      $region12: #{mude_forward.6} parent=5 // pred_fallthru
        _
      %p201 = scmp.lt.s32.totalorder %s12, 2
      // Predicated region
      $region29: #{mude_forward.6} parent=5 // pred_check
        %p202 = pneg %p201
      $region30: #{mude_forward.6} parent=5 // pred_check_branch
        %204 = sbr.rel (%p202) target = $region32
      $region31: #{mude_forward.6} parent=5 // pred_region
        // Predicated region
        $region33: #{mude_forward.6} parent=31 // pred_check
          %p205 = pneg %p32
        $region34: #{mude_forward.6} parent=31 // pred_check_branch
          %207 = sbr.rel (%p205) target = $region36
        $region35: #{mude_forward.6} parent=31 // pred_region
          %s208 = sand.u32 %s22, 1
          %s209 = sand.u32 %s22, 1
          %s210 = smul.addr %s209, 28
          %s211 = scalar_lea.vmem [#allocation3], %s210
          %s212 = smul.addr %s12, 4
          %s213 = scalar_lea.vmem %s0, %s212
          // Predicated region
          $region37: #{mude_forward.6} parent=35 // pred_check
            _
          $region38: #{mude_forward.6} parent=35 // pred_check_branch
            %215 = sbr.rel (0) target = $region40
          $region39: #{mude_forward.6} parent=35 // pred_region
            // Predicated region
            $region41: #{mude_forward.6} parent=39 // pred_check
              _
            $region42: #{mude_forward.6} parent=39 // pred_check_branch
              %217 = sbr.rel target = $region44
            $region43: #{mude_forward.6} parent=39 // pred_region
              // Predicated region
              $region56: #{mude_forward.6} parent=43 // pred_check
                _
              $region57: #{mude_forward.6} parent=43 // pred_check_branch
                %245 = sbr.rel (0) target = $region59
              $region58: #{mude_forward.6} parent=43 // pred_region
                loop: start=0, step=1, limit=1
                $region60: #{mude_forward.6} parent=58 // loop_pre_header
                  _
                $region61: #{mude_forward.6} parent=58 // loop_header
                  %s247 = sphi 0, %s251
                  %p248 = scmp.ge.s32.totalorder %s247, 1
                  %s252 = sphi %s213, %s213
                  %s253 = sphi %s211, %s211
                $region62: #{mude_forward.6} parent=58 // loop_header_branch
                  %250 = sbr.rel (%p248) target = $region66
                $region63: #{mude_forward.6} parent=58 // loop_body
                  _
                $region64: #{mude_forward.6} parent=58 // loop_footer
                  %s251 = sadd.s32 1, %s247
                $region65: #{mude_forward.6} parent=58 // loop_footer_branch
                  %246 = sbr.rel target = $region61
                $region66: #{mude_forward.6} parent=58 // loop_exit
                  _
                %s255 = ssub.s32 16, 1
                loop: start=0, step=1, limit=1
                $region67: #{mude_forward.6} parent=58 // loop_pre_header
                  _
                $region68: #{mude_forward.6} parent=58 // loop_header
                  %s257 = sphi 0, %s261
                  %p258 = scmp.ge.s32.totalorder %s257, 1
                  %s262 = sphi %s213, %s213
                  %s263 = sphi %s211, %s211
                $region69: #{mude_forward.6} parent=58 // loop_header_branch
                  %260 = sbr.rel (%p258) target = $region73
                $region70: #{mude_forward.6} parent=58 // loop_body
                  %v264 = vld [vmem:[%s262] sm:%s255]
                  %265 = vst [vmem:[%s263] sm:%s255] %v264
                  %v266 = vld [vmem:[%s262 + $0x8] sm:%s255]
                  %267 = vst [vmem:[%s263 + $0x4] sm:%s255] %v266
                  %v268 = vld [vmem:[%s262 + $0x10] sm:%s255]
                  %269 = vst [vmem:[%s263 + $0x8] sm:%s255] %v268
                  %v270 = vld [vmem:[%s262 + $0x18] sm:%s255]
                  %271 = vst [vmem:[%s263 + $0xc] sm:%s255] %v270
                  %v272 = vld [vmem:[%s262 + $0x20] sm:%s255]
                  %273 = vst [vmem:[%s263 + $0x10] sm:%s255] %v272
                  %v274 = vld [vmem:[%s262 + $0x28] sm:%s255]
                  %275 = vst [vmem:[%s263 + $0x14] sm:%s255] %v274
                  %v276 = vld [vmem:[%s262 + $0x30] sm:%s255]
                  %277 = vst [vmem:[%s263 + $0x18] sm:%s255] %v276
                $region71: #{mude_forward.6} parent=58 // loop_footer
                  %s261 = sadd.s32 1, %s257
                $region72: #{mude_forward.6} parent=58 // loop_footer_branch
                  %256 = sbr.rel target = $region68
                $region73: #{mude_forward.6} parent=58 // loop_exit
                  _
              $region59: #{mude_forward.6} parent=43 // pred_fallthru
                _
            $region44: #{mude_forward.6} parent=39 // pred_fallthru
              _
            // Predicated region
            $region45: #{mude_forward.6} parent=39 // pred_check
              _
            $region46: #{mude_forward.6} parent=39 // pred_check_branch
              %219 = sbr.rel (0) target = $region48
            $region47: #{mude_forward.6} parent=39 // pred_region
              %s221 = ssub.s32 16, 1
              loop: start=0, step=1, limit=1
              $region49: #{mude_forward.6} parent=47 // loop_pre_header
                _
              $region50: #{mude_forward.6} parent=47 // loop_header
                %s223 = sphi 0, %s227
                %p224 = scmp.ge.s32.totalorder %s223, 1
                %s228 = sphi %s213, %s213
                %s229 = sphi %s211, %s211
              $region51: #{mude_forward.6} parent=47 // loop_header_branch
                %226 = sbr.rel (%p224) target = $region55
              $region52: #{mude_forward.6} parent=47 // loop_body
                %v230 = vld [vmem:[%s228] sm:%s221]
                %231 = vst [vmem:[%s229] sm:%s221] %v230
                %v232 = vld [vmem:[%s228 + $0x8] sm:%s221]
                %233 = vst [vmem:[%s229 + $0x4] sm:%s221] %v232
                %v234 = vld [vmem:[%s228 + $0x10] sm:%s221]
                %235 = vst [vmem:[%s229 + $0x8] sm:%s221] %v234
                %v236 = vld [vmem:[%s228 + $0x18] sm:%s221]
                %237 = vst [vmem:[%s229 + $0xc] sm:%s221] %v236
                %v238 = vld [vmem:[%s228 + $0x20] sm:%s221]
                %239 = vst [vmem:[%s229 + $0x10] sm:%s221] %v238
                %v240 = vld [vmem:[%s228 + $0x28] sm:%s221]
                %241 = vst [vmem:[%s229 + $0x14] sm:%s221] %v240
                %v242 = vld [vmem:[%s228 + $0x30] sm:%s221]
                %243 = vst [vmem:[%s229 + $0x18] sm:%s221] %v242
              $region53: #{mude_forward.6} parent=47 // loop_footer
                %s227 = sadd.s32 1, %s223
              $region54: #{mude_forward.6} parent=47 // loop_footer_branch
                %222 = sbr.rel target = $region50
              $region55: #{mude_forward.6} parent=47 // loop_exit
                _
            $region48: #{mude_forward.6} parent=39 // pred_fallthru
              _
          $region40: #{mude_forward.6} parent=35 // pred_fallthru
            _
          %278 = vnop
        $region36: #{mude_forward.6} parent=31 // pred_fallthru
          _
        // Predicated region
        $region74: #{mude_forward.6} parent=31 // pred_check
          %p279 = pneg %p58
        $region75: #{mude_forward.6} parent=31 // pred_check_branch
          %281 = sbr.rel (%p279) target = $region77
        $region76: #{mude_forward.6} parent=31 // pred_region
          %p282 = scmp.lt.s32.totalorder %s12, 1
          %s283 = scalar_select %p282, %s12, 1
          %s284 = smul.addr %s283, 8
          %s285 = scalar_lea.vmem %s1, %s284
        $region77: #{mude_forward.6} parent=31 // pred_fallthru
          _
      $region32: #{mude_forward.6} parent=5 // pred_fallthru
        _
      %p286 = scmp.le.s32.totalorder 1, %s12
      %p287 = scmp.lt.s32.totalorder %s12, 3
      %p288 = pnand %p286, %p287
      %p289 = pneg %p288
      // Predicated region
      $region78: #{mude_forward.6} parent=5 // pred_check
        _
      $region79: #{mude_forward.6} parent=5 // pred_check_branch
        %291 = sbr.rel (%p288) target = $region81
      $region80: #{mude_forward.6} parent=5 // pred_region
        %s292 = ssub.s32 %s12, 1
        %s293 = sand.u32 %s25, 1
        %s294 = sand.u32 %s25, 1
        %s295 = smul.addr %s294, 28
        %s296 = scalar_lea.vmem [#allocation3], %s295
        // Predicated region
        $region82: #{mude_forward.6} parent=80 // pred_check
          %p297 = pneg %p38
        $region83: #{mude_forward.6} parent=80 // pred_check_branch
          %299 = sbr.rel (%p297) target = $region85
        $region84: #{mude_forward.6} parent=80 // pred_region
          _
        $region85: #{mude_forward.6} parent=80 // pred_fallthru
          _
        %s300 = sand.u32 %s25, 1
        %s301 = sand.u32 %s25, 1
        %s302 = smul.addr %s301, 28
        %s303 = scalar_lea.vmem [#allocation3], %s302
        %p304 = pneg %p38
        %p305 = pneg %p35
        %p306 = scmp.lt.s32.totalorder %s17, 1
        %s307 = scalar_select %p306, %s17, 1
        %s308 = smul.addr %s307, 8
        %s309 = scalar_lea.vmem %s1, %s308
        %p310 = pneg %p64
        %p311 = pneg %p61
        %p312 = pneg %p85
        %p313 = pneg %p82
        %p314 = pneg %p106
        %p315 = pneg %p103
        %p316 = pneg %p127
        %p317 = pneg %p124
        %p318 = pneg %p148
        %p319 = pneg %p145
        %p320 = pneg %p174
        %p321 = pneg %p171
        %s322 = sand.u32 %s161, 1
        %s323 = sand.u32 %s161, 1
        %s324 = smul.addr %s323, 56
        %s325 = scalar_lea.vmem [#allocation4], %s324
        %p326 = scmp.lt.s32.totalorder %s17, 1
        %s327 = scalar_select %p326, %s17, 1
        %s328 = smul.addr %s327, 8
        %s329 = scalar_lea.vmem %s1, %s328
        %v331 = vld [vmem:[%s296] sm:$0xf]
        %v332 = vld [vmem:[%s296 + $0x4] sm:$0xf]
        %v333 = vld [vmem:[%s296 + $0x8] sm:$0xf]
        %v334 = vld [vmem:[%s296 + $0xc] sm:$0xf]
        %v335 = vld [vmem:[%s296 + $0x10] sm:$0xf]
        %v336 = vld [vmem:[%s296 + $0x14] sm:$0xf]
        %v337 = vld [vmem:[%s296 + $0x18] sm:$0xf]
        %v338 = vld [vmem:[%s2] sm:$0xf]
        %v339 = vld [vmem:[%s2 + $0x4] sm:$0xf]
        %v340 = vld [vmem:[%s2 + $0x8] sm:$0xf]
        %v341 = vld [vmem:[%s2 + $0xc] sm:$0xf]
        %v342 = vld [vmem:[%s4] sm:$0x1]
        %v344 = vlaneseq
        %v345 = vshrl.u32 %v344, 7
        %v346 = vsub.s32 0, %v345
        %v347 = vrot.slane %v342, %v346
        %v356 = vunpack.c.l.b16 %v331
        %v357 = vunpack.c.l.b16 %v332
        %v358 = vunpack.c.l.b16 %v333
        %v359 = vunpack.c.l.b16 %v334
        %v360 = vunpack.c.l.b16 %v335
        %v361 = vunpack.c.l.b16 %v336
        %v362 = vunpack.c.l.b16 %v337
        %v363 = vpack.c.b16 %v357, %v356
        %v364 = vpack.c.b16 %v359, %v358
        %v365 = vpack.c.b16 %v361, %v360
        %v366 = vpack.c.b16 %v362, %v362
        %v371 = vunpack.c.l.b16 %v338
        %v372 = vunpack.c.l.b16 %v339
        %v373 = vunpack.c.l.b16 %v340
        %v374 = vunpack.c.l.b16 %v341
        %v375 = vpack.c.b16 %v372, %v371
        %v376 = vpack.c.b16 %v374, %v373
        %vm379 = vcmask 261120
        %v381 = vsel %vm379, %v363, 0
        %v384 = vsel %vm379, %v364, 0
        %v387 = vsel %vm379, %v365, 0
        %v390 = vsel %vm379, %v366, 0
        %392 = vmatprep.subr.bf16.mxu0 0
        %393 = vmatpush1.bf16.msra.mxu0 0
        %394 = vmatprep.subr.bf16.mxu0 0
        %395 = vmatpush1.bf16.msra.mxu0 0
        %396 = vmatprep.subr.bf16.mxu0 0
        %397 = vmatpush1.bf16.msra.mxu0 0
        %398 = vmatprep.subr.bf16.mxu0 0
        %399 = vmatpush1.bf16.msra.mxu0 0
        %400 = vmatprep.subr.bf16.mxu0 0
        %401 = vmatpush1.bf16.msra.mxu0 0
        %402 = vmatprep.subr.bf16.mxu0 0
        %403 = vmatpush1.bf16.msra.mxu0 0
        %404 = vmatprep.subr.bf16.mxu0 0
        %405 = vmatpush1.bf16.msra.mxu0 %v376
        %406 = vmatprep.subr.bf16.mxu0 0
        %407 = vmatpush1.bf16.msra.mxu0 %v375
        %408 = vmatprep.subr.bf16.mxu0 0
        %409 = vmatpush2.bf16.msra.mxu0 0
        %410 = vmatprep.subr.bf16.mxu0 0
        %411 = vmatpush2.bf16.msra.mxu0 0
        %412 = vmatprep.subr.bf16.mxu0 0
        %413 = vmatpush2.bf16.msra.mxu0 0
        %414 = vmatprep.subr.bf16.mxu0 0
        %415 = vmatpush2.bf16.msra.mxu0 0
        %416 = vmatprep.subr.bf16.mxu0 0
        %417 = vmatpush2.bf16.msra.mxu0 0
        %418 = vmatprep.subr.bf16.mxu0 0
        %419 = vmatpush2.bf16.msra.mxu0 0
        %420 = vmatprep.subr.bf16.mxu0 0
        %421 = vmatpush2.bf16.msra.mxu0 0
        %422 = vmatprep.subr.bf16.mxu0 0
        %423 = vmatpush2.bf16.msra.mxu0 0
        %424 = vmatprep.mubr.bf16.mxu0 0
        %425 = vmatmul.mubr.bf16.gmra.mxu0 %v381
        %v426 = vpop.f32.mrf.mxu0
        %v427 = vadd.f32 %v347, %v426
        %v428 = vpop.f32.mrf.mxu0
        %v429 = vpop.f32.mrf.mxu0
        %v430 = vadd.f32 %v347, %v429
        %v431 = vpop.f32.mrf.mxu0
        %432 = vmatprep.mubr.bf16.mxu0 0
        %433 = vmatmul.mubr.bf16.gmra.mxu0 %v384
        %v434 = vpop.f32.mrf.mxu0
        %v435 = vadd.f32 %v347, %v434
        %v436 = vpop.f32.mrf.mxu0
        %v437 = vpop.f32.mrf.mxu0
        %v438 = vadd.f32 %v347, %v437
        %v439 = vpop.f32.mrf.mxu0
        %440 = vmatprep.mubr.bf16.mxu0 0
        %441 = vmatmul.mubr.bf16.gmra.mxu0 %v387
        %v442 = vpop.f32.mrf.mxu0
        %v443 = vadd.f32 %v347, %v442
        %v444 = vpop.f32.mrf.mxu0
        %v445 = vpop.f32.mrf.mxu0
        %v446 = vadd.f32 %v347, %v445
        %v447 = vpop.f32.mrf.mxu0
        %448 = vmatprep.mubr.bf16.mxu0 0
        %449 = vmatmul.mubr.bf16.gmra.mxu0 %v390
        %v450 = vpop.f32.mrf.mxu0
        %v451 = vadd.f32 %v347, %v450
        %v452 = vpop.f32.mrf.mxu0
        %v453 = vpop.f32.mrf.mxu0
        %v454 = vpop.f32.mrf.mxu0
        %455 = vdwg.mxu0
        %vm456 = vcmask 785408
        %457 = vst.msk [vmem:[#allocation2] sm:$0xff] %vm456, %v427
        %458 = vst.msk [vmem:[#allocation2 + $0x8] sm:$0xff] %vm456, %v430
        %459 = vst.msk [vmem:[#allocation2 + $0x10] sm:$0xff] %vm456, %v435
        %460 = vst.msk [vmem:[#allocation2 + $0x18] sm:$0xff] %vm456, %v438
        %461 = vst.msk [vmem:[#allocation2 + $0x20] sm:$0xff] %vm456, %v443
        %462 = vst.msk [vmem:[#allocation2 + $0x28] sm:$0xff] %vm456, %v446
        %463 = vst.msk [vmem:[#allocation2 + $0x30] sm:$0xff] %vm456, %v451
        %v464 = vld [vmem:[%s3] sm:$0xf]
        %v465 = vld [vmem:[%s3 + $0x4] sm:$0xf]
        %v466 = vld [vmem:[%s3 + $0x8] sm:$0xf]
        %v467 = vld [vmem:[%s3 + $0xc] sm:$0xf]
        %v468 = vld [vmem:[%s5] sm:$0x1]
        %v469 = vld [vmem:[%s329] sm:$0xff]
        %v470 = vld [vmem:[#allocation2] sm:$0xff]
        %v471 = vpack.c.bf16 %v469, %v469
        %v473 = vlaneseq
        %v474 = vshrl.u32 %v473, 7
        %v475 = vsub.s32 0, %v474
        %v476 = vrot.slane %v468, %v475
        %v482 = vunpack.c.l.b16 %v464
        %v483 = vunpack.c.l.b16 %v465
        %v484 = vunpack.c.l.b16 %v466
        %v485 = vunpack.c.l.b16 %v467
        %v486 = vpack.c.b16 %v483, %v482
        %v487 = vpack.c.b16 %v485, %v484
        %v491 = vsel %vm379, %v471, 0
        %493 = vmatprep.subr.bf16.mxu0 0
        %494 = vmatpush1.bf16.msra.mxu0 0
        %495 = vmatprep.subr.bf16.mxu0 0
        %496 = vmatpush1.bf16.msra.mxu0 0
        %497 = vmatprep.subr.bf16.mxu0 0
        %498 = vmatpush1.bf16.msra.mxu0 0
        %499 = vmatprep.subr.bf16.mxu0 0
        %500 = vmatpush1.bf16.msra.mxu0 0
        %501 = vmatprep.subr.bf16.mxu0 0
        %502 = vmatpush1.bf16.msra.mxu0 0
        %503 = vmatprep.subr.bf16.mxu0 0
        %504 = vmatpush1.bf16.msra.mxu0 0
        %505 = vmatprep.subr.bf16.mxu0 0
        %506 = vmatpush1.bf16.msra.mxu0 %v487
        %507 = vmatprep.subr.bf16.mxu0 0
        %508 = vmatpush1.bf16.msra.mxu0 %v486
        %509 = vmatprep.subr.bf16.mxu0 0
        %510 = vmatpush2.bf16.msra.mxu0 0
        %511 = vmatprep.subr.bf16.mxu0 0
        %512 = vmatpush2.bf16.msra.mxu0 0
        %513 = vmatprep.subr.bf16.mxu0 0
        %514 = vmatpush2.bf16.msra.mxu0 0
        %515 = vmatprep.subr.bf16.mxu0 0
        %516 = vmatpush2.bf16.msra.mxu0 0
        %517 = vmatprep.subr.bf16.mxu0 0
        %518 = vmatpush2.bf16.msra.mxu0 0
        %519 = vmatprep.subr.bf16.mxu0 0
        %520 = vmatpush2.bf16.msra.mxu0 0
        %521 = vmatprep.subr.bf16.mxu0 0
        %522 = vmatpush2.bf16.msra.mxu0 0
        %523 = vmatprep.subr.bf16.mxu0 0
        %524 = vmatpush2.bf16.msra.mxu0 0
        %525 = vmatprep.mubr.bf16.mxu0 0
        %526 = vmatmul.mubr.bf16.gmra.mxu0 %v491
        %v527 = vpop.f32.mrf.mxu0
        %v528 = vadd.f32 %v476, %v527
        %v529 = vpop.f32.mrf.mxu0
        %v530 = vpop.f32.mrf.mxu0
        %v531 = vpop.f32.mrf.mxu0
        %532 = vdwg.mxu0
        %v533 = vadd.f32 %v470, %v528
        %v534 = vxor.u32 %v533, 2147483648
        %v535 = vmul.f32 %v534, 1.442695
        %v536 = vpow.pop %v535
        %v537 = vadd.f32 %v536, 1.0
        %v538 = vrcp.pop %v537
        %v539 = vmul.f32 1.0, %v538
        %541 = vrot.lane.b32.xlu0 %v528, 64
        %v542 = vpop.permute.xlu0 %541
        %v544 = vmul.f32 %v539, %v542
        %546 = vrot.lane.b32.xlu0 %v544, 64
        %v547 = vpop.permute.xlu0 %546
        %v549 = vadd.f32 %v470, %v547
        %v550 = vtanh.pop %v549
        %v551 = vsub.f32 1.0, %v539
        %553 = vrot.lane.b32.xlu0 %v550, 96
        %v554 = vpop.permute.xlu0 %553
        %v556 = vmul.f32 %v551, %v554
        %558 = vrot.lane.b32.xlu0 %v469, 32
        %v559 = vpop.permute.xlu0 %558
        %v561 = vmul.f32 %v539, %v559
        %v562 = vadd.f32 %v556, %v561
        %564 = vrot.lane.b32.xlu0 %v562, 96
        %v565 = vpop.permute.xlu0 %564
        %567 = vst.msk [vmem:[%s325] sm:$0xff] %vm379, %v565
        %s568 = scalar_lea.vmem [#allocation2], 8
        %v569 = vld [vmem:[%s568] sm:$0xff]
        %v570 = vpack.c.bf16 %v562, %v562
        %572 = vrot.lane.b32.xlu0 %v570, 96
        %v573 = vpop.permute.xlu0 %572
        %v575 = vsel %vm379, %v573, 0
        %577 = vmatprep.subr.bf16.mxu0 0
        %578 = vmatpush1.bf16.msra.mxu0 0
        %579 = vmatprep.subr.bf16.mxu0 0
        %580 = vmatpush1.bf16.msra.mxu0 0
        %581 = vmatprep.subr.bf16.mxu0 0
        %582 = vmatpush1.bf16.msra.mxu0 0
        %583 = vmatprep.subr.bf16.mxu0 0
        %584 = vmatpush1.bf16.msra.mxu0 0
        %585 = vmatprep.subr.bf16.mxu0 0
        %586 = vmatpush1.bf16.msra.mxu0 0
        %587 = vmatprep.subr.bf16.mxu0 0
        %588 = vmatpush1.bf16.msra.mxu0 0
        %589 = vmatprep.subr.bf16.mxu0 0
        %590 = vmatpush1.bf16.msra.mxu0 %v487
        %591 = vmatprep.subr.bf16.mxu0 0
        %592 = vmatpush1.bf16.msra.mxu0 %v486
        %593 = vmatprep.subr.bf16.mxu0 0
        %594 = vmatpush2.bf16.msra.mxu0 0
        %595 = vmatprep.subr.bf16.mxu0 0
        %596 = vmatpush2.bf16.msra.mxu0 0
        %597 = vmatprep.subr.bf16.mxu0 0
        %598 = vmatpush2.bf16.msra.mxu0 0
        %599 = vmatprep.subr.bf16.mxu0 0
        %600 = vmatpush2.bf16.msra.mxu0 0
        %601 = vmatprep.subr.bf16.mxu0 0
        %602 = vmatpush2.bf16.msra.mxu0 0
        %603 = vmatprep.subr.bf16.mxu0 0
        %604 = vmatpush2.bf16.msra.mxu0 0
        %605 = vmatprep.subr.bf16.mxu0 0
        %606 = vmatpush2.bf16.msra.mxu0 0
        %607 = vmatprep.subr.bf16.mxu0 0
        %608 = vmatpush2.bf16.msra.mxu0 0
        %609 = vmatprep.mubr.bf16.mxu0 0
        %610 = vmatmul.mubr.bf16.gmra.mxu0 %v575
        %v611 = vpop.f32.mrf.mxu0
        %v612 = vadd.f32 %v476, %v611
        %v613 = vpop.f32.mrf.mxu0
        %v614 = vpop.f32.mrf.mxu0
        %v615 = vpop.f32.mrf.mxu0
        %616 = vdwg.mxu0
        %v617 = vadd.f32 %v569, %v612
        %v618 = vxor.u32 %v617, 2147483648
        %v619 = vmul.f32 %v618, 1.442695
        %v620 = vpow.pop %v619
        %v621 = vadd.f32 %v620, 1.0
        %v622 = vrcp.pop %v621
        %v623 = vmul.f32 1.0, %v622
        %625 = vrot.lane.b32.xlu0 %v612, 64
        %v626 = vpop.permute.xlu0 %625
        %v628 = vmul.f32 %v623, %v626
        %630 = vrot.lane.b32.xlu0 %v628, 64
        %v631 = vpop.permute.xlu0 %630
        %v633 = vadd.f32 %v569, %v631
        %v634 = vtanh.pop %v633
        %v635 = vsub.f32 1.0, %v623
        %637 = vrot.lane.b32.xlu0 %v634, 96
        %v638 = vpop.permute.xlu0 %637
        %v640 = vmul.f32 %v635, %v638
        %v641 = vmul.f32 %v623, %v562
        %v642 = vadd.f32 %v640, %v641
        %644 = vrot.lane.b32.xlu0 %v642, 96
        %v645 = vpop.permute.xlu0 %644
        %s647 = scalar_lea.vmem %s325, 8 [#allocation4]
        %648 = vst.msk [vmem:[%s647] sm:$0xff] %vm379, %v645
        %s649 = scalar_lea.vmem [#allocation2], 16
        %v650 = vld [vmem:[%s649] sm:$0xff]
        %v651 = vpack.c.bf16 %v642, %v642
        %653 = vrot.lane.b32.xlu0 %v651, 96
        %v654 = vpop.permute.xlu0 %653
        %v656 = vsel %vm379, %v654, 0
        %658 = vmatprep.subr.bf16.mxu0 0
        %659 = vmatpush1.bf16.msra.mxu0 0
        %660 = vmatprep.subr.bf16.mxu0 0
        %661 = vmatpush1.bf16.msra.mxu0 0
        %662 = vmatprep.subr.bf16.mxu0 0
        %663 = vmatpush1.bf16.msra.mxu0 0
        %664 = vmatprep.subr.bf16.mxu0 0
        %665 = vmatpush1.bf16.msra.mxu0 0
        %666 = vmatprep.subr.bf16.mxu0 0
        %667 = vmatpush1.bf16.msra.mxu0 0
        %668 = vmatprep.subr.bf16.mxu0 0
        %669 = vmatpush1.bf16.msra.mxu0 0
        %670 = vmatprep.subr.bf16.mxu0 0
        %671 = vmatpush1.bf16.msra.mxu0 %v487
        %672 = vmatprep.subr.bf16.mxu0 0
        %673 = vmatpush1.bf16.msra.mxu0 %v486
        %674 = vmatprep.subr.bf16.mxu0 0
        %675 = vmatpush2.bf16.msra.mxu0 0
        %676 = vmatprep.subr.bf16.mxu0 0
        %677 = vmatpush2.bf16.msra.mxu0 0
        %678 = vmatprep.subr.bf16.mxu0 0
        %679 = vmatpush2.bf16.msra.mxu0 0
        %680 = vmatprep.subr.bf16.mxu0 0
        %681 = vmatpush2.bf16.msra.mxu0 0
        %682 = vmatprep.subr.bf16.mxu0 0
        %683 = vmatpush2.bf16.msra.mxu0 0
        %684 = vmatprep.subr.bf16.mxu0 0
        %685 = vmatpush2.bf16.msra.mxu0 0
        %686 = vmatprep.subr.bf16.mxu0 0
        %687 = vmatpush2.bf16.msra.mxu0 0
        %688 = vmatprep.subr.bf16.mxu0 0
        %689 = vmatpush2.bf16.msra.mxu0 0
        %690 = vmatprep.mubr.bf16.mxu0 0
        %691 = vmatmul.mubr.bf16.gmra.mxu0 %v656
        %v692 = vpop.f32.mrf.mxu0
        %v693 = vadd.f32 %v476, %v692
        %v694 = vpop.f32.mrf.mxu0
        %v695 = vpop.f32.mrf.mxu0
        %v696 = vpop.f32.mrf.mxu0
        %697 = vdwg.mxu0
        %v698 = vadd.f32 %v650, %v693
        %v699 = vxor.u32 %v698, 2147483648
        %v700 = vmul.f32 %v699, 1.442695
        %v701 = vpow.pop %v700
        %v702 = vadd.f32 %v701, 1.0
        %v703 = vrcp.pop %v702
        %v704 = vmul.f32 1.0, %v703
        %706 = vrot.lane.b32.xlu0 %v693, 64
        %v707 = vpop.permute.xlu0 %706
        %v709 = vmul.f32 %v704, %v707
        %711 = vrot.lane.b32.xlu0 %v709, 64
        %v712 = vpop.permute.xlu0 %711
        %v714 = vadd.f32 %v650, %v712
        %v715 = vtanh.pop %v714
        %v716 = vsub.f32 1.0, %v704
        %718 = vrot.lane.b32.xlu0 %v715, 96
        %v719 = vpop.permute.xlu0 %718
        %v721 = vmul.f32 %v716, %v719
        %v722 = vmul.f32 %v704, %v642
        %v723 = vadd.f32 %v721, %v722
        %725 = vrot.lane.b32.xlu0 %v723, 96
        %v726 = vpop.permute.xlu0 %725
        %s728 = scalar_lea.vmem %s325, 16 [#allocation4]
        %729 = vst.msk [vmem:[%s728] sm:$0xff] %vm379, %v726
        %s730 = scalar_lea.vmem [#allocation2], 24
        %v731 = vld [vmem:[%s730] sm:$0xff]
        %v732 = vpack.c.bf16 %v723, %v723
        %734 = vrot.lane.b32.xlu0 %v732, 96
        %v735 = vpop.permute.xlu0 %734
        %v737 = vsel %vm379, %v735, 0
        %739 = vmatprep.subr.bf16.mxu0 0
        %740 = vmatpush1.bf16.msra.mxu0 0
        %741 = vmatprep.subr.bf16.mxu0 0
        %742 = vmatpush1.bf16.msra.mxu0 0
        %743 = vmatprep.subr.bf16.mxu0 0
        %744 = vmatpush1.bf16.msra.mxu0 0
        %745 = vmatprep.subr.bf16.mxu0 0
        %746 = vmatpush1.bf16.msra.mxu0 0
        %747 = vmatprep.subr.bf16.mxu0 0
        %748 = vmatpush1.bf16.msra.mxu0 0
        %749 = vmatprep.subr.bf16.mxu0 0
        %750 = vmatpush1.bf16.msra.mxu0 0
        %751 = vmatprep.subr.bf16.mxu0 0
        %752 = vmatpush1.bf16.msra.mxu0 %v487
        %753 = vmatprep.subr.bf16.mxu0 0
        %754 = vmatpush1.bf16.msra.mxu0 %v486
        %755 = vmatprep.subr.bf16.mxu0 0
        %756 = vmatpush2.bf16.msra.mxu0 0
        %757 = vmatprep.subr.bf16.mxu0 0
        %758 = vmatpush2.bf16.msra.mxu0 0
        %759 = vmatprep.subr.bf16.mxu0 0
        %760 = vmatpush2.bf16.msra.mxu0 0
        %761 = vmatprep.subr.bf16.mxu0 0
        %762 = vmatpush2.bf16.msra.mxu0 0
        %763 = vmatprep.subr.bf16.mxu0 0
        %764 = vmatpush2.bf16.msra.mxu0 0
        %765 = vmatprep.subr.bf16.mxu0 0
        %766 = vmatpush2.bf16.msra.mxu0 0
        %767 = vmatprep.subr.bf16.mxu0 0
        %768 = vmatpush2.bf16.msra.mxu0 0
        %769 = vmatprep.subr.bf16.mxu0 0
        %770 = vmatpush2.bf16.msra.mxu0 0
        %771 = vmatprep.mubr.bf16.mxu0 0
        %772 = vmatmul.mubr.bf16.gmra.mxu0 %v737
        %v773 = vpop.f32.mrf.mxu0
        %v774 = vadd.f32 %v476, %v773
        %v775 = vpop.f32.mrf.mxu0
        %v776 = vpop.f32.mrf.mxu0
        %v777 = vpop.f32.mrf.mxu0
        %778 = vdwg.mxu0
        %v779 = vadd.f32 %v731, %v774
        %v780 = vxor.u32 %v779, 2147483648
        %v781 = vmul.f32 %v780, 1.442695
        %v782 = vpow.pop %v781
        %v783 = vadd.f32 %v782, 1.0
        %v784 = vrcp.pop %v783
        %v785 = vmul.f32 1.0, %v784
        %787 = vrot.lane.b32.xlu0 %v774, 64
        %v788 = vpop.permute.xlu0 %787
        %v790 = vmul.f32 %v785, %v788
        %792 = vrot.lane.b32.xlu0 %v790, 64
        %v793 = vpop.permute.xlu0 %792
        %v795 = vadd.f32 %v731, %v793
        %v796 = vtanh.pop %v795
        %v797 = vsub.f32 1.0, %v785
        %799 = vrot.lane.b32.xlu0 %v796, 96
        %v800 = vpop.permute.xlu0 %799
        %v802 = vmul.f32 %v797, %v800
        %v803 = vmul.f32 %v785, %v723
        %v804 = vadd.f32 %v802, %v803
        %806 = vrot.lane.b32.xlu0 %v804, 96
        %v807 = vpop.permute.xlu0 %806
        %s809 = scalar_lea.vmem %s325, 24 [#allocation4]
        %810 = vst.msk [vmem:[%s809] sm:$0xff] %vm379, %v807
        %s811 = scalar_lea.vmem [#allocation2], 32
        %v812 = vld [vmem:[%s811] sm:$0xff]
        %v813 = vpack.c.bf16 %v804, %v804
        %815 = vrot.lane.b32.xlu0 %v813, 96
        %v816 = vpop.permute.xlu0 %815
        %v818 = vsel %vm379, %v816, 0
        %820 = vmatprep.subr.bf16.mxu0 0
        %821 = vmatpush1.bf16.msra.mxu0 0
        %822 = vmatprep.subr.bf16.mxu0 0
        %823 = vmatpush1.bf16.msra.mxu0 0
        %824 = vmatprep.subr.bf16.mxu0 0
        %825 = vmatpush1.bf16.msra.mxu0 0
        %826 = vmatprep.subr.bf16.mxu0 0
        %827 = vmatpush1.bf16.msra.mxu0 0
        %828 = vmatprep.subr.bf16.mxu0 0
        %829 = vmatpush1.bf16.msra.mxu0 0
        %830 = vmatprep.subr.bf16.mxu0 0
        %831 = vmatpush1.bf16.msra.mxu0 0
        %832 = vmatprep.subr.bf16.mxu0 0
        %833 = vmatpush1.bf16.msra.mxu0 %v487
        %834 = vmatprep.subr.bf16.mxu0 0
        %835 = vmatpush1.bf16.msra.mxu0 %v486
        %836 = vmatprep.subr.bf16.mxu0 0
        %837 = vmatpush2.bf16.msra.mxu0 0
        %838 = vmatprep.subr.bf16.mxu0 0
        %839 = vmatpush2.bf16.msra.mxu0 0
        %840 = vmatprep.subr.bf16.mxu0 0
        %841 = vmatpush2.bf16.msra.mxu0 0
        %842 = vmatprep.subr.bf16.mxu0 0
        %843 = vmatpush2.bf16.msra.mxu0 0
        %844 = vmatprep.subr.bf16.mxu0 0
        %845 = vmatpush2.bf16.msra.mxu0 0
        %846 = vmatprep.subr.bf16.mxu0 0
        %847 = vmatpush2.bf16.msra.mxu0 0
        %848 = vmatprep.subr.bf16.mxu0 0
        %849 = vmatpush2.bf16.msra.mxu0 0
        %850 = vmatprep.subr.bf16.mxu0 0
        %851 = vmatpush2.bf16.msra.mxu0 0
        %852 = vmatprep.mubr.bf16.mxu0 0
        %853 = vmatmul.mubr.bf16.gmra.mxu0 %v818
        %v854 = vpop.f32.mrf.mxu0
        %v855 = vadd.f32 %v476, %v854
        %v856 = vpop.f32.mrf.mxu0
        %v857 = vpop.f32.mrf.mxu0
        %v858 = vpop.f32.mrf.mxu0
        %859 = vdwg.mxu0
        %v860 = vadd.f32 %v812, %v855
        %v861 = vxor.u32 %v860, 2147483648
        %v862 = vmul.f32 %v861, 1.442695
        %v863 = vpow.pop %v862
        %v864 = vadd.f32 %v863, 1.0
        %v865 = vrcp.pop %v864
        %v866 = vmul.f32 1.0, %v865
        %868 = vrot.lane.b32.xlu0 %v855, 64
        %v869 = vpop.permute.xlu0 %868
        %v871 = vmul.f32 %v866, %v869
        %873 = vrot.lane.b32.xlu0 %v871, 64
        %v874 = vpop.permute.xlu0 %873
        %v876 = vadd.f32 %v812, %v874
        %v877 = vtanh.pop %v876
        %v878 = vsub.f32 1.0, %v866
        %880 = vrot.lane.b32.xlu0 %v877, 96
        %v881 = vpop.permute.xlu0 %880
        %v883 = vmul.f32 %v878, %v881
        %v884 = vmul.f32 %v866, %v804
        %v885 = vadd.f32 %v883, %v884
        %887 = vrot.lane.b32.xlu0 %v885, 96
        %v888 = vpop.permute.xlu0 %887
        %s890 = scalar_lea.vmem %s325, 32 [#allocation4]
        %891 = vst.msk [vmem:[%s890] sm:$0xff] %vm379, %v888
        %s892 = scalar_lea.vmem [#allocation2], 40
        %v893 = vld [vmem:[%s892] sm:$0xff]
        %v894 = vpack.c.bf16 %v885, %v885
        %896 = vrot.lane.b32.xlu0 %v894, 96
        %v897 = vpop.permute.xlu0 %896
        %v899 = vsel %vm379, %v897, 0
        %901 = vmatprep.subr.bf16.mxu0 0
        %902 = vmatpush1.bf16.msra.mxu0 0
        %903 = vmatprep.subr.bf16.mxu0 0
        %904 = vmatpush1.bf16.msra.mxu0 0
        %905 = vmatprep.subr.bf16.mxu0 0
        %906 = vmatpush1.bf16.msra.mxu0 0
        %907 = vmatprep.subr.bf16.mxu0 0
        %908 = vmatpush1.bf16.msra.mxu0 0
        %909 = vmatprep.subr.bf16.mxu0 0
        %910 = vmatpush1.bf16.msra.mxu0 0
        %911 = vmatprep.subr.bf16.mxu0 0
        %912 = vmatpush1.bf16.msra.mxu0 0
        %913 = vmatprep.subr.bf16.mxu0 0
        %914 = vmatpush1.bf16.msra.mxu0 %v487
        %915 = vmatprep.subr.bf16.mxu0 0
        %916 = vmatpush1.bf16.msra.mxu0 %v486
        %917 = vmatprep.subr.bf16.mxu0 0
        %918 = vmatpush2.bf16.msra.mxu0 0
        %919 = vmatprep.subr.bf16.mxu0 0
        %920 = vmatpush2.bf16.msra.mxu0 0
        %921 = vmatprep.subr.bf16.mxu0 0
        %922 = vmatpush2.bf16.msra.mxu0 0
        %923 = vmatprep.subr.bf16.mxu0 0
        %924 = vmatpush2.bf16.msra.mxu0 0
        %925 = vmatprep.subr.bf16.mxu0 0
        %926 = vmatpush2.bf16.msra.mxu0 0
        %927 = vmatprep.subr.bf16.mxu0 0
        %928 = vmatpush2.bf16.msra.mxu0 0
        %929 = vmatprep.subr.bf16.mxu0 0
        %930 = vmatpush2.bf16.msra.mxu0 0
        %931 = vmatprep.subr.bf16.mxu0 0
        %932 = vmatpush2.bf16.msra.mxu0 0
        %933 = vmatprep.mubr.bf16.mxu0 0
        %934 = vmatmul.mubr.bf16.gmra.mxu0 %v899
        %v935 = vpop.f32.mrf.mxu0
        %v936 = vadd.f32 %v476, %v935
        %v937 = vpop.f32.mrf.mxu0
        %v938 = vpop.f32.mrf.mxu0
        %v939 = vpop.f32.mrf.mxu0
        %940 = vdwg.mxu0
        %v941 = vadd.f32 %v893, %v936
        %v942 = vxor.u32 %v941, 2147483648
        %v943 = vmul.f32 %v942, 1.442695
        %v944 = vpow.pop %v943
        %v945 = vadd.f32 %v944, 1.0
        %v946 = vrcp.pop %v945
        %v947 = vmul.f32 1.0, %v946
        %949 = vrot.lane.b32.xlu0 %v936, 64
        %v950 = vpop.permute.xlu0 %949
        %v952 = vmul.f32 %v947, %v950
        %954 = vrot.lane.b32.xlu0 %v952, 64
        %v955 = vpop.permute.xlu0 %954
        %v957 = vadd.f32 %v893, %v955
        %v958 = vtanh.pop %v957
        %v959 = vsub.f32 1.0, %v947
        %961 = vrot.lane.b32.xlu0 %v958, 96
        %v962 = vpop.permute.xlu0 %961
        %v964 = vmul.f32 %v959, %v962
        %v965 = vmul.f32 %v947, %v885
        %v966 = vadd.f32 %v964, %v965
        %968 = vrot.lane.b32.xlu0 %v966, 96
        %v969 = vpop.permute.xlu0 %968
        %s971 = scalar_lea.vmem %s325, 40 [#allocation4]
        %972 = vst.msk [vmem:[%s971] sm:$0xff] %vm379, %v969
        %s973 = scalar_lea.vmem [#allocation2], 48
        %v974 = vld [vmem:[%s973] sm:$0xff]
        %v975 = vpack.c.bf16 %v966, %v966
        %977 = vrot.lane.b32.xlu0 %v975, 96
        %v978 = vpop.permute.xlu0 %977
        %v980 = vsel %vm379, %v978, 0
        %982 = vmatprep.subr.bf16.mxu0 0
        %983 = vmatpush1.bf16.msra.mxu0 0
        %984 = vmatprep.subr.bf16.mxu0 0
        %985 = vmatpush1.bf16.msra.mxu0 0
        %986 = vmatprep.subr.bf16.mxu0 0
        %987 = vmatpush1.bf16.msra.mxu0 0
        %988 = vmatprep.subr.bf16.mxu0 0
        %989 = vmatpush1.bf16.msra.mxu0 0
        %990 = vmatprep.subr.bf16.mxu0 0
        %991 = vmatpush1.bf16.msra.mxu0 0
        %992 = vmatprep.subr.bf16.mxu0 0
        %993 = vmatpush1.bf16.msra.mxu0 0
        %994 = vmatprep.subr.bf16.mxu0 0
        %995 = vmatpush1.bf16.msra.mxu0 %v487
        %996 = vmatprep.subr.bf16.mxu0 0
        %997 = vmatpush1.bf16.msra.mxu0 %v486
        %998 = vmatprep.subr.bf16.mxu0 0
        %999 = vmatpush2.bf16.msra.mxu0 0
        %1000 = vmatprep.subr.bf16.mxu0 0
        %1001 = vmatpush2.bf16.msra.mxu0 0
        %1002 = vmatprep.subr.bf16.mxu0 0
        %1003 = vmatpush2.bf16.msra.mxu0 0
        %1004 = vmatprep.subr.bf16.mxu0 0
        %1005 = vmatpush2.bf16.msra.mxu0 0
        %1006 = vmatprep.subr.bf16.mxu0 0
        %1007 = vmatpush2.bf16.msra.mxu0 0
        %1008 = vmatprep.subr.bf16.mxu0 0
        %1009 = vmatpush2.bf16.msra.mxu0 0
        %1010 = vmatprep.subr.bf16.mxu0 0
        %1011 = vmatpush2.bf16.msra.mxu0 0
        %1012 = vmatprep.subr.bf16.mxu0 0
        %1013 = vmatpush2.bf16.msra.mxu0 0
        %1014 = vmatprep.mubr.bf16.mxu0 0
        %1015 = vmatmul.mubr.bf16.gmra.mxu0 %v980
        %v1016 = vpop.f32.mrf.mxu0
        %v1017 = vadd.f32 %v476, %v1016
        %v1018 = vpop.f32.mrf.mxu0
        %v1019 = vpop.f32.mrf.mxu0
        %v1020 = vpop.f32.mrf.mxu0
        %1021 = vdwg.mxu0
        %v1022 = vadd.f32 %v974, %v1017
        %v1023 = vxor.u32 %v1022, 2147483648
        %v1024 = vmul.f32 %v1023, 1.442695
        %v1025 = vpow.pop %v1024
        %v1026 = vadd.f32 %v1025, 1.0
        %v1027 = vrcp.pop %v1026
        %v1028 = vmul.f32 1.0, %v1027
        %1030 = vrot.lane.b32.xlu0 %v1017, 64
        %v1031 = vpop.permute.xlu0 %1030
        %v1033 = vmul.f32 %v1028, %v1031
        %1035 = vrot.lane.b32.xlu0 %v1033, 64
        %v1036 = vpop.permute.xlu0 %1035
        %v1038 = vadd.f32 %v974, %v1036
        %v1039 = vtanh.pop %v1038
        %v1040 = vsub.f32 1.0, %v1028
        %1042 = vrot.lane.b32.xlu0 %v1039, 96
        %v1043 = vpop.permute.xlu0 %1042
        %v1045 = vmul.f32 %v1040, %v1043
        %v1046 = vmul.f32 %v1028, %v966
        %v1047 = vadd.f32 %v1045, %v1046
        %1049 = vrot.lane.b32.xlu0 %v1047, 96
        %v1050 = vpop.permute.xlu0 %1049
        %s1052 = scalar_lea.vmem %s325, 48 [#allocation4]
        %1053 = vst.msk [vmem:[%s1052] sm:$0xff] %vm379, %v1050
        %s1054 = sand.u32 %s161, 1
        %s1055 = sand.u32 %s161, 1
        %s1056 = smul.addr %s1055, 56
        %s1057 = scalar_lea.vmem [#allocation4], %s1056
        // Predicated region
        $region86: #{mude_forward.6} parent=80 // pred_check
          %p1058 = pneg %p171
        $region87: #{mude_forward.6} parent=80 // pred_check_branch
          %1060 = sbr.rel (%p1058) target = $region89
        $region88: #{mude_forward.6} parent=80 // pred_region
          %s1061 = smul.addr %s17, 8
          %s1062 = scalar_lea.vmem %s6, %s1061
          // Predicated region
          $region90: #{mude_forward.6} parent=88 // pred_check
            _
          $region91: #{mude_forward.6} parent=88 // pred_check_branch
            %1064 = sbr.rel (0) target = $region93
          $region92: #{mude_forward.6} parent=88 // pred_region
            // Predicated region
            $region94: #{mude_forward.6} parent=92 // pred_check
              _
            $region95: #{mude_forward.6} parent=92 // pred_check_branch
              %1066 = sbr.rel (0) target = $region97
            $region96: #{mude_forward.6} parent=92 // pred_region
              // Predicated region
              $region109: #{mude_forward.6} parent=96 // pred_check
                _
              $region110: #{mude_forward.6} parent=96 // pred_check_branch
                %1094 = sbr.rel (0) target = $region112
              $region111: #{mude_forward.6} parent=96 // pred_region
                loop: start=0, step=1, limit=1
                $region113: #{mude_forward.6} parent=111 // loop_pre_header
                  _
                $region114: #{mude_forward.6} parent=111 // loop_header
                  %s1096 = sphi 0, %s1100
                  %p1097 = scmp.ge.s32.totalorder %s1096, 1
                  %s1101 = sphi %s1057, %s1057
                  %s1102 = sphi %s1062, %s1062
                $region115: #{mude_forward.6} parent=111 // loop_header_branch
                  %1099 = sbr.rel (%p1097) target = $region119
                $region116: #{mude_forward.6} parent=111 // loop_body
                  %v1103 = vld [vmem:[%s1101] sm:$0xff]
                  %1104 = vst [vmem:[%s1102] sm:$0xff] %v1103
                  %v1105 = vld [vmem:[%s1101 + $0x8] sm:$0xff]
                  %1106 = vst [vmem:[%s1102 + $0x10] sm:$0xff] %v1105
                  %v1107 = vld [vmem:[%s1101 + $0x10] sm:$0xff]
                  %1108 = vst [vmem:[%s1102 + $0x20] sm:$0xff] %v1107
                  %v1109 = vld [vmem:[%s1101 + $0x18] sm:$0xff]
                  %1110 = vst [vmem:[%s1102 + $0x30] sm:$0xff] %v1109
                  %v1111 = vld [vmem:[%s1101 + $0x20] sm:$0xff]
                  %1112 = vst [vmem:[%s1102 + $0x40] sm:$0xff] %v1111
                  %v1113 = vld [vmem:[%s1101 + $0x28] sm:$0xff]
                  %1114 = vst [vmem:[%s1102 + $0x50] sm:$0xff] %v1113
                  %v1115 = vld [vmem:[%s1101 + $0x30] sm:$0xff]
                  %1116 = vst [vmem:[%s1102 + $0x60] sm:$0xff] %v1115
                $region117: #{mude_forward.6} parent=111 // loop_footer
                  %s1100 = sadd.s32 1, %s1096
                $region118: #{mude_forward.6} parent=111 // loop_footer_branch
                  %1095 = sbr.rel target = $region114
                $region119: #{mude_forward.6} parent=111 // loop_exit
                  _
              $region112: #{mude_forward.6} parent=96 // pred_fallthru
                _
              // Predicated region
              $region120: #{mude_forward.6} parent=96 // pred_check
                _
              $region121: #{mude_forward.6} parent=96 // pred_check_branch
                %1118 = sbr.rel target = $region123
              $region122: #{mude_forward.6} parent=96 // pred_region
                _
              $region123: #{mude_forward.6} parent=96 // pred_fallthru
                _
            $region97: #{mude_forward.6} parent=92 // pred_fallthru
              _
            // Predicated region
            $region98: #{mude_forward.6} parent=92 // pred_check
              _
            $region99: #{mude_forward.6} parent=92 // pred_check_branch
              %1068 = sbr.rel target = $region101
            $region100: #{mude_forward.6} parent=92 // pred_region
              %s1070 = ssub.s32 256, 1
              loop: start=0, step=1, limit=1
              $region102: #{mude_forward.6} parent=100 // loop_pre_header
                _
              $region103: #{mude_forward.6} parent=100 // loop_header
                %s1072 = sphi 0, %s1076
                %p1073 = scmp.ge.s32.totalorder %s1072, 1
                %s1077 = sphi %s1057, %s1057
                %s1078 = sphi %s1062, %s1062
              $region104: #{mude_forward.6} parent=100 // loop_header_branch
                %1075 = sbr.rel (%p1073) target = $region108
              $region105: #{mude_forward.6} parent=100 // loop_body
                %v1079 = vld [vmem:[%s1077] sm:%s1070]
                %1080 = vst [vmem:[%s1078] sm:%s1070] %v1079
                %v1081 = vld [vmem:[%s1077 + $0x8] sm:%s1070]
                %1082 = vst [vmem:[%s1078 + $0x10] sm:%s1070] %v1081
                %v1083 = vld [vmem:[%s1077 + $0x10] sm:%s1070]
                %1084 = vst [vmem:[%s1078 + $0x20] sm:%s1070] %v1083
                %v1085 = vld [vmem:[%s1077 + $0x18] sm:%s1070]
                %1086 = vst [vmem:[%s1078 + $0x30] sm:%s1070] %v1085
                %v1087 = vld [vmem:[%s1077 + $0x20] sm:%s1070]
                %1088 = vst [vmem:[%s1078 + $0x40] sm:%s1070] %v1087
                %v1089 = vld [vmem:[%s1077 + $0x28] sm:%s1070]
                %1090 = vst [vmem:[%s1078 + $0x50] sm:%s1070] %v1089
                %v1091 = vld [vmem:[%s1077 + $0x30] sm:%s1070]
                %1092 = vst [vmem:[%s1078 + $0x60] sm:%s1070] %v1091
              $region106: #{mude_forward.6} parent=100 // loop_footer
                %s1076 = sadd.s32 1, %s1072
              $region107: #{mude_forward.6} parent=100 // loop_footer_branch
                %1071 = sbr.rel target = $region103
              $region108: #{mude_forward.6} parent=100 // loop_exit
                _
            $region101: #{mude_forward.6} parent=92 // pred_fallthru
              _
          $region93: #{mude_forward.6} parent=88 // pred_fallthru
            _
          %1119 = vnop
        $region89: #{mude_forward.6} parent=80 // pred_fallthru
          _
      $region81: #{mude_forward.6} parent=5 // pred_fallthru
        _
      %p1120 = scmp.le.s32.totalorder 2, %s12
      // Predicated region
      $region124: #{mude_forward.6} parent=5 // pred_check
        %p1121 = pneg %p1120
      $region125: #{mude_forward.6} parent=5 // pred_check_branch
        %1123 = sbr.rel (%p1121) target = $region127
      $region126: #{mude_forward.6} parent=5 // pred_region
        %s1124 = ssub.s32 %s12, 2
        // Predicated region
        $region128: #{mude_forward.6} parent=126 // pred_check
          %p1125 = pneg %p177
        $region129: #{mude_forward.6} parent=126 // pred_check_branch
          %1127 = sbr.rel (%p1125) target = $region131
        $region130: #{mude_forward.6} parent=126 // pred_region
          %s1128 = sand.u32 %s162, 1
          %s1129 = sand.u32 %s162, 1
          %s1130 = smul.addr %s1129, 56
          %s1131 = scalar_lea.vmem [#allocation4], %s1130
        $region131: #{mude_forward.6} parent=126 // pred_fallthru
          _
      $region127: #{mude_forward.6} parent=5 // pred_fallthru
        _
    $region6: #{mude_forward.6} parent=1 // loop_footer
      %s16 = sadd.s32 1, %s12
    $region7: #{mude_forward.6} parent=1 // loop_footer_branch
      %11 = sbr.rel target = $region3
    $region8: #{mude_forward.6} parent=1 // loop_exit
      _

// kernel: mude_forward.7
$region0: #{mude_forward.7}
  #allocation0 [shape = 'u32[]', space=smem, size = 0x4, offset = 0x4, fixed_abs, tag = 'smem constant byte address 0x4 - core index']
  #allocation1 [shape = 'u32[144,128]{1,0:T(1,128)}', space=vmem, size = 0x12000, scoped, tag = 'internal scratch']
  #allocation2 [shape = 'f32[112,1]{1,0:T(8,128)}', space=vmem, size = 0xe000, scoped, tag = 'scratch operand']
  #allocation3 [shape = 'f32[112,1]{1,0:T(8,128)}', space=vmem, size = 0xe000, scoped, tag = 'scratch operand']
  %s0 = inlined_call_operand.vmem [shape: f32[112,32], index: 0, kind: input, shape index: {}]
  %s1 = inlined_call_operand.vmem [shape: bf16[32,128], index: 1, kind: input, shape index: {}]
  %s2 = inlined_call_operand.vmem [shape: f32[1,128], index: 2, kind: input, shape index: {}]
  %s3 = inlined_call_operand.vmem [shape: f32[112,128], index: 3, kind: output, shape index: {0}]
  %s4 = inlined_call_operand.vmem [shape: f32[112,1], index: 4, kind: output, shape index: {1}]
  %5 = xla_tuple %s3, %s4
  %s6 = sld [smem:[#allocation0]]
  $region38: #{mude_forward.7} parent=0
    _
  %s8 = ssub.s32 1, %s6
  %s9 = scalar_select 0, %s8, %s6
  // Predicated region
  $region2: #{mude_forward.7} parent=0 // pred_check
    _
  $region3: #{mude_forward.7} parent=0 // pred_check_branch
    %11 = sbr.rel (0) target = $region5
  $region4: #{mude_forward.7} parent=0 // pred_region
    _
  $region5: #{mude_forward.7} parent=0 // pred_fallthru
    _
  // Predicated region
  $region6: #{mude_forward.7} parent=0 // pred_check
    _
  $region7: #{mude_forward.7} parent=0 // pred_check_branch
    %13 = sbr.rel (0) target = $region9
  $region8: #{mude_forward.7} parent=0 // pred_region
    _
  $region9: #{mude_forward.7} parent=0 // pred_fallthru
    _
  // Predicated region
  $region10: #{mude_forward.7} parent=0 // pred_check
    _
  $region11: #{mude_forward.7} parent=0 // pred_check_branch
    %15 = sbr.rel (0) target = $region13
  $region12: #{mude_forward.7} parent=0 // pred_region
    _
  $region13: #{mude_forward.7} parent=0 // pred_fallthru
    _
  %p17 = scmp.eq.s32.totalorder 0, 0
  // Predicated region
  $region14: #{mude_forward.7} parent=0 // pred_check
    %p18 = pneg %p17
  $region15: #{mude_forward.7} parent=0 // pred_check_branch
    %20 = sbr.rel (%p18) target = $region17
  $region16: #{mude_forward.7} parent=0 // pred_region
    %vm21 = vcmask 7168
    %22 = vst.msk [vmem:[#allocation2] sm:$0xff] %vm21, -inf
    %23 = vst.msk [vmem:[#allocation2 + $0x8] sm:$0xff] %vm21, -inf
    %24 = vst.msk [vmem:[#allocation2 + $0x10] sm:$0xff] %vm21, -inf
    %25 = vst.msk [vmem:[#allocation2 + $0x18] sm:$0xff] %vm21, -inf
    %26 = vst.msk [vmem:[#allocation2 + $0x20] sm:$0xff] %vm21, -inf
    %27 = vst.msk [vmem:[#allocation2 + $0x28] sm:$0xff] %vm21, -inf
    %28 = vst.msk [vmem:[#allocation2 + $0x30] sm:$0xff] %vm21, -inf
    %29 = vst.msk [vmem:[#allocation2 + $0x38] sm:$0xff] %vm21, -inf
    %30 = vst.msk [vmem:[#allocation2 + $0x40] sm:$0xff] %vm21, -inf
    %31 = vst.msk [vmem:[#allocation2 + $0x48] sm:$0xff] %vm21, -inf
    %32 = vst.msk [vmem:[#allocation2 + $0x50] sm:$0xff] %vm21, -inf
    %33 = vst.msk [vmem:[#allocation2 + $0x58] sm:$0xff] %vm21, -inf
    %34 = vst.msk [vmem:[#allocation2 + $0x60] sm:$0xff] %vm21, -inf
    %35 = vst.msk [vmem:[#allocation2 + $0x68] sm:$0xff] %vm21, -inf
    %36 = vst.msk [vmem:[#allocation3] sm:$0xff] %vm21, 0.0
    %37 = vst.msk [vmem:[#allocation3 + $0x8] sm:$0xff] %vm21, 0.0
    %38 = vst.msk [vmem:[#allocation3 + $0x10] sm:$0xff] %vm21, 0.0
    %39 = vst.msk [vmem:[#allocation3 + $0x18] sm:$0xff] %vm21, 0.0
    %40 = vst.msk [vmem:[#allocation3 + $0x20] sm:$0xff] %vm21, 0.0
    %41 = vst.msk [vmem:[#allocation3 + $0x28] sm:$0xff] %vm21, 0.0
    %42 = vst.msk [vmem:[#allocation3 + $0x30] sm:$0xff] %vm21, 0.0
    %43 = vst.msk [vmem:[#allocation3 + $0x38] sm:$0xff] %vm21, 0.0
    %44 = vst.msk [vmem:[#allocation3 + $0x40] sm:$0xff] %vm21, 0.0
    %45 = vst.msk [vmem:[#allocation3 + $0x48] sm:$0xff] %vm21, 0.0
    %46 = vst.msk [vmem:[#allocation3 + $0x50] sm:$0xff] %vm21, 0.0
    %47 = vst.msk [vmem:[#allocation3 + $0x58] sm:$0xff] %vm21, 0.0
    %48 = vst.msk [vmem:[#allocation3 + $0x60] sm:$0xff] %vm21, 0.0
    %49 = vst.msk [vmem:[#allocation3 + $0x68] sm:$0xff] %vm21, 0.0
  $region17: #{mude_forward.7} parent=0 // pred_fallthru
    _
  %v50 = vld [vmem:[%s0] sm:$0xff]
  %v51 = vld [vmem:[%s0 + $0x8] sm:$0xff]
  %v52 = vld [vmem:[%s0 + $0x10] sm:$0xff]
  %v53 = vld [vmem:[%s0 + $0x18] sm:$0xff]
  %v54 = vld [vmem:[%s0 + $0x20] sm:$0xff]
  %v55 = vld [vmem:[%s0 + $0x28] sm:$0xff]
  %v56 = vld [vmem:[%s0 + $0x30] sm:$0xff]
  %v57 = vld [vmem:[%s0 + $0x38] sm:$0xff]
  %v58 = vld [vmem:[%s0 + $0x40] sm:$0xff]
  %v59 = vld [vmem:[%s0 + $0x48] sm:$0xff]
  %v60 = vld [vmem:[%s0 + $0x50] sm:$0xff]
  %v61 = vld [vmem:[%s0 + $0x58] sm:$0xff]
  %v62 = vld [vmem:[%s0 + $0x60] sm:$0xff]
  %v63 = vld [vmem:[%s0 + $0x68] sm:$0xff]
  %v64 = vpack.c.bf16 %v51, %v50
  %v65 = vpack.c.bf16 %v53, %v52
  %v66 = vpack.c.bf16 %v55, %v54
  %v67 = vpack.c.bf16 %v57, %v56
  %v68 = vpack.c.bf16 %v59, %v58
  %v69 = vpack.c.bf16 %v61, %v60
  %v70 = vpack.c.bf16 %v63, %v62
  %v71 = vld [vmem:[%s1] sm:$0xf]
  %v72 = vld [vmem:[%s1 + $0x4] sm:$0xf]
  %v73 = vld [vmem:[%s1 + $0x8] sm:$0xf]
  %v74 = vld [vmem:[%s1 + $0xc] sm:$0xf]
  %v75 = vld [vmem:[%s2] sm:$0x1]
  %v77 = vlaneseq
  %v78 = vshrl.u32 %v77, 7
  %v79 = vsub.s32 0, %v78
  %v80 = vrot.slane %v75, %v79
  %v86 = vunpack.c.l.b16 %v71
  %v87 = vunpack.c.l.b16 %v72
  %v88 = vunpack.c.l.b16 %v73
  %v89 = vunpack.c.l.b16 %v74
  %v90 = vpack.c.b16 %v87, %v86
  %v91 = vpack.c.b16 %v89, %v88
  %vm94 = vcmask 261120
  %v96 = vsel %vm94, %v64, 0
  %v99 = vsel %vm94, %v65, 0
  %v102 = vsel %vm94, %v66, 0
  %v105 = vsel %vm94, %v67, 0
  %v108 = vsel %vm94, %v68, 0
  %v111 = vsel %vm94, %v69, 0
  %v114 = vsel %vm94, %v70, 0
  %116 = vmatprep.subr.bf16.mxu0 0
  %117 = vmatpush1.bf16.msra.mxu0 0
  %118 = vmatprep.subr.bf16.mxu0 0
  %119 = vmatpush1.bf16.msra.mxu0 0
  %120 = vmatprep.subr.bf16.mxu0 0
  %121 = vmatpush1.bf16.msra.mxu0 0
  %122 = vmatprep.subr.bf16.mxu0 0
  %123 = vmatpush1.bf16.msra.mxu0 0
  %124 = vmatprep.subr.bf16.mxu0 0
  %125 = vmatpush1.bf16.msra.mxu0 0
  %126 = vmatprep.subr.bf16.mxu0 0
  %127 = vmatpush1.bf16.msra.mxu0 0
  %128 = vmatprep.subr.bf16.mxu0 0
  %129 = vmatpush1.bf16.msra.mxu0 %v91
  %130 = vmatprep.subr.bf16.mxu0 0
  %131 = vmatpush1.bf16.msra.mxu0 %v90
  %132 = vmatprep.subr.bf16.mxu0 0
  %133 = vmatpush2.bf16.msra.mxu0 0
  %134 = vmatprep.subr.bf16.mxu0 0
  %135 = vmatpush2.bf16.msra.mxu0 0
  %136 = vmatprep.subr.bf16.mxu0 0
  %137 = vmatpush2.bf16.msra.mxu0 0
  %138 = vmatprep.subr.bf16.mxu0 0
  %139 = vmatpush2.bf16.msra.mxu0 0
  %140 = vmatprep.subr.bf16.mxu0 0
  %141 = vmatpush2.bf16.msra.mxu0 0
  %142 = vmatprep.subr.bf16.mxu0 0
  %143 = vmatpush2.bf16.msra.mxu0 0
  %144 = vmatprep.subr.bf16.mxu0 0
  %145 = vmatpush2.bf16.msra.mxu0 0
  %146 = vmatprep.subr.bf16.mxu0 0
  %147 = vmatpush2.bf16.msra.mxu0 0
  %148 = vmatprep.mubr.bf16.mxu0 0
  %149 = vmatmul.mubr.bf16.gmra.mxu0 %v96
  %v150 = vpop.f32.mrf.mxu0
  %v151 = vadd.f32 %v80, %v150
  %v152 = vpop.f32.mrf.mxu0
  %v153 = vpop.f32.mrf.mxu0
  %v154 = vadd.f32 %v80, %v153
  %v155 = vpop.f32.mrf.mxu0
  %156 = vmatprep.mubr.bf16.mxu0 0
  %157 = vmatmul.mubr.bf16.gmra.mxu0 %v99
  %v158 = vpop.f32.mrf.mxu0
  %v159 = vadd.f32 %v80, %v158
  %v160 = vpop.f32.mrf.mxu0
  %v161 = vpop.f32.mrf.mxu0
  %v162 = vadd.f32 %v80, %v161
  %v163 = vpop.f32.mrf.mxu0
  %164 = vmatprep.mubr.bf16.mxu0 0
  %165 = vmatmul.mubr.bf16.gmra.mxu0 %v102
  %v166 = vpop.f32.mrf.mxu0
  %v167 = vadd.f32 %v80, %v166
  %v168 = vpop.f32.mrf.mxu0
  %v169 = vpop.f32.mrf.mxu0
  %v170 = vadd.f32 %v80, %v169
  %v171 = vpop.f32.mrf.mxu0
  %172 = vmatprep.mubr.bf16.mxu0 0
  %173 = vmatmul.mubr.bf16.gmra.mxu0 %v105
  %v174 = vpop.f32.mrf.mxu0
  %v175 = vadd.f32 %v80, %v174
  %v176 = vpop.f32.mrf.mxu0
  %v177 = vpop.f32.mrf.mxu0
  %v178 = vadd.f32 %v80, %v177
  %v179 = vpop.f32.mrf.mxu0
  %180 = vmatprep.mubr.bf16.mxu0 0
  %181 = vmatmul.mubr.bf16.gmra.mxu0 %v108
  %v182 = vpop.f32.mrf.mxu0
  %v183 = vadd.f32 %v80, %v182
  %v184 = vpop.f32.mrf.mxu0
  %v185 = vpop.f32.mrf.mxu0
  %v186 = vadd.f32 %v80, %v185
  %v187 = vpop.f32.mrf.mxu0
  %188 = vmatprep.mubr.bf16.mxu0 0
  %189 = vmatmul.mubr.bf16.gmra.mxu0 %v111
  %v190 = vpop.f32.mrf.mxu0
  %v191 = vadd.f32 %v80, %v190
  %v192 = vpop.f32.mrf.mxu0
  %v193 = vpop.f32.mrf.mxu0
  %v194 = vadd.f32 %v80, %v193
  %v195 = vpop.f32.mrf.mxu0
  %196 = vmatprep.mubr.bf16.mxu0 0
  %197 = vmatmul.mubr.bf16.gmra.mxu0 %v114
  %v198 = vpop.f32.mrf.mxu0
  %v199 = vadd.f32 %v80, %v198
  %v200 = vpop.f32.mrf.mxu0
  %v201 = vpop.f32.mrf.mxu0
  %v202 = vadd.f32 %v80, %v201
  %v203 = vpop.f32.mrf.mxu0
  %204 = vdwg.mxu0
  %205 = vst [vmem:[%s3] sm:$0xff] %v151
  %206 = vst [vmem:[%s3 + $0x8] sm:$0xff] %v154
  %207 = vst [vmem:[%s3 + $0x10] sm:$0xff] %v159
  %208 = vst [vmem:[%s3 + $0x18] sm:$0xff] %v162
  %209 = vst [vmem:[%s3 + $0x20] sm:$0xff] %v167
  %210 = vst [vmem:[%s3 + $0x28] sm:$0xff] %v170
  %211 = vst [vmem:[%s3 + $0x30] sm:$0xff] %v175
  %212 = vst [vmem:[%s3 + $0x38] sm:$0xff] %v178
  %213 = vst [vmem:[%s3 + $0x40] sm:$0xff] %v183
  %214 = vst [vmem:[%s3 + $0x48] sm:$0xff] %v186
  %215 = vst [vmem:[%s3 + $0x50] sm:$0xff] %v191
  %216 = vst [vmem:[%s3 + $0x58] sm:$0xff] %v194
  %217 = vst [vmem:[%s3 + $0x60] sm:$0xff] %v199
  %218 = vst [vmem:[%s3 + $0x68] sm:$0xff] %v202
  %v219 = vld [vmem:[#allocation2] sm:$0xff]
  %v220 = vld [vmem:[#allocation2 + $0x8] sm:$0xff]
  %v221 = vld [vmem:[#allocation2 + $0x10] sm:$0xff]
  %v222 = vld [vmem:[#allocation2 + $0x18] sm:$0xff]
  %v223 = vld [vmem:[#allocation2 + $0x20] sm:$0xff]
  %v224 = vld [vmem:[#allocation2 + $0x28] sm:$0xff]
  %v225 = vld [vmem:[#allocation2 + $0x30] sm:$0xff]
  %v226 = vld [vmem:[#allocation2 + $0x38] sm:$0xff]
  %v227 = vld [vmem:[#allocation2 + $0x40] sm:$0xff]
  %v228 = vld [vmem:[#allocation2 + $0x48] sm:$0xff]
  %v229 = vld [vmem:[#allocation2 + $0x50] sm:$0xff]
  %v230 = vld [vmem:[#allocation2 + $0x58] sm:$0xff]
  %v231 = vld [vmem:[#allocation2 + $0x60] sm:$0xff]
  %v232 = vld [vmem:[#allocation2 + $0x68] sm:$0xff]
  %233 = vmax.xlane.f32.xlu0 %v151
  %v234 = vpop.xlane.xlu0 %233
  %235 = vmax.xlane.f32.xlu0 %v154
  %v236 = vpop.xlane.xlu0 %235
  %237 = vmax.xlane.f32.xlu0 %v159
  %v238 = vpop.xlane.xlu0 %237
  %239 = vmax.xlane.f32.xlu0 %v162
  %v240 = vpop.xlane.xlu0 %239
  %241 = vmax.xlane.f32.xlu0 %v167
  %v242 = vpop.xlane.xlu0 %241
  %243 = vmax.xlane.f32.xlu0 %v170
  %v244 = vpop.xlane.xlu0 %243
  %245 = vmax.xlane.f32.xlu0 %v175
  %v246 = vpop.xlane.xlu0 %245
  %247 = vmax.xlane.f32.xlu0 %v178
  %v248 = vpop.xlane.xlu0 %247
  %249 = vmax.xlane.f32.xlu0 %v183
  %v250 = vpop.xlane.xlu0 %249
  %251 = vmax.xlane.f32.xlu0 %v186
  %v252 = vpop.xlane.xlu0 %251
  %253 = vmax.xlane.f32.xlu0 %v191
  %v254 = vpop.xlane.xlu0 %253
  %255 = vmax.xlane.f32.xlu0 %v194
  %v256 = vpop.xlane.xlu0 %255
  %257 = vmax.xlane.f32.xlu0 %v199
  %v258 = vpop.xlane.xlu0 %257
  %259 = vmax.xlane.f32.xlu0 %v202
  %v260 = vpop.xlane.xlu0 %259
  %v261 = vmax.f32 %v219, %v234
  %v262 = vmax.f32 %v220, %v236
  %v263 = vmax.f32 %v221, %v238
  %v264 = vmax.f32 %v222, %v240
  %v265 = vmax.f32 %v223, %v242
  %v266 = vmax.f32 %v224, %v244
  %v267 = vmax.f32 %v225, %v246
  %v268 = vmax.f32 %v226, %v248
  %v269 = vmax.f32 %v227, %v250
  %v270 = vmax.f32 %v228, %v252
  %v271 = vmax.f32 %v229, %v254
  %v272 = vmax.f32 %v230, %v256
  %v273 = vmax.f32 %v231, %v258
  %v274 = vmax.f32 %v232, %v260
  %v275 = vld [vmem:[#allocation3] sm:$0xff]
  %v276 = vld [vmem:[#allocation3 + $0x8] sm:$0xff]
  %v277 = vld [vmem:[#allocation3 + $0x10] sm:$0xff]
  %v278 = vld [vmem:[#allocation3 + $0x18] sm:$0xff]
  %v279 = vld [vmem:[#allocation3 + $0x20] sm:$0xff]
  %v280 = vld [vmem:[#allocation3 + $0x28] sm:$0xff]
  %v281 = vld [vmem:[#allocation3 + $0x30] sm:$0xff]
  %v282 = vld [vmem:[#allocation3 + $0x38] sm:$0xff]
  %v283 = vld [vmem:[#allocation3 + $0x40] sm:$0xff]
  %v284 = vld [vmem:[#allocation3 + $0x48] sm:$0xff]
  %v285 = vld [vmem:[#allocation3 + $0x50] sm:$0xff]
  %v286 = vld [vmem:[#allocation3 + $0x58] sm:$0xff]
  %v287 = vld [vmem:[#allocation3 + $0x60] sm:$0xff]
  %v288 = vld [vmem:[#allocation3 + $0x68] sm:$0xff]
  %v289 = vsub.f32 %v219, %v261
  %v290 = vsub.f32 %v220, %v262
  %v291 = vsub.f32 %v221, %v263
  %v292 = vsub.f32 %v222, %v264
  %v293 = vsub.f32 %v223, %v265
  %v294 = vsub.f32 %v224, %v266
  %v295 = vsub.f32 %v225, %v267
  %v296 = vsub.f32 %v226, %v268
  %v297 = vsub.f32 %v227, %v269
  %v298 = vsub.f32 %v228, %v270
  %v299 = vsub.f32 %v229, %v271
  %v300 = vsub.f32 %v230, %v272
  %v301 = vsub.f32 %v231, %v273
  %v302 = vsub.f32 %v232, %v274
  %v303 = vmul.f32 %v289, 1.442695
  %v304 = vpow.pop %v303
  %v305 = vmul.f32 %v290, 1.442695
  %v306 = vpow.pop %v305
  %v307 = vmul.f32 %v291, 1.442695
  %v308 = vpow.pop %v307
  %v309 = vmul.f32 %v292, 1.442695
  %v310 = vpow.pop %v309
  %v311 = vmul.f32 %v293, 1.442695
  %v312 = vpow.pop %v311
  %v313 = vmul.f32 %v294, 1.442695
  %v314 = vpow.pop %v313
  %v315 = vmul.f32 %v295, 1.442695
  %v316 = vpow.pop %v315
  %v317 = vmul.f32 %v296, 1.442695
  %v318 = vpow.pop %v317
  %v319 = vmul.f32 %v297, 1.442695
  %v320 = vpow.pop %v319
  %v321 = vmul.f32 %v298, 1.442695
  %v322 = vpow.pop %v321
  %v323 = vmul.f32 %v299, 1.442695
  %v324 = vpow.pop %v323
  %v325 = vmul.f32 %v300, 1.442695
  %v326 = vpow.pop %v325
  %v327 = vmul.f32 %v301, 1.442695
  %v328 = vpow.pop %v327
  %v329 = vmul.f32 %v302, 1.442695
  %v330 = vpow.pop %v329
  %v331 = vmul.f32 %v275, %v304
  %v332 = vmul.f32 %v276, %v306
  %v333 = vmul.f32 %v277, %v308
  %v334 = vmul.f32 %v278, %v310
  %v335 = vmul.f32 %v279, %v312
  %v336 = vmul.f32 %v280, %v314
  %v337 = vmul.f32 %v281, %v316
  %v338 = vmul.f32 %v282, %v318
  %v339 = vmul.f32 %v283, %v320
  %v340 = vmul.f32 %v284, %v322
  %v341 = vmul.f32 %v285, %v324
  %v342 = vmul.f32 %v286, %v326
  %v343 = vmul.f32 %v287, %v328
  %v344 = vmul.f32 %v288, %v330
  %346 = vset.pattern.permute.xlu0 0
  %347 = vperm.xlu0 %346, %v261
  %v348 = vpop.permute.xlu0 %347
  %351 = vset.pattern.permute.xlu0 0
  %352 = vperm.xlu0 %351, %v262
  %v353 = vpop.permute.xlu0 %352
  %356 = vset.pattern.permute.xlu0 0
  %357 = vperm.xlu0 %356, %v263
  %v358 = vpop.permute.xlu0 %357
  %361 = vset.pattern.permute.xlu0 0
  %362 = vperm.xlu0 %361, %v264
  %v363 = vpop.permute.xlu0 %362
  %366 = vset.pattern.permute.xlu0 0
  %367 = vperm.xlu0 %366, %v265
  %v368 = vpop.permute.xlu0 %367
  %371 = vset.pattern.permute.xlu0 0
  %372 = vperm.xlu0 %371, %v266
  %v373 = vpop.permute.xlu0 %372
  %376 = vset.pattern.permute.xlu0 0
  %377 = vperm.xlu0 %376, %v267
  %v378 = vpop.permute.xlu0 %377
  %381 = vset.pattern.permute.xlu0 0
  %382 = vperm.xlu0 %381, %v268
  %v383 = vpop.permute.xlu0 %382
  %386 = vset.pattern.permute.xlu0 0
  %387 = vperm.xlu0 %386, %v269
  %v388 = vpop.permute.xlu0 %387
  %391 = vset.pattern.permute.xlu0 0
  %392 = vperm.xlu0 %391, %v270
  %v393 = vpop.permute.xlu0 %392
  %396 = vset.pattern.permute.xlu0 0
  %397 = vperm.xlu0 %396, %v271
  %v398 = vpop.permute.xlu0 %397
  %401 = vset.pattern.permute.xlu0 0
  %402 = vperm.xlu0 %401, %v272
  %v403 = vpop.permute.xlu0 %402
  %406 = vset.pattern.permute.xlu0 0
  %407 = vperm.xlu0 %406, %v273
  %v408 = vpop.permute.xlu0 %407
  %411 = vset.pattern.permute.xlu0 0
  %412 = vperm.xlu0 %411, %v274
  %v413 = vpop.permute.xlu0 %412
  %v415 = vsub.f32 %v151, %v348
  %v416 = vsub.f32 %v154, %v353
  %v417 = vsub.f32 %v159, %v358
  %v418 = vsub.f32 %v162, %v363
  %v419 = vsub.f32 %v167, %v368
  %v420 = vsub.f32 %v170, %v373
  %v421 = vsub.f32 %v175, %v378
  %v422 = vsub.f32 %v178, %v383
  %v423 = vsub.f32 %v183, %v388
  %v424 = vsub.f32 %v186, %v393
  %v425 = vsub.f32 %v191, %v398
  %v426 = vsub.f32 %v194, %v403
  %v427 = vsub.f32 %v199, %v408
  %v428 = vsub.f32 %v202, %v413
  %v429 = vmul.f32 %v415, 1.442695
  %v430 = vpow.pop %v429
  %v431 = vmul.f32 %v416, 1.442695
  %v432 = vpow.pop %v431
  %v433 = vmul.f32 %v417, 1.442695
  %v434 = vpow.pop %v433
  %v435 = vmul.f32 %v418, 1.442695
  %v436 = vpow.pop %v435
  %v437 = vmul.f32 %v419, 1.442695
  %v438 = vpow.pop %v437
  %v439 = vmul.f32 %v420, 1.442695
  %v440 = vpow.pop %v439
  %v441 = vmul.f32 %v421, 1.442695
  %v442 = vpow.pop %v441
  %v443 = vmul.f32 %v422, 1.442695
  %v444 = vpow.pop %v443
  %v445 = vmul.f32 %v423, 1.442695
  %v446 = vpow.pop %v445
  %v447 = vmul.f32 %v424, 1.442695
  %v448 = vpow.pop %v447
  %v449 = vmul.f32 %v425, 1.442695
  %v450 = vpow.pop %v449
  %v451 = vmul.f32 %v426, 1.442695
  %v452 = vpow.pop %v451
  %v453 = vmul.f32 %v427, 1.442695
  %v454 = vpow.pop %v453
  %v455 = vmul.f32 %v428, 1.442695
  %v456 = vpow.pop %v455
  %457 = vadd.xlane.f32.xlu0 %v430
  %v458 = vpop.xlane.xlu0 %457
  %459 = vadd.xlane.f32.xlu0 %v432
  %v460 = vpop.xlane.xlu0 %459
  %461 = vadd.xlane.f32.xlu0 %v434
  %v462 = vpop.xlane.xlu0 %461
  %463 = vadd.xlane.f32.xlu0 %v436
  %v464 = vpop.xlane.xlu0 %463
  %465 = vadd.xlane.f32.xlu0 %v438
  %v466 = vpop.xlane.xlu0 %465
  %467 = vadd.xlane.f32.xlu0 %v440
  %v468 = vpop.xlane.xlu0 %467
  %469 = vadd.xlane.f32.xlu0 %v442
  %v470 = vpop.xlane.xlu0 %469
  %471 = vadd.xlane.f32.xlu0 %v444
  %v472 = vpop.xlane.xlu0 %471
  %473 = vadd.xlane.f32.xlu0 %v446
  %v474 = vpop.xlane.xlu0 %473
  %475 = vadd.xlane.f32.xlu0 %v448
  %v476 = vpop.xlane.xlu0 %475
  %477 = vadd.xlane.f32.xlu0 %v450
  %v478 = vpop.xlane.xlu0 %477
  %479 = vadd.xlane.f32.xlu0 %v452
  %v480 = vpop.xlane.xlu0 %479
  %481 = vadd.xlane.f32.xlu0 %v454
  %v482 = vpop.xlane.xlu0 %481
  %483 = vadd.xlane.f32.xlu0 %v456
  %v484 = vpop.xlane.xlu0 %483
  %v485 = vadd.f32 %v331, %v458
  %v486 = vadd.f32 %v332, %v460
  %v487 = vadd.f32 %v333, %v462
  %v488 = vadd.f32 %v334, %v464
  %v489 = vadd.f32 %v335, %v466
  %v490 = vadd.f32 %v336, %v468
  %v491 = vadd.f32 %v337, %v470
  %v492 = vadd.f32 %v338, %v472
  %v493 = vadd.f32 %v339, %v474
  %v494 = vadd.f32 %v340, %v476
  %v495 = vadd.f32 %v341, %v478
  %v496 = vadd.f32 %v342, %v480
  %v497 = vadd.f32 %v343, %v482
  %v498 = vadd.f32 %v344, %v484
  %vm499 = vcmask 7168
  %500 = vst.msk [vmem:[#allocation3] sm:$0xff] %vm499, %v485
  %501 = vst.msk [vmem:[#allocation3 + $0x8] sm:$0xff] %vm499, %v486
  %502 = vst.msk [vmem:[#allocation3 + $0x10] sm:$0xff] %vm499, %v487
  %503 = vst.msk [vmem:[#allocation3 + $0x18] sm:$0xff] %vm499, %v488
  %504 = vst.msk [vmem:[#allocation3 + $0x20] sm:$0xff] %vm499, %v489
  %505 = vst.msk [vmem:[#allocation3 + $0x28] sm:$0xff] %vm499, %v490
  %506 = vst.msk [vmem:[#allocation3 + $0x30] sm:$0xff] %vm499, %v491
  %507 = vst.msk [vmem:[#allocation3 + $0x38] sm:$0xff] %vm499, %v492
  %508 = vst.msk [vmem:[#allocation3 + $0x40] sm:$0xff] %vm499, %v493
  %509 = vst.msk [vmem:[#allocation3 + $0x48] sm:$0xff] %vm499, %v494
  %510 = vst.msk [vmem:[#allocation3 + $0x50] sm:$0xff] %vm499, %v495
  %511 = vst.msk [vmem:[#allocation3 + $0x58] sm:$0xff] %vm499, %v496
  %512 = vst.msk [vmem:[#allocation3 + $0x60] sm:$0xff] %vm499, %v497
  %513 = vst.msk [vmem:[#allocation3 + $0x68] sm:$0xff] %vm499, %v498
  %514 = vst.msk [vmem:[#allocation2] sm:$0xff] %vm499, %v261
  %515 = vst.msk [vmem:[#allocation2 + $0x8] sm:$0xff] %vm499, %v262
  %516 = vst.msk [vmem:[#allocation2 + $0x10] sm:$0xff] %vm499, %v263
  %517 = vst.msk [vmem:[#allocation2 + $0x18] sm:$0xff] %vm499, %v264
  %518 = vst.msk [vmem:[#allocation2 + $0x20] sm:$0xff] %vm499, %v265
  %519 = vst.msk [vmem:[#allocation2 + $0x28] sm:$0xff] %vm499, %v266
  %520 = vst.msk [vmem:[#allocation2 + $0x30] sm:$0xff] %vm499, %v267
  %521 = vst.msk [vmem:[#allocation2 + $0x38] sm:$0xff] %vm499, %v268
  %522 = vst.msk [vmem:[#allocation2 + $0x40] sm:$0xff] %vm499, %v269
  %523 = vst.msk [vmem:[#allocation2 + $0x48] sm:$0xff] %vm499, %v270
  %524 = vst.msk [vmem:[#allocation2 + $0x50] sm:$0xff] %vm499, %v271
  %525 = vst.msk [vmem:[#allocation2 + $0x58] sm:$0xff] %vm499, %v272
  %526 = vst.msk [vmem:[#allocation2 + $0x60] sm:$0xff] %vm499, %v273
  %527 = vst.msk [vmem:[#allocation2 + $0x68] sm:$0xff] %vm499, %v274
  // Predicated region
  $region18: #{mude_forward.7} parent=0 // pred_check
    %p528 = pneg %p17
  $region19: #{mude_forward.7} parent=0 // pred_check_branch
    %530 = sbr.rel (%p528) target = $region21
  $region20: #{mude_forward.7} parent=0 // pred_region
    %v531 = vld [vmem:[#allocation2] sm:$0xff]
    %v532 = vld [vmem:[#allocation2 + $0x8] sm:$0xff]
    %v533 = vld [vmem:[#allocation2 + $0x10] sm:$0xff]
    %v534 = vld [vmem:[#allocation2 + $0x18] sm:$0xff]
    %v535 = vld [vmem:[#allocation2 + $0x20] sm:$0xff]
    %v536 = vld [vmem:[#allocation2 + $0x28] sm:$0xff]
    %v537 = vld [vmem:[#allocation2 + $0x30] sm:$0xff]
    %v538 = vld [vmem:[#allocation2 + $0x38] sm:$0xff]
    %v539 = vld [vmem:[#allocation2 + $0x40] sm:$0xff]
    %v540 = vld [vmem:[#allocation2 + $0x48] sm:$0xff]
    %v541 = vld [vmem:[#allocation2 + $0x50] sm:$0xff]
    %v542 = vld [vmem:[#allocation2 + $0x58] sm:$0xff]
    %v543 = vld [vmem:[#allocation2 + $0x60] sm:$0xff]
    %v544 = vld [vmem:[#allocation2 + $0x68] sm:$0xff]
    %v545 = vld [vmem:[#allocation3] sm:$0xff]
    %v546 = vld [vmem:[#allocation3 + $0x8] sm:$0xff]
    %v547 = vld [vmem:[#allocation3 + $0x10] sm:$0xff]
    %v548 = vld [vmem:[#allocation3 + $0x18] sm:$0xff]
    %v549 = vld [vmem:[#allocation3 + $0x20] sm:$0xff]
    %v550 = vld [vmem:[#allocation3 + $0x28] sm:$0xff]
    %v551 = vld [vmem:[#allocation3 + $0x30] sm:$0xff]
    %v552 = vld [vmem:[#allocation3 + $0x38] sm:$0xff]
    %v553 = vld [vmem:[#allocation3 + $0x40] sm:$0xff]
    %v554 = vld [vmem:[#allocation3 + $0x48] sm:$0xff]
    %v555 = vld [vmem:[#allocation3 + $0x50] sm:$0xff]
    %v556 = vld [vmem:[#allocation3 + $0x58] sm:$0xff]
    %v557 = vld [vmem:[#allocation3 + $0x60] sm:$0xff]
    %v558 = vld [vmem:[#allocation3 + $0x68] sm:$0xff]
    %v559 = vlog2.pop %v545
    %v560 = vmul.f32 %v559, 0.6931472
    %v561 = vlog2.pop %v546
    %v562 = vmul.f32 %v561, 0.6931472
    %v563 = vlog2.pop %v547
    %v564 = vmul.f32 %v563, 0.6931472
    %v565 = vlog2.pop %v548
    %v566 = vmul.f32 %v565, 0.6931472
    %v567 = vlog2.pop %v549
    %v568 = vmul.f32 %v567, 0.6931472
    %v569 = vlog2.pop %v550
    %v570 = vmul.f32 %v569, 0.6931472
    %v571 = vlog2.pop %v551
    %v572 = vmul.f32 %v571, 0.6931472
    %v573 = vlog2.pop %v552
    %v574 = vmul.f32 %v573, 0.6931472
    %v575 = vlog2.pop %v553
    %v576 = vmul.f32 %v575, 0.6931472
    %v577 = vlog2.pop %v554
    %v578 = vmul.f32 %v577, 0.6931472
    %v579 = vlog2.pop %v555
    %v580 = vmul.f32 %v579, 0.6931472
    %v581 = vlog2.pop %v556
    %v582 = vmul.f32 %v581, 0.6931472
    %v583 = vlog2.pop %v557
    %v584 = vmul.f32 %v583, 0.6931472
    %v585 = vlog2.pop %v558
    %v586 = vmul.f32 %v585, 0.6931472
    %v587 = vadd.f32 %v531, %v560
    %v588 = vadd.f32 %v532, %v562
    %v589 = vadd.f32 %v533, %v564
    %v590 = vadd.f32 %v534, %v566
    %v591 = vadd.f32 %v535, %v568
    %v592 = vadd.f32 %v536, %v570
    %v593 = vadd.f32 %v537, %v572
    %v594 = vadd.f32 %v538, %v574
    %v595 = vadd.f32 %v539, %v576
    %v596 = vadd.f32 %v540, %v578
    %v597 = vadd.f32 %v541, %v580
    %v598 = vadd.f32 %v542, %v582
    %v599 = vadd.f32 %v543, %v584
    %v600 = vadd.f32 %v544, %v586
    %601 = vst.msk [vmem:[%s4] sm:$0xff] %vm499, %v587
    %602 = vst.msk [vmem:[%s4 + $0x8] sm:$0xff] %vm499, %v588
    %603 = vst.msk [vmem:[%s4 + $0x10] sm:$0xff] %vm499, %v589
    %604 = vst.msk [vmem:[%s4 + $0x18] sm:$0xff] %vm499, %v590
    %605 = vst.msk [vmem:[%s4 + $0x20] sm:$0xff] %vm499, %v591
    %606 = vst.msk [vmem:[%s4 + $0x28] sm:$0xff] %vm499, %v592
    %607 = vst.msk [vmem:[%s4 + $0x30] sm:$0xff] %vm499, %v593
    %608 = vst.msk [vmem:[%s4 + $0x38] sm:$0xff] %vm499, %v594
    %609 = vst.msk [vmem:[%s4 + $0x40] sm:$0xff] %vm499, %v595
    %610 = vst.msk [vmem:[%s4 + $0x48] sm:$0xff] %vm499, %v596
    %611 = vst.msk [vmem:[%s4 + $0x50] sm:$0xff] %vm499, %v597
    %612 = vst.msk [vmem:[%s4 + $0x58] sm:$0xff] %vm499, %v598
    %613 = vst.msk [vmem:[%s4 + $0x60] sm:$0xff] %vm499, %v599
    %614 = vst.msk [vmem:[%s4 + $0x68] sm:$0xff] %vm499, %v600
  $region21: #{mude_forward.7} parent=0 // pred_fallthru
    _
  // Predicated region
  $region22: #{mude_forward.7} parent=0 // pred_check
    _
  $region23: #{mude_forward.7} parent=0 // pred_check_branch
    %616 = sbr.rel (0) target = $region25
  $region24: #{mude_forward.7} parent=0 // pred_region
    _
  $region25: #{mude_forward.7} parent=0 // pred_fallthru
    _
  // Predicated region
  $region26: #{mude_forward.7} parent=0 // pred_check
    _
  $region27: #{mude_forward.7} parent=0 // pred_check_branch
    %618 = sbr.rel (0) target = $region29
  $region28: #{mude_forward.7} parent=0 // pred_region
    _
  $region29: #{mude_forward.7} parent=0 // pred_fallthru
    _
  // Predicated region
  $region30: #{mude_forward.7} parent=0 // pred_check
    _
  $region31: #{mude_forward.7} parent=0 // pred_check_branch
    %620 = sbr.rel (0) target = $region33
  $region32: #{mude_forward.7} parent=0 // pred_region
    _
  $region33: #{mude_forward.7} parent=0 // pred_fallthru
    _
  // Predicated region
  $region34: #{mude_forward.7} parent=0 // pred_check
    _
  $region35: #{mude_forward.7} parent=0 // pred_check_branch
    %622 = sbr.rel (0) target = $region37
  $region36: #{mude_forward.7} parent=0 // pred_region
    _
  $region37: #{mude_forward.7} parent=0 // pred_fallthru
    _

// kernel: mude_forward.5
$region0: #{mude_forward.5}
  #allocation0 [shape = 'u32[]', space=smem, size = 0x4, offset = 0x4, fixed_abs, tag = 'smem constant byte address 0x4 - core index']
  #allocation1 [shape = 'u32[144,128]{1,0:T(1,128)}', space=vmem, size = 0x12000, scoped, tag = 'internal scratch']
  #allocation2 [shape = 'f32[64,32]{1,0:T(8,128)}', space=vmem, size = 0x8000, scoped, tag = 'scratch operand']
  %s0 = inlined_call_operand.vmem [shape: f32[16,8,32], index: 0, kind: input, shape index: {}]
  %s1 = inlined_call_operand.vmem [shape: f32[16,8,8], index: 1, kind: input, shape index: {}]
  %s2 = inlined_call_operand.vmem [shape: bf16[2,32,96], index: 2, kind: input, shape index: {}]
  %s3 = inlined_call_operand.vmem [shape: f32[2,1,96], index: 3, kind: input, shape index: {}]
  %s4 = inlined_call_operand.vmem [shape: bf16[2,32,32], index: 4, kind: input, shape index: {}]
  %s5 = inlined_call_operand.vmem [shape: f32[2,1,32], index: 5, kind: input, shape index: {}]
  %s6 = inlined_call_operand.vmem [shape: bf16[2,32,128], index: 6, kind: input, shape index: {}]
  %s7 = inlined_call_operand.vmem [shape: f32[2,1,128], index: 7, kind: input, shape index: {}]
  %s8 = inlined_call_operand.vmem [shape: bf16[2,128,32], index: 8, kind: input, shape index: {}]
  %s9 = inlined_call_operand.vmem [shape: f32[2,1,32], index: 9, kind: input, shape index: {}]
  %s10 = inlined_call_operand.vmem [shape: f32[2,1,32], index: 10, kind: input, shape index: {}]
  %s11 = inlined_call_operand.vmem [shape: f32[2,1,32], index: 11, kind: input, shape index: {}]
  %s12 = inlined_call_operand.vmem [shape: f32[2,1,32], index: 12, kind: input, shape index: {}]
  %s13 = inlined_call_operand.vmem [shape: f32[2,1,32], index: 13, kind: input, shape index: {}]
  %s14 = inlined_call_operand.vmem [shape: f32[1,32], index: 14, kind: input, shape index: {}]
  %s15 = inlined_call_operand.vmem [shape: f32[1,32], index: 15, kind: input, shape index: {}]
  %s16 = inlined_call_operand.vmem [shape: f32[16,32], index: 16, kind: output, shape index: {}]
  %s17 = sld [smem:[#allocation0]]
  $region105: #{mude_forward.5} parent=0
    _
  %s19 = ssub.s32 1, %s17
  %s20 = scalar_select 0, %s19, %s17
  loop: start=0, step=1, limit=6
  $region2: #{mude_forward.5} parent=0 // loop_pre_header
    _
  $region3: #{mude_forward.5} parent=0 // loop_header
    %s22 = sphi 0, %s26
    %p23 = scmp.ge.s32.totalorder %s22, 6
    %s29 = sphi 0, %s41
    %s30 = sphi 0, %s37
    %s31 = sphi 0, %s29
    %s32 = sphi 0, %s30
    %s33 = sphi 0, %s31
    %s34 = sphi 0, %s32
    %s44 = sphi 0, %s46
    %s47 = sphi 0, %s44
    %s48 = sphi 0, %s47
    %s64 = sphi 0, %s48
    %s70 = sphi 0, %s72
    %s73 = sphi 0, %s70
    %s74 = sphi 0, %s73
    %s90 = sphi 0, %s74
    %s96 = sphi 0, %s98
    %s99 = sphi 0, %s96
    %s100 = sphi 0, %s99
    %s116 = sphi 0, %s100
    %s122 = sphi 0, %s124
    %s125 = sphi 0, %s122
    %s126 = sphi 0, %s125
    %s142 = sphi 0, %s126
    %s148 = sphi 0, %s150
    %s151 = sphi 0, %s148
    %s152 = sphi 0, %s151
    %s168 = sphi 0, %s152
    %s174 = sphi 0, %s176
    %s177 = sphi 0, %s174
    %s178 = sphi 0, %s177
    %s194 = sphi 0, %s178
    %s200 = sphi 0, %s202
    %s203 = sphi 0, %s200
    %s204 = sphi 0, %s203
    %s220 = sphi 0, %s204
    %s226 = sphi 0, %s228
    %s229 = sphi 0, %s226
    %s230 = sphi 0, %s229
    %s246 = sphi 0, %s230
    %s252 = sphi 0, %s254
    %s255 = sphi 0, %s252
    %s256 = sphi 0, %s255
    %s272 = sphi 0, %s256
    %s278 = sphi 0, %s280
    %s281 = sphi 0, %s278
    %s282 = sphi 0, %s281
    %s298 = sphi 0, %s282
    %s304 = sphi 0, %s306
    %s307 = sphi 0, %s304
    %s308 = sphi 0, %s307
    %s324 = sphi 0, %s308
    %s330 = sphi 0, %s332
    %s333 = sphi 0, %s330
    %s334 = sphi 0, %s333
    %s350 = sphi 0, %s334
    %s356 = sphi 0, %s358
    %s359 = sphi 0, %s356
    %s360 = sphi 0, %s359
    %s376 = sphi 0, %s360
    %s382 = sphi 0, %s384
    %s385 = sphi 0, %s382
    %s386 = sphi 0, %s385
    %s402 = sphi 0, %s386
    %s406 = sphi 0, %s406
    %s408 = sphi 0, %s406
    %s409 = sphi 0, %s408
    %s423 = sphi 0, %s409
    %s427 = sphi 0, %s427
    %s429 = sphi 0, %s427
    %s430 = sphi 0, %s429
    %s444 = sphi 0, %s430
    %s450 = sphi 0, %s452
    %s453 = sphi 0, %s450
    %s454 = sphi 0, %s453
    %s470 = sphi 0, %s454
  $region4: #{mude_forward.5} parent=0 // loop_header_branch
    %25 = sbr.rel (%p23) target = $region8
  $region5: #{mude_forward.5} parent=0 // loop_body
    %s27 = ssub.s32 %s22, 1
    %s28 = ssub.s32 %s22, 2
    %s35 = sadd.s32 1, %s30
    %p36 = scmp.ge.s32.totalorder %s35, 2
    %s37 = scalar_select %p36, 0, %s35
    %s38 = sadd.s32 1, %s29
    %s39 = scalar_select %p36, %s38, %s29
    %p40 = scmp.ge.s32.totalorder %s39, 2
    %s41 = scalar_select %p40, 0, %s39
    %s42 = ssub.s32 %s29, %s41
    %p43 = scmp.eq.s32.totalorder %s42, 0
    %s45 = sadd.s32 %s44, 1
    %s46 = scalar_select %p43, %s44, %s45
    %p49 = pneg %p43
    %p50 = scmp.eq.s32.totalorder %s22, 3
    %p51 = por %p49, %p50
    %p52 = scmp.ne.s32.totalorder %s44, %s47
    %p53 = scmp.eq.s32.totalorder %s22, 0
    %p54 = por %p52, %p53
    %p55 = scmp.ne.s32.totalorder %s44, %s47
    %p56 = scmp.eq.s32.totalorder %s27, 3
    %p57 = por %p55, %p56
    %p58 = scmp.ne.s32.totalorder %s47, %s48
    %p59 = scmp.eq.s32.totalorder %s27, 0
    %p60 = por %p58, %p59
    %p61 = scmp.ne.s32.totalorder %s47, %s48
    %p62 = scmp.eq.s32.totalorder %s28, 3
    %p63 = por %p61, %p62
    %p65 = scmp.ne.s32.totalorder %s48, %s64
    %p66 = scmp.eq.s32.totalorder %s28, 0
    %p67 = por %p65, %p66
    %s68 = ssub.s32 %s29, %s41
    %p69 = scmp.eq.s32.totalorder %s68, 0
    %s71 = sadd.s32 %s70, 1
    %s72 = scalar_select %p69, %s70, %s71
    %p75 = pneg %p69
    %p76 = scmp.eq.s32.totalorder %s22, 3
    %p77 = por %p75, %p76
    %p78 = scmp.ne.s32.totalorder %s70, %s73
    %p79 = scmp.eq.s32.totalorder %s22, 0
    %p80 = por %p78, %p79
    %p81 = scmp.ne.s32.totalorder %s70, %s73
    %p82 = scmp.eq.s32.totalorder %s27, 3
    %p83 = por %p81, %p82
    %p84 = scmp.ne.s32.totalorder %s73, %s74
    %p85 = scmp.eq.s32.totalorder %s27, 0
    %p86 = por %p84, %p85
    %p87 = scmp.ne.s32.totalorder %s73, %s74
    %p88 = scmp.eq.s32.totalorder %s28, 3
    %p89 = por %p87, %p88
    %p91 = scmp.ne.s32.totalorder %s74, %s90
    %p92 = scmp.eq.s32.totalorder %s28, 0
    %p93 = por %p91, %p92
    %s94 = ssub.s32 %s30, %s37
    %p95 = scmp.eq.s32.totalorder %s94, 0
    %s97 = sadd.s32 %s96, 1
    %s98 = scalar_select %p95, %s96, %s97
    %p101 = pneg %p95
    %p102 = scmp.eq.s32.totalorder %s22, 3
    %p103 = por %p101, %p102
    %p104 = scmp.ne.s32.totalorder %s96, %s99
    %p105 = scmp.eq.s32.totalorder %s22, 0
    %p106 = por %p104, %p105
    %p107 = scmp.ne.s32.totalorder %s96, %s99
    %p108 = scmp.eq.s32.totalorder %s27, 3
    %p109 = por %p107, %p108
    %p110 = scmp.ne.s32.totalorder %s99, %s100
    %p111 = scmp.eq.s32.totalorder %s27, 0
    %p112 = por %p110, %p111
    %p113 = scmp.ne.s32.totalorder %s99, %s100
    %p114 = scmp.eq.s32.totalorder %s28, 3
    %p115 = por %p113, %p114
    %p117 = scmp.ne.s32.totalorder %s100, %s116
    %p118 = scmp.eq.s32.totalorder %s28, 0
    %p119 = por %p117, %p118
    %s120 = ssub.s32 %s30, %s37
    %p121 = scmp.eq.s32.totalorder %s120, 0
    %s123 = sadd.s32 %s122, 1
    %s124 = scalar_select %p121, %s122, %s123
    %p127 = pneg %p121
    %p128 = scmp.eq.s32.totalorder %s22, 3
    %p129 = por %p127, %p128
    %p130 = scmp.ne.s32.totalorder %s122, %s125
    %p131 = scmp.eq.s32.totalorder %s22, 0
    %p132 = por %p130, %p131
    %p133 = scmp.ne.s32.totalorder %s122, %s125
    %p134 = scmp.eq.s32.totalorder %s27, 3
    %p135 = por %p133, %p134
    %p136 = scmp.ne.s32.totalorder %s125, %s126
    %p137 = scmp.eq.s32.totalorder %s27, 0
    %p138 = por %p136, %p137
    %p139 = scmp.ne.s32.totalorder %s125, %s126
    %p140 = scmp.eq.s32.totalorder %s28, 3
    %p141 = por %p139, %p140
    %p143 = scmp.ne.s32.totalorder %s126, %s142
    %p144 = scmp.eq.s32.totalorder %s28, 0
    %p145 = por %p143, %p144
    %s146 = ssub.s32 %s30, %s37
    %p147 = scmp.eq.s32.totalorder %s146, 0
    %s149 = sadd.s32 %s148, 1
    %s150 = scalar_select %p147, %s148, %s149
    %p153 = pneg %p147
    %p154 = scmp.eq.s32.totalorder %s22, 3
    %p155 = por %p153, %p154
    %p156 = scmp.ne.s32.totalorder %s148, %s151
    %p157 = scmp.eq.s32.totalorder %s22, 0
    %p158 = por %p156, %p157
    %p159 = scmp.ne.s32.totalorder %s148, %s151
    %p160 = scmp.eq.s32.totalorder %s27, 3
    %p161 = por %p159, %p160
    %p162 = scmp.ne.s32.totalorder %s151, %s152
    %p163 = scmp.eq.s32.totalorder %s27, 0
    %p164 = por %p162, %p163
    %p165 = scmp.ne.s32.totalorder %s151, %s152
    %p166 = scmp.eq.s32.totalorder %s28, 3
    %p167 = por %p165, %p166
    %p169 = scmp.ne.s32.totalorder %s152, %s168
    %p170 = scmp.eq.s32.totalorder %s28, 0
    %p171 = por %p169, %p170
    %s172 = ssub.s32 %s30, %s37
    %p173 = scmp.eq.s32.totalorder %s172, 0
    %s175 = sadd.s32 %s174, 1
    %s176 = scalar_select %p173, %s174, %s175
    %p179 = pneg %p173
    %p180 = scmp.eq.s32.totalorder %s22, 3
    %p181 = por %p179, %p180
    %p182 = scmp.ne.s32.totalorder %s174, %s177
    %p183 = scmp.eq.s32.totalorder %s22, 0
    %p184 = por %p182, %p183
    %p185 = scmp.ne.s32.totalorder %s174, %s177
    %p186 = scmp.eq.s32.totalorder %s27, 3
    %p187 = por %p185, %p186
    %p188 = scmp.ne.s32.totalorder %s177, %s178
    %p189 = scmp.eq.s32.totalorder %s27, 0
    %p190 = por %p188, %p189
    %p191 = scmp.ne.s32.totalorder %s177, %s178
    %p192 = scmp.eq.s32.totalorder %s28, 3
    %p193 = por %p191, %p192
    %p195 = scmp.ne.s32.totalorder %s178, %s194
    %p196 = scmp.eq.s32.totalorder %s28, 0
    %p197 = por %p195, %p196
    %s198 = ssub.s32 %s30, %s37
    %p199 = scmp.eq.s32.totalorder %s198, 0
    %s201 = sadd.s32 %s200, 1
    %s202 = scalar_select %p199, %s200, %s201
    %p205 = pneg %p199
    %p206 = scmp.eq.s32.totalorder %s22, 3
    %p207 = por %p205, %p206
    %p208 = scmp.ne.s32.totalorder %s200, %s203
    %p209 = scmp.eq.s32.totalorder %s22, 0
    %p210 = por %p208, %p209
    %p211 = scmp.ne.s32.totalorder %s200, %s203
    %p212 = scmp.eq.s32.totalorder %s27, 3
    %p213 = por %p211, %p212
    %p214 = scmp.ne.s32.totalorder %s203, %s204
    %p215 = scmp.eq.s32.totalorder %s27, 0
    %p216 = por %p214, %p215
    %p217 = scmp.ne.s32.totalorder %s203, %s204
    %p218 = scmp.eq.s32.totalorder %s28, 3
    %p219 = por %p217, %p218
    %p221 = scmp.ne.s32.totalorder %s204, %s220
    %p222 = scmp.eq.s32.totalorder %s28, 0
    %p223 = por %p221, %p222
    %s224 = ssub.s32 %s30, %s37
    %p225 = scmp.eq.s32.totalorder %s224, 0
    %s227 = sadd.s32 %s226, 1
    %s228 = scalar_select %p225, %s226, %s227
    %p231 = pneg %p225
    %p232 = scmp.eq.s32.totalorder %s22, 3
    %p233 = por %p231, %p232
    %p234 = scmp.ne.s32.totalorder %s226, %s229
    %p235 = scmp.eq.s32.totalorder %s22, 0
    %p236 = por %p234, %p235
    %p237 = scmp.ne.s32.totalorder %s226, %s229
    %p238 = scmp.eq.s32.totalorder %s27, 3
    %p239 = por %p237, %p238
    %p240 = scmp.ne.s32.totalorder %s229, %s230
    %p241 = scmp.eq.s32.totalorder %s27, 0
    %p242 = por %p240, %p241
    %p243 = scmp.ne.s32.totalorder %s229, %s230
    %p244 = scmp.eq.s32.totalorder %s28, 3
    %p245 = por %p243, %p244
    %p247 = scmp.ne.s32.totalorder %s230, %s246
    %p248 = scmp.eq.s32.totalorder %s28, 0
    %p249 = por %p247, %p248
    %s250 = ssub.s32 %s30, %s37
    %p251 = scmp.eq.s32.totalorder %s250, 0
    %s253 = sadd.s32 %s252, 1
    %s254 = scalar_select %p251, %s252, %s253
    %p257 = pneg %p251
    %p258 = scmp.eq.s32.totalorder %s22, 3
    %p259 = por %p257, %p258
    %p260 = scmp.ne.s32.totalorder %s252, %s255
    %p261 = scmp.eq.s32.totalorder %s22, 0
    %p262 = por %p260, %p261
    %p263 = scmp.ne.s32.totalorder %s252, %s255
    %p264 = scmp.eq.s32.totalorder %s27, 3
    %p265 = por %p263, %p264
    %p266 = scmp.ne.s32.totalorder %s255, %s256
    %p267 = scmp.eq.s32.totalorder %s27, 0
    %p268 = por %p266, %p267
    %p269 = scmp.ne.s32.totalorder %s255, %s256
    %p270 = scmp.eq.s32.totalorder %s28, 3
    %p271 = por %p269, %p270
    %p273 = scmp.ne.s32.totalorder %s256, %s272
    %p274 = scmp.eq.s32.totalorder %s28, 0
    %p275 = por %p273, %p274
    %s276 = ssub.s32 %s30, %s37
    %p277 = scmp.eq.s32.totalorder %s276, 0
    %s279 = sadd.s32 %s278, 1
    %s280 = scalar_select %p277, %s278, %s279
    %p283 = pneg %p277
    %p284 = scmp.eq.s32.totalorder %s22, 3
    %p285 = por %p283, %p284
    %p286 = scmp.ne.s32.totalorder %s278, %s281
    %p287 = scmp.eq.s32.totalorder %s22, 0
    %p288 = por %p286, %p287
    %p289 = scmp.ne.s32.totalorder %s278, %s281
    %p290 = scmp.eq.s32.totalorder %s27, 3
    %p291 = por %p289, %p290
    %p292 = scmp.ne.s32.totalorder %s281, %s282
    %p293 = scmp.eq.s32.totalorder %s27, 0
    %p294 = por %p292, %p293
    %p295 = scmp.ne.s32.totalorder %s281, %s282
    %p296 = scmp.eq.s32.totalorder %s28, 3
    %p297 = por %p295, %p296
    %p299 = scmp.ne.s32.totalorder %s282, %s298
    %p300 = scmp.eq.s32.totalorder %s28, 0
    %p301 = por %p299, %p300
    %s302 = ssub.s32 %s30, %s37
    %p303 = scmp.eq.s32.totalorder %s302, 0
    %s305 = sadd.s32 %s304, 1
    %s306 = scalar_select %p303, %s304, %s305
    %p309 = pneg %p303
    %p310 = scmp.eq.s32.totalorder %s22, 3
    %p311 = por %p309, %p310
    %p312 = scmp.ne.s32.totalorder %s304, %s307
    %p313 = scmp.eq.s32.totalorder %s22, 0
    %p314 = por %p312, %p313
    %p315 = scmp.ne.s32.totalorder %s304, %s307
    %p316 = scmp.eq.s32.totalorder %s27, 3
    %p317 = por %p315, %p316
    %p318 = scmp.ne.s32.totalorder %s307, %s308
    %p319 = scmp.eq.s32.totalorder %s27, 0
    %p320 = por %p318, %p319
    %p321 = scmp.ne.s32.totalorder %s307, %s308
    %p322 = scmp.eq.s32.totalorder %s28, 3
    %p323 = por %p321, %p322
    %p325 = scmp.ne.s32.totalorder %s308, %s324
    %p326 = scmp.eq.s32.totalorder %s28, 0
    %p327 = por %p325, %p326
    %s328 = ssub.s32 %s30, %s37
    %p329 = scmp.eq.s32.totalorder %s328, 0
    %s331 = sadd.s32 %s330, 1
    %s332 = scalar_select %p329, %s330, %s331
    %p335 = pneg %p329
    %p336 = scmp.eq.s32.totalorder %s22, 3
    %p337 = por %p335, %p336
    %p338 = scmp.ne.s32.totalorder %s330, %s333
    %p339 = scmp.eq.s32.totalorder %s22, 0
    %p340 = por %p338, %p339
    %p341 = scmp.ne.s32.totalorder %s330, %s333
    %p342 = scmp.eq.s32.totalorder %s27, 3
    %p343 = por %p341, %p342
    %p344 = scmp.ne.s32.totalorder %s333, %s334
    %p345 = scmp.eq.s32.totalorder %s27, 0
    %p346 = por %p344, %p345
    %p347 = scmp.ne.s32.totalorder %s333, %s334
    %p348 = scmp.eq.s32.totalorder %s28, 3
    %p349 = por %p347, %p348
    %p351 = scmp.ne.s32.totalorder %s334, %s350
    %p352 = scmp.eq.s32.totalorder %s28, 0
    %p353 = por %p351, %p352
    %s354 = ssub.s32 %s30, %s37
    %p355 = scmp.eq.s32.totalorder %s354, 0
    %s357 = sadd.s32 %s356, 1
    %s358 = scalar_select %p355, %s356, %s357
    %p361 = pneg %p355
    %p362 = scmp.eq.s32.totalorder %s22, 3
    %p363 = por %p361, %p362
    %p364 = scmp.ne.s32.totalorder %s356, %s359
    %p365 = scmp.eq.s32.totalorder %s22, 0
    %p366 = por %p364, %p365
    %p367 = scmp.ne.s32.totalorder %s356, %s359
    %p368 = scmp.eq.s32.totalorder %s27, 3
    %p369 = por %p367, %p368
    %p370 = scmp.ne.s32.totalorder %s359, %s360
    %p371 = scmp.eq.s32.totalorder %s27, 0
    %p372 = por %p370, %p371
    %p373 = scmp.ne.s32.totalorder %s359, %s360
    %p374 = scmp.eq.s32.totalorder %s28, 3
    %p375 = por %p373, %p374
    %p377 = scmp.ne.s32.totalorder %s360, %s376
    %p378 = scmp.eq.s32.totalorder %s28, 0
    %p379 = por %p377, %p378
    %s380 = ssub.s32 %s30, %s37
    %p381 = scmp.eq.s32.totalorder %s380, 0
    %s383 = sadd.s32 %s382, 1
    %s384 = scalar_select %p381, %s382, %s383
    %p387 = pneg %p381
    %p388 = scmp.eq.s32.totalorder %s22, 3
    %p389 = por %p387, %p388
    %p390 = scmp.ne.s32.totalorder %s382, %s385
    %p391 = scmp.eq.s32.totalorder %s22, 0
    %p392 = por %p390, %p391
    %p393 = scmp.ne.s32.totalorder %s382, %s385
    %p394 = scmp.eq.s32.totalorder %s27, 3
    %p395 = por %p393, %p394
    %p396 = scmp.ne.s32.totalorder %s385, %s386
    %p397 = scmp.eq.s32.totalorder %s27, 0
    %p398 = por %p396, %p397
    %p399 = scmp.ne.s32.totalorder %s385, %s386
    %p400 = scmp.eq.s32.totalorder %s28, 3
    %p401 = por %p399, %p400
    %p403 = scmp.ne.s32.totalorder %s386, %s402
    %p404 = scmp.eq.s32.totalorder %s28, 0
    %p405 = por %p403, %p404
    %s407 = sadd.s32 %s406, 1
    %p410 = scmp.eq.s32.totalorder %s22, 3
    %p411 = scmp.ne.s32.totalorder %s406, %s408
    %p412 = scmp.eq.s32.totalorder %s22, 0
    %p413 = por %p411, %p412
    %p414 = scmp.ne.s32.totalorder %s406, %s408
    %p415 = scmp.eq.s32.totalorder %s27, 3
    %p416 = por %p414, %p415
    %p417 = scmp.ne.s32.totalorder %s408, %s409
    %p418 = scmp.eq.s32.totalorder %s27, 0
    %p419 = por %p417, %p418
    %p420 = scmp.ne.s32.totalorder %s408, %s409
    %p421 = scmp.eq.s32.totalorder %s28, 3
    %p422 = por %p420, %p421
    %p424 = scmp.ne.s32.totalorder %s409, %s423
    %p425 = scmp.eq.s32.totalorder %s28, 0
    %p426 = por %p424, %p425
    %s428 = sadd.s32 %s427, 1
    %p431 = scmp.eq.s32.totalorder %s22, 3
    %p432 = scmp.ne.s32.totalorder %s427, %s429
    %p433 = scmp.eq.s32.totalorder %s22, 0
    %p434 = por %p432, %p433
    %p435 = scmp.ne.s32.totalorder %s427, %s429
    %p436 = scmp.eq.s32.totalorder %s27, 3
    %p437 = por %p435, %p436
    %p438 = scmp.ne.s32.totalorder %s429, %s430
    %p439 = scmp.eq.s32.totalorder %s27, 0
    %p440 = por %p438, %p439
    %p441 = scmp.ne.s32.totalorder %s429, %s430
    %p442 = scmp.eq.s32.totalorder %s28, 3
    %p443 = por %p441, %p442
    %p445 = scmp.ne.s32.totalorder %s430, %s444
    %p446 = scmp.eq.s32.totalorder %s28, 0
    %p447 = por %p445, %p446
    %s448 = ssub.s32 %s29, %s41
    %p449 = scmp.eq.s32.totalorder %s448, 0
    %s451 = sadd.s32 %s450, 1
    %s452 = scalar_select %p449, %s450, %s451
    %p455 = pneg %p449
    %p456 = scmp.eq.s32.totalorder %s22, 3
    %p457 = por %p455, %p456
    %p458 = scmp.ne.s32.totalorder %s450, %s453
    %p459 = scmp.eq.s32.totalorder %s22, 0
    %p460 = por %p458, %p459
    %p461 = scmp.ne.s32.totalorder %s450, %s453
    %p462 = scmp.eq.s32.totalorder %s27, 3
    %p463 = por %p461, %p462
    %p464 = scmp.ne.s32.totalorder %s453, %s454
    %p465 = scmp.eq.s32.totalorder %s27, 0
    %p466 = por %p464, %p465
    %p467 = scmp.ne.s32.totalorder %s453, %s454
    %p468 = scmp.eq.s32.totalorder %s28, 3
    %p469 = por %p467, %p468
    %p471 = scmp.ne.s32.totalorder %s454, %s470
    %p472 = scmp.eq.s32.totalorder %s28, 0
    %p473 = por %p471, %p472
    %p474 = scmp.le.s32.totalorder 1, %s22
    %p475 = scmp.lt.s32.totalorder %s22, 5
    %p476 = pnand %p474, %p475
    %p477 = pneg %p476
    // Predicated region
    $region9: #{mude_forward.5} parent=5 // pred_check
      _
    $region10: #{mude_forward.5} parent=5 // pred_check_branch
      %479 = sbr.rel (%p476) target = $region12
    $region11: #{mude_forward.5} parent=5 // pred_region
      %s480 = ssub.s32 %s22, 1
      // Predicated region
      $region13: #{mude_forward.5} parent=11 // pred_check
        %p481 = pneg %p419
      $region14: #{mude_forward.5} parent=11 // pred_check_branch
        %483 = sbr.rel (%p481) target = $region16
      $region15: #{mude_forward.5} parent=11 // pred_region
        _
      $region16: #{mude_forward.5} parent=11 // pred_fallthru
        _
      // Predicated region
      $region17: #{mude_forward.5} parent=11 // pred_check
        %p484 = pneg %p440
      $region18: #{mude_forward.5} parent=11 // pred_check_branch
        %486 = sbr.rel (%p484) target = $region20
      $region19: #{mude_forward.5} parent=11 // pred_region
        _
      $region20: #{mude_forward.5} parent=11 // pred_fallthru
        _
    $region12: #{mude_forward.5} parent=5 // pred_fallthru
      _
    %p487 = scmp.lt.s32.totalorder %s22, 4
    // Predicated region
    $region21: #{mude_forward.5} parent=5 // pred_check
      %p488 = pneg %p487
    $region22: #{mude_forward.5} parent=5 // pred_check_branch
      %490 = sbr.rel (%p488) target = $region24
    $region23: #{mude_forward.5} parent=5 // pred_region
      // Predicated region
      $region25: #{mude_forward.5} parent=23 // pred_check
        %p491 = pneg %p54
      $region26: #{mude_forward.5} parent=23 // pred_check_branch
        %493 = sbr.rel (%p491) target = $region28
      $region27: #{mude_forward.5} parent=23 // pred_region
        %s494 = smul.u32 8, %s29
        %p495 = scmp.lt.s32.totalorder %s494, 15
        %s496 = scalar_select %p495, %s494, 15
        %s497 = smul.addr %s496, 8
        %s498 = scalar_lea.vmem %s0, %s497
        %s499 = smul.u32 8, %s29
      $region28: #{mude_forward.5} parent=23 // pred_fallthru
        _
      // Predicated region
      $region29: #{mude_forward.5} parent=23 // pred_check
        %p500 = pneg %p80
      $region30: #{mude_forward.5} parent=23 // pred_check_branch
        %502 = sbr.rel (%p500) target = $region32
      $region31: #{mude_forward.5} parent=23 // pred_region
        %s503 = smul.u32 8, %s29
        %p504 = scmp.lt.s32.totalorder %s503, 15
        %s505 = scalar_select %p504, %s503, 15
        %s506 = smul.addr %s505, 8
        %s507 = scalar_lea.vmem %s1, %s506
        %s508 = smul.u32 8, %s29
      $region32: #{mude_forward.5} parent=23 // pred_fallthru
        _
      // Predicated region
      $region33: #{mude_forward.5} parent=23 // pred_check
        %p509 = pneg %p106
      $region34: #{mude_forward.5} parent=23 // pred_check_branch
        %511 = sbr.rel (%p509) target = $region36
      $region35: #{mude_forward.5} parent=23 // pred_region
        %p512 = scmp.lt.s32.totalorder %s30, 1
        %s513 = scalar_select %p512, %s30, 1
        %s514 = smul.addr %s513, 4
        %s515 = smul.addr %s514, 4
        %s516 = scalar_lea.vmem %s2, %s515
      $region36: #{mude_forward.5} parent=23 // pred_fallthru
        _
      // Predicated region
      $region37: #{mude_forward.5} parent=23 // pred_check
        %p517 = pneg %p132
      $region38: #{mude_forward.5} parent=23 // pred_check_branch
        %519 = sbr.rel (%p517) target = $region40
      $region39: #{mude_forward.5} parent=23 // pred_region
        %p520 = scmp.lt.s32.totalorder %s30, 1
        %s521 = scalar_select %p520, %s30, 1
        %s522 = scalar_lea.vmem %s3, %s521
      $region40: #{mude_forward.5} parent=23 // pred_fallthru
        _
      // Predicated region
      $region41: #{mude_forward.5} parent=23 // pred_check
        %p523 = pneg %p158
      $region42: #{mude_forward.5} parent=23 // pred_check_branch
        %525 = sbr.rel (%p523) target = $region44
      $region43: #{mude_forward.5} parent=23 // pred_region
        %p526 = scmp.lt.s32.totalorder %s30, 1
        %s527 = scalar_select %p526, %s30, 1
        %s528 = smul.addr %s527, 4
        %s529 = smul.addr %s528, 4
        %s530 = scalar_lea.vmem %s4, %s529
      $region44: #{mude_forward.5} parent=23 // pred_fallthru
        _
      // Predicated region
      $region45: #{mude_forward.5} parent=23 // pred_check
        %p531 = pneg %p184
      $region46: #{mude_forward.5} parent=23 // pred_check_branch
        %533 = sbr.rel (%p531) target = $region48
      $region47: #{mude_forward.5} parent=23 // pred_region
        %p534 = scmp.lt.s32.totalorder %s30, 1
        %s535 = scalar_select %p534, %s30, 1
        %s536 = scalar_lea.vmem %s5, %s535
      $region48: #{mude_forward.5} parent=23 // pred_fallthru
        _
      // Predicated region
      $region49: #{mude_forward.5} parent=23 // pred_check
        %p537 = pneg %p210
      $region50: #{mude_forward.5} parent=23 // pred_check_branch
        %539 = sbr.rel (%p537) target = $region52
      $region51: #{mude_forward.5} parent=23 // pred_region
        %p540 = scmp.lt.s32.totalorder %s30, 1
        %s541 = scalar_select %p540, %s30, 1
        %s542 = smul.addr %s541, 4
        %s543 = smul.addr %s542, 4
        %s544 = scalar_lea.vmem %s6, %s543
      $region52: #{mude_forward.5} parent=23 // pred_fallthru
        _
      // Predicated region
      $region53: #{mude_forward.5} parent=23 // pred_check
        %p545 = pneg %p236
      $region54: #{mude_forward.5} parent=23 // pred_check_branch
        %547 = sbr.rel (%p545) target = $region56
      $region55: #{mude_forward.5} parent=23 // pred_region
        %p548 = scmp.lt.s32.totalorder %s30, 1
        %s549 = scalar_select %p548, %s30, 1
        %s550 = scalar_lea.vmem %s7, %s549
      $region56: #{mude_forward.5} parent=23 // pred_fallthru
        _
      // Predicated region
      $region57: #{mude_forward.5} parent=23 // pred_check
        %p551 = pneg %p262
      $region58: #{mude_forward.5} parent=23 // pred_check_branch
        %553 = sbr.rel (%p551) target = $region60
      $region59: #{mude_forward.5} parent=23 // pred_region
        %p554 = scmp.lt.s32.totalorder %s30, 1
        %s555 = scalar_select %p554, %s30, 1
        %s556 = smul.addr %s555, 16
        %s557 = smul.addr %s556, 4
        %s558 = scalar_lea.vmem %s8, %s557
      $region60: #{mude_forward.5} parent=23 // pred_fallthru
        _
      // Predicated region
      $region61: #{mude_forward.5} parent=23 // pred_check
        %p559 = pneg %p288
      $region62: #{mude_forward.5} parent=23 // pred_check_branch
        %561 = sbr.rel (%p559) target = $region64
      $region63: #{mude_forward.5} parent=23 // pred_region
        %p562 = scmp.lt.s32.totalorder %s30, 1
        %s563 = scalar_select %p562, %s30, 1
        %s564 = scalar_lea.vmem %s9, %s563
      $region64: #{mude_forward.5} parent=23 // pred_fallthru
        _
      // Predicated region
      $region65: #{mude_forward.5} parent=23 // pred_check
        %p565 = pneg %p314
      $region66: #{mude_forward.5} parent=23 // pred_check_branch
        %567 = sbr.rel (%p565) target = $region68
      $region67: #{mude_forward.5} parent=23 // pred_region
        %p568 = scmp.lt.s32.totalorder %s30, 1
        %s569 = scalar_select %p568, %s30, 1
        %s570 = scalar_lea.vmem %s10, %s569
      $region68: #{mude_forward.5} parent=23 // pred_fallthru
        _
      // Predicated region
      $region69: #{mude_forward.5} parent=23 // pred_check
        %p571 = pneg %p340
      $region70: #{mude_forward.5} parent=23 // pred_check_branch
        %573 = sbr.rel (%p571) target = $region72
      $region71: #{mude_forward.5} parent=23 // pred_region
        %p574 = scmp.lt.s32.totalorder %s30, 1
        %s575 = scalar_select %p574, %s30, 1
        %s576 = scalar_lea.vmem %s11, %s575
      $region72: #{mude_forward.5} parent=23 // pred_fallthru
        _
      // Predicated region
      $region73: #{mude_forward.5} parent=23 // pred_check
        %p577 = pneg %p366
      $region74: #{mude_forward.5} parent=23 // pred_check_branch
        %579 = sbr.rel (%p577) target = $region76
      $region75: #{mude_forward.5} parent=23 // pred_region
        %p580 = scmp.lt.s32.totalorder %s30, 1
        %s581 = scalar_select %p580, %s30, 1
        %s582 = scalar_lea.vmem %s12, %s581
      $region76: #{mude_forward.5} parent=23 // pred_fallthru
        _
      // Predicated region
      $region77: #{mude_forward.5} parent=23 // pred_check
        %p583 = pneg %p392
      $region78: #{mude_forward.5} parent=23 // pred_check_branch
        %585 = sbr.rel (%p583) target = $region80
      $region79: #{mude_forward.5} parent=23 // pred_region
        %p586 = scmp.lt.s32.totalorder %s30, 1
        %s587 = scalar_select %p586, %s30, 1
        %s588 = scalar_lea.vmem %s13, %s587
      $region80: #{mude_forward.5} parent=23 // pred_fallthru
        _
    $region24: #{mude_forward.5} parent=5 // pred_fallthru
      _
    %p589 = scmp.le.s32.totalorder 1, %s22
    %p590 = scmp.lt.s32.totalorder %s22, 5
    %p591 = pnand %p589, %p590
    %p592 = pneg %p591
    // Predicated region
    $region81: #{mude_forward.5} parent=5 // pred_check
      _
    $region82: #{mude_forward.5} parent=5 // pred_check_branch
      %594 = sbr.rel (%p591) target = $region84
    $region83: #{mude_forward.5} parent=5 // pred_region
      %s595 = ssub.s32 %s22, 1
      %s596 = smul.u32 8, %s31
      %p597 = scmp.lt.s32.totalorder %s596, 15
      %s598 = scalar_select %p597, %s596, 15
      %s599 = smul.addr %s598, 8
      %s600 = scalar_lea.vmem %s0, %s599
      %p601 = pneg %p60
      %p602 = pneg %p57
      %s603 = smul.u32 8, %s31
      %p604 = scmp.lt.s32.totalorder %s603, 15
      %s605 = scalar_select %p604, %s603, 15
      %s606 = smul.addr %s605, 8
      %s607 = scalar_lea.vmem %s1, %s606
      %p608 = pneg %p86
      %p609 = pneg %p83
      %p610 = scmp.lt.s32.totalorder %s32, 1
      %s611 = scalar_select %p610, %s32, 1
      %s612 = smul.addr %s611, 4
      %s613 = smul.addr %s612, 4
      %s614 = scalar_lea.vmem %s2, %s613
      %p615 = pneg %p112
      %p616 = pneg %p109
      %p617 = scmp.lt.s32.totalorder %s32, 1
      %s618 = scalar_select %p617, %s32, 1
      %s619 = scalar_lea.vmem %s3, %s618
      %p620 = pneg %p138
      %p621 = pneg %p135
      %p622 = scmp.lt.s32.totalorder %s32, 1
      %s623 = scalar_select %p622, %s32, 1
      %s624 = smul.addr %s623, 4
      %s625 = smul.addr %s624, 4
      %s626 = scalar_lea.vmem %s4, %s625
      %p627 = pneg %p164
      %p628 = pneg %p161
      %p629 = scmp.lt.s32.totalorder %s32, 1
      %s630 = scalar_select %p629, %s32, 1
      %s631 = scalar_lea.vmem %s5, %s630
      %p632 = pneg %p190
      %p633 = pneg %p187
      %p634 = scmp.lt.s32.totalorder %s32, 1
      %s635 = scalar_select %p634, %s32, 1
      %s636 = smul.addr %s635, 4
      %s637 = smul.addr %s636, 4
      %s638 = scalar_lea.vmem %s6, %s637
      %p639 = pneg %p216
      %p640 = pneg %p213
      %p641 = scmp.lt.s32.totalorder %s32, 1
      %s642 = scalar_select %p641, %s32, 1
      %s643 = scalar_lea.vmem %s7, %s642
      %p644 = pneg %p242
      %p645 = pneg %p239
      %p646 = scmp.lt.s32.totalorder %s32, 1
      %s647 = scalar_select %p646, %s32, 1
      %s648 = smul.addr %s647, 16
      %s649 = smul.addr %s648, 4
      %s650 = scalar_lea.vmem %s8, %s649
      %p651 = pneg %p268
      %p652 = pneg %p265
      %p653 = scmp.lt.s32.totalorder %s32, 1
      %s654 = scalar_select %p653, %s32, 1
      %s655 = scalar_lea.vmem %s9, %s654
      %p656 = pneg %p294
      %p657 = pneg %p291
      %p658 = scmp.lt.s32.totalorder %s32, 1
      %s659 = scalar_select %p658, %s32, 1
      %s660 = scalar_lea.vmem %s10, %s659
      %p661 = pneg %p320
      %p662 = pneg %p317
      %p663 = scmp.lt.s32.totalorder %s32, 1
      %s664 = scalar_select %p663, %s32, 1
      %s665 = scalar_lea.vmem %s11, %s664
      %p666 = pneg %p346
      %p667 = pneg %p343
      %p668 = scmp.lt.s32.totalorder %s32, 1
      %s669 = scalar_select %p668, %s32, 1
      %s670 = scalar_lea.vmem %s12, %s669
      %p671 = pneg %p372
      %p672 = pneg %p369
      %p673 = scmp.lt.s32.totalorder %s32, 1
      %s674 = scalar_select %p673, %s32, 1
      %s675 = scalar_lea.vmem %s13, %s674
      %p676 = pneg %p398
      %p677 = pneg %p395
      %p678 = pneg %p419
      %p679 = pneg %p416
      %p680 = pneg %p440
      %p681 = pneg %p437
      %p682 = pneg %p466
      %p683 = pneg %p463
      %p684 = scmp.lt.s32.totalorder %s31, 1
      %s685 = scalar_select %p684, %s31, 1
      %s686 = smul.addr %s685, 8
      %s687 = scalar_lea.vmem %s16, %s686
      %s688 = smul.u32 8, %s31
      %p689 = scmp.lt.s32.totalorder %s688, 15
      %s690 = scalar_select %p689, %s688, 15
      %s691 = smul.addr %s690, 8
      %s692 = scalar_lea.vmem %s0, %s691
      %s693 = smul.u32 8, %s31
      %s694 = smul.u32 8, %s31
      %p695 = scmp.lt.s32.totalorder %s694, 15
      %s696 = scalar_select %p695, %s694, 15
      %s697 = smul.addr %s696, 8
      %s698 = scalar_lea.vmem %s1, %s697
      %s699 = smul.u32 8, %s31
      %p700 = scmp.lt.s32.totalorder %s32, 1
      %s701 = scalar_select %p700, %s32, 1
      %s702 = smul.addr %s701, 4
      %s703 = smul.addr %s702, 4
      %s704 = scalar_lea.vmem %s2, %s703
      %p705 = scmp.lt.s32.totalorder %s32, 1
      %s706 = scalar_select %p705, %s32, 1
      %s707 = scalar_lea.vmem %s3, %s706
      %p708 = scmp.lt.s32.totalorder %s32, 1
      %s709 = scalar_select %p708, %s32, 1
      %s710 = smul.addr %s709, 4
      %s711 = smul.addr %s710, 4
      %s712 = scalar_lea.vmem %s4, %s711
      %p713 = scmp.lt.s32.totalorder %s32, 1
      %s714 = scalar_select %p713, %s32, 1
      %s715 = scalar_lea.vmem %s5, %s714
      %p716 = scmp.lt.s32.totalorder %s32, 1
      %s717 = scalar_select %p716, %s32, 1
      %s718 = smul.addr %s717, 4
      %s719 = smul.addr %s718, 4
      %s720 = scalar_lea.vmem %s6, %s719
      %p721 = scmp.lt.s32.totalorder %s32, 1
      %s722 = scalar_select %p721, %s32, 1
      %s723 = scalar_lea.vmem %s7, %s722
      %p724 = scmp.lt.s32.totalorder %s32, 1
      %s725 = scalar_select %p724, %s32, 1
      %s726 = smul.addr %s725, 16
      %s727 = smul.addr %s726, 4
      %s728 = scalar_lea.vmem %s8, %s727
      %p729 = scmp.lt.s32.totalorder %s32, 1
      %s730 = scalar_select %p729, %s32, 1
      %s731 = scalar_lea.vmem %s9, %s730
      %p732 = scmp.lt.s32.totalorder %s32, 1
      %s733 = scalar_select %p732, %s32, 1
      %s734 = scalar_lea.vmem %s10, %s733
      %p735 = scmp.lt.s32.totalorder %s32, 1
      %s736 = scalar_select %p735, %s32, 1
      %s737 = scalar_lea.vmem %s11, %s736
      %p738 = scmp.lt.s32.totalorder %s32, 1
      %s739 = scalar_select %p738, %s32, 1
      %s740 = scalar_lea.vmem %s12, %s739
      %p741 = scmp.lt.s32.totalorder %s32, 1
      %s742 = scalar_select %p741, %s32, 1
      %s743 = scalar_lea.vmem %s13, %s742
      %p744 = scmp.lt.s32.totalorder %s31, 1
      %s745 = scalar_select %p744, %s31, 1
      %s746 = smul.addr %s745, 8
      %s747 = scalar_lea.vmem %s16, %s746
      %p749 = scmp.eq.s32.totalorder %s32, 0
      // Predicated region
      $region85: #{mude_forward.5} parent=83 // pred_check
        %p750 = pneg %p749
      $region86: #{mude_forward.5} parent=83 // pred_check_branch
        %752 = sbr.rel (%p750) target = $region88
      $region87: #{mude_forward.5} parent=83 // pred_region
        %v753 = vld [vmem:[%s692] sm:$0xff]
        %v754 = vld [vmem:[%s692 + $0x8] sm:$0xff]
        %v755 = vld [vmem:[%s692 + $0x10] sm:$0xff]
        %v756 = vld [vmem:[%s692 + $0x18] sm:$0xff]
        %v757 = vld [vmem:[%s692 + $0x20] sm:$0xff]
        %v758 = vld [vmem:[%s692 + $0x28] sm:$0xff]
        %v759 = vld [vmem:[%s692 + $0x30] sm:$0xff]
        %v760 = vld [vmem:[%s692 + $0x38] sm:$0xff]
        %vm761 = vcmask 261120
        %762 = vst.msk [vmem:[#allocation2] sm:$0xff] %vm761, %v753
        %763 = vst.msk [vmem:[#allocation2 + $0x8] sm:$0xff] %vm761, %v754
        %764 = vst.msk [vmem:[#allocation2 + $0x10] sm:$0xff] %vm761, %v755
        %765 = vst.msk [vmem:[#allocation2 + $0x18] sm:$0xff] %vm761, %v756
        %766 = vst.msk [vmem:[#allocation2 + $0x20] sm:$0xff] %vm761, %v757
        %767 = vst.msk [vmem:[#allocation2 + $0x28] sm:$0xff] %vm761, %v758
        %768 = vst.msk [vmem:[#allocation2 + $0x30] sm:$0xff] %vm761, %v759
        %769 = vst.msk [vmem:[#allocation2 + $0x38] sm:$0xff] %vm761, %v760
      $region88: #{mude_forward.5} parent=83 // pred_fallthru
        _
      %v770 = vld [vmem:[#allocation2] sm:$0xff]
      %v771 = vld [vmem:[#allocation2 + $0x8] sm:$0xff]
      %v772 = vld [vmem:[#allocation2 + $0x10] sm:$0xff]
      %v773 = vld [vmem:[#allocation2 + $0x18] sm:$0xff]
      %v774 = vld [vmem:[#allocation2 + $0x20] sm:$0xff]
      %v775 = vld [vmem:[#allocation2 + $0x28] sm:$0xff]
      %v776 = vld [vmem:[#allocation2 + $0x30] sm:$0xff]
      %v777 = vld [vmem:[#allocation2 + $0x38] sm:$0xff]
      %v778 = vld [vmem:[%s698] sm:$0xff]
      %v779 = vld [vmem:[%s698 + $0x8] sm:$0xff]
      %v780 = vld [vmem:[%s698 + $0x10] sm:$0xff]
      %v781 = vld [vmem:[%s698 + $0x18] sm:$0xff]
      %v782 = vld [vmem:[%s698 + $0x20] sm:$0xff]
      %v783 = vld [vmem:[%s698 + $0x28] sm:$0xff]
      %v784 = vld [vmem:[%s698 + $0x30] sm:$0xff]
      %v785 = vld [vmem:[%s698 + $0x38] sm:$0xff]
      %v786 = vsub.f32 %v778, 1.0
      %v787 = vsub.f32 %v779, 1.0
      %v788 = vsub.f32 %v780, 1.0
      %v789 = vsub.f32 %v781, 1.0
      %v790 = vsub.f32 %v782, 1.0
      %v791 = vsub.f32 %v783, 1.0
      %v792 = vsub.f32 %v784, 1.0
      %v793 = vsub.f32 %v785, 1.0
      %v794 = vmul.f32 %v786, 1e+09
      %v795 = vmul.f32 %v787, 1e+09
      %v796 = vmul.f32 %v788, 1e+09
      %v797 = vmul.f32 %v789, 1e+09
      %v798 = vmul.f32 %v790, 1e+09
      %v799 = vmul.f32 %v791, 1e+09
      %v800 = vmul.f32 %v792, 1e+09
      %v801 = vmul.f32 %v793, 1e+09
      %v802 = vld [vmem:[%s734] sm:$0x1]
      %v803 = vld [vmem:[%s737] sm:$0x1]
      %vm804 = vcmask 261120
      %v805 = vsel %vm804, %v770, 0.0
      %806 = vadd.xlane.f32.xlu0 %v805
      %v807 = vpop.xlane.xlu0 %806
      %v808 = vsel %vm804, %v771, 0.0
      %809 = vadd.xlane.f32.xlu0 %v808
      %v810 = vpop.xlane.xlu0 %809
      %v811 = vsel %vm804, %v772, 0.0
      %812 = vadd.xlane.f32.xlu0 %v811
      %v813 = vpop.xlane.xlu0 %812
      %v814 = vsel %vm804, %v773, 0.0
      %815 = vadd.xlane.f32.xlu0 %v814
      %v816 = vpop.xlane.xlu0 %815
      %v817 = vsel %vm804, %v774, 0.0
      %818 = vadd.xlane.f32.xlu0 %v817
      %v819 = vpop.xlane.xlu0 %818
      %v820 = vsel %vm804, %v775, 0.0
      %821 = vadd.xlane.f32.xlu0 %v820
      %v822 = vpop.xlane.xlu0 %821
      %v823 = vsel %vm804, %v776, 0.0
      %824 = vadd.xlane.f32.xlu0 %v823
      %v825 = vpop.xlane.xlu0 %824
      %v826 = vsel %vm804, %v777, 0.0
      %827 = vadd.xlane.f32.xlu0 %v826
      %v828 = vpop.xlane.xlu0 %827
      %v829 = vrcp.pop 32.0
      %v830 = vmul.f32 %v807, %v829
      %v831 = vmul.f32 %v810, %v829
      %v832 = vmul.f32 %v813, %v829
      %v833 = vmul.f32 %v816, %v829
      %v834 = vmul.f32 %v819, %v829
      %v835 = vmul.f32 %v822, %v829
      %v836 = vmul.f32 %v825, %v829
      %v837 = vmul.f32 %v828, %v829
      %v838 = vmul.f32 %v770, %v770
      %v839 = vmul.f32 %v771, %v771
      %v840 = vmul.f32 %v772, %v772
      %v841 = vmul.f32 %v773, %v773
      %v842 = vmul.f32 %v774, %v774
      %v843 = vmul.f32 %v775, %v775
      %v844 = vmul.f32 %v776, %v776
      %v845 = vmul.f32 %v777, %v777
      %v846 = vsel %vm804, %v838, 0.0
      %847 = vadd.xlane.f32.xlu0 %v846
      %v848 = vpop.xlane.xlu0 %847
      %v849 = vsel %vm804, %v839, 0.0
      %850 = vadd.xlane.f32.xlu0 %v849
      %v851 = vpop.xlane.xlu0 %850
      %v852 = vsel %vm804, %v840, 0.0
      %853 = vadd.xlane.f32.xlu0 %v852
      %v854 = vpop.xlane.xlu0 %853
      %v855 = vsel %vm804, %v841, 0.0
      %856 = vadd.xlane.f32.xlu0 %v855
      %v857 = vpop.xlane.xlu0 %856
      %v858 = vsel %vm804, %v842, 0.0
      %859 = vadd.xlane.f32.xlu0 %v858
      %v860 = vpop.xlane.xlu0 %859
      %v861 = vsel %vm804, %v843, 0.0
      %862 = vadd.xlane.f32.xlu0 %v861
      %v863 = vpop.xlane.xlu0 %862
      %v864 = vsel %vm804, %v844, 0.0
      %865 = vadd.xlane.f32.xlu0 %v864
      %v866 = vpop.xlane.xlu0 %865
      %v867 = vsel %vm804, %v845, 0.0
      %868 = vadd.xlane.f32.xlu0 %v867
      %v869 = vpop.xlane.xlu0 %868
      %v870 = vmul.f32 %v848, %v829
      %v871 = vmul.f32 %v851, %v829
      %v872 = vmul.f32 %v854, %v829
      %v873 = vmul.f32 %v857, %v829
      %v874 = vmul.f32 %v860, %v829
      %v875 = vmul.f32 %v863, %v829
      %v876 = vmul.f32 %v866, %v829
      %v877 = vmul.f32 %v869, %v829
      %v878 = vmul.f32 %v830, %v830
      %v879 = vmul.f32 %v831, %v831
      %v880 = vmul.f32 %v832, %v832
      %v881 = vmul.f32 %v833, %v833
      %v882 = vmul.f32 %v834, %v834
      %v883 = vmul.f32 %v835, %v835
      %v884 = vmul.f32 %v836, %v836
      %v885 = vmul.f32 %v837, %v837
      %v886 = vsub.f32 %v870, %v878
      %v887 = vsub.f32 %v871, %v879
      %v888 = vsub.f32 %v872, %v880
      %v889 = vsub.f32 %v873, %v881
      %v890 = vsub.f32 %v874, %v882
      %v891 = vsub.f32 %v875, %v883
      %v892 = vsub.f32 %v876, %v884
      %v893 = vsub.f32 %v877, %v885
      %v894 = vmax.f32 %v886, 0.0
      %v895 = vmax.f32 %v887, 0.0
      %v896 = vmax.f32 %v888, 0.0
      %v897 = vmax.f32 %v889, 0.0
      %v898 = vmax.f32 %v890, 0.0
      %v899 = vmax.f32 %v891, 0.0
      %v900 = vmax.f32 %v892, 0.0
      %v901 = vmax.f32 %v893, 0.0
      %v902 = vsub.f32 %v770, %v830
      %v903 = vsub.f32 %v771, %v831
      %v904 = vsub.f32 %v772, %v832
      %v905 = vsub.f32 %v773, %v833
      %v906 = vsub.f32 %v774, %v834
      %v907 = vsub.f32 %v775, %v835
      %v908 = vsub.f32 %v776, %v836
      %v909 = vsub.f32 %v777, %v837
      %v910 = vadd.f32 %v894, 1e-05
      %v911 = vadd.f32 %v895, 1e-05
      %v912 = vadd.f32 %v896, 1e-05
      %v913 = vadd.f32 %v897, 1e-05
      %v914 = vadd.f32 %v898, 1e-05
      %v915 = vadd.f32 %v899, 1e-05
      %v916 = vadd.f32 %v900, 1e-05
      %v917 = vadd.f32 %v901, 1e-05
      %v918 = vrsqrt.pop %v910
      %v919 = vrsqrt.pop %v911
      %v920 = vrsqrt.pop %v912
      %v921 = vrsqrt.pop %v913
      %v922 = vrsqrt.pop %v914
      %v923 = vrsqrt.pop %v915
      %v924 = vrsqrt.pop %v916
      %v925 = vrsqrt.pop %v917
      %v926 = vmul.f32 %v902, %v918
      %v927 = vmul.f32 %v903, %v919
      %v928 = vmul.f32 %v904, %v920
      %v929 = vmul.f32 %v905, %v921
      %v930 = vmul.f32 %v906, %v922
      %v931 = vmul.f32 %v907, %v923
      %v932 = vmul.f32 %v908, %v924
      %v933 = vmul.f32 %v909, %v925
      %v935 = vlaneseq
      %v936 = vshrl.u32 %v935, 7
      %v937 = vsub.s32 0, %v936
      %v938 = vrot.slane %v802, %v937
      %v940 = vmul.f32 %v926, %v938
      %v941 = vmul.f32 %v927, %v938
      %v942 = vmul.f32 %v928, %v938
      %v943 = vmul.f32 %v929, %v938
      %v944 = vmul.f32 %v930, %v938
      %v945 = vmul.f32 %v931, %v938
      %v946 = vmul.f32 %v932, %v938
      %v947 = vmul.f32 %v933, %v938
      %v949 = vlaneseq
      %v950 = vshrl.u32 %v949, 7
      %v951 = vsub.s32 0, %v950
      %v952 = vrot.slane %v803, %v951
      %v954 = vadd.f32 %v940, %v952
      %v955 = vadd.f32 %v941, %v952
      %v956 = vadd.f32 %v942, %v952
      %v957 = vadd.f32 %v943, %v952
      %v958 = vadd.f32 %v944, %v952
      %v959 = vadd.f32 %v945, %v952
      %v960 = vadd.f32 %v946, %v952
      %v961 = vadd.f32 %v947, %v952
      %v962 = vpack.c.bf16 %v955, %v954
      %v963 = vpack.c.bf16 %v957, %v956
      %v964 = vpack.c.bf16 %v959, %v958
      %v965 = vpack.c.bf16 %v961, %v960
      %v966 = vld [vmem:[%s704] sm:$0xf]
      %v967 = vld [vmem:[%s704 + $0x4] sm:$0xf]
      %v968 = vld [vmem:[%s704 + $0x8] sm:$0xf]
      %v969 = vld [vmem:[%s704 + $0xc] sm:$0xf]
      %v970 = vld [vmem:[%s707] sm:$0x1]
      %v972 = vlaneseq
      %v973 = vshrl.u32 %v972, 7
      %v974 = vsub.s32 0, %v973
      %v975 = vrot.slane %v970, %v974
      %v981 = vunpack.c.l.b16 %v966
      %v982 = vunpack.c.l.b16 %v967
      %v983 = vunpack.c.l.b16 %v968
      %v984 = vunpack.c.l.b16 %v969
      %v985 = vpack.c.b16 %v982, %v981
      %v986 = vpack.c.b16 %v984, %v983
      %v990 = vsel %vm804, %v962, 0
      %v993 = vsel %vm804, %v963, 0
      %v996 = vsel %vm804, %v964, 0
      %v999 = vsel %vm804, %v965, 0
      %1001 = vmatprep.subr.bf16.mxu0 0
      %1002 = vmatpush1.bf16.msra.mxu0 0
      %1003 = vmatprep.subr.bf16.mxu0 0
      %1004 = vmatpush1.bf16.msra.mxu0 0
      %1005 = vmatprep.subr.bf16.mxu0 0
      %1006 = vmatpush1.bf16.msra.mxu0 0
      %1007 = vmatprep.subr.bf16.mxu0 0
      %1008 = vmatpush1.bf16.msra.mxu0 0
      %1009 = vmatprep.subr.bf16.mxu0 0
      %1010 = vmatpush1.bf16.msra.mxu0 0
      %1011 = vmatprep.subr.bf16.mxu0 0
      %1012 = vmatpush1.bf16.msra.mxu0 0
      %1013 = vmatprep.subr.bf16.mxu0 0
      %1014 = vmatpush1.bf16.msra.mxu0 %v986
      %1015 = vmatprep.subr.bf16.mxu0 0
      %1016 = vmatpush1.bf16.msra.mxu0 %v985
      %1017 = vmatprep.subr.bf16.mxu0 0
      %1018 = vmatpush2.bf16.msra.mxu0 0
      %1019 = vmatprep.subr.bf16.mxu0 0
      %1020 = vmatpush2.bf16.msra.mxu0 0
      %1021 = vmatprep.subr.bf16.mxu0 0
      %1022 = vmatpush2.bf16.msra.mxu0 0
      %1023 = vmatprep.subr.bf16.mxu0 0
      %1024 = vmatpush2.bf16.msra.mxu0 0
      %1025 = vmatprep.subr.bf16.mxu0 0
      %1026 = vmatpush2.bf16.msra.mxu0 0
      %1027 = vmatprep.subr.bf16.mxu0 0
      %1028 = vmatpush2.bf16.msra.mxu0 0
      %1029 = vmatprep.subr.bf16.mxu0 0
      %1030 = vmatpush2.bf16.msra.mxu0 0
      %1031 = vmatprep.subr.bf16.mxu0 0
      %1032 = vmatpush2.bf16.msra.mxu0 0
      %1033 = vmatprep.mubr.bf16.mxu0 0
      %1034 = vmatmul.mubr.bf16.gmra.mxu0 %v990
      %v1035 = vpop.f32.mrf.mxu0
      %v1036 = vadd.f32 %v975, %v1035
      %v1037 = vpop.f32.mrf.mxu0
      %v1038 = vpop.f32.mrf.mxu0
      %v1039 = vadd.f32 %v975, %v1038
      %v1040 = vpop.f32.mrf.mxu0
      %1041 = vmatprep.mubr.bf16.mxu0 0
      %1042 = vmatmul.mubr.bf16.gmra.mxu0 %v993
      %v1043 = vpop.f32.mrf.mxu0
      %v1044 = vadd.f32 %v975, %v1043
      %v1045 = vpop.f32.mrf.mxu0
      %v1046 = vpop.f32.mrf.mxu0
      %v1047 = vadd.f32 %v975, %v1046
      %v1048 = vpop.f32.mrf.mxu0
      %1049 = vmatprep.mubr.bf16.mxu0 0
      %1050 = vmatmul.mubr.bf16.gmra.mxu0 %v996
      %v1051 = vpop.f32.mrf.mxu0
      %v1052 = vadd.f32 %v975, %v1051
      %v1053 = vpop.f32.mrf.mxu0
      %v1054 = vpop.f32.mrf.mxu0
      %v1055 = vadd.f32 %v975, %v1054
      %v1056 = vpop.f32.mrf.mxu0
      %1057 = vmatprep.mubr.bf16.mxu0 0
      %1058 = vmatmul.mubr.bf16.gmra.mxu0 %v999
      %v1059 = vpop.f32.mrf.mxu0
      %v1060 = vadd.f32 %v975, %v1059
      %v1061 = vpop.f32.mrf.mxu0
      %v1062 = vpop.f32.mrf.mxu0
      %v1063 = vadd.f32 %v975, %v1062
      %v1064 = vpop.f32.mrf.mxu0
      %1065 = vdwg.mxu0
      %v1066 = vpack.c.bf16 %v1036, %v1036
      %v1067 = vpack.c.bf16 %v1039, %v1039
      %v1068 = vpack.c.bf16 %v1044, %v1044
      %v1069 = vpack.c.bf16 %v1047, %v1047
      %v1070 = vpack.c.bf16 %v1052, %v1052
      %v1071 = vpack.c.bf16 %v1055, %v1055
      %v1072 = vpack.c.bf16 %v1060, %v1060
      %v1073 = vpack.c.bf16 %v1063, %v1063
      %1075 = vrot.lane.b32.xlu0 %v1066, 96
      %v1076 = vpop.permute.xlu0 %1075
      %vm1077 = vcmask 64512
      %v1079 = vsel %vm1077, %v1066, 0
      %v1082 = vsel %vm1077, %v1076, 0
      %1084 = vmatprep.subr.bf16.mxu0 0
      %1085 = vmatpush1.bf16.xpose.msra.mxu0 0
      %1086 = vmatprep.subr.bf16.mxu0 0
      %1087 = vmatpush1.bf16.xpose.msra.mxu0 0
      %1088 = vmatprep.subr.bf16.mxu0 0
      %1089 = vmatpush1.bf16.xpose.msra.mxu0 0
      %1090 = vmatprep.subr.bf16.mxu0 0
      %1091 = vmatpush1.bf16.xpose.msra.mxu0 0
      %1092 = vmatprep.subr.bf16.mxu0 0
      %1093 = vmatpush1.bf16.xpose.msra.mxu0 0
      %1094 = vmatprep.subr.bf16.mxu0 0
      %1095 = vmatpush1.bf16.xpose.msra.mxu0 0
      %1096 = vmatprep.subr.bf16.mxu0 0
      %1097 = vmatpush1.bf16.xpose.msra.mxu0 0
      %1098 = vmatprep.subr.bf16.mxu0 0
      %1099 = vmatpush1.bf16.xpose.msra.mxu0 %v1082
      %1100 = vmatprep.subr.bf16.mxu0 0
      %1101 = vmatpush2.bf16.xpose.msra.mxu0 0
      %1102 = vmatprep.subr.bf16.mxu0 0
      %1103 = vmatpush2.bf16.xpose.msra.mxu0 0
      %1104 = vmatprep.subr.bf16.mxu0 0
      %1105 = vmatpush2.bf16.xpose.msra.mxu0 0
      %1106 = vmatprep.subr.bf16.mxu0 0
      %1107 = vmatpush2.bf16.xpose.msra.mxu0 0
      %1108 = vmatprep.subr.bf16.mxu0 0
      %1109 = vmatpush2.bf16.xpose.msra.mxu0 0
      %1110 = vmatprep.subr.bf16.mxu0 0
      %1111 = vmatpush2.bf16.xpose.msra.mxu0 0
      %1112 = vmatprep.subr.bf16.mxu0 0
      %1113 = vmatpush2.bf16.xpose.msra.mxu0 0
      %1114 = vmatprep.subr.bf16.mxu0 0
      %1115 = vmatpush2.bf16.xpose.msra.mxu0 0
      %1116 = vmatprep.mubr.bf16.mxu0 0
      %1117 = vmatmul.mubr.bf16.gmra.mxu0 %v1079
      %v1118 = vpop.f32.mrf.mxu0
      %v1119 = vadd.f32 0.0, %v1118
      %v1120 = vpop.f32.mrf.mxu0
      %v1121 = vpop.f32.mrf.mxu0
      %v1122 = vpop.f32.mrf.mxu0
      %1123 = vdwg.mxu0
      %1125 = vrot.lane.b32.xlu0 %v1067, 96
      %v1126 = vpop.permute.xlu0 %1125
      %v1128 = vsel %vm1077, %v1067, 0
      %v1131 = vsel %vm1077, %v1126, 0
      %1133 = vmatprep.subr.bf16.mxu0 0
      %1134 = vmatpush1.bf16.xpose.msra.mxu0 0
      %1135 = vmatprep.subr.bf16.mxu0 0
      %1136 = vmatpush1.bf16.xpose.msra.mxu0 0
      %1137 = vmatprep.subr.bf16.mxu0 0
      %1138 = vmatpush1.bf16.xpose.msra.mxu0 0
      %1139 = vmatprep.subr.bf16.mxu0 0
      %1140 = vmatpush1.bf16.xpose.msra.mxu0 0
      %1141 = vmatprep.subr.bf16.mxu0 0
      %1142 = vmatpush1.bf16.xpose.msra.mxu0 0
      %1143 = vmatprep.subr.bf16.mxu0 0
      %1144 = vmatpush1.bf16.xpose.msra.mxu0 0
      %1145 = vmatprep.subr.bf16.mxu0 0
      %1146 = vmatpush1.bf16.xpose.msra.mxu0 0
      %1147 = vmatprep.subr.bf16.mxu0 0
      %1148 = vmatpush1.bf16.xpose.msra.mxu0 %v1131
      %1149 = vmatprep.subr.bf16.mxu0 0
      %1150 = vmatpush2.bf16.xpose.msra.mxu0 0
      %1151 = vmatprep.subr.bf16.mxu0 0
      %1152 = vmatpush2.bf16.xpose.msra.mxu0 0
      %1153 = vmatprep.subr.bf16.mxu0 0
      %1154 = vmatpush2.bf16.xpose.msra.mxu0 0
      %1155 = vmatprep.subr.bf16.mxu0 0
      %1156 = vmatpush2.bf16.xpose.msra.mxu0 0
      %1157 = vmatprep.subr.bf16.mxu0 0
      %1158 = vmatpush2.bf16.xpose.msra.mxu0 0
      %1159 = vmatprep.subr.bf16.mxu0 0
      %1160 = vmatpush2.bf16.xpose.msra.mxu0 0
      %1161 = vmatprep.subr.bf16.mxu0 0
      %1162 = vmatpush2.bf16.xpose.msra.mxu0 0
      %1163 = vmatprep.subr.bf16.mxu0 0
      %1164 = vmatpush2.bf16.xpose.msra.mxu0 0
      %1165 = vmatprep.mubr.bf16.mxu0 0
      %1166 = vmatmul.mubr.bf16.gmra.mxu0 %v1128
      %v1167 = vpop.f32.mrf.mxu0
      %v1168 = vadd.f32 0.0, %v1167
      %v1169 = vpop.f32.mrf.mxu0
      %v1170 = vpop.f32.mrf.mxu0
      %v1171 = vpop.f32.mrf.mxu0
      %1172 = vdwg.mxu0
      %1174 = vrot.lane.b32.xlu0 %v1068, 96
      %v1175 = vpop.permute.xlu0 %1174
      %v1177 = vsel %vm1077, %v1068, 0
      %v1180 = vsel %vm1077, %v1175, 0
      %1182 = vmatprep.subr.bf16.mxu0 0
      %1183 = vmatpush1.bf16.xpose.msra.mxu0 0
      %1184 = vmatprep.subr.bf16.mxu0 0
      %1185 = vmatpush1.bf16.xpose.msra.mxu0 0
      %1186 = vmatprep.subr.bf16.mxu0 0
      %1187 = vmatpush1.bf16.xpose.msra.mxu0 0
      %1188 = vmatprep.subr.bf16.mxu0 0
      %1189 = vmatpush1.bf16.xpose.msra.mxu0 0
      %1190 = vmatprep.subr.bf16.mxu0 0
      %1191 = vmatpush1.bf16.xpose.msra.mxu0 0
      %1192 = vmatprep.subr.bf16.mxu0 0
      %1193 = vmatpush1.bf16.xpose.msra.mxu0 0
      %1194 = vmatprep.subr.bf16.mxu0 0
      %1195 = vmatpush1.bf16.xpose.msra.mxu0 0
      %1196 = vmatprep.subr.bf16.mxu0 0
      %1197 = vmatpush1.bf16.xpose.msra.mxu0 %v1180
      %1198 = vmatprep.subr.bf16.mxu0 0
      %1199 = vmatpush2.bf16.xpose.msra.mxu0 0
      %1200 = vmatprep.subr.bf16.mxu0 0
      %1201 = vmatpush2.bf16.xpose.msra.mxu0 0
      %1202 = vmatprep.subr.bf16.mxu0 0
      %1203 = vmatpush2.bf16.xpose.msra.mxu0 0
      %1204 = vmatprep.subr.bf16.mxu0 0
      %1205 = vmatpush2.bf16.xpose.msra.mxu0 0
      %1206 = vmatprep.subr.bf16.mxu0 0
      %1207 = vmatpush2.bf16.xpose.msra.mxu0 0
      %1208 = vmatprep.subr.bf16.mxu0 0
      %1209 = vmatpush2.bf16.xpose.msra.mxu0 0
      %1210 = vmatprep.subr.bf16.mxu0 0
      %1211 = vmatpush2.bf16.xpose.msra.mxu0 0
      %1212 = vmatprep.subr.bf16.mxu0 0
      %1213 = vmatpush2.bf16.xpose.msra.mxu0 0
      %1214 = vmatprep.mubr.bf16.mxu0 0
      %1215 = vmatmul.mubr.bf16.gmra.mxu0 %v1177
      %v1216 = vpop.f32.mrf.mxu0
      %v1217 = vadd.f32 0.0, %v1216
      %v1218 = vpop.f32.mrf.mxu0
      %v1219 = vpop.f32.mrf.mxu0
      %v1220 = vpop.f32.mrf.mxu0
      %1221 = vdwg.mxu0
      %1223 = vrot.lane.b32.xlu0 %v1069, 96
      %v1224 = vpop.permute.xlu0 %1223
      %v1226 = vsel %vm1077, %v1069, 0
      %v1229 = vsel %vm1077, %v1224, 0
      %1231 = vmatprep.subr.bf16.mxu0 0
      %1232 = vmatpush1.bf16.xpose.msra.mxu0 0
      %1233 = vmatprep.subr.bf16.mxu0 0
      %1234 = vmatpush1.bf16.xpose.msra.mxu0 0
      %1235 = vmatprep.subr.bf16.mxu0 0
      %1236 = vmatpush1.bf16.xpose.msra.mxu0 0
      %1237 = vmatprep.subr.bf16.mxu0 0
      %1238 = vmatpush1.bf16.xpose.msra.mxu0 0
      %1239 = vmatprep.subr.bf16.mxu0 0
      %1240 = vmatpush1.bf16.xpose.msra.mxu0 0
      %1241 = vmatprep.subr.bf16.mxu0 0
      %1242 = vmatpush1.bf16.xpose.msra.mxu0 0
      %1243 = vmatprep.subr.bf16.mxu0 0
      %1244 = vmatpush1.bf16.xpose.msra.mxu0 0
      %1245 = vmatprep.subr.bf16.mxu0 0
      %1246 = vmatpush1.bf16.xpose.msra.mxu0 %v1229
      %1247 = vmatprep.subr.bf16.mxu0 0
      %1248 = vmatpush2.bf16.xpose.msra.mxu0 0
      %1249 = vmatprep.subr.bf16.mxu0 0
      %1250 = vmatpush2.bf16.xpose.msra.mxu0 0
      %1251 = vmatprep.subr.bf16.mxu0 0
      %1252 = vmatpush2.bf16.xpose.msra.mxu0 0
      %1253 = vmatprep.subr.bf16.mxu0 0
      %1254 = vmatpush2.bf16.xpose.msra.mxu0 0
      %1255 = vmatprep.subr.bf16.mxu0 0
      %1256 = vmatpush2.bf16.xpose.msra.mxu0 0
      %1257 = vmatprep.subr.bf16.mxu0 0
      %1258 = vmatpush2.bf16.xpose.msra.mxu0 0
      %1259 = vmatprep.subr.bf16.mxu0 0
      %1260 = vmatpush2.bf16.xpose.msra.mxu0 0
      %1261 = vmatprep.subr.bf16.mxu0 0
      %1262 = vmatpush2.bf16.xpose.msra.mxu0 0
      %1263 = vmatprep.mubr.bf16.mxu0 0
      %1264 = vmatmul.mubr.bf16.gmra.mxu0 %v1226
      %v1265 = vpop.f32.mrf.mxu0
      %v1266 = vadd.f32 0.0, %v1265
      %v1267 = vpop.f32.mrf.mxu0
      %v1268 = vpop.f32.mrf.mxu0
      %v1269 = vpop.f32.mrf.mxu0
      %1270 = vdwg.mxu0
      %1272 = vrot.lane.b32.xlu0 %v1070, 96
      %v1273 = vpop.permute.xlu0 %1272
      %v1275 = vsel %vm1077, %v1070, 0
      %v1278 = vsel %vm1077, %v1273, 0
      %1280 = vmatprep.subr.bf16.mxu0 0
      %1281 = vmatpush1.bf16.xpose.msra.mxu0 0
      %1282 = vmatprep.subr.bf16.mxu0 0
      %1283 = vmatpush1.bf16.xpose.msra.mxu0 0
      %1284 = vmatprep.subr.bf16.mxu0 0
      %1285 = vmatpush1.bf16.xpose.msra.mxu0 0
      %1286 = vmatprep.subr.bf16.mxu0 0
      %1287 = vmatpush1.bf16.xpose.msra.mxu0 0
      %1288 = vmatprep.subr.bf16.mxu0 0
      %1289 = vmatpush1.bf16.xpose.msra.mxu0 0
      %1290 = vmatprep.subr.bf16.mxu0 0
      %1291 = vmatpush1.bf16.xpose.msra.mxu0 0
      %1292 = vmatprep.subr.bf16.mxu0 0
      %1293 = vmatpush1.bf16.xpose.msra.mxu0 0
      %1294 = vmatprep.subr.bf16.mxu0 0
      %1295 = vmatpush1.bf16.xpose.msra.mxu0 %v1278
      %1296 = vmatprep.subr.bf16.mxu0 0
      %1297 = vmatpush2.bf16.xpose.msra.mxu0 0
      %1298 = vmatprep.subr.bf16.mxu0 0
      %1299 = vmatpush2.bf16.xpose.msra.mxu0 0
      %1300 = vmatprep.subr.bf16.mxu0 0
      %1301 = vmatpush2.bf16.xpose.msra.mxu0 0
      %1302 = vmatprep.subr.bf16.mxu0 0
      %1303 = vmatpush2.bf16.xpose.msra.mxu0 0
      %1304 = vmatprep.subr.bf16.mxu0 0
      %1305 = vmatpush2.bf16.xpose.msra.mxu0 0
      %1306 = vmatprep.subr.bf16.mxu0 0
      %1307 = vmatpush2.bf16.xpose.msra.mxu0 0
      %1308 = vmatprep.subr.bf16.mxu0 0
      %1309 = vmatpush2.bf16.xpose.msra.mxu0 0
      %1310 = vmatprep.subr.bf16.mxu0 0
      %1311 = vmatpush2.bf16.xpose.msra.mxu0 0
      %1312 = vmatprep.mubr.bf16.mxu0 0
      %1313 = vmatmul.mubr.bf16.gmra.mxu0 %v1275
      %v1314 = vpop.f32.mrf.mxu0
      %v1315 = vadd.f32 0.0, %v1314
      %v1316 = vpop.f32.mrf.mxu0
      %v1317 = vpop.f32.mrf.mxu0
      %v1318 = vpop.f32.mrf.mxu0
      %1319 = vdwg.mxu0
      %1321 = vrot.lane.b32.xlu0 %v1071, 96
      %v1322 = vpop.permute.xlu0 %1321
      %v1324 = vsel %vm1077, %v1071, 0
      %v1327 = vsel %vm1077, %v1322, 0
      %1329 = vmatprep.subr.bf16.mxu0 0
      %1330 = vmatpush1.bf16.xpose.msra.mxu0 0
      %1331 = vmatprep.subr.bf16.mxu0 0
      %1332 = vmatpush1.bf16.xpose.msra.mxu0 0
      %1333 = vmatprep.subr.bf16.mxu0 0
      %1334 = vmatpush1.bf16.xpose.msra.mxu0 0
      %1335 = vmatprep.subr.bf16.mxu0 0
      %1336 = vmatpush1.bf16.xpose.msra.mxu0 0
      %1337 = vmatprep.subr.bf16.mxu0 0
      %1338 = vmatpush1.bf16.xpose.msra.mxu0 0
      %1339 = vmatprep.subr.bf16.mxu0 0
      %1340 = vmatpush1.bf16.xpose.msra.mxu0 0
      %1341 = vmatprep.subr.bf16.mxu0 0
      %1342 = vmatpush1.bf16.xpose.msra.mxu0 0
      %1343 = vmatprep.subr.bf16.mxu0 0
      %1344 = vmatpush1.bf16.xpose.msra.mxu0 %v1327
      %1345 = vmatprep.subr.bf16.mxu0 0
      %1346 = vmatpush2.bf16.xpose.msra.mxu0 0
      %1347 = vmatprep.subr.bf16.mxu0 0
      %1348 = vmatpush2.bf16.xpose.msra.mxu0 0
      %1349 = vmatprep.subr.bf16.mxu0 0
      %1350 = vmatpush2.bf16.xpose.msra.mxu0 0
      %1351 = vmatprep.subr.bf16.mxu0 0
      %1352 = vmatpush2.bf16.xpose.msra.mxu0 0
      %1353 = vmatprep.subr.bf16.mxu0 0
      %1354 = vmatpush2.bf16.xpose.msra.mxu0 0
      %1355 = vmatprep.subr.bf16.mxu0 0
      %1356 = vmatpush2.bf16.xpose.msra.mxu0 0
      %1357 = vmatprep.subr.bf16.mxu0 0
      %1358 = vmatpush2.bf16.xpose.msra.mxu0 0
      %1359 = vmatprep.subr.bf16.mxu0 0
      %1360 = vmatpush2.bf16.xpose.msra.mxu0 0
      %1361 = vmatprep.mubr.bf16.mxu0 0
      %1362 = vmatmul.mubr.bf16.gmra.mxu0 %v1324
      %v1363 = vpop.f32.mrf.mxu0
      %v1364 = vadd.f32 0.0, %v1363
      %v1365 = vpop.f32.mrf.mxu0
      %v1366 = vpop.f32.mrf.mxu0
      %v1367 = vpop.f32.mrf.mxu0
      %1368 = vdwg.mxu0
      %1370 = vrot.lane.b32.xlu0 %v1072, 96
      %v1371 = vpop.permute.xlu0 %1370
      %v1373 = vsel %vm1077, %v1072, 0
      %v1376 = vsel %vm1077, %v1371, 0
      %1378 = vmatprep.subr.bf16.mxu0 0
      %1379 = vmatpush1.bf16.xpose.msra.mxu0 0
      %1380 = vmatprep.subr.bf16.mxu0 0
      %1381 = vmatpush1.bf16.xpose.msra.mxu0 0
      %1382 = vmatprep.subr.bf16.mxu0 0
      %1383 = vmatpush1.bf16.xpose.msra.mxu0 0
      %1384 = vmatprep.subr.bf16.mxu0 0
      %1385 = vmatpush1.bf16.xpose.msra.mxu0 0
      %1386 = vmatprep.subr.bf16.mxu0 0
      %1387 = vmatpush1.bf16.xpose.msra.mxu0 0
      %1388 = vmatprep.subr.bf16.mxu0 0
      %1389 = vmatpush1.bf16.xpose.msra.mxu0 0
      %1390 = vmatprep.subr.bf16.mxu0 0
      %1391 = vmatpush1.bf16.xpose.msra.mxu0 0
      %1392 = vmatprep.subr.bf16.mxu0 0
      %1393 = vmatpush1.bf16.xpose.msra.mxu0 %v1376
      %1394 = vmatprep.subr.bf16.mxu0 0
      %1395 = vmatpush2.bf16.xpose.msra.mxu0 0
      %1396 = vmatprep.subr.bf16.mxu0 0
      %1397 = vmatpush2.bf16.xpose.msra.mxu0 0
      %1398 = vmatprep.subr.bf16.mxu0 0
      %1399 = vmatpush2.bf16.xpose.msra.mxu0 0
      %1400 = vmatprep.subr.bf16.mxu0 0
      %1401 = vmatpush2.bf16.xpose.msra.mxu0 0
      %1402 = vmatprep.subr.bf16.mxu0 0
      %1403 = vmatpush2.bf16.xpose.msra.mxu0 0
      %1404 = vmatprep.subr.bf16.mxu0 0
      %1405 = vmatpush2.bf16.xpose.msra.mxu0 0
      %1406 = vmatprep.subr.bf16.mxu0 0
      %1407 = vmatpush2.bf16.xpose.msra.mxu0 0
      %1408 = vmatprep.subr.bf16.mxu0 0
      %1409 = vmatpush2.bf16.xpose.msra.mxu0 0
      %1410 = vmatprep.mubr.bf16.mxu0 0
      %1411 = vmatmul.mubr.bf16.gmra.mxu0 %v1373
      %v1412 = vpop.f32.mrf.mxu0
      %v1413 = vadd.f32 0.0, %v1412
      %v1414 = vpop.f32.mrf.mxu0
      %v1415 = vpop.f32.mrf.mxu0
      %v1416 = vpop.f32.mrf.mxu0
      %1417 = vdwg.mxu0
      %1419 = vrot.lane.b32.xlu0 %v1073, 96
      %v1420 = vpop.permute.xlu0 %1419
      %v1422 = vsel %vm1077, %v1073, 0
      %v1425 = vsel %vm1077, %v1420, 0
      %1427 = vmatprep.subr.bf16.mxu0 0
      %1428 = vmatpush1.bf16.xpose.msra.mxu0 0
      %1429 = vmatprep.subr.bf16.mxu0 0
      %1430 = vmatpush1.bf16.xpose.msra.mxu0 0
      %1431 = vmatprep.subr.bf16.mxu0 0
      %1432 = vmatpush1.bf16.xpose.msra.mxu0 0
      %1433 = vmatprep.subr.bf16.mxu0 0
      %1434 = vmatpush1.bf16.xpose.msra.mxu0 0
      %1435 = vmatprep.subr.bf16.mxu0 0
      %1436 = vmatpush1.bf16.xpose.msra.mxu0 0
      %1437 = vmatprep.subr.bf16.mxu0 0
      %1438 = vmatpush1.bf16.xpose.msra.mxu0 0
      %1439 = vmatprep.subr.bf16.mxu0 0
      %1440 = vmatpush1.bf16.xpose.msra.mxu0 0
      %1441 = vmatprep.subr.bf16.mxu0 0
      %1442 = vmatpush1.bf16.xpose.msra.mxu0 %v1425
      %1443 = vmatprep.subr.bf16.mxu0 0
      %1444 = vmatpush2.bf16.xpose.msra.mxu0 0
      %1445 = vmatprep.subr.bf16.mxu0 0
      %1446 = vmatpush2.bf16.xpose.msra.mxu0 0
      %1447 = vmatprep.subr.bf16.mxu0 0
      %1448 = vmatpush2.bf16.xpose.msra.mxu0 0
      %1449 = vmatprep.subr.bf16.mxu0 0
      %1450 = vmatpush2.bf16.xpose.msra.mxu0 0
      %1451 = vmatprep.subr.bf16.mxu0 0
      %1452 = vmatpush2.bf16.xpose.msra.mxu0 0
      %1453 = vmatprep.subr.bf16.mxu0 0
      %1454 = vmatpush2.bf16.xpose.msra.mxu0 0
      %1455 = vmatprep.subr.bf16.mxu0 0
      %1456 = vmatpush2.bf16.xpose.msra.mxu0 0
      %1457 = vmatprep.subr.bf16.mxu0 0
      %1458 = vmatpush2.bf16.xpose.msra.mxu0 0
      %1459 = vmatprep.mubr.bf16.mxu0 0
      %1460 = vmatmul.mubr.bf16.gmra.mxu0 %v1422
      %v1461 = vpop.f32.mrf.mxu0
      %v1462 = vadd.f32 0.0, %v1461
      %v1463 = vpop.f32.mrf.mxu0
      %v1464 = vpop.f32.mrf.mxu0
      %v1465 = vpop.f32.mrf.mxu0
      %1466 = vdwg.mxu0
      %v1467 = vmul.f32 %v1119, 0.35355338
      %v1468 = vmul.f32 %v1168, 0.35355338
      %v1469 = vmul.f32 %v1217, 0.35355338
      %v1470 = vmul.f32 %v1266, 0.35355338
      %v1471 = vmul.f32 %v1315, 0.35355338
      %v1472 = vmul.f32 %v1364, 0.35355338
      %v1473 = vmul.f32 %v1413, 0.35355338
      %v1474 = vmul.f32 %v1462, 0.35355338
      %v1475 = vadd.f32 %v1467, %v794
      %v1476 = vadd.f32 %v1468, %v795
      %v1477 = vadd.f32 %v1469, %v796
      %v1478 = vadd.f32 %v1470, %v797
      %v1479 = vadd.f32 %v1471, %v798
      %v1480 = vadd.f32 %v1472, %v799
      %v1481 = vadd.f32 %v1473, %v800
      %v1482 = vadd.f32 %v1474, %v801
      %v1483 = vsel %vm1077, %v1475, -inf
      %1484 = vmax.xlane.f32.xlu0 %v1483
      %v1485 = vpop.xlane.xlu0 %1484
      %v1486 = vsel %vm1077, %v1476, -inf
      %1487 = vmax.xlane.f32.xlu0 %v1486
      %v1488 = vpop.xlane.xlu0 %1487
      %v1489 = vsel %vm1077, %v1477, -inf
      %1490 = vmax.xlane.f32.xlu0 %v1489
      %v1491 = vpop.xlane.xlu0 %1490
      %v1492 = vsel %vm1077, %v1478, -inf
      %1493 = vmax.xlane.f32.xlu0 %v1492
      %v1494 = vpop.xlane.xlu0 %1493
      %v1495 = vsel %vm1077, %v1479, -inf
      %1496 = vmax.xlane.f32.xlu0 %v1495
      %v1497 = vpop.xlane.xlu0 %1496
      %v1498 = vsel %vm1077, %v1480, -inf
      %1499 = vmax.xlane.f32.xlu0 %v1498
      %v1500 = vpop.xlane.xlu0 %1499
      %v1501 = vsel %vm1077, %v1481, -inf
      %1502 = vmax.xlane.f32.xlu0 %v1501
      %v1503 = vpop.xlane.xlu0 %1502
      %v1504 = vsel %vm1077, %v1482, -inf
      %1505 = vmax.xlane.f32.xlu0 %v1504
      %v1506 = vpop.xlane.xlu0 %1505
      %v1507 = vsub.f32 %v1475, %v1485
      %v1508 = vsub.f32 %v1476, %v1488
      %v1509 = vsub.f32 %v1477, %v1491
      %v1510 = vsub.f32 %v1478, %v1494
      %v1511 = vsub.f32 %v1479, %v1497
      %v1512 = vsub.f32 %v1480, %v1500
      %v1513 = vsub.f32 %v1481, %v1503
      %v1514 = vsub.f32 %v1482, %v1506
      %v1515 = vmul.f32 %v1507, 1.442695
      %v1516 = vpow.pop %v1515
      %v1517 = vmul.f32 %v1508, 1.442695
      %v1518 = vpow.pop %v1517
      %v1519 = vmul.f32 %v1509, 1.442695
      %v1520 = vpow.pop %v1519
      %v1521 = vmul.f32 %v1510, 1.442695
      %v1522 = vpow.pop %v1521
      %v1523 = vmul.f32 %v1511, 1.442695
      %v1524 = vpow.pop %v1523
      %v1525 = vmul.f32 %v1512, 1.442695
      %v1526 = vpow.pop %v1525
      %v1527 = vmul.f32 %v1513, 1.442695
      %v1528 = vpow.pop %v1527
      %v1529 = vmul.f32 %v1514, 1.442695
      %v1530 = vpow.pop %v1529
      %v1531 = vsel %vm1077, %v1516, 0.0
      %1532 = vadd.xlane.f32.xlu0 %v1531
      %v1533 = vpop.xlane.xlu0 %1532
      %v1534 = vsel %vm1077, %v1518, 0.0
      %1535 = vadd.xlane.f32.xlu0 %v1534
      %v1536 = vpop.xlane.xlu0 %1535
      %v1537 = vsel %vm1077, %v1520, 0.0
      %1538 = vadd.xlane.f32.xlu0 %v1537
      %v1539 = vpop.xlane.xlu0 %1538
      %v1540 = vsel %vm1077, %v1522, 0.0
      %1541 = vadd.xlane.f32.xlu0 %v1540
      %v1542 = vpop.xlane.xlu0 %1541
      %v1543 = vsel %vm1077, %v1524, 0.0
      %1544 = vadd.xlane.f32.xlu0 %v1543
      %v1545 = vpop.xlane.xlu0 %1544
      %v1546 = vsel %vm1077, %v1526, 0.0
      %1547 = vadd.xlane.f32.xlu0 %v1546
      %v1548 = vpop.xlane.xlu0 %1547
      %v1549 = vsel %vm1077, %v1528, 0.0
      %1550 = vadd.xlane.f32.xlu0 %v1549
      %v1551 = vpop.xlane.xlu0 %1550
      %v1552 = vsel %vm1077, %v1530, 0.0
      %1553 = vadd.xlane.f32.xlu0 %v1552
      %v1554 = vpop.xlane.xlu0 %1553
      %v1555 = vrcp.pop %v1533
      %v1556 = vrcp.pop %v1536
      %v1557 = vrcp.pop %v1539
      %v1558 = vrcp.pop %v1542
      %v1559 = vrcp.pop %v1545
      %v1560 = vrcp.pop %v1548
      %v1561 = vrcp.pop %v1551
      %v1562 = vrcp.pop %v1554
      %v1563 = vmul.f32 %v1516, %v1555
      %v1564 = vmul.f32 %v1518, %v1556
      %v1565 = vmul.f32 %v1520, %v1557
      %v1566 = vmul.f32 %v1522, %v1558
      %v1567 = vmul.f32 %v1524, %v1559
      %v1568 = vmul.f32 %v1526, %v1560
      %v1569 = vmul.f32 %v1528, %v1561
      %v1570 = vmul.f32 %v1530, %v1562
      %v1571 = vpack.c.bf16 %v1563, %v1563
      %v1572 = vpack.c.bf16 %v1564, %v1564
      %v1573 = vpack.c.bf16 %v1565, %v1565
      %v1574 = vpack.c.bf16 %v1566, %v1566
      %v1575 = vpack.c.bf16 %v1567, %v1567
      %v1576 = vpack.c.bf16 %v1568, %v1568
      %v1577 = vpack.c.bf16 %v1569, %v1569
      %v1578 = vpack.c.bf16 %v1570, %v1570
      %1579 = vrot.lane.b32.xlu0 %v1066, 64
      %v1580 = vpop.permute.xlu0 %1579
      %v1582 = vsel %vm1077, %v1571, 0
      %vm1584 = vcmask 1043456
      %v1586 = vsel %vm1584, %v1580, 0
      %1588 = vmatprep.subr.bf16.mxu0 0
      %1589 = vmatpush1.bf16.msra.mxu0 0
      %1590 = vmatprep.subr.bf16.mxu0 0
      %1591 = vmatpush1.bf16.msra.mxu0 0
      %1592 = vmatprep.subr.bf16.mxu0 0
      %1593 = vmatpush1.bf16.msra.mxu0 0
      %1594 = vmatprep.subr.bf16.mxu0 0
      %1595 = vmatpush1.bf16.msra.mxu0 0
      %1596 = vmatprep.subr.bf16.mxu0 0
      %1597 = vmatpush1.bf16.msra.mxu0 0
      %1598 = vmatprep.subr.bf16.mxu0 0
      %1599 = vmatpush1.bf16.msra.mxu0 0
      %1600 = vmatprep.subr.bf16.mxu0 0
      %1601 = vmatpush1.bf16.msra.mxu0 0
      %1602 = vmatprep.subr.bf16.mxu0 0
      %1603 = vmatpush1.bf16.msra.mxu0 %v1586
      %1604 = vmatprep.subr.bf16.mxu0 0
      %1605 = vmatpush2.bf16.msra.mxu0 0
      %1606 = vmatprep.subr.bf16.mxu0 0
      %1607 = vmatpush2.bf16.msra.mxu0 0
      %1608 = vmatprep.subr.bf16.mxu0 0
      %1609 = vmatpush2.bf16.msra.mxu0 0
      %1610 = vmatprep.subr.bf16.mxu0 0
      %1611 = vmatpush2.bf16.msra.mxu0 0
      %1612 = vmatprep.subr.bf16.mxu0 0
      %1613 = vmatpush2.bf16.msra.mxu0 0
      %1614 = vmatprep.subr.bf16.mxu0 0
      %1615 = vmatpush2.bf16.msra.mxu0 0
      %1616 = vmatprep.subr.bf16.mxu0 0
      %1617 = vmatpush2.bf16.msra.mxu0 0
      %1618 = vmatprep.subr.bf16.mxu0 0
      %1619 = vmatpush2.bf16.msra.mxu0 0
      %1620 = vmatprep.mubr.bf16.mxu0 0
      %1621 = vmatmul.mubr.bf16.gmra.mxu0 %v1582
      %v1622 = vpop.f32.mrf.mxu0
      %v1623 = vadd.f32 0.0, %v1622
      %v1624 = vpop.f32.mrf.mxu0
      %v1625 = vpop.f32.mrf.mxu0
      %v1626 = vpop.f32.mrf.mxu0
      %1627 = vdwg.mxu0
      %1628 = vrot.lane.b32.xlu0 %v1067, 64
      %v1629 = vpop.permute.xlu0 %1628
      %v1631 = vsel %vm1077, %v1572, 0
      %v1634 = vsel %vm1584, %v1629, 0
      %1636 = vmatprep.subr.bf16.mxu0 0
      %1637 = vmatpush1.bf16.msra.mxu0 0
      %1638 = vmatprep.subr.bf16.mxu0 0
      %1639 = vmatpush1.bf16.msra.mxu0 0
      %1640 = vmatprep.subr.bf16.mxu0 0
      %1641 = vmatpush1.bf16.msra.mxu0 0
      %1642 = vmatprep.subr.bf16.mxu0 0
      %1643 = vmatpush1.bf16.msra.mxu0 0
      %1644 = vmatprep.subr.bf16.mxu0 0
      %1645 = vmatpush1.bf16.msra.mxu0 0
      %1646 = vmatprep.subr.bf16.mxu0 0
      %1647 = vmatpush1.bf16.msra.mxu0 0
      %1648 = vmatprep.subr.bf16.mxu0 0
      %1649 = vmatpush1.bf16.msra.mxu0 0
      %1650 = vmatprep.subr.bf16.mxu0 0
      %1651 = vmatpush1.bf16.msra.mxu0 %v1634
      %1652 = vmatprep.subr.bf16.mxu0 0
      %1653 = vmatpush2.bf16.msra.mxu0 0
      %1654 = vmatprep.subr.bf16.mxu0 0
      %1655 = vmatpush2.bf16.msra.mxu0 0
      %1656 = vmatprep.subr.bf16.mxu0 0
      %1657 = vmatpush2.bf16.msra.mxu0 0
      %1658 = vmatprep.subr.bf16.mxu0 0
      %1659 = vmatpush2.bf16.msra.mxu0 0
      %1660 = vmatprep.subr.bf16.mxu0 0
      %1661 = vmatpush2.bf16.msra.mxu0 0
      %1662 = vmatprep.subr.bf16.mxu0 0
      %1663 = vmatpush2.bf16.msra.mxu0 0
      %1664 = vmatprep.subr.bf16.mxu0 0
      %1665 = vmatpush2.bf16.msra.mxu0 0
      %1666 = vmatprep.subr.bf16.mxu0 0
      %1667 = vmatpush2.bf16.msra.mxu0 0
      %1668 = vmatprep.mubr.bf16.mxu0 0
      %1669 = vmatmul.mubr.bf16.gmra.mxu0 %v1631
      %v1670 = vpop.f32.mrf.mxu0
      %v1671 = vadd.f32 0.0, %v1670
      %v1672 = vpop.f32.mrf.mxu0
      %v1673 = vpop.f32.mrf.mxu0
      %v1674 = vpop.f32.mrf.mxu0
      %1675 = vdwg.mxu0
      %1676 = vrot.lane.b32.xlu0 %v1068, 64
      %v1677 = vpop.permute.xlu0 %1676
      %v1679 = vsel %vm1077, %v1573, 0
      %v1682 = vsel %vm1584, %v1677, 0
      %1684 = vmatprep.subr.bf16.mxu0 0
      %1685 = vmatpush1.bf16.msra.mxu0 0
      %1686 = vmatprep.subr.bf16.mxu0 0
      %1687 = vmatpush1.bf16.msra.mxu0 0
      %1688 = vmatprep.subr.bf16.mxu0 0
      %1689 = vmatpush1.bf16.msra.mxu0 0
      %1690 = vmatprep.subr.bf16.mxu0 0
      %1691 = vmatpush1.bf16.msra.mxu0 0
      %1692 = vmatprep.subr.bf16.mxu0 0
      %1693 = vmatpush1.bf16.msra.mxu0 0
      %1694 = vmatprep.subr.bf16.mxu0 0
      %1695 = vmatpush1.bf16.msra.mxu0 0
      %1696 = vmatprep.subr.bf16.mxu0 0
      %1697 = vmatpush1.bf16.msra.mxu0 0
      %1698 = vmatprep.subr.bf16.mxu0 0
      %1699 = vmatpush1.bf16.msra.mxu0 %v1682
      %1700 = vmatprep.subr.bf16.mxu0 0
      %1701 = vmatpush2.bf16.msra.mxu0 0
      %1702 = vmatprep.subr.bf16.mxu0 0
      %1703 = vmatpush2.bf16.msra.mxu0 0
      %1704 = vmatprep.subr.bf16.mxu0 0
      %1705 = vmatpush2.bf16.msra.mxu0 0
      %1706 = vmatprep.subr.bf16.mxu0 0
      %1707 = vmatpush2.bf16.msra.mxu0 0
      %1708 = vmatprep.subr.bf16.mxu0 0
      %1709 = vmatpush2.bf16.msra.mxu0 0
      %1710 = vmatprep.subr.bf16.mxu0 0
      %1711 = vmatpush2.bf16.msra.mxu0 0
      %1712 = vmatprep.subr.bf16.mxu0 0
      %1713 = vmatpush2.bf16.msra.mxu0 0
      %1714 = vmatprep.subr.bf16.mxu0 0
      %1715 = vmatpush2.bf16.msra.mxu0 0
      %1716 = vmatprep.mubr.bf16.mxu0 0
      %1717 = vmatmul.mubr.bf16.gmra.mxu0 %v1679
      %v1718 = vpop.f32.mrf.mxu0
      %v1719 = vadd.f32 0.0, %v1718
      %v1720 = vpop.f32.mrf.mxu0
      %v1721 = vpop.f32.mrf.mxu0
      %v1722 = vpop.f32.mrf.mxu0
      %1723 = vdwg.mxu0
      %1724 = vrot.lane.b32.xlu0 %v1069, 64
      %v1725 = vpop.permute.xlu0 %1724
      %v1727 = vsel %vm1077, %v1574, 0
      %v1730 = vsel %vm1584, %v1725, 0
      %1732 = vmatprep.subr.bf16.mxu0 0
      %1733 = vmatpush1.bf16.msra.mxu0 0
      %1734 = vmatprep.subr.bf16.mxu0 0
      %1735 = vmatpush1.bf16.msra.mxu0 0
      %1736 = vmatprep.subr.bf16.mxu0 0
      %1737 = vmatpush1.bf16.msra.mxu0 0
      %1738 = vmatprep.subr.bf16.mxu0 0
      %1739 = vmatpush1.bf16.msra.mxu0 0
      %1740 = vmatprep.subr.bf16.mxu0 0
      %1741 = vmatpush1.bf16.msra.mxu0 0
      %1742 = vmatprep.subr.bf16.mxu0 0
      %1743 = vmatpush1.bf16.msra.mxu0 0
      %1744 = vmatprep.subr.bf16.mxu0 0
      %1745 = vmatpush1.bf16.msra.mxu0 0
      %1746 = vmatprep.subr.bf16.mxu0 0
      %1747 = vmatpush1.bf16.msra.mxu0 %v1730
      %1748 = vmatprep.subr.bf16.mxu0 0
      %1749 = vmatpush2.bf16.msra.mxu0 0
      %1750 = vmatprep.subr.bf16.mxu0 0
      %1751 = vmatpush2.bf16.msra.mxu0 0
      %1752 = vmatprep.subr.bf16.mxu0 0
      %1753 = vmatpush2.bf16.msra.mxu0 0
      %1754 = vmatprep.subr.bf16.mxu0 0
      %1755 = vmatpush2.bf16.msra.mxu0 0
      %1756 = vmatprep.subr.bf16.mxu0 0
      %1757 = vmatpush2.bf16.msra.mxu0 0
      %1758 = vmatprep.subr.bf16.mxu0 0
      %1759 = vmatpush2.bf16.msra.mxu0 0
      %1760 = vmatprep.subr.bf16.mxu0 0
      %1761 = vmatpush2.bf16.msra.mxu0 0
      %1762 = vmatprep.subr.bf16.mxu0 0
      %1763 = vmatpush2.bf16.msra.mxu0 0
      %1764 = vmatprep.mubr.bf16.mxu0 0
      %1765 = vmatmul.mubr.bf16.gmra.mxu0 %v1727
      %v1766 = vpop.f32.mrf.mxu0
      %v1767 = vadd.f32 0.0, %v1766
      %v1768 = vpop.f32.mrf.mxu0
      %v1769 = vpop.f32.mrf.mxu0
      %v1770 = vpop.f32.mrf.mxu0
      %1771 = vdwg.mxu0
      %1772 = vrot.lane.b32.xlu0 %v1070, 64
      %v1773 = vpop.permute.xlu0 %1772
      %v1775 = vsel %vm1077, %v1575, 0
      %v1778 = vsel %vm1584, %v1773, 0
      %1780 = vmatprep.subr.bf16.mxu0 0
      %1781 = vmatpush1.bf16.msra.mxu0 0
      %1782 = vmatprep.subr.bf16.mxu0 0
      %1783 = vmatpush1.bf16.msra.mxu0 0
      %1784 = vmatprep.subr.bf16.mxu0 0
      %1785 = vmatpush1.bf16.msra.mxu0 0
      %1786 = vmatprep.subr.bf16.mxu0 0
      %1787 = vmatpush1.bf16.msra.mxu0 0
      %1788 = vmatprep.subr.bf16.mxu0 0
      %1789 = vmatpush1.bf16.msra.mxu0 0
      %1790 = vmatprep.subr.bf16.mxu0 0
      %1791 = vmatpush1.bf16.msra.mxu0 0
      %1792 = vmatprep.subr.bf16.mxu0 0
      %1793 = vmatpush1.bf16.msra.mxu0 0
      %1794 = vmatprep.subr.bf16.mxu0 0
      %1795 = vmatpush1.bf16.msra.mxu0 %v1778
      %1796 = vmatprep.subr.bf16.mxu0 0
      %1797 = vmatpush2.bf16.msra.mxu0 0
      %1798 = vmatprep.subr.bf16.mxu0 0
      %1799 = vmatpush2.bf16.msra.mxu0 0
      %1800 = vmatprep.subr.bf16.mxu0 0
      %1801 = vmatpush2.bf16.msra.mxu0 0
      %1802 = vmatprep.subr.bf16.mxu0 0
      %1803 = vmatpush2.bf16.msra.mxu0 0
      %1804 = vmatprep.subr.bf16.mxu0 0
      %1805 = vmatpush2.bf16.msra.mxu0 0
      %1806 = vmatprep.subr.bf16.mxu0 0
      %1807 = vmatpush2.bf16.msra.mxu0 0
      %1808 = vmatprep.subr.bf16.mxu0 0
      %1809 = vmatpush2.bf16.msra.mxu0 0
      %1810 = vmatprep.subr.bf16.mxu0 0
      %1811 = vmatpush2.bf16.msra.mxu0 0
      %1812 = vmatprep.mubr.bf16.mxu0 0
      %1813 = vmatmul.mubr.bf16.gmra.mxu0 %v1775
      %v1814 = vpop.f32.mrf.mxu0
      %v1815 = vadd.f32 0.0, %v1814
      %v1816 = vpop.f32.mrf.mxu0
      %v1817 = vpop.f32.mrf.mxu0
      %v1818 = vpop.f32.mrf.mxu0
      %1819 = vdwg.mxu0
      %1820 = vrot.lane.b32.xlu0 %v1071, 64
      %v1821 = vpop.permute.xlu0 %1820
      %v1823 = vsel %vm1077, %v1576, 0
      %v1826 = vsel %vm1584, %v1821, 0
      %1828 = vmatprep.subr.bf16.mxu0 0
      %1829 = vmatpush1.bf16.msra.mxu0 0
      %1830 = vmatprep.subr.bf16.mxu0 0
      %1831 = vmatpush1.bf16.msra.mxu0 0
      %1832 = vmatprep.subr.bf16.mxu0 0
      %1833 = vmatpush1.bf16.msra.mxu0 0
      %1834 = vmatprep.subr.bf16.mxu0 0
      %1835 = vmatpush1.bf16.msra.mxu0 0
      %1836 = vmatprep.subr.bf16.mxu0 0
      %1837 = vmatpush1.bf16.msra.mxu0 0
      %1838 = vmatprep.subr.bf16.mxu0 0
      %1839 = vmatpush1.bf16.msra.mxu0 0
      %1840 = vmatprep.subr.bf16.mxu0 0
      %1841 = vmatpush1.bf16.msra.mxu0 0
      %1842 = vmatprep.subr.bf16.mxu0 0
      %1843 = vmatpush1.bf16.msra.mxu0 %v1826
      %1844 = vmatprep.subr.bf16.mxu0 0
      %1845 = vmatpush2.bf16.msra.mxu0 0
      %1846 = vmatprep.subr.bf16.mxu0 0
      %1847 = vmatpush2.bf16.msra.mxu0 0
      %1848 = vmatprep.subr.bf16.mxu0 0
      %1849 = vmatpush2.bf16.msra.mxu0 0
      %1850 = vmatprep.subr.bf16.mxu0 0
      %1851 = vmatpush2.bf16.msra.mxu0 0
      %1852 = vmatprep.subr.bf16.mxu0 0
      %1853 = vmatpush2.bf16.msra.mxu0 0
      %1854 = vmatprep.subr.bf16.mxu0 0
      %1855 = vmatpush2.bf16.msra.mxu0 0
      %1856 = vmatprep.subr.bf16.mxu0 0
      %1857 = vmatpush2.bf16.msra.mxu0 0
      %1858 = vmatprep.subr.bf16.mxu0 0
      %1859 = vmatpush2.bf16.msra.mxu0 0
      %1860 = vmatprep.mubr.bf16.mxu0 0
      %1861 = vmatmul.mubr.bf16.gmra.mxu0 %v1823
      %v1862 = vpop.f32.mrf.mxu0
      %v1863 = vadd.f32 0.0, %v1862
      %v1864 = vpop.f32.mrf.mxu0
      %v1865 = vpop.f32.mrf.mxu0
      %v1866 = vpop.f32.mrf.mxu0
      %1867 = vdwg.mxu0
      %1868 = vrot.lane.b32.xlu0 %v1072, 64
      %v1869 = vpop.permute.xlu0 %1868
      %v1871 = vsel %vm1077, %v1577, 0
      %v1874 = vsel %vm1584, %v1869, 0
      %1876 = vmatprep.subr.bf16.mxu0 0
      %1877 = vmatpush1.bf16.msra.mxu0 0
      %1878 = vmatprep.subr.bf16.mxu0 0
      %1879 = vmatpush1.bf16.msra.mxu0 0
      %1880 = vmatprep.subr.bf16.mxu0 0
      %1881 = vmatpush1.bf16.msra.mxu0 0
      %1882 = vmatprep.subr.bf16.mxu0 0
      %1883 = vmatpush1.bf16.msra.mxu0 0
      %1884 = vmatprep.subr.bf16.mxu0 0
      %1885 = vmatpush1.bf16.msra.mxu0 0
      %1886 = vmatprep.subr.bf16.mxu0 0
      %1887 = vmatpush1.bf16.msra.mxu0 0
      %1888 = vmatprep.subr.bf16.mxu0 0
      %1889 = vmatpush1.bf16.msra.mxu0 0
      %1890 = vmatprep.subr.bf16.mxu0 0
      %1891 = vmatpush1.bf16.msra.mxu0 %v1874
      %1892 = vmatprep.subr.bf16.mxu0 0
      %1893 = vmatpush2.bf16.msra.mxu0 0
      %1894 = vmatprep.subr.bf16.mxu0 0
      %1895 = vmatpush2.bf16.msra.mxu0 0
      %1896 = vmatprep.subr.bf16.mxu0 0
      %1897 = vmatpush2.bf16.msra.mxu0 0
      %1898 = vmatprep.subr.bf16.mxu0 0
      %1899 = vmatpush2.bf16.msra.mxu0 0
      %1900 = vmatprep.subr.bf16.mxu0 0
      %1901 = vmatpush2.bf16.msra.mxu0 0
      %1902 = vmatprep.subr.bf16.mxu0 0
      %1903 = vmatpush2.bf16.msra.mxu0 0
      %1904 = vmatprep.subr.bf16.mxu0 0
      %1905 = vmatpush2.bf16.msra.mxu0 0
      %1906 = vmatprep.subr.bf16.mxu0 0
      %1907 = vmatpush2.bf16.msra.mxu0 0
      %1908 = vmatprep.mubr.bf16.mxu0 0
      %1909 = vmatmul.mubr.bf16.gmra.mxu0 %v1871
      %v1910 = vpop.f32.mrf.mxu0
      %v1911 = vadd.f32 0.0, %v1910
      %v1912 = vpop.f32.mrf.mxu0
      %v1913 = vpop.f32.mrf.mxu0
      %v1914 = vpop.f32.mrf.mxu0
      %1915 = vdwg.mxu0
      %1916 = vrot.lane.b32.xlu0 %v1073, 64
      %v1917 = vpop.permute.xlu0 %1916
      %v1919 = vsel %vm1077, %v1578, 0
      %v1922 = vsel %vm1584, %v1917, 0
      %1924 = vmatprep.subr.bf16.mxu0 0
      %1925 = vmatpush1.bf16.msra.mxu0 0
      %1926 = vmatprep.subr.bf16.mxu0 0
      %1927 = vmatpush1.bf16.msra.mxu0 0
      %1928 = vmatprep.subr.bf16.mxu0 0
      %1929 = vmatpush1.bf16.msra.mxu0 0
      %1930 = vmatprep.subr.bf16.mxu0 0
      %1931 = vmatpush1.bf16.msra.mxu0 0
      %1932 = vmatprep.subr.bf16.mxu0 0
      %1933 = vmatpush1.bf16.msra.mxu0 0
      %1934 = vmatprep.subr.bf16.mxu0 0
      %1935 = vmatpush1.bf16.msra.mxu0 0
      %1936 = vmatprep.subr.bf16.mxu0 0
      %1937 = vmatpush1.bf16.msra.mxu0 0
      %1938 = vmatprep.subr.bf16.mxu0 0
      %1939 = vmatpush1.bf16.msra.mxu0 %v1922
      %1940 = vmatprep.subr.bf16.mxu0 0
      %1941 = vmatpush2.bf16.msra.mxu0 0
      %1942 = vmatprep.subr.bf16.mxu0 0
      %1943 = vmatpush2.bf16.msra.mxu0 0
      %1944 = vmatprep.subr.bf16.mxu0 0
      %1945 = vmatpush2.bf16.msra.mxu0 0
      %1946 = vmatprep.subr.bf16.mxu0 0
      %1947 = vmatpush2.bf16.msra.mxu0 0
      %1948 = vmatprep.subr.bf16.mxu0 0
      %1949 = vmatpush2.bf16.msra.mxu0 0
      %1950 = vmatprep.subr.bf16.mxu0 0
      %1951 = vmatpush2.bf16.msra.mxu0 0
      %1952 = vmatprep.subr.bf16.mxu0 0
      %1953 = vmatpush2.bf16.msra.mxu0 0
      %1954 = vmatprep.subr.bf16.mxu0 0
      %1955 = vmatpush2.bf16.msra.mxu0 0
      %1956 = vmatprep.mubr.bf16.mxu0 0
      %1957 = vmatmul.mubr.bf16.gmra.mxu0 %v1919
      %v1958 = vpop.f32.mrf.mxu0
      %v1959 = vadd.f32 0.0, %v1958
      %v1960 = vpop.f32.mrf.mxu0
      %v1961 = vpop.f32.mrf.mxu0
      %v1962 = vpop.f32.mrf.mxu0
      %1963 = vdwg.mxu0
      %v1964 = vpack.c.bf16 %v1671, %v1623
      %v1965 = vpack.c.bf16 %v1767, %v1719
      %v1966 = vpack.c.bf16 %v1863, %v1815
      %v1967 = vpack.c.bf16 %v1959, %v1911
      %v1968 = vld [vmem:[%s712] sm:$0xf]
      %1969 = vrot.lane.b32.xlu0 %v1066, 120
      %v1970 = vpop.permute.xlu0 %1969
      %1971 = vrot.lane.b32.xlu0 %v1066, 88
      %v1972 = vpop.permute.xlu0 %1971
      %v1974 = vsel %vm1077, %v1970, 0
      %v1977 = vsel %vm1077, %v1972, 0
      %1979 = vmatprep.subr.bf16.mxu0 0
      %1980 = vmatpush1.bf16.xpose.msra.mxu0 0
      %1981 = vmatprep.subr.bf16.mxu0 0
      %1982 = vmatpush1.bf16.xpose.msra.mxu0 0
      %1983 = vmatprep.subr.bf16.mxu0 0
      %1984 = vmatpush1.bf16.xpose.msra.mxu0 0
      %1985 = vmatprep.subr.bf16.mxu0 0
      %1986 = vmatpush1.bf16.xpose.msra.mxu0 0
      %1987 = vmatprep.subr.bf16.mxu0 0
      %1988 = vmatpush1.bf16.xpose.msra.mxu0 0
      %1989 = vmatprep.subr.bf16.mxu0 0
      %1990 = vmatpush1.bf16.xpose.msra.mxu0 0
      %1991 = vmatprep.subr.bf16.mxu0 0
      %1992 = vmatpush1.bf16.xpose.msra.mxu0 0
      %1993 = vmatprep.subr.bf16.mxu0 0
      %1994 = vmatpush1.bf16.xpose.msra.mxu0 %v1977
      %1995 = vmatprep.subr.bf16.mxu0 0
      %1996 = vmatpush2.bf16.xpose.msra.mxu0 0
      %1997 = vmatprep.subr.bf16.mxu0 0
      %1998 = vmatpush2.bf16.xpose.msra.mxu0 0
      %1999 = vmatprep.subr.bf16.mxu0 0
      %2000 = vmatpush2.bf16.xpose.msra.mxu0 0
      %2001 = vmatprep.subr.bf16.mxu0 0
      %2002 = vmatpush2.bf16.xpose.msra.mxu0 0
      %2003 = vmatprep.subr.bf16.mxu0 0
      %2004 = vmatpush2.bf16.xpose.msra.mxu0 0
      %2005 = vmatprep.subr.bf16.mxu0 0
      %2006 = vmatpush2.bf16.xpose.msra.mxu0 0
      %2007 = vmatprep.subr.bf16.mxu0 0
      %2008 = vmatpush2.bf16.xpose.msra.mxu0 0
      %2009 = vmatprep.subr.bf16.mxu0 0
      %2010 = vmatpush2.bf16.xpose.msra.mxu0 0
      %2011 = vmatprep.mubr.bf16.mxu0 0
      %2012 = vmatmul.mubr.bf16.gmra.mxu0 %v1974
      %v2013 = vpop.f32.mrf.mxu0
      %v2014 = vadd.f32 0.0, %v2013
      %v2015 = vpop.f32.mrf.mxu0
      %v2016 = vpop.f32.mrf.mxu0
      %v2017 = vpop.f32.mrf.mxu0
      %2018 = vdwg.mxu0
      %2019 = vrot.lane.b32.xlu0 %v1067, 120
      %v2020 = vpop.permute.xlu0 %2019
      %2021 = vrot.lane.b32.xlu0 %v1067, 88
      %v2022 = vpop.permute.xlu0 %2021
      %v2024 = vsel %vm1077, %v2020, 0
      %v2027 = vsel %vm1077, %v2022, 0
      %2029 = vmatprep.subr.bf16.mxu0 0
      %2030 = vmatpush1.bf16.xpose.msra.mxu0 0
      %2031 = vmatprep.subr.bf16.mxu0 0
      %2032 = vmatpush1.bf16.xpose.msra.mxu0 0
      %2033 = vmatprep.subr.bf16.mxu0 0
      %2034 = vmatpush1.bf16.xpose.msra.mxu0 0
      %2035 = vmatprep.subr.bf16.mxu0 0
      %2036 = vmatpush1.bf16.xpose.msra.mxu0 0
      %2037 = vmatprep.subr.bf16.mxu0 0
      %2038 = vmatpush1.bf16.xpose.msra.mxu0 0
      %2039 = vmatprep.subr.bf16.mxu0 0
      %2040 = vmatpush1.bf16.xpose.msra.mxu0 0
      %2041 = vmatprep.subr.bf16.mxu0 0
      %2042 = vmatpush1.bf16.xpose.msra.mxu0 0
      %2043 = vmatprep.subr.bf16.mxu0 0
      %2044 = vmatpush1.bf16.xpose.msra.mxu0 %v2027
      %2045 = vmatprep.subr.bf16.mxu0 0
      %2046 = vmatpush2.bf16.xpose.msra.mxu0 0
      %2047 = vmatprep.subr.bf16.mxu0 0
      %2048 = vmatpush2.bf16.xpose.msra.mxu0 0
      %2049 = vmatprep.subr.bf16.mxu0 0
      %2050 = vmatpush2.bf16.xpose.msra.mxu0 0
      %2051 = vmatprep.subr.bf16.mxu0 0
      %2052 = vmatpush2.bf16.xpose.msra.mxu0 0
      %2053 = vmatprep.subr.bf16.mxu0 0
      %2054 = vmatpush2.bf16.xpose.msra.mxu0 0
      %2055 = vmatprep.subr.bf16.mxu0 0
      %2056 = vmatpush2.bf16.xpose.msra.mxu0 0
      %2057 = vmatprep.subr.bf16.mxu0 0
      %2058 = vmatpush2.bf16.xpose.msra.mxu0 0
      %2059 = vmatprep.subr.bf16.mxu0 0
      %2060 = vmatpush2.bf16.xpose.msra.mxu0 0
      %2061 = vmatprep.mubr.bf16.mxu0 0
      %2062 = vmatmul.mubr.bf16.gmra.mxu0 %v2024
      %v2063 = vpop.f32.mrf.mxu0
      %v2064 = vadd.f32 0.0, %v2063
      %v2065 = vpop.f32.mrf.mxu0
      %v2066 = vpop.f32.mrf.mxu0
      %v2067 = vpop.f32.mrf.mxu0
      %2068 = vdwg.mxu0
      %2069 = vrot.lane.b32.xlu0 %v1068, 120
      %v2070 = vpop.permute.xlu0 %2069
      %2071 = vrot.lane.b32.xlu0 %v1068, 88
      %v2072 = vpop.permute.xlu0 %2071
      %v2074 = vsel %vm1077, %v2070, 0
      %v2077 = vsel %vm1077, %v2072, 0
      %2079 = vmatprep.subr.bf16.mxu0 0
      %2080 = vmatpush1.bf16.xpose.msra.mxu0 0
      %2081 = vmatprep.subr.bf16.mxu0 0
      %2082 = vmatpush1.bf16.xpose.msra.mxu0 0
      %2083 = vmatprep.subr.bf16.mxu0 0
      %2084 = vmatpush1.bf16.xpose.msra.mxu0 0
      %2085 = vmatprep.subr.bf16.mxu0 0
      %2086 = vmatpush1.bf16.xpose.msra.mxu0 0
      %2087 = vmatprep.subr.bf16.mxu0 0
      %2088 = vmatpush1.bf16.xpose.msra.mxu0 0
      %2089 = vmatprep.subr.bf16.mxu0 0
      %2090 = vmatpush1.bf16.xpose.msra.mxu0 0
      %2091 = vmatprep.subr.bf16.mxu0 0
      %2092 = vmatpush1.bf16.xpose.msra.mxu0 0
      %2093 = vmatprep.subr.bf16.mxu0 0
      %2094 = vmatpush1.bf16.xpose.msra.mxu0 %v2077
      %2095 = vmatprep.subr.bf16.mxu0 0
      %2096 = vmatpush2.bf16.xpose.msra.mxu0 0
      %2097 = vmatprep.subr.bf16.mxu0 0
      %2098 = vmatpush2.bf16.xpose.msra.mxu0 0
      %2099 = vmatprep.subr.bf16.mxu0 0
      %2100 = vmatpush2.bf16.xpose.msra.mxu0 0
      %2101 = vmatprep.subr.bf16.mxu0 0
      %2102 = vmatpush2.bf16.xpose.msra.mxu0 0
      %2103 = vmatprep.subr.bf16.mxu0 0
      %2104 = vmatpush2.bf16.xpose.msra.mxu0 0
      %2105 = vmatprep.subr.bf16.mxu0 0
      %2106 = vmatpush2.bf16.xpose.msra.mxu0 0
      %2107 = vmatprep.subr.bf16.mxu0 0
      %2108 = vmatpush2.bf16.xpose.msra.mxu0 0
      %2109 = vmatprep.subr.bf16.mxu0 0
      %2110 = vmatpush2.bf16.xpose.msra.mxu0 0
      %2111 = vmatprep.mubr.bf16.mxu0 0
      %2112 = vmatmul.mubr.bf16.gmra.mxu0 %v2074
      %v2113 = vpop.f32.mrf.mxu0
      %v2114 = vadd.f32 0.0, %v2113
      %v2115 = vpop.f32.mrf.mxu0
      %v2116 = vpop.f32.mrf.mxu0
      %v2117 = vpop.f32.mrf.mxu0
      %2118 = vdwg.mxu0
      %2119 = vrot.lane.b32.xlu0 %v1069, 120
      %v2120 = vpop.permute.xlu0 %2119
      %2121 = vrot.lane.b32.xlu0 %v1069, 88
      %v2122 = vpop.permute.xlu0 %2121
      %v2124 = vsel %vm1077, %v2120, 0
      %v2127 = vsel %vm1077, %v2122, 0
      %2129 = vmatprep.subr.bf16.mxu0 0
      %2130 = vmatpush1.bf16.xpose.msra.mxu0 0
      %2131 = vmatprep.subr.bf16.mxu0 0
      %2132 = vmatpush1.bf16.xpose.msra.mxu0 0
      %2133 = vmatprep.subr.bf16.mxu0 0
      %2134 = vmatpush1.bf16.xpose.msra.mxu0 0
      %2135 = vmatprep.subr.bf16.mxu0 0
      %2136 = vmatpush1.bf16.xpose.msra.mxu0 0
      %2137 = vmatprep.subr.bf16.mxu0 0
      %2138 = vmatpush1.bf16.xpose.msra.mxu0 0
      %2139 = vmatprep.subr.bf16.mxu0 0
      %2140 = vmatpush1.bf16.xpose.msra.mxu0 0
      %2141 = vmatprep.subr.bf16.mxu0 0
      %2142 = vmatpush1.bf16.xpose.msra.mxu0 0
      %2143 = vmatprep.subr.bf16.mxu0 0
      %2144 = vmatpush1.bf16.xpose.msra.mxu0 %v2127
      %2145 = vmatprep.subr.bf16.mxu0 0
      %2146 = vmatpush2.bf16.xpose.msra.mxu0 0
      %2147 = vmatprep.subr.bf16.mxu0 0
      %2148 = vmatpush2.bf16.xpose.msra.mxu0 0
      %2149 = vmatprep.subr.bf16.mxu0 0
      %2150 = vmatpush2.bf16.xpose.msra.mxu0 0
      %2151 = vmatprep.subr.bf16.mxu0 0
      %2152 = vmatpush2.bf16.xpose.msra.mxu0 0
      %2153 = vmatprep.subr.bf16.mxu0 0
      %2154 = vmatpush2.bf16.xpose.msra.mxu0 0
      %2155 = vmatprep.subr.bf16.mxu0 0
      %2156 = vmatpush2.bf16.xpose.msra.mxu0 0
      %2157 = vmatprep.subr.bf16.mxu0 0
      %2158 = vmatpush2.bf16.xpose.msra.mxu0 0
      %2159 = vmatprep.subr.bf16.mxu0 0
      %2160 = vmatpush2.bf16.xpose.msra.mxu0 0
      %2161 = vmatprep.mubr.bf16.mxu0 0
      %2162 = vmatmul.mubr.bf16.gmra.mxu0 %v2124
      %v2163 = vpop.f32.mrf.mxu0
      %v2164 = vadd.f32 0.0, %v2163
      %v2165 = vpop.f32.mrf.mxu0
      %v2166 = vpop.f32.mrf.mxu0
      %v2167 = vpop.f32.mrf.mxu0
      %2168 = vdwg.mxu0
      %2169 = vrot.lane.b32.xlu0 %v1070, 120
      %v2170 = vpop.permute.xlu0 %2169
      %2171 = vrot.lane.b32.xlu0 %v1070, 88
      %v2172 = vpop.permute.xlu0 %2171
      %v2174 = vsel %vm1077, %v2170, 0
      %v2177 = vsel %vm1077, %v2172, 0
      %2179 = vmatprep.subr.bf16.mxu0 0
      %2180 = vmatpush1.bf16.xpose.msra.mxu0 0
      %2181 = vmatprep.subr.bf16.mxu0 0
      %2182 = vmatpush1.bf16.xpose.msra.mxu0 0
      %2183 = vmatprep.subr.bf16.mxu0 0
      %2184 = vmatpush1.bf16.xpose.msra.mxu0 0
      %2185 = vmatprep.subr.bf16.mxu0 0
      %2186 = vmatpush1.bf16.xpose.msra.mxu0 0
      %2187 = vmatprep.subr.bf16.mxu0 0
      %2188 = vmatpush1.bf16.xpose.msra.mxu0 0
      %2189 = vmatprep.subr.bf16.mxu0 0
      %2190 = vmatpush1.bf16.xpose.msra.mxu0 0
      %2191 = vmatprep.subr.bf16.mxu0 0
      %2192 = vmatpush1.bf16.xpose.msra.mxu0 0
      %2193 = vmatprep.subr.bf16.mxu0 0
      %2194 = vmatpush1.bf16.xpose.msra.mxu0 %v2177
      %2195 = vmatprep.subr.bf16.mxu0 0
      %2196 = vmatpush2.bf16.xpose.msra.mxu0 0
      %2197 = vmatprep.subr.bf16.mxu0 0
      %2198 = vmatpush2.bf16.xpose.msra.mxu0 0
      %2199 = vmatprep.subr.bf16.mxu0 0
      %2200 = vmatpush2.bf16.xpose.msra.mxu0 0
      %2201 = vmatprep.subr.bf16.mxu0 0
      %2202 = vmatpush2.bf16.xpose.msra.mxu0 0
      %2203 = vmatprep.subr.bf16.mxu0 0
      %2204 = vmatpush2.bf16.xpose.msra.mxu0 0
      %2205 = vmatprep.subr.bf16.mxu0 0
      %2206 = vmatpush2.bf16.xpose.msra.mxu0 0
      %2207 = vmatprep.subr.bf16.mxu0 0
      %2208 = vmatpush2.bf16.xpose.msra.mxu0 0
      %2209 = vmatprep.subr.bf16.mxu0 0
      %2210 = vmatpush2.bf16.xpose.msra.mxu0 0
      %2211 = vmatprep.mubr.bf16.mxu0 0
      %2212 = vmatmul.mubr.bf16.gmra.mxu0 %v2174
      %v2213 = vpop.f32.mrf.mxu0
      %v2214 = vadd.f32 0.0, %v2213
      %v2215 = vpop.f32.mrf.mxu0
      %v2216 = vpop.f32.mrf.mxu0
      %v2217 = vpop.f32.mrf.mxu0
      %2218 = vdwg.mxu0
      %2219 = vrot.lane.b32.xlu0 %v1071, 120
      %v2220 = vpop.permute.xlu0 %2219
      %2221 = vrot.lane.b32.xlu0 %v1071, 88
      %v2222 = vpop.permute.xlu0 %2221
      %v2224 = vsel %vm1077, %v2220, 0
      %v2227 = vsel %vm1077, %v2222, 0
      %2229 = vmatprep.subr.bf16.mxu0 0
      %2230 = vmatpush1.bf16.xpose.msra.mxu0 0
      %2231 = vmatprep.subr.bf16.mxu0 0
      %2232 = vmatpush1.bf16.xpose.msra.mxu0 0
      %2233 = vmatprep.subr.bf16.mxu0 0
      %2234 = vmatpush1.bf16.xpose.msra.mxu0 0
      %2235 = vmatprep.subr.bf16.mxu0 0
      %2236 = vmatpush1.bf16.xpose.msra.mxu0 0
      %2237 = vmatprep.subr.bf16.mxu0 0
      %2238 = vmatpush1.bf16.xpose.msra.mxu0 0
      %2239 = vmatprep.subr.bf16.mxu0 0
      %2240 = vmatpush1.bf16.xpose.msra.mxu0 0
      %2241 = vmatprep.subr.bf16.mxu0 0
      %2242 = vmatpush1.bf16.xpose.msra.mxu0 0
      %2243 = vmatprep.subr.bf16.mxu0 0
      %2244 = vmatpush1.bf16.xpose.msra.mxu0 %v2227
      %2245 = vmatprep.subr.bf16.mxu0 0
      %2246 = vmatpush2.bf16.xpose.msra.mxu0 0
      %2247 = vmatprep.subr.bf16.mxu0 0
      %2248 = vmatpush2.bf16.xpose.msra.mxu0 0
      %2249 = vmatprep.subr.bf16.mxu0 0
      %2250 = vmatpush2.bf16.xpose.msra.mxu0 0
      %2251 = vmatprep.subr.bf16.mxu0 0
      %2252 = vmatpush2.bf16.xpose.msra.mxu0 0
      %2253 = vmatprep.subr.bf16.mxu0 0
      %2254 = vmatpush2.bf16.xpose.msra.mxu0 0
      %2255 = vmatprep.subr.bf16.mxu0 0
      %2256 = vmatpush2.bf16.xpose.msra.mxu0 0
      %2257 = vmatprep.subr.bf16.mxu0 0
      %2258 = vmatpush2.bf16.xpose.msra.mxu0 0
      %2259 = vmatprep.subr.bf16.mxu0 0
      %2260 = vmatpush2.bf16.xpose.msra.mxu0 0
      %2261 = vmatprep.mubr.bf16.mxu0 0
      %2262 = vmatmul.mubr.bf16.gmra.mxu0 %v2224
      %v2263 = vpop.f32.mrf.mxu0
      %v2264 = vadd.f32 0.0, %v2263
      %v2265 = vpop.f32.mrf.mxu0
      %v2266 = vpop.f32.mrf.mxu0
      %v2267 = vpop.f32.mrf.mxu0
      %2268 = vdwg.mxu0
      %2269 = vrot.lane.b32.xlu0 %v1072, 120
      %v2270 = vpop.permute.xlu0 %2269
      %2271 = vrot.lane.b32.xlu0 %v1072, 88
      %v2272 = vpop.permute.xlu0 %2271
      %v2274 = vsel %vm1077, %v2270, 0
      %v2277 = vsel %vm1077, %v2272, 0
      %2279 = vmatprep.subr.bf16.mxu0 0
      %2280 = vmatpush1.bf16.xpose.msra.mxu0 0
      %2281 = vmatprep.subr.bf16.mxu0 0
      %2282 = vmatpush1.bf16.xpose.msra.mxu0 0
      %2283 = vmatprep.subr.bf16.mxu0 0
      %2284 = vmatpush1.bf16.xpose.msra.mxu0 0
      %2285 = vmatprep.subr.bf16.mxu0 0
      %2286 = vmatpush1.bf16.xpose.msra.mxu0 0
      %2287 = vmatprep.subr.bf16.mxu0 0
      %2288 = vmatpush1.bf16.xpose.msra.mxu0 0
      %2289 = vmatprep.subr.bf16.mxu0 0
      %2290 = vmatpush1.bf16.xpose.msra.mxu0 0
      %2291 = vmatprep.subr.bf16.mxu0 0
      %2292 = vmatpush1.bf16.xpose.msra.mxu0 0
      %2293 = vmatprep.subr.bf16.mxu0 0
      %2294 = vmatpush1.bf16.xpose.msra.mxu0 %v2277
      %2295 = vmatprep.subr.bf16.mxu0 0
      %2296 = vmatpush2.bf16.xpose.msra.mxu0 0
      %2297 = vmatprep.subr.bf16.mxu0 0
      %2298 = vmatpush2.bf16.xpose.msra.mxu0 0
      %2299 = vmatprep.subr.bf16.mxu0 0
      %2300 = vmatpush2.bf16.xpose.msra.mxu0 0
      %2301 = vmatprep.subr.bf16.mxu0 0
      %2302 = vmatpush2.bf16.xpose.msra.mxu0 0
      %2303 = vmatprep.subr.bf16.mxu0 0
      %2304 = vmatpush2.bf16.xpose.msra.mxu0 0
      %2305 = vmatprep.subr.bf16.mxu0 0
      %2306 = vmatpush2.bf16.xpose.msra.mxu0 0
      %2307 = vmatprep.subr.bf16.mxu0 0
      %2308 = vmatpush2.bf16.xpose.msra.mxu0 0
      %2309 = vmatprep.subr.bf16.mxu0 0
      %2310 = vmatpush2.bf16.xpose.msra.mxu0 0
      %2311 = vmatprep.mubr.bf16.mxu0 0
      %2312 = vmatmul.mubr.bf16.gmra.mxu0 %v2274
      %v2313 = vpop.f32.mrf.mxu0
      %v2314 = vadd.f32 0.0, %v2313
      %v2315 = vpop.f32.mrf.mxu0
      %v2316 = vpop.f32.mrf.mxu0
      %v2317 = vpop.f32.mrf.mxu0
      %2318 = vdwg.mxu0
      %2319 = vrot.lane.b32.xlu0 %v1073, 120
      %v2320 = vpop.permute.xlu0 %2319
      %2321 = vrot.lane.b32.xlu0 %v1073, 88
      %v2322 = vpop.permute.xlu0 %2321
      %v2324 = vsel %vm1077, %v2320, 0
      %v2327 = vsel %vm1077, %v2322, 0
      %2329 = vmatprep.subr.bf16.mxu0 0
      %2330 = vmatpush1.bf16.xpose.msra.mxu0 0
      %2331 = vmatprep.subr.bf16.mxu0 0
      %2332 = vmatpush1.bf16.xpose.msra.mxu0 0
      %2333 = vmatprep.subr.bf16.mxu0 0
      %2334 = vmatpush1.bf16.xpose.msra.mxu0 0
      %2335 = vmatprep.subr.bf16.mxu0 0
      %2336 = vmatpush1.bf16.xpose.msra.mxu0 0
      %2337 = vmatprep.subr.bf16.mxu0 0
      %2338 = vmatpush1.bf16.xpose.msra.mxu0 0
      %2339 = vmatprep.subr.bf16.mxu0 0
      %2340 = vmatpush1.bf16.xpose.msra.mxu0 0
      %2341 = vmatprep.subr.bf16.mxu0 0
      %2342 = vmatpush1.bf16.xpose.msra.mxu0 0
      %2343 = vmatprep.subr.bf16.mxu0 0
      %2344 = vmatpush1.bf16.xpose.msra.mxu0 %v2327
      %2345 = vmatprep.subr.bf16.mxu0 0
      %2346 = vmatpush2.bf16.xpose.msra.mxu0 0
      %2347 = vmatprep.subr.bf16.mxu0 0
      %2348 = vmatpush2.bf16.xpose.msra.mxu0 0
      %2349 = vmatprep.subr.bf16.mxu0 0
      %2350 = vmatpush2.bf16.xpose.msra.mxu0 0
      %2351 = vmatprep.subr.bf16.mxu0 0
      %2352 = vmatpush2.bf16.xpose.msra.mxu0 0
      %2353 = vmatprep.subr.bf16.mxu0 0
      %2354 = vmatpush2.bf16.xpose.msra.mxu0 0
      %2355 = vmatprep.subr.bf16.mxu0 0
      %2356 = vmatpush2.bf16.xpose.msra.mxu0 0
      %2357 = vmatprep.subr.bf16.mxu0 0
      %2358 = vmatpush2.bf16.xpose.msra.mxu0 0
      %2359 = vmatprep.subr.bf16.mxu0 0
      %2360 = vmatpush2.bf16.xpose.msra.mxu0 0
      %2361 = vmatprep.mubr.bf16.mxu0 0
      %2362 = vmatmul.mubr.bf16.gmra.mxu0 %v2324
      %v2363 = vpop.f32.mrf.mxu0
      %v2364 = vadd.f32 0.0, %v2363
      %v2365 = vpop.f32.mrf.mxu0
      %v2366 = vpop.f32.mrf.mxu0
      %v2367 = vpop.f32.mrf.mxu0
      %2368 = vdwg.mxu0
      %v2369 = vmul.f32 %v2014, 0.35355338
      %v2370 = vmul.f32 %v2064, 0.35355338
      %v2371 = vmul.f32 %v2114, 0.35355338
      %v2372 = vmul.f32 %v2164, 0.35355338
      %v2373 = vmul.f32 %v2214, 0.35355338
      %v2374 = vmul.f32 %v2264, 0.35355338
      %v2375 = vmul.f32 %v2314, 0.35355338
      %v2376 = vmul.f32 %v2364, 0.35355338
      %v2377 = vadd.f32 %v2369, %v794
      %v2378 = vadd.f32 %v2370, %v795
      %v2379 = vadd.f32 %v2371, %v796
      %v2380 = vadd.f32 %v2372, %v797
      %v2381 = vadd.f32 %v2373, %v798
      %v2382 = vadd.f32 %v2374, %v799
      %v2383 = vadd.f32 %v2375, %v800
      %v2384 = vadd.f32 %v2376, %v801
      %v2385 = vsel %vm1077, %v2377, -inf
      %2386 = vmax.xlane.f32.xlu0 %v2385
      %v2387 = vpop.xlane.xlu0 %2386
      %v2388 = vsel %vm1077, %v2378, -inf
      %2389 = vmax.xlane.f32.xlu0 %v2388
      %v2390 = vpop.xlane.xlu0 %2389
      %v2391 = vsel %vm1077, %v2379, -inf
      %2392 = vmax.xlane.f32.xlu0 %v2391
      %v2393 = vpop.xlane.xlu0 %2392
      %v2394 = vsel %vm1077, %v2380, -inf
      %2395 = vmax.xlane.f32.xlu0 %v2394
      %v2396 = vpop.xlane.xlu0 %2395
      %v2397 = vsel %vm1077, %v2381, -inf
      %2398 = vmax.xlane.f32.xlu0 %v2397
      %v2399 = vpop.xlane.xlu0 %2398
      %v2400 = vsel %vm1077, %v2382, -inf
      %2401 = vmax.xlane.f32.xlu0 %v2400
      %v2402 = vpop.xlane.xlu0 %2401
      %v2403 = vsel %vm1077, %v2383, -inf
      %2404 = vmax.xlane.f32.xlu0 %v2403
      %v2405 = vpop.xlane.xlu0 %2404
      %v2406 = vsel %vm1077, %v2384, -inf
      %2407 = vmax.xlane.f32.xlu0 %v2406
      %v2408 = vpop.xlane.xlu0 %2407
      %v2409 = vsub.f32 %v2377, %v2387
      %v2410 = vsub.f32 %v2378, %v2390
      %v2411 = vsub.f32 %v2379, %v2393
      %v2412 = vsub.f32 %v2380, %v2396
      %v2413 = vsub.f32 %v2381, %v2399
      %v2414 = vsub.f32 %v2382, %v2402
      %v2415 = vsub.f32 %v2383, %v2405
      %v2416 = vsub.f32 %v2384, %v2408
      %v2417 = vmul.f32 %v2409, 1.442695
      %v2418 = vpow.pop %v2417
      %v2419 = vmul.f32 %v2410, 1.442695
      %v2420 = vpow.pop %v2419
      %v2421 = vmul.f32 %v2411, 1.442695
      %v2422 = vpow.pop %v2421
      %v2423 = vmul.f32 %v2412, 1.442695
      %v2424 = vpow.pop %v2423
      %v2425 = vmul.f32 %v2413, 1.442695
      %v2426 = vpow.pop %v2425
      %v2427 = vmul.f32 %v2414, 1.442695
      %v2428 = vpow.pop %v2427
      %v2429 = vmul.f32 %v2415, 1.442695
      %v2430 = vpow.pop %v2429
      %v2431 = vmul.f32 %v2416, 1.442695
      %v2432 = vpow.pop %v2431
      %v2433 = vsel %vm1077, %v2418, 0.0
      %2434 = vadd.xlane.f32.xlu0 %v2433
      %v2435 = vpop.xlane.xlu0 %2434
      %v2436 = vsel %vm1077, %v2420, 0.0
      %2437 = vadd.xlane.f32.xlu0 %v2436
      %v2438 = vpop.xlane.xlu0 %2437
      %v2439 = vsel %vm1077, %v2422, 0.0
      %2440 = vadd.xlane.f32.xlu0 %v2439
      %v2441 = vpop.xlane.xlu0 %2440
      %v2442 = vsel %vm1077, %v2424, 0.0
      %2443 = vadd.xlane.f32.xlu0 %v2442
      %v2444 = vpop.xlane.xlu0 %2443
      %v2445 = vsel %vm1077, %v2426, 0.0
      %2446 = vadd.xlane.f32.xlu0 %v2445
      %v2447 = vpop.xlane.xlu0 %2446
      %v2448 = vsel %vm1077, %v2428, 0.0
      %2449 = vadd.xlane.f32.xlu0 %v2448
      %v2450 = vpop.xlane.xlu0 %2449
      %v2451 = vsel %vm1077, %v2430, 0.0
      %2452 = vadd.xlane.f32.xlu0 %v2451
      %v2453 = vpop.xlane.xlu0 %2452
      %v2454 = vsel %vm1077, %v2432, 0.0
      %2455 = vadd.xlane.f32.xlu0 %v2454
      %v2456 = vpop.xlane.xlu0 %2455
      %v2457 = vrcp.pop %v2435
      %v2458 = vrcp.pop %v2438
      %v2459 = vrcp.pop %v2441
      %v2460 = vrcp.pop %v2444
      %v2461 = vrcp.pop %v2447
      %v2462 = vrcp.pop %v2450
      %v2463 = vrcp.pop %v2453
      %v2464 = vrcp.pop %v2456
      %v2465 = vmul.f32 %v2418, %v2457
      %v2466 = vmul.f32 %v2420, %v2458
      %v2467 = vmul.f32 %v2422, %v2459
      %v2468 = vmul.f32 %v2424, %v2460
      %v2469 = vmul.f32 %v2426, %v2461
      %v2470 = vmul.f32 %v2428, %v2462
      %v2471 = vmul.f32 %v2430, %v2463
      %v2472 = vmul.f32 %v2432, %v2464
      %v2473 = vpack.c.bf16 %v2465, %v2465
      %v2474 = vpack.c.bf16 %v2466, %v2466
      %v2475 = vpack.c.bf16 %v2467, %v2467
      %v2476 = vpack.c.bf16 %v2468, %v2468
      %v2477 = vpack.c.bf16 %v2469, %v2469
      %v2478 = vpack.c.bf16 %v2470, %v2470
      %v2479 = vpack.c.bf16 %v2471, %v2471
      %v2480 = vpack.c.bf16 %v2472, %v2472
      %2481 = vrot.lane.b32.xlu0 %v1066, 56
      %v2482 = vpop.permute.xlu0 %2481
      %v2484 = vsel %vm1077, %v2473, 0
      %v2487 = vsel %vm1584, %v2482, 0
      %2489 = vmatprep.subr.bf16.mxu0 0
      %2490 = vmatpush1.bf16.msra.mxu0 0
      %2491 = vmatprep.subr.bf16.mxu0 0
      %2492 = vmatpush1.bf16.msra.mxu0 0
      %2493 = vmatprep.subr.bf16.mxu0 0
      %2494 = vmatpush1.bf16.msra.mxu0 0
      %2495 = vmatprep.subr.bf16.mxu0 0
      %2496 = vmatpush1.bf16.msra.mxu0 0
      %2497 = vmatprep.subr.bf16.mxu0 0
      %2498 = vmatpush1.bf16.msra.mxu0 0
      %2499 = vmatprep.subr.bf16.mxu0 0
      %2500 = vmatpush1.bf16.msra.mxu0 0
      %2501 = vmatprep.subr.bf16.mxu0 0
      %2502 = vmatpush1.bf16.msra.mxu0 0
      %2503 = vmatprep.subr.bf16.mxu0 0
      %2504 = vmatpush1.bf16.msra.mxu0 %v2487
      %2505 = vmatprep.subr.bf16.mxu0 0
      %2506 = vmatpush2.bf16.msra.mxu0 0
      %2507 = vmatprep.subr.bf16.mxu0 0
      %2508 = vmatpush2.bf16.msra.mxu0 0
      %2509 = vmatprep.subr.bf16.mxu0 0
      %2510 = vmatpush2.bf16.msra.mxu0 0
      %2511 = vmatprep.subr.bf16.mxu0 0
      %2512 = vmatpush2.bf16.msra.mxu0 0
      %2513 = vmatprep.subr.bf16.mxu0 0
      %2514 = vmatpush2.bf16.msra.mxu0 0
      %2515 = vmatprep.subr.bf16.mxu0 0
      %2516 = vmatpush2.bf16.msra.mxu0 0
      %2517 = vmatprep.subr.bf16.mxu0 0
      %2518 = vmatpush2.bf16.msra.mxu0 0
      %2519 = vmatprep.subr.bf16.mxu0 0
      %2520 = vmatpush2.bf16.msra.mxu0 0
      %2521 = vmatprep.mubr.bf16.mxu0 0
      %2522 = vmatmul.mubr.bf16.gmra.mxu0 %v2484
      %v2523 = vpop.f32.mrf.mxu0
      %v2524 = vadd.f32 0.0, %v2523
      %v2525 = vpop.f32.mrf.mxu0
      %v2526 = vpop.f32.mrf.mxu0
      %v2527 = vpop.f32.mrf.mxu0
      %2528 = vdwg.mxu0
      %2529 = vrot.lane.b32.xlu0 %v1067, 56
      %v2530 = vpop.permute.xlu0 %2529
      %v2532 = vsel %vm1077, %v2474, 0
      %v2535 = vsel %vm1584, %v2530, 0
      %2537 = vmatprep.subr.bf16.mxu0 0
      %2538 = vmatpush1.bf16.msra.mxu0 0
      %2539 = vmatprep.subr.bf16.mxu0 0
      %2540 = vmatpush1.bf16.msra.mxu0 0
      %2541 = vmatprep.subr.bf16.mxu0 0
      %2542 = vmatpush1.bf16.msra.mxu0 0
      %2543 = vmatprep.subr.bf16.mxu0 0
      %2544 = vmatpush1.bf16.msra.mxu0 0
      %2545 = vmatprep.subr.bf16.mxu0 0
      %2546 = vmatpush1.bf16.msra.mxu0 0
      %2547 = vmatprep.subr.bf16.mxu0 0
      %2548 = vmatpush1.bf16.msra.mxu0 0
      %2549 = vmatprep.subr.bf16.mxu0 0
      %2550 = vmatpush1.bf16.msra.mxu0 0
      %2551 = vmatprep.subr.bf16.mxu0 0
      %2552 = vmatpush1.bf16.msra.mxu0 %v2535
      %2553 = vmatprep.subr.bf16.mxu0 0
      %2554 = vmatpush2.bf16.msra.mxu0 0
      %2555 = vmatprep.subr.bf16.mxu0 0
      %2556 = vmatpush2.bf16.msra.mxu0 0
      %2557 = vmatprep.subr.bf16.mxu0 0
      %2558 = vmatpush2.bf16.msra.mxu0 0
      %2559 = vmatprep.subr.bf16.mxu0 0
      %2560 = vmatpush2.bf16.msra.mxu0 0
      %2561 = vmatprep.subr.bf16.mxu0 0
      %2562 = vmatpush2.bf16.msra.mxu0 0
      %2563 = vmatprep.subr.bf16.mxu0 0
      %2564 = vmatpush2.bf16.msra.mxu0 0
      %2565 = vmatprep.subr.bf16.mxu0 0
      %2566 = vmatpush2.bf16.msra.mxu0 0
      %2567 = vmatprep.subr.bf16.mxu0 0
      %2568 = vmatpush2.bf16.msra.mxu0 0
      %2569 = vmatprep.mubr.bf16.mxu0 0
      %2570 = vmatmul.mubr.bf16.gmra.mxu0 %v2532
      %v2571 = vpop.f32.mrf.mxu0
      %v2572 = vadd.f32 0.0, %v2571
      %v2573 = vpop.f32.mrf.mxu0
      %v2574 = vpop.f32.mrf.mxu0
      %v2575 = vpop.f32.mrf.mxu0
      %2576 = vdwg.mxu0
      %2577 = vrot.lane.b32.xlu0 %v1068, 56
      %v2578 = vpop.permute.xlu0 %2577
      %v2580 = vsel %vm1077, %v2475, 0
      %v2583 = vsel %vm1584, %v2578, 0
      %2585 = vmatprep.subr.bf16.mxu0 0
      %2586 = vmatpush1.bf16.msra.mxu0 0
      %2587 = vmatprep.subr.bf16.mxu0 0
      %2588 = vmatpush1.bf16.msra.mxu0 0
      %2589 = vmatprep.subr.bf16.mxu0 0
      %2590 = vmatpush1.bf16.msra.mxu0 0
      %2591 = vmatprep.subr.bf16.mxu0 0
      %2592 = vmatpush1.bf16.msra.mxu0 0
      %2593 = vmatprep.subr.bf16.mxu0 0
      %2594 = vmatpush1.bf16.msra.mxu0 0
      %2595 = vmatprep.subr.bf16.mxu0 0
      %2596 = vmatpush1.bf16.msra.mxu0 0
      %2597 = vmatprep.subr.bf16.mxu0 0
      %2598 = vmatpush1.bf16.msra.mxu0 0
      %2599 = vmatprep.subr.bf16.mxu0 0
      %2600 = vmatpush1.bf16.msra.mxu0 %v2583
      %2601 = vmatprep.subr.bf16.mxu0 0
      %2602 = vmatpush2.bf16.msra.mxu0 0
      %2603 = vmatprep.subr.bf16.mxu0 0
      %2604 = vmatpush2.bf16.msra.mxu0 0
      %2605 = vmatprep.subr.bf16.mxu0 0
      %2606 = vmatpush2.bf16.msra.mxu0 0
      %2607 = vmatprep.subr.bf16.mxu0 0
      %2608 = vmatpush2.bf16.msra.mxu0 0
      %2609 = vmatprep.subr.bf16.mxu0 0
      %2610 = vmatpush2.bf16.msra.mxu0 0
      %2611 = vmatprep.subr.bf16.mxu0 0
      %2612 = vmatpush2.bf16.msra.mxu0 0
      %2613 = vmatprep.subr.bf16.mxu0 0
      %2614 = vmatpush2.bf16.msra.mxu0 0
      %2615 = vmatprep.subr.bf16.mxu0 0
      %2616 = vmatpush2.bf16.msra.mxu0 0
      %2617 = vmatprep.mubr.bf16.mxu0 0
      %2618 = vmatmul.mubr.bf16.gmra.mxu0 %v2580
      %v2619 = vpop.f32.mrf.mxu0
      %v2620 = vadd.f32 0.0, %v2619
      %v2621 = vpop.f32.mrf.mxu0
      %v2622 = vpop.f32.mrf.mxu0
      %v2623 = vpop.f32.mrf.mxu0
      %2624 = vdwg.mxu0
      %2625 = vrot.lane.b32.xlu0 %v1069, 56
      %v2626 = vpop.permute.xlu0 %2625
      %v2628 = vsel %vm1077, %v2476, 0
      %v2631 = vsel %vm1584, %v2626, 0
      %2633 = vmatprep.subr.bf16.mxu0 0
      %2634 = vmatpush1.bf16.msra.mxu0 0
      %2635 = vmatprep.subr.bf16.mxu0 0
      %2636 = vmatpush1.bf16.msra.mxu0 0
      %2637 = vmatprep.subr.bf16.mxu0 0
      %2638 = vmatpush1.bf16.msra.mxu0 0
      %2639 = vmatprep.subr.bf16.mxu0 0
      %2640 = vmatpush1.bf16.msra.mxu0 0
      %2641 = vmatprep.subr.bf16.mxu0 0
      %2642 = vmatpush1.bf16.msra.mxu0 0
      %2643 = vmatprep.subr.bf16.mxu0 0
      %2644 = vmatpush1.bf16.msra.mxu0 0
      %2645 = vmatprep.subr.bf16.mxu0 0
      %2646 = vmatpush1.bf16.msra.mxu0 0
      %2647 = vmatprep.subr.bf16.mxu0 0
      %2648 = vmatpush1.bf16.msra.mxu0 %v2631
      %2649 = vmatprep.subr.bf16.mxu0 0
      %2650 = vmatpush2.bf16.msra.mxu0 0
      %2651 = vmatprep.subr.bf16.mxu0 0
      %2652 = vmatpush2.bf16.msra.mxu0 0
      %2653 = vmatprep.subr.bf16.mxu0 0
      %2654 = vmatpush2.bf16.msra.mxu0 0
      %2655 = vmatprep.subr.bf16.mxu0 0
      %2656 = vmatpush2.bf16.msra.mxu0 0
      %2657 = vmatprep.subr.bf16.mxu0 0
      %2658 = vmatpush2.bf16.msra.mxu0 0
      %2659 = vmatprep.subr.bf16.mxu0 0
      %2660 = vmatpush2.bf16.msra.mxu0 0
      %2661 = vmatprep.subr.bf16.mxu0 0
      %2662 = vmatpush2.bf16.msra.mxu0 0
      %2663 = vmatprep.subr.bf16.mxu0 0
      %2664 = vmatpush2.bf16.msra.mxu0 0
      %2665 = vmatprep.mubr.bf16.mxu0 0
      %2666 = vmatmul.mubr.bf16.gmra.mxu0 %v2628
      %v2667 = vpop.f32.mrf.mxu0
      %v2668 = vadd.f32 0.0, %v2667
      %v2669 = vpop.f32.mrf.mxu0
      %v2670 = vpop.f32.mrf.mxu0
      %v2671 = vpop.f32.mrf.mxu0
      %2672 = vdwg.mxu0
      %2673 = vrot.lane.b32.xlu0 %v1070, 56
      %v2674 = vpop.permute.xlu0 %2673
      %v2676 = vsel %vm1077, %v2477, 0
      %v2679 = vsel %vm1584, %v2674, 0
      %2681 = vmatprep.subr.bf16.mxu0 0
      %2682 = vmatpush1.bf16.msra.mxu0 0
      %2683 = vmatprep.subr.bf16.mxu0 0
      %2684 = vmatpush1.bf16.msra.mxu0 0
      %2685 = vmatprep.subr.bf16.mxu0 0
      %2686 = vmatpush1.bf16.msra.mxu0 0
      %2687 = vmatprep.subr.bf16.mxu0 0
      %2688 = vmatpush1.bf16.msra.mxu0 0
      %2689 = vmatprep.subr.bf16.mxu0 0
      %2690 = vmatpush1.bf16.msra.mxu0 0
      %2691 = vmatprep.subr.bf16.mxu0 0
      %2692 = vmatpush1.bf16.msra.mxu0 0
      %2693 = vmatprep.subr.bf16.mxu0 0
      %2694 = vmatpush1.bf16.msra.mxu0 0
      %2695 = vmatprep.subr.bf16.mxu0 0
      %2696 = vmatpush1.bf16.msra.mxu0 %v2679
      %2697 = vmatprep.subr.bf16.mxu0 0
      %2698 = vmatpush2.bf16.msra.mxu0 0
      %2699 = vmatprep.subr.bf16.mxu0 0
      %2700 = vmatpush2.bf16.msra.mxu0 0
      %2701 = vmatprep.subr.bf16.mxu0 0
      %2702 = vmatpush2.bf16.msra.mxu0 0
      %2703 = vmatprep.subr.bf16.mxu0 0
      %2704 = vmatpush2.bf16.msra.mxu0 0
      %2705 = vmatprep.subr.bf16.mxu0 0
      %2706 = vmatpush2.bf16.msra.mxu0 0
      %2707 = vmatprep.subr.bf16.mxu0 0
      %2708 = vmatpush2.bf16.msra.mxu0 0
      %2709 = vmatprep.subr.bf16.mxu0 0
      %2710 = vmatpush2.bf16.msra.mxu0 0
      %2711 = vmatprep.subr.bf16.mxu0 0
      %2712 = vmatpush2.bf16.msra.mxu0 0
      %2713 = vmatprep.mubr.bf16.mxu0 0
      %2714 = vmatmul.mubr.bf16.gmra.mxu0 %v2676
      %v2715 = vpop.f32.mrf.mxu0
      %v2716 = vadd.f32 0.0, %v2715
      %v2717 = vpop.f32.mrf.mxu0
      %v2718 = vpop.f32.mrf.mxu0
      %v2719 = vpop.f32.mrf.mxu0
      %2720 = vdwg.mxu0
      %2721 = vrot.lane.b32.xlu0 %v1071, 56
      %v2722 = vpop.permute.xlu0 %2721
      %v2724 = vsel %vm1077, %v2478, 0
      %v2727 = vsel %vm1584, %v2722, 0
      %2729 = vmatprep.subr.bf16.mxu0 0
      %2730 = vmatpush1.bf16.msra.mxu0 0
      %2731 = vmatprep.subr.bf16.mxu0 0
      %2732 = vmatpush1.bf16.msra.mxu0 0
      %2733 = vmatprep.subr.bf16.mxu0 0
      %2734 = vmatpush1.bf16.msra.mxu0 0
      %2735 = vmatprep.subr.bf16.mxu0 0
      %2736 = vmatpush1.bf16.msra.mxu0 0
      %2737 = vmatprep.subr.bf16.mxu0 0
      %2738 = vmatpush1.bf16.msra.mxu0 0
      %2739 = vmatprep.subr.bf16.mxu0 0
      %2740 = vmatpush1.bf16.msra.mxu0 0
      %2741 = vmatprep.subr.bf16.mxu0 0
      %2742 = vmatpush1.bf16.msra.mxu0 0
      %2743 = vmatprep.subr.bf16.mxu0 0
      %2744 = vmatpush1.bf16.msra.mxu0 %v2727
      %2745 = vmatprep.subr.bf16.mxu0 0
      %2746 = vmatpush2.bf16.msra.mxu0 0
      %2747 = vmatprep.subr.bf16.mxu0 0
      %2748 = vmatpush2.bf16.msra.mxu0 0
      %2749 = vmatprep.subr.bf16.mxu0 0
      %2750 = vmatpush2.bf16.msra.mxu0 0
      %2751 = vmatprep.subr.bf16.mxu0 0
      %2752 = vmatpush2.bf16.msra.mxu0 0
      %2753 = vmatprep.subr.bf16.mxu0 0
      %2754 = vmatpush2.bf16.msra.mxu0 0
      %2755 = vmatprep.subr.bf16.mxu0 0
      %2756 = vmatpush2.bf16.msra.mxu0 0
      %2757 = vmatprep.subr.bf16.mxu0 0
      %2758 = vmatpush2.bf16.msra.mxu0 0
      %2759 = vmatprep.subr.bf16.mxu0 0
      %2760 = vmatpush2.bf16.msra.mxu0 0
      %2761 = vmatprep.mubr.bf16.mxu0 0
      %2762 = vmatmul.mubr.bf16.gmra.mxu0 %v2724
      %v2763 = vpop.f32.mrf.mxu0
      %v2764 = vadd.f32 0.0, %v2763
      %v2765 = vpop.f32.mrf.mxu0
      %v2766 = vpop.f32.mrf.mxu0
      %v2767 = vpop.f32.mrf.mxu0
      %2768 = vdwg.mxu0
      %2769 = vrot.lane.b32.xlu0 %v1072, 56
      %v2770 = vpop.permute.xlu0 %2769
      %v2772 = vsel %vm1077, %v2479, 0
      %v2775 = vsel %vm1584, %v2770, 0
      %2777 = vmatprep.subr.bf16.mxu0 0
      %2778 = vmatpush1.bf16.msra.mxu0 0
      %2779 = vmatprep.subr.bf16.mxu0 0
      %2780 = vmatpush1.bf16.msra.mxu0 0
      %2781 = vmatprep.subr.bf16.mxu0 0
      %2782 = vmatpush1.bf16.msra.mxu0 0
      %2783 = vmatprep.subr.bf16.mxu0 0
      %2784 = vmatpush1.bf16.msra.mxu0 0
      %2785 = vmatprep.subr.bf16.mxu0 0
      %2786 = vmatpush1.bf16.msra.mxu0 0
      %2787 = vmatprep.subr.bf16.mxu0 0
      %2788 = vmatpush1.bf16.msra.mxu0 0
      %2789 = vmatprep.subr.bf16.mxu0 0
      %2790 = vmatpush1.bf16.msra.mxu0 0
      %2791 = vmatprep.subr.bf16.mxu0 0
      %2792 = vmatpush1.bf16.msra.mxu0 %v2775
      %2793 = vmatprep.subr.bf16.mxu0 0
      %2794 = vmatpush2.bf16.msra.mxu0 0
      %2795 = vmatprep.subr.bf16.mxu0 0
      %2796 = vmatpush2.bf16.msra.mxu0 0
      %2797 = vmatprep.subr.bf16.mxu0 0
      %2798 = vmatpush2.bf16.msra.mxu0 0
      %2799 = vmatprep.subr.bf16.mxu0 0
      %2800 = vmatpush2.bf16.msra.mxu0 0
      %2801 = vmatprep.subr.bf16.mxu0 0
      %2802 = vmatpush2.bf16.msra.mxu0 0
      %2803 = vmatprep.subr.bf16.mxu0 0
      %2804 = vmatpush2.bf16.msra.mxu0 0
      %2805 = vmatprep.subr.bf16.mxu0 0
      %2806 = vmatpush2.bf16.msra.mxu0 0
      %2807 = vmatprep.subr.bf16.mxu0 0
      %2808 = vmatpush2.bf16.msra.mxu0 0
      %2809 = vmatprep.mubr.bf16.mxu0 0
      %2810 = vmatmul.mubr.bf16.gmra.mxu0 %v2772
      %v2811 = vpop.f32.mrf.mxu0
      %v2812 = vadd.f32 0.0, %v2811
      %v2813 = vpop.f32.mrf.mxu0
      %v2814 = vpop.f32.mrf.mxu0
      %v2815 = vpop.f32.mrf.mxu0
      %2816 = vdwg.mxu0
      %2817 = vrot.lane.b32.xlu0 %v1073, 56
      %v2818 = vpop.permute.xlu0 %2817
      %v2820 = vsel %vm1077, %v2480, 0
      %v2823 = vsel %vm1584, %v2818, 0
      %2825 = vmatprep.subr.bf16.mxu0 0
      %2826 = vmatpush1.bf16.msra.mxu0 0
      %2827 = vmatprep.subr.bf16.mxu0 0
      %2828 = vmatpush1.bf16.msra.mxu0 0
      %2829 = vmatprep.subr.bf16.mxu0 0
      %2830 = vmatpush1.bf16.msra.mxu0 0
      %2831 = vmatprep.subr.bf16.mxu0 0
      %2832 = vmatpush1.bf16.msra.mxu0 0
      %2833 = vmatprep.subr.bf16.mxu0 0
      %2834 = vmatpush1.bf16.msra.mxu0 0
      %2835 = vmatprep.subr.bf16.mxu0 0
      %2836 = vmatpush1.bf16.msra.mxu0 0
      %2837 = vmatprep.subr.bf16.mxu0 0
      %2838 = vmatpush1.bf16.msra.mxu0 0
      %2839 = vmatprep.subr.bf16.mxu0 0
      %2840 = vmatpush1.bf16.msra.mxu0 %v2823
      %2841 = vmatprep.subr.bf16.mxu0 0
      %2842 = vmatpush2.bf16.msra.mxu0 0
      %2843 = vmatprep.subr.bf16.mxu0 0
      %2844 = vmatpush2.bf16.msra.mxu0 0
      %2845 = vmatprep.subr.bf16.mxu0 0
      %2846 = vmatpush2.bf16.msra.mxu0 0
      %2847 = vmatprep.subr.bf16.mxu0 0
      %2848 = vmatpush2.bf16.msra.mxu0 0
      %2849 = vmatprep.subr.bf16.mxu0 0
      %2850 = vmatpush2.bf16.msra.mxu0 0
      %2851 = vmatprep.subr.bf16.mxu0 0
      %2852 = vmatpush2.bf16.msra.mxu0 0
      %2853 = vmatprep.subr.bf16.mxu0 0
      %2854 = vmatpush2.bf16.msra.mxu0 0
      %2855 = vmatprep.subr.bf16.mxu0 0
      %2856 = vmatpush2.bf16.msra.mxu0 0
      %2857 = vmatprep.mubr.bf16.mxu0 0
      %2858 = vmatmul.mubr.bf16.gmra.mxu0 %v2820
      %v2859 = vpop.f32.mrf.mxu0
      %v2860 = vadd.f32 0.0, %v2859
      %v2861 = vpop.f32.mrf.mxu0
      %v2862 = vpop.f32.mrf.mxu0
      %v2863 = vpop.f32.mrf.mxu0
      %2864 = vdwg.mxu0
      %v2865 = vpack.c.bf16 %v2572, %v2524
      %v2866 = vpack.c.bf16 %v2668, %v2620
      %v2867 = vpack.c.bf16 %v2764, %v2716
      %v2868 = vpack.c.bf16 %v2860, %v2812
      %v2869 = vld [vmem:[%s712 + $0x4] sm:$0xf]
      %v2871 = vsel %vm1077, %v2865, 0
      %v2874 = vsel %vm1077, %v2866, 0
      %v2877 = vsel %vm1077, %v2867, 0
      %v2880 = vsel %vm1077, %v2868, 0
      %v2883 = vsel %vm1584, %v2869, 0
      %2885 = vmatprep.subr.bf16.mxu0 0
      %2886 = vmatpush1.bf16.msra.mxu0 0
      %2887 = vmatprep.subr.bf16.mxu0 0
      %2888 = vmatpush1.bf16.msra.mxu0 0
      %2889 = vmatprep.subr.bf16.mxu0 0
      %2890 = vmatpush1.bf16.msra.mxu0 0
      %2891 = vmatprep.subr.bf16.mxu0 0
      %2892 = vmatpush1.bf16.msra.mxu0 0
      %2893 = vmatprep.subr.bf16.mxu0 0
      %2894 = vmatpush1.bf16.msra.mxu0 0
      %2895 = vmatprep.subr.bf16.mxu0 0
      %2896 = vmatpush1.bf16.msra.mxu0 0
      %2897 = vmatprep.subr.bf16.mxu0 0
      %2898 = vmatpush1.bf16.msra.mxu0 0
      %2899 = vmatprep.subr.bf16.mxu0 0
      %2900 = vmatpush1.bf16.msra.mxu0 %v2883
      %2901 = vmatprep.subr.bf16.mxu0 0
      %2902 = vmatpush2.bf16.msra.mxu0 0
      %2903 = vmatprep.subr.bf16.mxu0 0
      %2904 = vmatpush2.bf16.msra.mxu0 0
      %2905 = vmatprep.subr.bf16.mxu0 0
      %2906 = vmatpush2.bf16.msra.mxu0 0
      %2907 = vmatprep.subr.bf16.mxu0 0
      %2908 = vmatpush2.bf16.msra.mxu0 0
      %2909 = vmatprep.subr.bf16.mxu0 0
      %2910 = vmatpush2.bf16.msra.mxu0 0
      %2911 = vmatprep.subr.bf16.mxu0 0
      %2912 = vmatpush2.bf16.msra.mxu0 0
      %2913 = vmatprep.subr.bf16.mxu0 0
      %2914 = vmatpush2.bf16.msra.mxu0 0
      %2915 = vmatprep.subr.bf16.mxu0 0
      %2916 = vmatpush2.bf16.msra.mxu0 0
      %2917 = vmatprep.mubr.bf16.mxu0 0
      %2918 = vmatmul.mubr.bf16.gmra.mxu0 %v2871
      %v2919 = vpop.f32.mrf.mxu0
      %v2920 = vadd.f32 0.0, %v2919
      %v2921 = vpop.f32.mrf.mxu0
      %v2922 = vpop.f32.mrf.mxu0
      %v2923 = vadd.f32 0.0, %v2922
      %v2924 = vpop.f32.mrf.mxu0
      %2925 = vmatprep.mubr.bf16.mxu0 0
      %2926 = vmatmul.mubr.bf16.gmra.mxu0 %v2874
      %v2927 = vpop.f32.mrf.mxu0
      %v2928 = vadd.f32 0.0, %v2927
      %v2929 = vpop.f32.mrf.mxu0
      %v2930 = vpop.f32.mrf.mxu0
      %v2931 = vadd.f32 0.0, %v2930
      %v2932 = vpop.f32.mrf.mxu0
      %2933 = vmatprep.mubr.bf16.mxu0 0
      %2934 = vmatmul.mubr.bf16.gmra.mxu0 %v2877
      %v2935 = vpop.f32.mrf.mxu0
      %v2936 = vadd.f32 0.0, %v2935
      %v2937 = vpop.f32.mrf.mxu0
      %v2938 = vpop.f32.mrf.mxu0
      %v2939 = vadd.f32 0.0, %v2938
      %v2940 = vpop.f32.mrf.mxu0
      %2941 = vmatprep.mubr.bf16.mxu0 0
      %2942 = vmatmul.mubr.bf16.gmra.mxu0 %v2880
      %v2943 = vpop.f32.mrf.mxu0
      %v2944 = vadd.f32 0.0, %v2943
      %v2945 = vpop.f32.mrf.mxu0
      %v2946 = vpop.f32.mrf.mxu0
      %v2947 = vadd.f32 0.0, %v2946
      %v2948 = vpop.f32.mrf.mxu0
      %2949 = vdwg.mxu0
      %v2951 = vsel %vm1077, %v1964, 0
      %v2954 = vsel %vm1077, %v1965, 0
      %v2957 = vsel %vm1077, %v1966, 0
      %v2960 = vsel %vm1077, %v1967, 0
      %v2963 = vsel %vm1584, %v1968, 0
      %2965 = vmatprep.subr.bf16.mxu0 0
      %2966 = vmatpush1.bf16.msra.mxu0 0
      %2967 = vmatprep.subr.bf16.mxu0 0
      %2968 = vmatpush1.bf16.msra.mxu0 0
      %2969 = vmatprep.subr.bf16.mxu0 0
      %2970 = vmatpush1.bf16.msra.mxu0 0
      %2971 = vmatprep.subr.bf16.mxu0 0
      %2972 = vmatpush1.bf16.msra.mxu0 0
      %2973 = vmatprep.subr.bf16.mxu0 0
      %2974 = vmatpush1.bf16.msra.mxu0 0
      %2975 = vmatprep.subr.bf16.mxu0 0
      %2976 = vmatpush1.bf16.msra.mxu0 0
      %2977 = vmatprep.subr.bf16.mxu0 0
      %2978 = vmatpush1.bf16.msra.mxu0 0
      %2979 = vmatprep.subr.bf16.mxu0 0
      %2980 = vmatpush1.bf16.msra.mxu0 %v2963
      %2981 = vmatprep.subr.bf16.mxu0 0
      %2982 = vmatpush2.bf16.msra.mxu0 0
      %2983 = vmatprep.subr.bf16.mxu0 0
      %2984 = vmatpush2.bf16.msra.mxu0 0
      %2985 = vmatprep.subr.bf16.mxu0 0
      %2986 = vmatpush2.bf16.msra.mxu0 0
      %2987 = vmatprep.subr.bf16.mxu0 0
      %2988 = vmatpush2.bf16.msra.mxu0 0
      %2989 = vmatprep.subr.bf16.mxu0 0
      %2990 = vmatpush2.bf16.msra.mxu0 0
      %2991 = vmatprep.subr.bf16.mxu0 0
      %2992 = vmatpush2.bf16.msra.mxu0 0
      %2993 = vmatprep.subr.bf16.mxu0 0
      %2994 = vmatpush2.bf16.msra.mxu0 0
      %2995 = vmatprep.subr.bf16.mxu0 0
      %2996 = vmatpush2.bf16.msra.mxu0 0
      %2997 = vmatprep.mubr.bf16.mxu0 0
      %2998 = vmatmul.mubr.bf16.gmra.mxu0 %v2951
      %v2999 = vpop.f32.mrf.mxu0
      %v3000 = vadd.f32 %v2920, %v2999
      %v3001 = vpop.f32.mrf.mxu0
      %v3002 = vpop.f32.mrf.mxu0
      %v3003 = vadd.f32 %v2923, %v3002
      %v3004 = vpop.f32.mrf.mxu0
      %3005 = vmatprep.mubr.bf16.mxu0 0
      %3006 = vmatmul.mubr.bf16.gmra.mxu0 %v2954
      %v3007 = vpop.f32.mrf.mxu0
      %v3008 = vadd.f32 %v2928, %v3007
      %v3009 = vpop.f32.mrf.mxu0
      %v3010 = vpop.f32.mrf.mxu0
      %v3011 = vadd.f32 %v2931, %v3010
      %v3012 = vpop.f32.mrf.mxu0
      %3013 = vmatprep.mubr.bf16.mxu0 0
      %3014 = vmatmul.mubr.bf16.gmra.mxu0 %v2957
      %v3015 = vpop.f32.mrf.mxu0
      %v3016 = vadd.f32 %v2936, %v3015
      %v3017 = vpop.f32.mrf.mxu0
      %v3018 = vpop.f32.mrf.mxu0
      %v3019 = vadd.f32 %v2939, %v3018
      %v3020 = vpop.f32.mrf.mxu0
      %3021 = vmatprep.mubr.bf16.mxu0 0
      %3022 = vmatmul.mubr.bf16.gmra.mxu0 %v2960
      %v3023 = vpop.f32.mrf.mxu0
      %v3024 = vadd.f32 %v2944, %v3023
      %v3025 = vpop.f32.mrf.mxu0
      %v3026 = vpop.f32.mrf.mxu0
      %v3027 = vadd.f32 %v2947, %v3026
      %v3028 = vpop.f32.mrf.mxu0
      %3029 = vdwg.mxu0
      %3030 = vrot.lane.b32.xlu0 %v1066, 112
      %v3031 = vpop.permute.xlu0 %3030
      %3032 = vrot.lane.b32.xlu0 %v1066, 80
      %v3033 = vpop.permute.xlu0 %3032
      %v3035 = vsel %vm1077, %v3031, 0
      %v3038 = vsel %vm1077, %v3033, 0
      %3040 = vmatprep.subr.bf16.mxu0 0
      %3041 = vmatpush1.bf16.xpose.msra.mxu0 0
      %3042 = vmatprep.subr.bf16.mxu0 0
      %3043 = vmatpush1.bf16.xpose.msra.mxu0 0
      %3044 = vmatprep.subr.bf16.mxu0 0
      %3045 = vmatpush1.bf16.xpose.msra.mxu0 0
      %3046 = vmatprep.subr.bf16.mxu0 0
      %3047 = vmatpush1.bf16.xpose.msra.mxu0 0
      %3048 = vmatprep.subr.bf16.mxu0 0
      %3049 = vmatpush1.bf16.xpose.msra.mxu0 0
      %3050 = vmatprep.subr.bf16.mxu0 0
      %3051 = vmatpush1.bf16.xpose.msra.mxu0 0
      %3052 = vmatprep.subr.bf16.mxu0 0
      %3053 = vmatpush1.bf16.xpose.msra.mxu0 0
      %3054 = vmatprep.subr.bf16.mxu0 0
      %3055 = vmatpush1.bf16.xpose.msra.mxu0 %v3038
      %3056 = vmatprep.subr.bf16.mxu0 0
      %3057 = vmatpush2.bf16.xpose.msra.mxu0 0
      %3058 = vmatprep.subr.bf16.mxu0 0
      %3059 = vmatpush2.bf16.xpose.msra.mxu0 0
      %3060 = vmatprep.subr.bf16.mxu0 0
      %3061 = vmatpush2.bf16.xpose.msra.mxu0 0
      %3062 = vmatprep.subr.bf16.mxu0 0
      %3063 = vmatpush2.bf16.xpose.msra.mxu0 0
      %3064 = vmatprep.subr.bf16.mxu0 0
      %3065 = vmatpush2.bf16.xpose.msra.mxu0 0
      %3066 = vmatprep.subr.bf16.mxu0 0
      %3067 = vmatpush2.bf16.xpose.msra.mxu0 0
      %3068 = vmatprep.subr.bf16.mxu0 0
      %3069 = vmatpush2.bf16.xpose.msra.mxu0 0
      %3070 = vmatprep.subr.bf16.mxu0 0
      %3071 = vmatpush2.bf16.xpose.msra.mxu0 0
      %3072 = vmatprep.mubr.bf16.mxu0 0
      %3073 = vmatmul.mubr.bf16.gmra.mxu0 %v3035
      %v3074 = vpop.f32.mrf.mxu0
      %v3075 = vadd.f32 0.0, %v3074
      %v3076 = vpop.f32.mrf.mxu0
      %v3077 = vpop.f32.mrf.mxu0
      %v3078 = vpop.f32.mrf.mxu0
      %3079 = vdwg.mxu0
      %3080 = vrot.lane.b32.xlu0 %v1067, 112
      %v3081 = vpop.permute.xlu0 %3080
      %3082 = vrot.lane.b32.xlu0 %v1067, 80
      %v3083 = vpop.permute.xlu0 %3082
      %v3085 = vsel %vm1077, %v3081, 0
      %v3088 = vsel %vm1077, %v3083, 0
      %3090 = vmatprep.subr.bf16.mxu0 0
      %3091 = vmatpush1.bf16.xpose.msra.mxu0 0
      %3092 = vmatprep.subr.bf16.mxu0 0
      %3093 = vmatpush1.bf16.xpose.msra.mxu0 0
      %3094 = vmatprep.subr.bf16.mxu0 0
      %3095 = vmatpush1.bf16.xpose.msra.mxu0 0
      %3096 = vmatprep.subr.bf16.mxu0 0
      %3097 = vmatpush1.bf16.xpose.msra.mxu0 0
      %3098 = vmatprep.subr.bf16.mxu0 0
      %3099 = vmatpush1.bf16.xpose.msra.mxu0 0
      %3100 = vmatprep.subr.bf16.mxu0 0
      %3101 = vmatpush1.bf16.xpose.msra.mxu0 0
      %3102 = vmatprep.subr.bf16.mxu0 0
      %3103 = vmatpush1.bf16.xpose.msra.mxu0 0
      %3104 = vmatprep.subr.bf16.mxu0 0
      %3105 = vmatpush1.bf16.xpose.msra.mxu0 %v3088
      %3106 = vmatprep.subr.bf16.mxu0 0
      %3107 = vmatpush2.bf16.xpose.msra.mxu0 0
      %3108 = vmatprep.subr.bf16.mxu0 0
      %3109 = vmatpush2.bf16.xpose.msra.mxu0 0
      %3110 = vmatprep.subr.bf16.mxu0 0
      %3111 = vmatpush2.bf16.xpose.msra.mxu0 0
      %3112 = vmatprep.subr.bf16.mxu0 0
      %3113 = vmatpush2.bf16.xpose.msra.mxu0 0
      %3114 = vmatprep.subr.bf16.mxu0 0
      %3115 = vmatpush2.bf16.xpose.msra.mxu0 0
      %3116 = vmatprep.subr.bf16.mxu0 0
      %3117 = vmatpush2.bf16.xpose.msra.mxu0 0
      %3118 = vmatprep.subr.bf16.mxu0 0
      %3119 = vmatpush2.bf16.xpose.msra.mxu0 0
      %3120 = vmatprep.subr.bf16.mxu0 0
      %3121 = vmatpush2.bf16.xpose.msra.mxu0 0
      %3122 = vmatprep.mubr.bf16.mxu0 0
      %3123 = vmatmul.mubr.bf16.gmra.mxu0 %v3085
      %v3124 = vpop.f32.mrf.mxu0
      %v3125 = vadd.f32 0.0, %v3124
      %v3126 = vpop.f32.mrf.mxu0
      %v3127 = vpop.f32.mrf.mxu0
      %v3128 = vpop.f32.mrf.mxu0
      %3129 = vdwg.mxu0
      %3130 = vrot.lane.b32.xlu0 %v1068, 112
      %v3131 = vpop.permute.xlu0 %3130
      %3132 = vrot.lane.b32.xlu0 %v1068, 80
      %v3133 = vpop.permute.xlu0 %3132
      %v3135 = vsel %vm1077, %v3131, 0
      %v3138 = vsel %vm1077, %v3133, 0
      %3140 = vmatprep.subr.bf16.mxu0 0
      %3141 = vmatpush1.bf16.xpose.msra.mxu0 0
      %3142 = vmatprep.subr.bf16.mxu0 0
      %3143 = vmatpush1.bf16.xpose.msra.mxu0 0
      %3144 = vmatprep.subr.bf16.mxu0 0
      %3145 = vmatpush1.bf16.xpose.msra.mxu0 0
      %3146 = vmatprep.subr.bf16.mxu0 0
      %3147 = vmatpush1.bf16.xpose.msra.mxu0 0
      %3148 = vmatprep.subr.bf16.mxu0 0
      %3149 = vmatpush1.bf16.xpose.msra.mxu0 0
      %3150 = vmatprep.subr.bf16.mxu0 0
      %3151 = vmatpush1.bf16.xpose.msra.mxu0 0
      %3152 = vmatprep.subr.bf16.mxu0 0
      %3153 = vmatpush1.bf16.xpose.msra.mxu0 0
      %3154 = vmatprep.subr.bf16.mxu0 0
      %3155 = vmatpush1.bf16.xpose.msra.mxu0 %v3138
      %3156 = vmatprep.subr.bf16.mxu0 0
      %3157 = vmatpush2.bf16.xpose.msra.mxu0 0
      %3158 = vmatprep.subr.bf16.mxu0 0
      %3159 = vmatpush2.bf16.xpose.msra.mxu0 0
      %3160 = vmatprep.subr.bf16.mxu0 0
      %3161 = vmatpush2.bf16.xpose.msra.mxu0 0
      %3162 = vmatprep.subr.bf16.mxu0 0
      %3163 = vmatpush2.bf16.xpose.msra.mxu0 0
      %3164 = vmatprep.subr.bf16.mxu0 0
      %3165 = vmatpush2.bf16.xpose.msra.mxu0 0
      %3166 = vmatprep.subr.bf16.mxu0 0
      %3167 = vmatpush2.bf16.xpose.msra.mxu0 0
      %3168 = vmatprep.subr.bf16.mxu0 0
      %3169 = vmatpush2.bf16.xpose.msra.mxu0 0
      %3170 = vmatprep.subr.bf16.mxu0 0
      %3171 = vmatpush2.bf16.xpose.msra.mxu0 0
      %3172 = vmatprep.mubr.bf16.mxu0 0
      %3173 = vmatmul.mubr.bf16.gmra.mxu0 %v3135
      %v3174 = vpop.f32.mrf.mxu0
      %v3175 = vadd.f32 0.0, %v3174
      %v3176 = vpop.f32.mrf.mxu0
      %v3177 = vpop.f32.mrf.mxu0
      %v3178 = vpop.f32.mrf.mxu0
      %3179 = vdwg.mxu0
      %3180 = vrot.lane.b32.xlu0 %v1069, 112
      %v3181 = vpop.permute.xlu0 %3180
      %3182 = vrot.lane.b32.xlu0 %v1069, 80
      %v3183 = vpop.permute.xlu0 %3182
      %v3185 = vsel %vm1077, %v3181, 0
      %v3188 = vsel %vm1077, %v3183, 0
      %3190 = vmatprep.subr.bf16.mxu0 0
      %3191 = vmatpush1.bf16.xpose.msra.mxu0 0
      %3192 = vmatprep.subr.bf16.mxu0 0
      %3193 = vmatpush1.bf16.xpose.msra.mxu0 0
      %3194 = vmatprep.subr.bf16.mxu0 0
      %3195 = vmatpush1.bf16.xpose.msra.mxu0 0
      %3196 = vmatprep.subr.bf16.mxu0 0
      %3197 = vmatpush1.bf16.xpose.msra.mxu0 0
      %3198 = vmatprep.subr.bf16.mxu0 0
      %3199 = vmatpush1.bf16.xpose.msra.mxu0 0
      %3200 = vmatprep.subr.bf16.mxu0 0
      %3201 = vmatpush1.bf16.xpose.msra.mxu0 0
      %3202 = vmatprep.subr.bf16.mxu0 0
      %3203 = vmatpush1.bf16.xpose.msra.mxu0 0
      %3204 = vmatprep.subr.bf16.mxu0 0
      %3205 = vmatpush1.bf16.xpose.msra.mxu0 %v3188
      %3206 = vmatprep.subr.bf16.mxu0 0
      %3207 = vmatpush2.bf16.xpose.msra.mxu0 0
      %3208 = vmatprep.subr.bf16.mxu0 0
      %3209 = vmatpush2.bf16.xpose.msra.mxu0 0
      %3210 = vmatprep.subr.bf16.mxu0 0
      %3211 = vmatpush2.bf16.xpose.msra.mxu0 0
      %3212 = vmatprep.subr.bf16.mxu0 0
      %3213 = vmatpush2.bf16.xpose.msra.mxu0 0
      %3214 = vmatprep.subr.bf16.mxu0 0
      %3215 = vmatpush2.bf16.xpose.msra.mxu0 0
      %3216 = vmatprep.subr.bf16.mxu0 0
      %3217 = vmatpush2.bf16.xpose.msra.mxu0 0
      %3218 = vmatprep.subr.bf16.mxu0 0
      %3219 = vmatpush2.bf16.xpose.msra.mxu0 0
      %3220 = vmatprep.subr.bf16.mxu0 0
      %3221 = vmatpush2.bf16.xpose.msra.mxu0 0
      %3222 = vmatprep.mubr.bf16.mxu0 0
      %3223 = vmatmul.mubr.bf16.gmra.mxu0 %v3185
      %v3224 = vpop.f32.mrf.mxu0
      %v3225 = vadd.f32 0.0, %v3224
      %v3226 = vpop.f32.mrf.mxu0
      %v3227 = vpop.f32.mrf.mxu0
      %v3228 = vpop.f32.mrf.mxu0
      %3229 = vdwg.mxu0
      %3230 = vrot.lane.b32.xlu0 %v1070, 112
      %v3231 = vpop.permute.xlu0 %3230
      %3232 = vrot.lane.b32.xlu0 %v1070, 80
      %v3233 = vpop.permute.xlu0 %3232
      %v3235 = vsel %vm1077, %v3231, 0
      %v3238 = vsel %vm1077, %v3233, 0
      %3240 = vmatprep.subr.bf16.mxu0 0
      %3241 = vmatpush1.bf16.xpose.msra.mxu0 0
      %3242 = vmatprep.subr.bf16.mxu0 0
      %3243 = vmatpush1.bf16.xpose.msra.mxu0 0
      %3244 = vmatprep.subr.bf16.mxu0 0
      %3245 = vmatpush1.bf16.xpose.msra.mxu0 0
      %3246 = vmatprep.subr.bf16.mxu0 0
      %3247 = vmatpush1.bf16.xpose.msra.mxu0 0
      %3248 = vmatprep.subr.bf16.mxu0 0
      %3249 = vmatpush1.bf16.xpose.msra.mxu0 0
      %3250 = vmatprep.subr.bf16.mxu0 0
      %3251 = vmatpush1.bf16.xpose.msra.mxu0 0
      %3252 = vmatprep.subr.bf16.mxu0 0
      %3253 = vmatpush1.bf16.xpose.msra.mxu0 0
      %3254 = vmatprep.subr.bf16.mxu0 0
      %3255 = vmatpush1.bf16.xpose.msra.mxu0 %v3238
      %3256 = vmatprep.subr.bf16.mxu0 0
      %3257 = vmatpush2.bf16.xpose.msra.mxu0 0
      %3258 = vmatprep.subr.bf16.mxu0 0
      %3259 = vmatpush2.bf16.xpose.msra.mxu0 0
      %3260 = vmatprep.subr.bf16.mxu0 0
      %3261 = vmatpush2.bf16.xpose.msra.mxu0 0
      %3262 = vmatprep.subr.bf16.mxu0 0
      %3263 = vmatpush2.bf16.xpose.msra.mxu0 0
      %3264 = vmatprep.subr.bf16.mxu0 0
      %3265 = vmatpush2.bf16.xpose.msra.mxu0 0
      %3266 = vmatprep.subr.bf16.mxu0 0
      %3267 = vmatpush2.bf16.xpose.msra.mxu0 0
      %3268 = vmatprep.subr.bf16.mxu0 0
      %3269 = vmatpush2.bf16.xpose.msra.mxu0 0
      %3270 = vmatprep.subr.bf16.mxu0 0
      %3271 = vmatpush2.bf16.xpose.msra.mxu0 0
      %3272 = vmatprep.mubr.bf16.mxu0 0
      %3273 = vmatmul.mubr.bf16.gmra.mxu0 %v3235
      %v3274 = vpop.f32.mrf.mxu0
      %v3275 = vadd.f32 0.0, %v3274
      %v3276 = vpop.f32.mrf.mxu0
      %v3277 = vpop.f32.mrf.mxu0
      %v3278 = vpop.f32.mrf.mxu0
      %3279 = vdwg.mxu0
      %3280 = vrot.lane.b32.xlu0 %v1071, 112
      %v3281 = vpop.permute.xlu0 %3280
      %3282 = vrot.lane.b32.xlu0 %v1071, 80
      %v3283 = vpop.permute.xlu0 %3282
      %v3285 = vsel %vm1077, %v3281, 0
      %v3288 = vsel %vm1077, %v3283, 0
      %3290 = vmatprep.subr.bf16.mxu0 0
      %3291 = vmatpush1.bf16.xpose.msra.mxu0 0
      %3292 = vmatprep.subr.bf16.mxu0 0
      %3293 = vmatpush1.bf16.xpose.msra.mxu0 0
      %3294 = vmatprep.subr.bf16.mxu0 0
      %3295 = vmatpush1.bf16.xpose.msra.mxu0 0
      %3296 = vmatprep.subr.bf16.mxu0 0
      %3297 = vmatpush1.bf16.xpose.msra.mxu0 0
      %3298 = vmatprep.subr.bf16.mxu0 0
      %3299 = vmatpush1.bf16.xpose.msra.mxu0 0
      %3300 = vmatprep.subr.bf16.mxu0 0
      %3301 = vmatpush1.bf16.xpose.msra.mxu0 0
      %3302 = vmatprep.subr.bf16.mxu0 0
      %3303 = vmatpush1.bf16.xpose.msra.mxu0 0
      %3304 = vmatprep.subr.bf16.mxu0 0
      %3305 = vmatpush1.bf16.xpose.msra.mxu0 %v3288
      %3306 = vmatprep.subr.bf16.mxu0 0
      %3307 = vmatpush2.bf16.xpose.msra.mxu0 0
      %3308 = vmatprep.subr.bf16.mxu0 0
      %3309 = vmatpush2.bf16.xpose.msra.mxu0 0
      %3310 = vmatprep.subr.bf16.mxu0 0
      %3311 = vmatpush2.bf16.xpose.msra.mxu0 0
      %3312 = vmatprep.subr.bf16.mxu0 0
      %3313 = vmatpush2.bf16.xpose.msra.mxu0 0
      %3314 = vmatprep.subr.bf16.mxu0 0
      %3315 = vmatpush2.bf16.xpose.msra.mxu0 0
      %3316 = vmatprep.subr.bf16.mxu0 0
      %3317 = vmatpush2.bf16.xpose.msra.mxu0 0
      %3318 = vmatprep.subr.bf16.mxu0 0
      %3319 = vmatpush2.bf16.xpose.msra.mxu0 0
      %3320 = vmatprep.subr.bf16.mxu0 0
      %3321 = vmatpush2.bf16.xpose.msra.mxu0 0
      %3322 = vmatprep.mubr.bf16.mxu0 0
      %3323 = vmatmul.mubr.bf16.gmra.mxu0 %v3285
      %v3324 = vpop.f32.mrf.mxu0
      %v3325 = vadd.f32 0.0, %v3324
      %v3326 = vpop.f32.mrf.mxu0
      %v3327 = vpop.f32.mrf.mxu0
      %v3328 = vpop.f32.mrf.mxu0
      %3329 = vdwg.mxu0
      %3330 = vrot.lane.b32.xlu0 %v1072, 112
      %v3331 = vpop.permute.xlu0 %3330
      %3332 = vrot.lane.b32.xlu0 %v1072, 80
      %v3333 = vpop.permute.xlu0 %3332
      %v3335 = vsel %vm1077, %v3331, 0
      %v3338 = vsel %vm1077, %v3333, 0
      %3340 = vmatprep.subr.bf16.mxu0 0
      %3341 = vmatpush1.bf16.xpose.msra.mxu0 0
      %3342 = vmatprep.subr.bf16.mxu0 0
      %3343 = vmatpush1.bf16.xpose.msra.mxu0 0
      %3344 = vmatprep.subr.bf16.mxu0 0
      %3345 = vmatpush1.bf16.xpose.msra.mxu0 0
      %3346 = vmatprep.subr.bf16.mxu0 0
      %3347 = vmatpush1.bf16.xpose.msra.mxu0 0
      %3348 = vmatprep.subr.bf16.mxu0 0
      %3349 = vmatpush1.bf16.xpose.msra.mxu0 0
      %3350 = vmatprep.subr.bf16.mxu0 0
      %3351 = vmatpush1.bf16.xpose.msra.mxu0 0
      %3352 = vmatprep.subr.bf16.mxu0 0
      %3353 = vmatpush1.bf16.xpose.msra.mxu0 0
      %3354 = vmatprep.subr.bf16.mxu0 0
      %3355 = vmatpush1.bf16.xpose.msra.mxu0 %v3338
      %3356 = vmatprep.subr.bf16.mxu0 0
      %3357 = vmatpush2.bf16.xpose.msra.mxu0 0
      %3358 = vmatprep.subr.bf16.mxu0 0
      %3359 = vmatpush2.bf16.xpose.msra.mxu0 0
      %3360 = vmatprep.subr.bf16.mxu0 0
      %3361 = vmatpush2.bf16.xpose.msra.mxu0 0
      %3362 = vmatprep.subr.bf16.mxu0 0
      %3363 = vmatpush2.bf16.xpose.msra.mxu0 0
      %3364 = vmatprep.subr.bf16.mxu0 0
      %3365 = vmatpush2.bf16.xpose.msra.mxu0 0
      %3366 = vmatprep.subr.bf16.mxu0 0
      %3367 = vmatpush2.bf16.xpose.msra.mxu0 0
      %3368 = vmatprep.subr.bf16.mxu0 0
      %3369 = vmatpush2.bf16.xpose.msra.mxu0 0
      %3370 = vmatprep.subr.bf16.mxu0 0
      %3371 = vmatpush2.bf16.xpose.msra.mxu0 0
      %3372 = vmatprep.mubr.bf16.mxu0 0
      %3373 = vmatmul.mubr.bf16.gmra.mxu0 %v3335
      %v3374 = vpop.f32.mrf.mxu0
      %v3375 = vadd.f32 0.0, %v3374
      %v3376 = vpop.f32.mrf.mxu0
      %v3377 = vpop.f32.mrf.mxu0
      %v3378 = vpop.f32.mrf.mxu0
      %3379 = vdwg.mxu0
      %3380 = vrot.lane.b32.xlu0 %v1073, 112
      %v3381 = vpop.permute.xlu0 %3380
      %3382 = vrot.lane.b32.xlu0 %v1073, 80
      %v3383 = vpop.permute.xlu0 %3382
      %v3385 = vsel %vm1077, %v3381, 0
      %v3388 = vsel %vm1077, %v3383, 0
      %3390 = vmatprep.subr.bf16.mxu0 0
      %3391 = vmatpush1.bf16.xpose.msra.mxu0 0
      %3392 = vmatprep.subr.bf16.mxu0 0
      %3393 = vmatpush1.bf16.xpose.msra.mxu0 0
      %3394 = vmatprep.subr.bf16.mxu0 0
      %3395 = vmatpush1.bf16.xpose.msra.mxu0 0
      %3396 = vmatprep.subr.bf16.mxu0 0
      %3397 = vmatpush1.bf16.xpose.msra.mxu0 0
      %3398 = vmatprep.subr.bf16.mxu0 0
      %3399 = vmatpush1.bf16.xpose.msra.mxu0 0
      %3400 = vmatprep.subr.bf16.mxu0 0
      %3401 = vmatpush1.bf16.xpose.msra.mxu0 0
      %3402 = vmatprep.subr.bf16.mxu0 0
      %3403 = vmatpush1.bf16.xpose.msra.mxu0 0
      %3404 = vmatprep.subr.bf16.mxu0 0
      %3405 = vmatpush1.bf16.xpose.msra.mxu0 %v3388
      %3406 = vmatprep.subr.bf16.mxu0 0
      %3407 = vmatpush2.bf16.xpose.msra.mxu0 0
      %3408 = vmatprep.subr.bf16.mxu0 0
      %3409 = vmatpush2.bf16.xpose.msra.mxu0 0
      %3410 = vmatprep.subr.bf16.mxu0 0
      %3411 = vmatpush2.bf16.xpose.msra.mxu0 0
      %3412 = vmatprep.subr.bf16.mxu0 0
      %3413 = vmatpush2.bf16.xpose.msra.mxu0 0
      %3414 = vmatprep.subr.bf16.mxu0 0
      %3415 = vmatpush2.bf16.xpose.msra.mxu0 0
      %3416 = vmatprep.subr.bf16.mxu0 0
      %3417 = vmatpush2.bf16.xpose.msra.mxu0 0
      %3418 = vmatprep.subr.bf16.mxu0 0
      %3419 = vmatpush2.bf16.xpose.msra.mxu0 0
      %3420 = vmatprep.subr.bf16.mxu0 0
      %3421 = vmatpush2.bf16.xpose.msra.mxu0 0
      %3422 = vmatprep.mubr.bf16.mxu0 0
      %3423 = vmatmul.mubr.bf16.gmra.mxu0 %v3385
      %v3424 = vpop.f32.mrf.mxu0
      %v3425 = vadd.f32 0.0, %v3424
      %v3426 = vpop.f32.mrf.mxu0
      %v3427 = vpop.f32.mrf.mxu0
      %v3428 = vpop.f32.mrf.mxu0
      %3429 = vdwg.mxu0
      %v3430 = vmul.f32 %v3075, 0.35355338
      %v3431 = vmul.f32 %v3125, 0.35355338
      %v3432 = vmul.f32 %v3175, 0.35355338
      %v3433 = vmul.f32 %v3225, 0.35355338
      %v3434 = vmul.f32 %v3275, 0.35355338
      %v3435 = vmul.f32 %v3325, 0.35355338
      %v3436 = vmul.f32 %v3375, 0.35355338
      %v3437 = vmul.f32 %v3425, 0.35355338
      %v3438 = vadd.f32 %v3430, %v794
      %v3439 = vadd.f32 %v3431, %v795
      %v3440 = vadd.f32 %v3432, %v796
      %v3441 = vadd.f32 %v3433, %v797
      %v3442 = vadd.f32 %v3434, %v798
      %v3443 = vadd.f32 %v3435, %v799
      %v3444 = vadd.f32 %v3436, %v800
      %v3445 = vadd.f32 %v3437, %v801
      %v3446 = vsel %vm1077, %v3438, -inf
      %3447 = vmax.xlane.f32.xlu0 %v3446
      %v3448 = vpop.xlane.xlu0 %3447
      %v3449 = vsel %vm1077, %v3439, -inf
      %3450 = vmax.xlane.f32.xlu0 %v3449
      %v3451 = vpop.xlane.xlu0 %3450
      %v3452 = vsel %vm1077, %v3440, -inf
      %3453 = vmax.xlane.f32.xlu0 %v3452
      %v3454 = vpop.xlane.xlu0 %3453
      %v3455 = vsel %vm1077, %v3441, -inf
      %3456 = vmax.xlane.f32.xlu0 %v3455
      %v3457 = vpop.xlane.xlu0 %3456
      %v3458 = vsel %vm1077, %v3442, -inf
      %3459 = vmax.xlane.f32.xlu0 %v3458
      %v3460 = vpop.xlane.xlu0 %3459
      %v3461 = vsel %vm1077, %v3443, -inf
      %3462 = vmax.xlane.f32.xlu0 %v3461
      %v3463 = vpop.xlane.xlu0 %3462
      %v3464 = vsel %vm1077, %v3444, -inf
      %3465 = vmax.xlane.f32.xlu0 %v3464
      %v3466 = vpop.xlane.xlu0 %3465
      %v3467 = vsel %vm1077, %v3445, -inf
      %3468 = vmax.xlane.f32.xlu0 %v3467
      %v3469 = vpop.xlane.xlu0 %3468
      %v3470 = vsub.f32 %v3438, %v3448
      %v3471 = vsub.f32 %v3439, %v3451
      %v3472 = vsub.f32 %v3440, %v3454
      %v3473 = vsub.f32 %v3441, %v3457
      %v3474 = vsub.f32 %v3442, %v3460
      %v3475 = vsub.f32 %v3443, %v3463
      %v3476 = vsub.f32 %v3444, %v3466
      %v3477 = vsub.f32 %v3445, %v3469
      %v3478 = vmul.f32 %v3470, 1.442695
      %v3479 = vpow.pop %v3478
      %v3480 = vmul.f32 %v3471, 1.442695
      %v3481 = vpow.pop %v3480
      %v3482 = vmul.f32 %v3472, 1.442695
      %v3483 = vpow.pop %v3482
      %v3484 = vmul.f32 %v3473, 1.442695
      %v3485 = vpow.pop %v3484
      %v3486 = vmul.f32 %v3474, 1.442695
      %v3487 = vpow.pop %v3486
      %v3488 = vmul.f32 %v3475, 1.442695
      %v3489 = vpow.pop %v3488
      %v3490 = vmul.f32 %v3476, 1.442695
      %v3491 = vpow.pop %v3490
      %v3492 = vmul.f32 %v3477, 1.442695
      %v3493 = vpow.pop %v3492
      %v3494 = vsel %vm1077, %v3479, 0.0
      %3495 = vadd.xlane.f32.xlu0 %v3494
      %v3496 = vpop.xlane.xlu0 %3495
      %v3497 = vsel %vm1077, %v3481, 0.0
      %3498 = vadd.xlane.f32.xlu0 %v3497
      %v3499 = vpop.xlane.xlu0 %3498
      %v3500 = vsel %vm1077, %v3483, 0.0
      %3501 = vadd.xlane.f32.xlu0 %v3500
      %v3502 = vpop.xlane.xlu0 %3501
      %v3503 = vsel %vm1077, %v3485, 0.0
      %3504 = vadd.xlane.f32.xlu0 %v3503
      %v3505 = vpop.xlane.xlu0 %3504
      %v3506 = vsel %vm1077, %v3487, 0.0
      %3507 = vadd.xlane.f32.xlu0 %v3506
      %v3508 = vpop.xlane.xlu0 %3507
      %v3509 = vsel %vm1077, %v3489, 0.0
      %3510 = vadd.xlane.f32.xlu0 %v3509
      %v3511 = vpop.xlane.xlu0 %3510
      %v3512 = vsel %vm1077, %v3491, 0.0
      %3513 = vadd.xlane.f32.xlu0 %v3512
      %v3514 = vpop.xlane.xlu0 %3513
      %v3515 = vsel %vm1077, %v3493, 0.0
      %3516 = vadd.xlane.f32.xlu0 %v3515
      %v3517 = vpop.xlane.xlu0 %3516
      %v3518 = vrcp.pop %v3496
      %v3519 = vrcp.pop %v3499
      %v3520 = vrcp.pop %v3502
      %v3521 = vrcp.pop %v3505
      %v3522 = vrcp.pop %v3508
      %v3523 = vrcp.pop %v3511
      %v3524 = vrcp.pop %v3514
      %v3525 = vrcp.pop %v3517
      %v3526 = vmul.f32 %v3479, %v3518
      %v3527 = vmul.f32 %v3481, %v3519
      %v3528 = vmul.f32 %v3483, %v3520
      %v3529 = vmul.f32 %v3485, %v3521
      %v3530 = vmul.f32 %v3487, %v3522
      %v3531 = vmul.f32 %v3489, %v3523
      %v3532 = vmul.f32 %v3491, %v3524
      %v3533 = vmul.f32 %v3493, %v3525
      %v3534 = vpack.c.bf16 %v3526, %v3526
      %v3535 = vpack.c.bf16 %v3527, %v3527
      %v3536 = vpack.c.bf16 %v3528, %v3528
      %v3537 = vpack.c.bf16 %v3529, %v3529
      %v3538 = vpack.c.bf16 %v3530, %v3530
      %v3539 = vpack.c.bf16 %v3531, %v3531
      %v3540 = vpack.c.bf16 %v3532, %v3532
      %v3541 = vpack.c.bf16 %v3533, %v3533
      %3542 = vrot.lane.b32.xlu0 %v1066, 48
      %v3543 = vpop.permute.xlu0 %3542
      %v3545 = vsel %vm1077, %v3534, 0
      %v3548 = vsel %vm1584, %v3543, 0
      %3550 = vmatprep.subr.bf16.mxu0 0
      %3551 = vmatpush1.bf16.msra.mxu0 0
      %3552 = vmatprep.subr.bf16.mxu0 0
      %3553 = vmatpush1.bf16.msra.mxu0 0
      %3554 = vmatprep.subr.bf16.mxu0 0
      %3555 = vmatpush1.bf16.msra.mxu0 0
      %3556 = vmatprep.subr.bf16.mxu0 0
      %3557 = vmatpush1.bf16.msra.mxu0 0
      %3558 = vmatprep.subr.bf16.mxu0 0
      %3559 = vmatpush1.bf16.msra.mxu0 0
      %3560 = vmatprep.subr.bf16.mxu0 0
      %3561 = vmatpush1.bf16.msra.mxu0 0
      %3562 = vmatprep.subr.bf16.mxu0 0
      %3563 = vmatpush1.bf16.msra.mxu0 0
      %3564 = vmatprep.subr.bf16.mxu0 0
      %3565 = vmatpush1.bf16.msra.mxu0 %v3548
      %3566 = vmatprep.subr.bf16.mxu0 0
      %3567 = vmatpush2.bf16.msra.mxu0 0
      %3568 = vmatprep.subr.bf16.mxu0 0
      %3569 = vmatpush2.bf16.msra.mxu0 0
      %3570 = vmatprep.subr.bf16.mxu0 0
      %3571 = vmatpush2.bf16.msra.mxu0 0
      %3572 = vmatprep.subr.bf16.mxu0 0
      %3573 = vmatpush2.bf16.msra.mxu0 0
      %3574 = vmatprep.subr.bf16.mxu0 0
      %3575 = vmatpush2.bf16.msra.mxu0 0
      %3576 = vmatprep.subr.bf16.mxu0 0
      %3577 = vmatpush2.bf16.msra.mxu0 0
      %3578 = vmatprep.subr.bf16.mxu0 0
      %3579 = vmatpush2.bf16.msra.mxu0 0
      %3580 = vmatprep.subr.bf16.mxu0 0
      %3581 = vmatpush2.bf16.msra.mxu0 0
      %3582 = vmatprep.mubr.bf16.mxu0 0
      %3583 = vmatmul.mubr.bf16.gmra.mxu0 %v3545
      %v3584 = vpop.f32.mrf.mxu0
      %v3585 = vadd.f32 0.0, %v3584
      %v3586 = vpop.f32.mrf.mxu0
      %v3587 = vpop.f32.mrf.mxu0
      %v3588 = vpop.f32.mrf.mxu0
      %3589 = vdwg.mxu0
      %3590 = vrot.lane.b32.xlu0 %v1067, 48
      %v3591 = vpop.permute.xlu0 %3590
      %v3593 = vsel %vm1077, %v3535, 0
      %v3596 = vsel %vm1584, %v3591, 0
      %3598 = vmatprep.subr.bf16.mxu0 0
      %3599 = vmatpush1.bf16.msra.mxu0 0
      %3600 = vmatprep.subr.bf16.mxu0 0
      %3601 = vmatpush1.bf16.msra.mxu0 0
      %3602 = vmatprep.subr.bf16.mxu0 0
      %3603 = vmatpush1.bf16.msra.mxu0 0
      %3604 = vmatprep.subr.bf16.mxu0 0
      %3605 = vmatpush1.bf16.msra.mxu0 0
      %3606 = vmatprep.subr.bf16.mxu0 0
      %3607 = vmatpush1.bf16.msra.mxu0 0
      %3608 = vmatprep.subr.bf16.mxu0 0
      %3609 = vmatpush1.bf16.msra.mxu0 0
      %3610 = vmatprep.subr.bf16.mxu0 0
      %3611 = vmatpush1.bf16.msra.mxu0 0
      %3612 = vmatprep.subr.bf16.mxu0 0
      %3613 = vmatpush1.bf16.msra.mxu0 %v3596
      %3614 = vmatprep.subr.bf16.mxu0 0
      %3615 = vmatpush2.bf16.msra.mxu0 0
      %3616 = vmatprep.subr.bf16.mxu0 0
      %3617 = vmatpush2.bf16.msra.mxu0 0
      %3618 = vmatprep.subr.bf16.mxu0 0
      %3619 = vmatpush2.bf16.msra.mxu0 0
      %3620 = vmatprep.subr.bf16.mxu0 0
      %3621 = vmatpush2.bf16.msra.mxu0 0
      %3622 = vmatprep.subr.bf16.mxu0 0
      %3623 = vmatpush2.bf16.msra.mxu0 0
      %3624 = vmatprep.subr.bf16.mxu0 0
      %3625 = vmatpush2.bf16.msra.mxu0 0
      %3626 = vmatprep.subr.bf16.mxu0 0
      %3627 = vmatpush2.bf16.msra.mxu0 0
      %3628 = vmatprep.subr.bf16.mxu0 0
      %3629 = vmatpush2.bf16.msra.mxu0 0
      %3630 = vmatprep.mubr.bf16.mxu0 0
      %3631 = vmatmul.mubr.bf16.gmra.mxu0 %v3593
      %v3632 = vpop.f32.mrf.mxu0
      %v3633 = vadd.f32 0.0, %v3632
      %v3634 = vpop.f32.mrf.mxu0
      %v3635 = vpop.f32.mrf.mxu0
      %v3636 = vpop.f32.mrf.mxu0
      %3637 = vdwg.mxu0
      %3638 = vrot.lane.b32.xlu0 %v1068, 48
      %v3639 = vpop.permute.xlu0 %3638
      %v3641 = vsel %vm1077, %v3536, 0
      %v3644 = vsel %vm1584, %v3639, 0
      %3646 = vmatprep.subr.bf16.mxu0 0
      %3647 = vmatpush1.bf16.msra.mxu0 0
      %3648 = vmatprep.subr.bf16.mxu0 0
      %3649 = vmatpush1.bf16.msra.mxu0 0
      %3650 = vmatprep.subr.bf16.mxu0 0
      %3651 = vmatpush1.bf16.msra.mxu0 0
      %3652 = vmatprep.subr.bf16.mxu0 0
      %3653 = vmatpush1.bf16.msra.mxu0 0
      %3654 = vmatprep.subr.bf16.mxu0 0
      %3655 = vmatpush1.bf16.msra.mxu0 0
      %3656 = vmatprep.subr.bf16.mxu0 0
      %3657 = vmatpush1.bf16.msra.mxu0 0
      %3658 = vmatprep.subr.bf16.mxu0 0
      %3659 = vmatpush1.bf16.msra.mxu0 0
      %3660 = vmatprep.subr.bf16.mxu0 0
      %3661 = vmatpush1.bf16.msra.mxu0 %v3644
      %3662 = vmatprep.subr.bf16.mxu0 0
      %3663 = vmatpush2.bf16.msra.mxu0 0
      %3664 = vmatprep.subr.bf16.mxu0 0
      %3665 = vmatpush2.bf16.msra.mxu0 0
      %3666 = vmatprep.subr.bf16.mxu0 0
      %3667 = vmatpush2.bf16.msra.mxu0 0
      %3668 = vmatprep.subr.bf16.mxu0 0
      %3669 = vmatpush2.bf16.msra.mxu0 0
      %3670 = vmatprep.subr.bf16.mxu0 0
      %3671 = vmatpush2.bf16.msra.mxu0 0
      %3672 = vmatprep.subr.bf16.mxu0 0
      %3673 = vmatpush2.bf16.msra.mxu0 0
      %3674 = vmatprep.subr.bf16.mxu0 0
      %3675 = vmatpush2.bf16.msra.mxu0 0
      %3676 = vmatprep.subr.bf16.mxu0 0
      %3677 = vmatpush2.bf16.msra.mxu0 0
      %3678 = vmatprep.mubr.bf16.mxu0 0
      %3679 = vmatmul.mubr.bf16.gmra.mxu0 %v3641
      %v3680 = vpop.f32.mrf.mxu0
      %v3681 = vadd.f32 0.0, %v3680
      %v3682 = vpop.f32.mrf.mxu0
      %v3683 = vpop.f32.mrf.mxu0
      %v3684 = vpop.f32.mrf.mxu0
      %3685 = vdwg.mxu0
      %3686 = vrot.lane.b32.xlu0 %v1069, 48
      %v3687 = vpop.permute.xlu0 %3686
      %v3689 = vsel %vm1077, %v3537, 0
      %v3692 = vsel %vm1584, %v3687, 0
      %3694 = vmatprep.subr.bf16.mxu0 0
      %3695 = vmatpush1.bf16.msra.mxu0 0
      %3696 = vmatprep.subr.bf16.mxu0 0
      %3697 = vmatpush1.bf16.msra.mxu0 0
      %3698 = vmatprep.subr.bf16.mxu0 0
      %3699 = vmatpush1.bf16.msra.mxu0 0
      %3700 = vmatprep.subr.bf16.mxu0 0
      %3701 = vmatpush1.bf16.msra.mxu0 0
      %3702 = vmatprep.subr.bf16.mxu0 0
      %3703 = vmatpush1.bf16.msra.mxu0 0
      %3704 = vmatprep.subr.bf16.mxu0 0
      %3705 = vmatpush1.bf16.msra.mxu0 0
      %3706 = vmatprep.subr.bf16.mxu0 0
      %3707 = vmatpush1.bf16.msra.mxu0 0
      %3708 = vmatprep.subr.bf16.mxu0 0
      %3709 = vmatpush1.bf16.msra.mxu0 %v3692
      %3710 = vmatprep.subr.bf16.mxu0 0
      %3711 = vmatpush2.bf16.msra.mxu0 0
      %3712 = vmatprep.subr.bf16.mxu0 0
      %3713 = vmatpush2.bf16.msra.mxu0 0
      %3714 = vmatprep.subr.bf16.mxu0 0
      %3715 = vmatpush2.bf16.msra.mxu0 0
      %3716 = vmatprep.subr.bf16.mxu0 0
      %3717 = vmatpush2.bf16.msra.mxu0 0
      %3718 = vmatprep.subr.bf16.mxu0 0
      %3719 = vmatpush2.bf16.msra.mxu0 0
      %3720 = vmatprep.subr.bf16.mxu0 0
      %3721 = vmatpush2.bf16.msra.mxu0 0
      %3722 = vmatprep.subr.bf16.mxu0 0
      %3723 = vmatpush2.bf16.msra.mxu0 0
      %3724 = vmatprep.subr.bf16.mxu0 0
      %3725 = vmatpush2.bf16.msra.mxu0 0
      %3726 = vmatprep.mubr.bf16.mxu0 0
      %3727 = vmatmul.mubr.bf16.gmra.mxu0 %v3689
      %v3728 = vpop.f32.mrf.mxu0
      %v3729 = vadd.f32 0.0, %v3728
      %v3730 = vpop.f32.mrf.mxu0
      %v3731 = vpop.f32.mrf.mxu0
      %v3732 = vpop.f32.mrf.mxu0
      %3733 = vdwg.mxu0
      %3734 = vrot.lane.b32.xlu0 %v1070, 48
      %v3735 = vpop.permute.xlu0 %3734
      %v3737 = vsel %vm1077, %v3538, 0
      %v3740 = vsel %vm1584, %v3735, 0
      %3742 = vmatprep.subr.bf16.mxu0 0
      %3743 = vmatpush1.bf16.msra.mxu0 0
      %3744 = vmatprep.subr.bf16.mxu0 0
      %3745 = vmatpush1.bf16.msra.mxu0 0
      %3746 = vmatprep.subr.bf16.mxu0 0
      %3747 = vmatpush1.bf16.msra.mxu0 0
      %3748 = vmatprep.subr.bf16.mxu0 0
      %3749 = vmatpush1.bf16.msra.mxu0 0
      %3750 = vmatprep.subr.bf16.mxu0 0
      %3751 = vmatpush1.bf16.msra.mxu0 0
      %3752 = vmatprep.subr.bf16.mxu0 0
      %3753 = vmatpush1.bf16.msra.mxu0 0
      %3754 = vmatprep.subr.bf16.mxu0 0
      %3755 = vmatpush1.bf16.msra.mxu0 0
      %3756 = vmatprep.subr.bf16.mxu0 0
      %3757 = vmatpush1.bf16.msra.mxu0 %v3740
      %3758 = vmatprep.subr.bf16.mxu0 0
      %3759 = vmatpush2.bf16.msra.mxu0 0
      %3760 = vmatprep.subr.bf16.mxu0 0
      %3761 = vmatpush2.bf16.msra.mxu0 0
      %3762 = vmatprep.subr.bf16.mxu0 0
      %3763 = vmatpush2.bf16.msra.mxu0 0
      %3764 = vmatprep.subr.bf16.mxu0 0
      %3765 = vmatpush2.bf16.msra.mxu0 0
      %3766 = vmatprep.subr.bf16.mxu0 0
      %3767 = vmatpush2.bf16.msra.mxu0 0
      %3768 = vmatprep.subr.bf16.mxu0 0
      %3769 = vmatpush2.bf16.msra.mxu0 0
      %3770 = vmatprep.subr.bf16.mxu0 0
      %3771 = vmatpush2.bf16.msra.mxu0 0
      %3772 = vmatprep.subr.bf16.mxu0 0
      %3773 = vmatpush2.bf16.msra.mxu0 0
      %3774 = vmatprep.mubr.bf16.mxu0 0
      %3775 = vmatmul.mubr.bf16.gmra.mxu0 %v3737
      %v3776 = vpop.f32.mrf.mxu0
      %v3777 = vadd.f32 0.0, %v3776
      %v3778 = vpop.f32.mrf.mxu0
      %v3779 = vpop.f32.mrf.mxu0
      %v3780 = vpop.f32.mrf.mxu0
      %3781 = vdwg.mxu0
      %3782 = vrot.lane.b32.xlu0 %v1071, 48
      %v3783 = vpop.permute.xlu0 %3782
      %v3785 = vsel %vm1077, %v3539, 0
      %v3788 = vsel %vm1584, %v3783, 0
      %3790 = vmatprep.subr.bf16.mxu0 0
      %3791 = vmatpush1.bf16.msra.mxu0 0
      %3792 = vmatprep.subr.bf16.mxu0 0
      %3793 = vmatpush1.bf16.msra.mxu0 0
      %3794 = vmatprep.subr.bf16.mxu0 0
      %3795 = vmatpush1.bf16.msra.mxu0 0
      %3796 = vmatprep.subr.bf16.mxu0 0
      %3797 = vmatpush1.bf16.msra.mxu0 0
      %3798 = vmatprep.subr.bf16.mxu0 0
      %3799 = vmatpush1.bf16.msra.mxu0 0
      %3800 = vmatprep.subr.bf16.mxu0 0
      %3801 = vmatpush1.bf16.msra.mxu0 0
      %3802 = vmatprep.subr.bf16.mxu0 0
      %3803 = vmatpush1.bf16.msra.mxu0 0
      %3804 = vmatprep.subr.bf16.mxu0 0
      %3805 = vmatpush1.bf16.msra.mxu0 %v3788
      %3806 = vmatprep.subr.bf16.mxu0 0
      %3807 = vmatpush2.bf16.msra.mxu0 0
      %3808 = vmatprep.subr.bf16.mxu0 0
      %3809 = vmatpush2.bf16.msra.mxu0 0
      %3810 = vmatprep.subr.bf16.mxu0 0
      %3811 = vmatpush2.bf16.msra.mxu0 0
      %3812 = vmatprep.subr.bf16.mxu0 0
      %3813 = vmatpush2.bf16.msra.mxu0 0
      %3814 = vmatprep.subr.bf16.mxu0 0
      %3815 = vmatpush2.bf16.msra.mxu0 0
      %3816 = vmatprep.subr.bf16.mxu0 0
      %3817 = vmatpush2.bf16.msra.mxu0 0
      %3818 = vmatprep.subr.bf16.mxu0 0
      %3819 = vmatpush2.bf16.msra.mxu0 0
      %3820 = vmatprep.subr.bf16.mxu0 0
      %3821 = vmatpush2.bf16.msra.mxu0 0
      %3822 = vmatprep.mubr.bf16.mxu0 0
      %3823 = vmatmul.mubr.bf16.gmra.mxu0 %v3785
      %v3824 = vpop.f32.mrf.mxu0
      %v3825 = vadd.f32 0.0, %v3824
      %v3826 = vpop.f32.mrf.mxu0
      %v3827 = vpop.f32.mrf.mxu0
      %v3828 = vpop.f32.mrf.mxu0
      %3829 = vdwg.mxu0
      %3830 = vrot.lane.b32.xlu0 %v1072, 48
      %v3831 = vpop.permute.xlu0 %3830
      %v3833 = vsel %vm1077, %v3540, 0
      %v3836 = vsel %vm1584, %v3831, 0
      %3838 = vmatprep.subr.bf16.mxu0 0
      %3839 = vmatpush1.bf16.msra.mxu0 0
      %3840 = vmatprep.subr.bf16.mxu0 0
      %3841 = vmatpush1.bf16.msra.mxu0 0
      %3842 = vmatprep.subr.bf16.mxu0 0
      %3843 = vmatpush1.bf16.msra.mxu0 0
      %3844 = vmatprep.subr.bf16.mxu0 0
      %3845 = vmatpush1.bf16.msra.mxu0 0
      %3846 = vmatprep.subr.bf16.mxu0 0
      %3847 = vmatpush1.bf16.msra.mxu0 0
      %3848 = vmatprep.subr.bf16.mxu0 0
      %3849 = vmatpush1.bf16.msra.mxu0 0
      %3850 = vmatprep.subr.bf16.mxu0 0
      %3851 = vmatpush1.bf16.msra.mxu0 0
      %3852 = vmatprep.subr.bf16.mxu0 0
      %3853 = vmatpush1.bf16.msra.mxu0 %v3836
      %3854 = vmatprep.subr.bf16.mxu0 0
      %3855 = vmatpush2.bf16.msra.mxu0 0
      %3856 = vmatprep.subr.bf16.mxu0 0
      %3857 = vmatpush2.bf16.msra.mxu0 0
      %3858 = vmatprep.subr.bf16.mxu0 0
      %3859 = vmatpush2.bf16.msra.mxu0 0
      %3860 = vmatprep.subr.bf16.mxu0 0
      %3861 = vmatpush2.bf16.msra.mxu0 0
      %3862 = vmatprep.subr.bf16.mxu0 0
      %3863 = vmatpush2.bf16.msra.mxu0 0
      %3864 = vmatprep.subr.bf16.mxu0 0
      %3865 = vmatpush2.bf16.msra.mxu0 0
      %3866 = vmatprep.subr.bf16.mxu0 0
      %3867 = vmatpush2.bf16.msra.mxu0 0
      %3868 = vmatprep.subr.bf16.mxu0 0
      %3869 = vmatpush2.bf16.msra.mxu0 0
      %3870 = vmatprep.mubr.bf16.mxu0 0
      %3871 = vmatmul.mubr.bf16.gmra.mxu0 %v3833
      %v3872 = vpop.f32.mrf.mxu0
      %v3873 = vadd.f32 0.0, %v3872
      %v3874 = vpop.f32.mrf.mxu0
      %v3875 = vpop.f32.mrf.mxu0
      %v3876 = vpop.f32.mrf.mxu0
      %3877 = vdwg.mxu0
      %3878 = vrot.lane.b32.xlu0 %v1073, 48
      %v3879 = vpop.permute.xlu0 %3878
      %v3881 = vsel %vm1077, %v3541, 0
      %v3884 = vsel %vm1584, %v3879, 0
      %3886 = vmatprep.subr.bf16.mxu0 0
      %3887 = vmatpush1.bf16.msra.mxu0 0
      %3888 = vmatprep.subr.bf16.mxu0 0
      %3889 = vmatpush1.bf16.msra.mxu0 0
      %3890 = vmatprep.subr.bf16.mxu0 0
      %3891 = vmatpush1.bf16.msra.mxu0 0
      %3892 = vmatprep.subr.bf16.mxu0 0
      %3893 = vmatpush1.bf16.msra.mxu0 0
      %3894 = vmatprep.subr.bf16.mxu0 0
      %3895 = vmatpush1.bf16.msra.mxu0 0
      %3896 = vmatprep.subr.bf16.mxu0 0
      %3897 = vmatpush1.bf16.msra.mxu0 0
      %3898 = vmatprep.subr.bf16.mxu0 0
      %3899 = vmatpush1.bf16.msra.mxu0 0
      %3900 = vmatprep.subr.bf16.mxu0 0
      %3901 = vmatpush1.bf16.msra.mxu0 %v3884
      %3902 = vmatprep.subr.bf16.mxu0 0
      %3903 = vmatpush2.bf16.msra.mxu0 0
      %3904 = vmatprep.subr.bf16.mxu0 0
      %3905 = vmatpush2.bf16.msra.mxu0 0
      %3906 = vmatprep.subr.bf16.mxu0 0
      %3907 = vmatpush2.bf16.msra.mxu0 0
      %3908 = vmatprep.subr.bf16.mxu0 0
      %3909 = vmatpush2.bf16.msra.mxu0 0
      %3910 = vmatprep.subr.bf16.mxu0 0
      %3911 = vmatpush2.bf16.msra.mxu0 0
      %3912 = vmatprep.subr.bf16.mxu0 0
      %3913 = vmatpush2.bf16.msra.mxu0 0
      %3914 = vmatprep.subr.bf16.mxu0 0
      %3915 = vmatpush2.bf16.msra.mxu0 0
      %3916 = vmatprep.subr.bf16.mxu0 0
      %3917 = vmatpush2.bf16.msra.mxu0 0
      %3918 = vmatprep.mubr.bf16.mxu0 0
      %3919 = vmatmul.mubr.bf16.gmra.mxu0 %v3881
      %v3920 = vpop.f32.mrf.mxu0
      %v3921 = vadd.f32 0.0, %v3920
      %v3922 = vpop.f32.mrf.mxu0
      %v3923 = vpop.f32.mrf.mxu0
      %v3924 = vpop.f32.mrf.mxu0
      %3925 = vdwg.mxu0
      %v3926 = vpack.c.bf16 %v3633, %v3585
      %v3927 = vpack.c.bf16 %v3729, %v3681
      %v3928 = vpack.c.bf16 %v3825, %v3777
      %v3929 = vpack.c.bf16 %v3921, %v3873
      %v3930 = vld [vmem:[%s712 + $0x8] sm:$0xf]
      %v3932 = vsel %vm1077, %v3926, 0
      %v3935 = vsel %vm1077, %v3927, 0
      %v3938 = vsel %vm1077, %v3928, 0
      %v3941 = vsel %vm1077, %v3929, 0
      %v3944 = vsel %vm1584, %v3930, 0
      %3946 = vmatprep.subr.bf16.mxu0 0
      %3947 = vmatpush1.bf16.msra.mxu0 0
      %3948 = vmatprep.subr.bf16.mxu0 0
      %3949 = vmatpush1.bf16.msra.mxu0 0
      %3950 = vmatprep.subr.bf16.mxu0 0
      %3951 = vmatpush1.bf16.msra.mxu0 0
      %3952 = vmatprep.subr.bf16.mxu0 0
      %3953 = vmatpush1.bf16.msra.mxu0 0
      %3954 = vmatprep.subr.bf16.mxu0 0
      %3955 = vmatpush1.bf16.msra.mxu0 0
      %3956 = vmatprep.subr.bf16.mxu0 0
      %3957 = vmatpush1.bf16.msra.mxu0 0
      %3958 = vmatprep.subr.bf16.mxu0 0
      %3959 = vmatpush1.bf16.msra.mxu0 0
      %3960 = vmatprep.subr.bf16.mxu0 0
      %3961 = vmatpush1.bf16.msra.mxu0 %v3944
      %3962 = vmatprep.subr.bf16.mxu0 0
      %3963 = vmatpush2.bf16.msra.mxu0 0
      %3964 = vmatprep.subr.bf16.mxu0 0
      %3965 = vmatpush2.bf16.msra.mxu0 0
      %3966 = vmatprep.subr.bf16.mxu0 0
      %3967 = vmatpush2.bf16.msra.mxu0 0
      %3968 = vmatprep.subr.bf16.mxu0 0
      %3969 = vmatpush2.bf16.msra.mxu0 0
      %3970 = vmatprep.subr.bf16.mxu0 0
      %3971 = vmatpush2.bf16.msra.mxu0 0
      %3972 = vmatprep.subr.bf16.mxu0 0
      %3973 = vmatpush2.bf16.msra.mxu0 0
      %3974 = vmatprep.subr.bf16.mxu0 0
      %3975 = vmatpush2.bf16.msra.mxu0 0
      %3976 = vmatprep.subr.bf16.mxu0 0
      %3977 = vmatpush2.bf16.msra.mxu0 0
      %3978 = vmatprep.mubr.bf16.mxu0 0
      %3979 = vmatmul.mubr.bf16.gmra.mxu0 %v3932
      %v3980 = vpop.f32.mrf.mxu0
      %v3981 = vadd.f32 0.0, %v3980
      %v3982 = vpop.f32.mrf.mxu0
      %v3983 = vpop.f32.mrf.mxu0
      %v3984 = vadd.f32 0.0, %v3983
      %v3985 = vpop.f32.mrf.mxu0
      %3986 = vmatprep.mubr.bf16.mxu0 0
      %3987 = vmatmul.mubr.bf16.gmra.mxu0 %v3935
      %v3988 = vpop.f32.mrf.mxu0
      %v3989 = vadd.f32 0.0, %v3988
      %v3990 = vpop.f32.mrf.mxu0
      %v3991 = vpop.f32.mrf.mxu0
      %v3992 = vadd.f32 0.0, %v3991
      %v3993 = vpop.f32.mrf.mxu0
      %3994 = vmatprep.mubr.bf16.mxu0 0
      %3995 = vmatmul.mubr.bf16.gmra.mxu0 %v3938
      %v3996 = vpop.f32.mrf.mxu0
      %v3997 = vadd.f32 0.0, %v3996
      %v3998 = vpop.f32.mrf.mxu0
      %v3999 = vpop.f32.mrf.mxu0
      %v4000 = vadd.f32 0.0, %v3999
      %v4001 = vpop.f32.mrf.mxu0
      %4002 = vmatprep.mubr.bf16.mxu0 0
      %4003 = vmatmul.mubr.bf16.gmra.mxu0 %v3941
      %v4004 = vpop.f32.mrf.mxu0
      %v4005 = vadd.f32 0.0, %v4004
      %v4006 = vpop.f32.mrf.mxu0
      %v4007 = vpop.f32.mrf.mxu0
      %v4008 = vadd.f32 0.0, %v4007
      %v4009 = vpop.f32.mrf.mxu0
      %4010 = vdwg.mxu0
      %v4011 = vadd.f32 %v3000, %v3981
      %v4012 = vadd.f32 %v3003, %v3984
      %v4013 = vadd.f32 %v3008, %v3989
      %v4014 = vadd.f32 %v3011, %v3992
      %v4015 = vadd.f32 %v3016, %v3997
      %v4016 = vadd.f32 %v3019, %v4000
      %v4017 = vadd.f32 %v3024, %v4005
      %v4018 = vadd.f32 %v3027, %v4008
      %4019 = vrot.lane.b32.xlu0 %v1066, 104
      %v4020 = vpop.permute.xlu0 %4019
      %4021 = vrot.lane.b32.xlu0 %v1066, 72
      %v4022 = vpop.permute.xlu0 %4021
      %v4024 = vsel %vm1077, %v4020, 0
      %v4027 = vsel %vm1077, %v4022, 0
      %4029 = vmatprep.subr.bf16.mxu0 0
      %4030 = vmatpush1.bf16.xpose.msra.mxu0 0
      %4031 = vmatprep.subr.bf16.mxu0 0
      %4032 = vmatpush1.bf16.xpose.msra.mxu0 0
      %4033 = vmatprep.subr.bf16.mxu0 0
      %4034 = vmatpush1.bf16.xpose.msra.mxu0 0
      %4035 = vmatprep.subr.bf16.mxu0 0
      %4036 = vmatpush1.bf16.xpose.msra.mxu0 0
      %4037 = vmatprep.subr.bf16.mxu0 0
      %4038 = vmatpush1.bf16.xpose.msra.mxu0 0
      %4039 = vmatprep.subr.bf16.mxu0 0
      %4040 = vmatpush1.bf16.xpose.msra.mxu0 0
      %4041 = vmatprep.subr.bf16.mxu0 0
      %4042 = vmatpush1.bf16.xpose.msra.mxu0 0
      %4043 = vmatprep.subr.bf16.mxu0 0
      %4044 = vmatpush1.bf16.xpose.msra.mxu0 %v4027
      %4045 = vmatprep.subr.bf16.mxu0 0
      %4046 = vmatpush2.bf16.xpose.msra.mxu0 0
      %4047 = vmatprep.subr.bf16.mxu0 0
      %4048 = vmatpush2.bf16.xpose.msra.mxu0 0
      %4049 = vmatprep.subr.bf16.mxu0 0
      %4050 = vmatpush2.bf16.xpose.msra.mxu0 0
      %4051 = vmatprep.subr.bf16.mxu0 0
      %4052 = vmatpush2.bf16.xpose.msra.mxu0 0
      %4053 = vmatprep.subr.bf16.mxu0 0
      %4054 = vmatpush2.bf16.xpose.msra.mxu0 0
      %4055 = vmatprep.subr.bf16.mxu0 0
      %4056 = vmatpush2.bf16.xpose.msra.mxu0 0
      %4057 = vmatprep.subr.bf16.mxu0 0
      %4058 = vmatpush2.bf16.xpose.msra.mxu0 0
      %4059 = vmatprep.subr.bf16.mxu0 0
      %4060 = vmatpush2.bf16.xpose.msra.mxu0 0
      %4061 = vmatprep.mubr.bf16.mxu0 0
      %4062 = vmatmul.mubr.bf16.gmra.mxu0 %v4024
      %v4063 = vpop.f32.mrf.mxu0
      %v4064 = vadd.f32 0.0, %v4063
      %v4065 = vpop.f32.mrf.mxu0
      %v4066 = vpop.f32.mrf.mxu0
      %v4067 = vpop.f32.mrf.mxu0
      %4068 = vdwg.mxu0
      %4069 = vrot.lane.b32.xlu0 %v1067, 104
      %v4070 = vpop.permute.xlu0 %4069
      %4071 = vrot.lane.b32.xlu0 %v1067, 72
      %v4072 = vpop.permute.xlu0 %4071
      %v4074 = vsel %vm1077, %v4070, 0
      %v4077 = vsel %vm1077, %v4072, 0
      %4079 = vmatprep.subr.bf16.mxu0 0
      %4080 = vmatpush1.bf16.xpose.msra.mxu0 0
      %4081 = vmatprep.subr.bf16.mxu0 0
      %4082 = vmatpush1.bf16.xpose.msra.mxu0 0
      %4083 = vmatprep.subr.bf16.mxu0 0
      %4084 = vmatpush1.bf16.xpose.msra.mxu0 0
      %4085 = vmatprep.subr.bf16.mxu0 0
      %4086 = vmatpush1.bf16.xpose.msra.mxu0 0
      %4087 = vmatprep.subr.bf16.mxu0 0
      %4088 = vmatpush1.bf16.xpose.msra.mxu0 0
      %4089 = vmatprep.subr.bf16.mxu0 0
      %4090 = vmatpush1.bf16.xpose.msra.mxu0 0
      %4091 = vmatprep.subr.bf16.mxu0 0
      %4092 = vmatpush1.bf16.xpose.msra.mxu0 0
      %4093 = vmatprep.subr.bf16.mxu0 0
      %4094 = vmatpush1.bf16.xpose.msra.mxu0 %v4077
      %4095 = vmatprep.subr.bf16.mxu0 0
      %4096 = vmatpush2.bf16.xpose.msra.mxu0 0
      %4097 = vmatprep.subr.bf16.mxu0 0
      %4098 = vmatpush2.bf16.xpose.msra.mxu0 0
      %4099 = vmatprep.subr.bf16.mxu0 0
      %4100 = vmatpush2.bf16.xpose.msra.mxu0 0
      %4101 = vmatprep.subr.bf16.mxu0 0
      %4102 = vmatpush2.bf16.xpose.msra.mxu0 0
      %4103 = vmatprep.subr.bf16.mxu0 0
      %4104 = vmatpush2.bf16.xpose.msra.mxu0 0
      %4105 = vmatprep.subr.bf16.mxu0 0
      %4106 = vmatpush2.bf16.xpose.msra.mxu0 0
      %4107 = vmatprep.subr.bf16.mxu0 0
      %4108 = vmatpush2.bf16.xpose.msra.mxu0 0
      %4109 = vmatprep.subr.bf16.mxu0 0
      %4110 = vmatpush2.bf16.xpose.msra.mxu0 0
      %4111 = vmatprep.mubr.bf16.mxu0 0
      %4112 = vmatmul.mubr.bf16.gmra.mxu0 %v4074
      %v4113 = vpop.f32.mrf.mxu0
      %v4114 = vadd.f32 0.0, %v4113
      %v4115 = vpop.f32.mrf.mxu0
      %v4116 = vpop.f32.mrf.mxu0
      %v4117 = vpop.f32.mrf.mxu0
      %4118 = vdwg.mxu0
      %4119 = vrot.lane.b32.xlu0 %v1068, 104
      %v4120 = vpop.permute.xlu0 %4119
      %4121 = vrot.lane.b32.xlu0 %v1068, 72
      %v4122 = vpop.permute.xlu0 %4121
      %v4124 = vsel %vm1077, %v4120, 0
      %v4127 = vsel %vm1077, %v4122, 0
      %4129 = vmatprep.subr.bf16.mxu0 0
      %4130 = vmatpush1.bf16.xpose.msra.mxu0 0
      %4131 = vmatprep.subr.bf16.mxu0 0
      %4132 = vmatpush1.bf16.xpose.msra.mxu0 0
      %4133 = vmatprep.subr.bf16.mxu0 0
      %4134 = vmatpush1.bf16.xpose.msra.mxu0 0
      %4135 = vmatprep.subr.bf16.mxu0 0
      %4136 = vmatpush1.bf16.xpose.msra.mxu0 0
      %4137 = vmatprep.subr.bf16.mxu0 0
      %4138 = vmatpush1.bf16.xpose.msra.mxu0 0
      %4139 = vmatprep.subr.bf16.mxu0 0
      %4140 = vmatpush1.bf16.xpose.msra.mxu0 0
      %4141 = vmatprep.subr.bf16.mxu0 0
      %4142 = vmatpush1.bf16.xpose.msra.mxu0 0
      %4143 = vmatprep.subr.bf16.mxu0 0
      %4144 = vmatpush1.bf16.xpose.msra.mxu0 %v4127
      %4145 = vmatprep.subr.bf16.mxu0 0
      %4146 = vmatpush2.bf16.xpose.msra.mxu0 0
      %4147 = vmatprep.subr.bf16.mxu0 0
      %4148 = vmatpush2.bf16.xpose.msra.mxu0 0
      %4149 = vmatprep.subr.bf16.mxu0 0
      %4150 = vmatpush2.bf16.xpose.msra.mxu0 0
      %4151 = vmatprep.subr.bf16.mxu0 0
      %4152 = vmatpush2.bf16.xpose.msra.mxu0 0
      %4153 = vmatprep.subr.bf16.mxu0 0
      %4154 = vmatpush2.bf16.xpose.msra.mxu0 0
      %4155 = vmatprep.subr.bf16.mxu0 0
      %4156 = vmatpush2.bf16.xpose.msra.mxu0 0
      %4157 = vmatprep.subr.bf16.mxu0 0
      %4158 = vmatpush2.bf16.xpose.msra.mxu0 0
      %4159 = vmatprep.subr.bf16.mxu0 0
      %4160 = vmatpush2.bf16.xpose.msra.mxu0 0
      %4161 = vmatprep.mubr.bf16.mxu0 0
      %4162 = vmatmul.mubr.bf16.gmra.mxu0 %v4124
      %v4163 = vpop.f32.mrf.mxu0
      %v4164 = vadd.f32 0.0, %v4163
      %v4165 = vpop.f32.mrf.mxu0
      %v4166 = vpop.f32.mrf.mxu0
      %v4167 = vpop.f32.mrf.mxu0
      %4168 = vdwg.mxu0
      %4169 = vrot.lane.b32.xlu0 %v1069, 104
      %v4170 = vpop.permute.xlu0 %4169
      %4171 = vrot.lane.b32.xlu0 %v1069, 72
      %v4172 = vpop.permute.xlu0 %4171
      %v4174 = vsel %vm1077, %v4170, 0
      %v4177 = vsel %vm1077, %v4172, 0
      %4179 = vmatprep.subr.bf16.mxu0 0
      %4180 = vmatpush1.bf16.xpose.msra.mxu0 0
      %4181 = vmatprep.subr.bf16.mxu0 0
      %4182 = vmatpush1.bf16.xpose.msra.mxu0 0
      %4183 = vmatprep.subr.bf16.mxu0 0
      %4184 = vmatpush1.bf16.xpose.msra.mxu0 0
      %4185 = vmatprep.subr.bf16.mxu0 0
      %4186 = vmatpush1.bf16.xpose.msra.mxu0 0
      %4187 = vmatprep.subr.bf16.mxu0 0
      %4188 = vmatpush1.bf16.xpose.msra.mxu0 0
      %4189 = vmatprep.subr.bf16.mxu0 0
      %4190 = vmatpush1.bf16.xpose.msra.mxu0 0
      %4191 = vmatprep.subr.bf16.mxu0 0
      %4192 = vmatpush1.bf16.xpose.msra.mxu0 0
      %4193 = vmatprep.subr.bf16.mxu0 0
      %4194 = vmatpush1.bf16.xpose.msra.mxu0 %v4177
      %4195 = vmatprep.subr.bf16.mxu0 0
      %4196 = vmatpush2.bf16.xpose.msra.mxu0 0
      %4197 = vmatprep.subr.bf16.mxu0 0
      %4198 = vmatpush2.bf16.xpose.msra.mxu0 0
      %4199 = vmatprep.subr.bf16.mxu0 0
      %4200 = vmatpush2.bf16.xpose.msra.mxu0 0
      %4201 = vmatprep.subr.bf16.mxu0 0
      %4202 = vmatpush2.bf16.xpose.msra.mxu0 0
      %4203 = vmatprep.subr.bf16.mxu0 0
      %4204 = vmatpush2.bf16.xpose.msra.mxu0 0
      %4205 = vmatprep.subr.bf16.mxu0 0
      %4206 = vmatpush2.bf16.xpose.msra.mxu0 0
      %4207 = vmatprep.subr.bf16.mxu0 0
      %4208 = vmatpush2.bf16.xpose.msra.mxu0 0
      %4209 = vmatprep.subr.bf16.mxu0 0
      %4210 = vmatpush2.bf16.xpose.msra.mxu0 0
      %4211 = vmatprep.mubr.bf16.mxu0 0
      %4212 = vmatmul.mubr.bf16.gmra.mxu0 %v4174
      %v4213 = vpop.f32.mrf.mxu0
      %v4214 = vadd.f32 0.0, %v4213
      %v4215 = vpop.f32.mrf.mxu0
      %v4216 = vpop.f32.mrf.mxu0
      %v4217 = vpop.f32.mrf.mxu0
      %4218 = vdwg.mxu0
      %4219 = vrot.lane.b32.xlu0 %v1070, 104
      %v4220 = vpop.permute.xlu0 %4219
      %4221 = vrot.lane.b32.xlu0 %v1070, 72
      %v4222 = vpop.permute.xlu0 %4221
      %v4224 = vsel %vm1077, %v4220, 0
      %v4227 = vsel %vm1077, %v4222, 0
      %4229 = vmatprep.subr.bf16.mxu0 0
      %4230 = vmatpush1.bf16.xpose.msra.mxu0 0
      %4231 = vmatprep.subr.bf16.mxu0 0
      %4232 = vmatpush1.bf16.xpose.msra.mxu0 0
      %4233 = vmatprep.subr.bf16.mxu0 0
      %4234 = vmatpush1.bf16.xpose.msra.mxu0 0
      %4235 = vmatprep.subr.bf16.mxu0 0
      %4236 = vmatpush1.bf16.xpose.msra.mxu0 0
      %4237 = vmatprep.subr.bf16.mxu0 0
      %4238 = vmatpush1.bf16.xpose.msra.mxu0 0
      %4239 = vmatprep.subr.bf16.mxu0 0
      %4240 = vmatpush1.bf16.xpose.msra.mxu0 0
      %4241 = vmatprep.subr.bf16.mxu0 0
      %4242 = vmatpush1.bf16.xpose.msra.mxu0 0
      %4243 = vmatprep.subr.bf16.mxu0 0
      %4244 = vmatpush1.bf16.xpose.msra.mxu0 %v4227
      %4245 = vmatprep.subr.bf16.mxu0 0
      %4246 = vmatpush2.bf16.xpose.msra.mxu0 0
      %4247 = vmatprep.subr.bf16.mxu0 0
      %4248 = vmatpush2.bf16.xpose.msra.mxu0 0
      %4249 = vmatprep.subr.bf16.mxu0 0
      %4250 = vmatpush2.bf16.xpose.msra.mxu0 0
      %4251 = vmatprep.subr.bf16.mxu0 0
      %4252 = vmatpush2.bf16.xpose.msra.mxu0 0
      %4253 = vmatprep.subr.bf16.mxu0 0
      %4254 = vmatpush2.bf16.xpose.msra.mxu0 0
      %4255 = vmatprep.subr.bf16.mxu0 0
      %4256 = vmatpush2.bf16.xpose.msra.mxu0 0
      %4257 = vmatprep.subr.bf16.mxu0 0
      %4258 = vmatpush2.bf16.xpose.msra.mxu0 0
      %4259 = vmatprep.subr.bf16.mxu0 0
      %4260 = vmatpush2.bf16.xpose.msra.mxu0 0
      %4261 = vmatprep.mubr.bf16.mxu0 0
      %4262 = vmatmul.mubr.bf16.gmra.mxu0 %v4224
      %v4263 = vpop.f32.mrf.mxu0
      %v4264 = vadd.f32 0.0, %v4263
      %v4265 = vpop.f32.mrf.mxu0
      %v4266 = vpop.f32.mrf.mxu0
      %v4267 = vpop.f32.mrf.mxu0
      %4268 = vdwg.mxu0
      %4269 = vrot.lane.b32.xlu0 %v1071, 104
      %v4270 = vpop.permute.xlu0 %4269
      %4271 = vrot.lane.b32.xlu0 %v1071, 72
      %v4272 = vpop.permute.xlu0 %4271
      %v4274 = vsel %vm1077, %v4270, 0
      %v4277 = vsel %vm1077, %v4272, 0
      %4279 = vmatprep.subr.bf16.mxu0 0
      %4280 = vmatpush1.bf16.xpose.msra.mxu0 0
      %4281 = vmatprep.subr.bf16.mxu0 0
      %4282 = vmatpush1.bf16.xpose.msra.mxu0 0
      %4283 = vmatprep.subr.bf16.mxu0 0
      %4284 = vmatpush1.bf16.xpose.msra.mxu0 0
      %4285 = vmatprep.subr.bf16.mxu0 0
      %4286 = vmatpush1.bf16.xpose.msra.mxu0 0
      %4287 = vmatprep.subr.bf16.mxu0 0
      %4288 = vmatpush1.bf16.xpose.msra.mxu0 0
      %4289 = vmatprep.subr.bf16.mxu0 0
      %4290 = vmatpush1.bf16.xpose.msra.mxu0 0
      %4291 = vmatprep.subr.bf16.mxu0 0
      %4292 = vmatpush1.bf16.xpose.msra.mxu0 0
      %4293 = vmatprep.subr.bf16.mxu0 0
      %4294 = vmatpush1.bf16.xpose.msra.mxu0 %v4277
      %4295 = vmatprep.subr.bf16.mxu0 0
      %4296 = vmatpush2.bf16.xpose.msra.mxu0 0
      %4297 = vmatprep.subr.bf16.mxu0 0
      %4298 = vmatpush2.bf16.xpose.msra.mxu0 0
      %4299 = vmatprep.subr.bf16.mxu0 0
      %4300 = vmatpush2.bf16.xpose.msra.mxu0 0
      %4301 = vmatprep.subr.bf16.mxu0 0
      %4302 = vmatpush2.bf16.xpose.msra.mxu0 0
      %4303 = vmatprep.subr.bf16.mxu0 0
      %4304 = vmatpush2.bf16.xpose.msra.mxu0 0
      %4305 = vmatprep.subr.bf16.mxu0 0
      %4306 = vmatpush2.bf16.xpose.msra.mxu0 0
      %4307 = vmatprep.subr.bf16.mxu0 0
      %4308 = vmatpush2.bf16.xpose.msra.mxu0 0
      %4309 = vmatprep.subr.bf16.mxu0 0
      %4310 = vmatpush2.bf16.xpose.msra.mxu0 0
      %4311 = vmatprep.mubr.bf16.mxu0 0
      %4312 = vmatmul.mubr.bf16.gmra.mxu0 %v4274
      %v4313 = vpop.f32.mrf.mxu0
      %v4314 = vadd.f32 0.0, %v4313
      %v4315 = vpop.f32.mrf.mxu0
      %v4316 = vpop.f32.mrf.mxu0
      %v4317 = vpop.f32.mrf.mxu0
      %4318 = vdwg.mxu0
      %4319 = vrot.lane.b32.xlu0 %v1072, 104
      %v4320 = vpop.permute.xlu0 %4319
      %4321 = vrot.lane.b32.xlu0 %v1072, 72
      %v4322 = vpop.permute.xlu0 %4321
      %v4324 = vsel %vm1077, %v4320, 0
      %v4327 = vsel %vm1077, %v4322, 0
      %4329 = vmatprep.subr.bf16.mxu0 0
      %4330 = vmatpush1.bf16.xpose.msra.mxu0 0
      %4331 = vmatprep.subr.bf16.mxu0 0
      %4332 = vmatpush1.bf16.xpose.msra.mxu0 0
      %4333 = vmatprep.subr.bf16.mxu0 0
      %4334 = vmatpush1.bf16.xpose.msra.mxu0 0
      %4335 = vmatprep.subr.bf16.mxu0 0
      %4336 = vmatpush1.bf16.xpose.msra.mxu0 0
      %4337 = vmatprep.subr.bf16.mxu0 0
      %4338 = vmatpush1.bf16.xpose.msra.mxu0 0
      %4339 = vmatprep.subr.bf16.mxu0 0
      %4340 = vmatpush1.bf16.xpose.msra.mxu0 0
      %4341 = vmatprep.subr.bf16.mxu0 0
      %4342 = vmatpush1.bf16.xpose.msra.mxu0 0
      %4343 = vmatprep.subr.bf16.mxu0 0
      %4344 = vmatpush1.bf16.xpose.msra.mxu0 %v4327
      %4345 = vmatprep.subr.bf16.mxu0 0
      %4346 = vmatpush2.bf16.xpose.msra.mxu0 0
      %4347 = vmatprep.subr.bf16.mxu0 0
      %4348 = vmatpush2.bf16.xpose.msra.mxu0 0
      %4349 = vmatprep.subr.bf16.mxu0 0
      %4350 = vmatpush2.bf16.xpose.msra.mxu0 0
      %4351 = vmatprep.subr.bf16.mxu0 0
      %4352 = vmatpush2.bf16.xpose.msra.mxu0 0
      %4353 = vmatprep.subr.bf16.mxu0 0
      %4354 = vmatpush2.bf16.xpose.msra.mxu0 0
      %4355 = vmatprep.subr.bf16.mxu0 0
      %4356 = vmatpush2.bf16.xpose.msra.mxu0 0
      %4357 = vmatprep.subr.bf16.mxu0 0
      %4358 = vmatpush2.bf16.xpose.msra.mxu0 0
      %4359 = vmatprep.subr.bf16.mxu0 0
      %4360 = vmatpush2.bf16.xpose.msra.mxu0 0
      %4361 = vmatprep.mubr.bf16.mxu0 0
      %4362 = vmatmul.mubr.bf16.gmra.mxu0 %v4324
      %v4363 = vpop.f32.mrf.mxu0
      %v4364 = vadd.f32 0.0, %v4363
      %v4365 = vpop.f32.mrf.mxu0
      %v4366 = vpop.f32.mrf.mxu0
      %v4367 = vpop.f32.mrf.mxu0
      %4368 = vdwg.mxu0
      %4369 = vrot.lane.b32.xlu0 %v1073, 104
      %v4370 = vpop.permute.xlu0 %4369
      %4371 = vrot.lane.b32.xlu0 %v1073, 72
      %v4372 = vpop.permute.xlu0 %4371
      %v4374 = vsel %vm1077, %v4370, 0
      %v4377 = vsel %vm1077, %v4372, 0
      %4379 = vmatprep.subr.bf16.mxu0 0
      %4380 = vmatpush1.bf16.xpose.msra.mxu0 0
      %4381 = vmatprep.subr.bf16.mxu0 0
      %4382 = vmatpush1.bf16.xpose.msra.mxu0 0
      %4383 = vmatprep.subr.bf16.mxu0 0
      %4384 = vmatpush1.bf16.xpose.msra.mxu0 0
      %4385 = vmatprep.subr.bf16.mxu0 0
      %4386 = vmatpush1.bf16.xpose.msra.mxu0 0
      %4387 = vmatprep.subr.bf16.mxu0 0
      %4388 = vmatpush1.bf16.xpose.msra.mxu0 0
      %4389 = vmatprep.subr.bf16.mxu0 0
      %4390 = vmatpush1.bf16.xpose.msra.mxu0 0
      %4391 = vmatprep.subr.bf16.mxu0 0
      %4392 = vmatpush1.bf16.xpose.msra.mxu0 0
      %4393 = vmatprep.subr.bf16.mxu0 0
      %4394 = vmatpush1.bf16.xpose.msra.mxu0 %v4377
      %4395 = vmatprep.subr.bf16.mxu0 0
      %4396 = vmatpush2.bf16.xpose.msra.mxu0 0
      %4397 = vmatprep.subr.bf16.mxu0 0
      %4398 = vmatpush2.bf16.xpose.msra.mxu0 0
      %4399 = vmatprep.subr.bf16.mxu0 0
      %4400 = vmatpush2.bf16.xpose.msra.mxu0 0
      %4401 = vmatprep.subr.bf16.mxu0 0
      %4402 = vmatpush2.bf16.xpose.msra.mxu0 0
      %4403 = vmatprep.subr.bf16.mxu0 0
      %4404 = vmatpush2.bf16.xpose.msra.mxu0 0
      %4405 = vmatprep.subr.bf16.mxu0 0
      %4406 = vmatpush2.bf16.xpose.msra.mxu0 0
      %4407 = vmatprep.subr.bf16.mxu0 0
      %4408 = vmatpush2.bf16.xpose.msra.mxu0 0
      %4409 = vmatprep.subr.bf16.mxu0 0
      %4410 = vmatpush2.bf16.xpose.msra.mxu0 0
      %4411 = vmatprep.mubr.bf16.mxu0 0
      %4412 = vmatmul.mubr.bf16.gmra.mxu0 %v4374
      %v4413 = vpop.f32.mrf.mxu0
      %v4414 = vadd.f32 0.0, %v4413
      %v4415 = vpop.f32.mrf.mxu0
      %v4416 = vpop.f32.mrf.mxu0
      %v4417 = vpop.f32.mrf.mxu0
      %4418 = vdwg.mxu0
      %v4419 = vmul.f32 %v4064, 0.35355338
      %v4420 = vmul.f32 %v4114, 0.35355338
      %v4421 = vmul.f32 %v4164, 0.35355338
      %v4422 = vmul.f32 %v4214, 0.35355338
      %v4423 = vmul.f32 %v4264, 0.35355338
      %v4424 = vmul.f32 %v4314, 0.35355338
      %v4425 = vmul.f32 %v4364, 0.35355338
      %v4426 = vmul.f32 %v4414, 0.35355338
      %v4427 = vadd.f32 %v4419, %v794
      %v4428 = vadd.f32 %v4420, %v795
      %v4429 = vadd.f32 %v4421, %v796
      %v4430 = vadd.f32 %v4422, %v797
      %v4431 = vadd.f32 %v4423, %v798
      %v4432 = vadd.f32 %v4424, %v799
      %v4433 = vadd.f32 %v4425, %v800
      %v4434 = vadd.f32 %v4426, %v801
      %v4435 = vsel %vm1077, %v4427, -inf
      %4436 = vmax.xlane.f32.xlu0 %v4435
      %v4437 = vpop.xlane.xlu0 %4436
      %v4438 = vsel %vm1077, %v4428, -inf
      %4439 = vmax.xlane.f32.xlu0 %v4438
      %v4440 = vpop.xlane.xlu0 %4439
      %v4441 = vsel %vm1077, %v4429, -inf
      %4442 = vmax.xlane.f32.xlu0 %v4441
      %v4443 = vpop.xlane.xlu0 %4442
      %v4444 = vsel %vm1077, %v4430, -inf
      %4445 = vmax.xlane.f32.xlu0 %v4444
      %v4446 = vpop.xlane.xlu0 %4445
      %v4447 = vsel %vm1077, %v4431, -inf
      %4448 = vmax.xlane.f32.xlu0 %v4447
      %v4449 = vpop.xlane.xlu0 %4448
      %v4450 = vsel %vm1077, %v4432, -inf
      %4451 = vmax.xlane.f32.xlu0 %v4450
      %v4452 = vpop.xlane.xlu0 %4451
      %v4453 = vsel %vm1077, %v4433, -inf
      %4454 = vmax.xlane.f32.xlu0 %v4453
      %v4455 = vpop.xlane.xlu0 %4454
      %v4456 = vsel %vm1077, %v4434, -inf
      %4457 = vmax.xlane.f32.xlu0 %v4456
      %v4458 = vpop.xlane.xlu0 %4457
      %v4459 = vsub.f32 %v4427, %v4437
      %v4460 = vsub.f32 %v4428, %v4440
      %v4461 = vsub.f32 %v4429, %v4443
      %v4462 = vsub.f32 %v4430, %v4446
      %v4463 = vsub.f32 %v4431, %v4449
      %v4464 = vsub.f32 %v4432, %v4452
      %v4465 = vsub.f32 %v4433, %v4455
      %v4466 = vsub.f32 %v4434, %v4458
      %v4467 = vmul.f32 %v4459, 1.442695
      %v4468 = vpow.pop %v4467
      %v4469 = vmul.f32 %v4460, 1.442695
      %v4470 = vpow.pop %v4469
      %v4471 = vmul.f32 %v4461, 1.442695
      %v4472 = vpow.pop %v4471
      %v4473 = vmul.f32 %v4462, 1.442695
      %v4474 = vpow.pop %v4473
      %v4475 = vmul.f32 %v4463, 1.442695
      %v4476 = vpow.pop %v4475
      %v4477 = vmul.f32 %v4464, 1.442695
      %v4478 = vpow.pop %v4477
      %v4479 = vmul.f32 %v4465, 1.442695
      %v4480 = vpow.pop %v4479
      %v4481 = vmul.f32 %v4466, 1.442695
      %v4482 = vpow.pop %v4481
      %v4483 = vsel %vm1077, %v4468, 0.0
      %4484 = vadd.xlane.f32.xlu0 %v4483
      %v4485 = vpop.xlane.xlu0 %4484
      %v4486 = vsel %vm1077, %v4470, 0.0
      %4487 = vadd.xlane.f32.xlu0 %v4486
      %v4488 = vpop.xlane.xlu0 %4487
      %v4489 = vsel %vm1077, %v4472, 0.0
      %4490 = vadd.xlane.f32.xlu0 %v4489
      %v4491 = vpop.xlane.xlu0 %4490
      %v4492 = vsel %vm1077, %v4474, 0.0
      %4493 = vadd.xlane.f32.xlu0 %v4492
      %v4494 = vpop.xlane.xlu0 %4493
      %v4495 = vsel %vm1077, %v4476, 0.0
      %4496 = vadd.xlane.f32.xlu0 %v4495
      %v4497 = vpop.xlane.xlu0 %4496
      %v4498 = vsel %vm1077, %v4478, 0.0
      %4499 = vadd.xlane.f32.xlu0 %v4498
      %v4500 = vpop.xlane.xlu0 %4499
      %v4501 = vsel %vm1077, %v4480, 0.0
      %4502 = vadd.xlane.f32.xlu0 %v4501
      %v4503 = vpop.xlane.xlu0 %4502
      %v4504 = vsel %vm1077, %v4482, 0.0
      %4505 = vadd.xlane.f32.xlu0 %v4504
      %v4506 = vpop.xlane.xlu0 %4505
      %v4507 = vrcp.pop %v4485
      %v4508 = vrcp.pop %v4488
      %v4509 = vrcp.pop %v4491
      %v4510 = vrcp.pop %v4494
      %v4511 = vrcp.pop %v4497
      %v4512 = vrcp.pop %v4500
      %v4513 = vrcp.pop %v4503
      %v4514 = vrcp.pop %v4506
      %v4515 = vmul.f32 %v4468, %v4507
      %v4516 = vmul.f32 %v4470, %v4508
      %v4517 = vmul.f32 %v4472, %v4509
      %v4518 = vmul.f32 %v4474, %v4510
      %v4519 = vmul.f32 %v4476, %v4511
      %v4520 = vmul.f32 %v4478, %v4512
      %v4521 = vmul.f32 %v4480, %v4513
      %v4522 = vmul.f32 %v4482, %v4514
      %v4523 = vpack.c.bf16 %v4515, %v4515
      %v4524 = vpack.c.bf16 %v4516, %v4516
      %v4525 = vpack.c.bf16 %v4517, %v4517
      %v4526 = vpack.c.bf16 %v4518, %v4518
      %v4527 = vpack.c.bf16 %v4519, %v4519
      %v4528 = vpack.c.bf16 %v4520, %v4520
      %v4529 = vpack.c.bf16 %v4521, %v4521
      %v4530 = vpack.c.bf16 %v4522, %v4522
      %4531 = vrot.lane.b32.xlu0 %v1066, 40
      %v4532 = vpop.permute.xlu0 %4531
      %v4534 = vsel %vm1077, %v4523, 0
      %v4537 = vsel %vm1584, %v4532, 0
      %4539 = vmatprep.subr.bf16.mxu0 0
      %4540 = vmatpush1.bf16.msra.mxu0 0
      %4541 = vmatprep.subr.bf16.mxu0 0
      %4542 = vmatpush1.bf16.msra.mxu0 0
      %4543 = vmatprep.subr.bf16.mxu0 0
      %4544 = vmatpush1.bf16.msra.mxu0 0
      %4545 = vmatprep.subr.bf16.mxu0 0
      %4546 = vmatpush1.bf16.msra.mxu0 0
      %4547 = vmatprep.subr.bf16.mxu0 0
      %4548 = vmatpush1.bf16.msra.mxu0 0
      %4549 = vmatprep.subr.bf16.mxu0 0
      %4550 = vmatpush1.bf16.msra.mxu0 0
      %4551 = vmatprep.subr.bf16.mxu0 0
      %4552 = vmatpush1.bf16.msra.mxu0 0
      %4553 = vmatprep.subr.bf16.mxu0 0
      %4554 = vmatpush1.bf16.msra.mxu0 %v4537
      %4555 = vmatprep.subr.bf16.mxu0 0
      %4556 = vmatpush2.bf16.msra.mxu0 0
      %4557 = vmatprep.subr.bf16.mxu0 0
      %4558 = vmatpush2.bf16.msra.mxu0 0
      %4559 = vmatprep.subr.bf16.mxu0 0
      %4560 = vmatpush2.bf16.msra.mxu0 0
      %4561 = vmatprep.subr.bf16.mxu0 0
      %4562 = vmatpush2.bf16.msra.mxu0 0
      %4563 = vmatprep.subr.bf16.mxu0 0
      %4564 = vmatpush2.bf16.msra.mxu0 0
      %4565 = vmatprep.subr.bf16.mxu0 0
      %4566 = vmatpush2.bf16.msra.mxu0 0
      %4567 = vmatprep.subr.bf16.mxu0 0
      %4568 = vmatpush2.bf16.msra.mxu0 0
      %4569 = vmatprep.subr.bf16.mxu0 0
      %4570 = vmatpush2.bf16.msra.mxu0 0
      %4571 = vmatprep.mubr.bf16.mxu0 0
      %4572 = vmatmul.mubr.bf16.gmra.mxu0 %v4534
      %v4573 = vpop.f32.mrf.mxu0
      %v4574 = vadd.f32 0.0, %v4573
      %v4575 = vpop.f32.mrf.mxu0
      %v4576 = vpop.f32.mrf.mxu0
      %v4577 = vpop.f32.mrf.mxu0
      %4578 = vdwg.mxu0
      %4579 = vrot.lane.b32.xlu0 %v1067, 40
      %v4580 = vpop.permute.xlu0 %4579
      %v4582 = vsel %vm1077, %v4524, 0
      %v4585 = vsel %vm1584, %v4580, 0
      %4587 = vmatprep.subr.bf16.mxu0 0
      %4588 = vmatpush1.bf16.msra.mxu0 0
      %4589 = vmatprep.subr.bf16.mxu0 0
      %4590 = vmatpush1.bf16.msra.mxu0 0
      %4591 = vmatprep.subr.bf16.mxu0 0
      %4592 = vmatpush1.bf16.msra.mxu0 0
      %4593 = vmatprep.subr.bf16.mxu0 0
      %4594 = vmatpush1.bf16.msra.mxu0 0
      %4595 = vmatprep.subr.bf16.mxu0 0
      %4596 = vmatpush1.bf16.msra.mxu0 0
      %4597 = vmatprep.subr.bf16.mxu0 0
      %4598 = vmatpush1.bf16.msra.mxu0 0
      %4599 = vmatprep.subr.bf16.mxu0 0
      %4600 = vmatpush1.bf16.msra.mxu0 0
      %4601 = vmatprep.subr.bf16.mxu0 0
      %4602 = vmatpush1.bf16.msra.mxu0 %v4585
      %4603 = vmatprep.subr.bf16.mxu0 0
      %4604 = vmatpush2.bf16.msra.mxu0 0
      %4605 = vmatprep.subr.bf16.mxu0 0
      %4606 = vmatpush2.bf16.msra.mxu0 0
      %4607 = vmatprep.subr.bf16.mxu0 0
      %4608 = vmatpush2.bf16.msra.mxu0 0
      %4609 = vmatprep.subr.bf16.mxu0 0
      %4610 = vmatpush2.bf16.msra.mxu0 0
      %4611 = vmatprep.subr.bf16.mxu0 0
      %4612 = vmatpush2.bf16.msra.mxu0 0
      %4613 = vmatprep.subr.bf16.mxu0 0
      %4614 = vmatpush2.bf16.msra.mxu0 0
      %4615 = vmatprep.subr.bf16.mxu0 0
      %4616 = vmatpush2.bf16.msra.mxu0 0
      %4617 = vmatprep.subr.bf16.mxu0 0
      %4618 = vmatpush2.bf16.msra.mxu0 0
      %4619 = vmatprep.mubr.bf16.mxu0 0
      %4620 = vmatmul.mubr.bf16.gmra.mxu0 %v4582
      %v4621 = vpop.f32.mrf.mxu0
      %v4622 = vadd.f32 0.0, %v4621
      %v4623 = vpop.f32.mrf.mxu0
      %v4624 = vpop.f32.mrf.mxu0
      %v4625 = vpop.f32.mrf.mxu0
      %4626 = vdwg.mxu0
      %4627 = vrot.lane.b32.xlu0 %v1068, 40
      %v4628 = vpop.permute.xlu0 %4627
      %v4630 = vsel %vm1077, %v4525, 0
      %v4633 = vsel %vm1584, %v4628, 0
      %4635 = vmatprep.subr.bf16.mxu0 0
      %4636 = vmatpush1.bf16.msra.mxu0 0
      %4637 = vmatprep.subr.bf16.mxu0 0
      %4638 = vmatpush1.bf16.msra.mxu0 0
      %4639 = vmatprep.subr.bf16.mxu0 0
      %4640 = vmatpush1.bf16.msra.mxu0 0
      %4641 = vmatprep.subr.bf16.mxu0 0
      %4642 = vmatpush1.bf16.msra.mxu0 0
      %4643 = vmatprep.subr.bf16.mxu0 0
      %4644 = vmatpush1.bf16.msra.mxu0 0
      %4645 = vmatprep.subr.bf16.mxu0 0
      %4646 = vmatpush1.bf16.msra.mxu0 0
      %4647 = vmatprep.subr.bf16.mxu0 0
      %4648 = vmatpush1.bf16.msra.mxu0 0
      %4649 = vmatprep.subr.bf16.mxu0 0
      %4650 = vmatpush1.bf16.msra.mxu0 %v4633
      %4651 = vmatprep.subr.bf16.mxu0 0
      %4652 = vmatpush2.bf16.msra.mxu0 0
      %4653 = vmatprep.subr.bf16.mxu0 0
      %4654 = vmatpush2.bf16.msra.mxu0 0
      %4655 = vmatprep.subr.bf16.mxu0 0
      %4656 = vmatpush2.bf16.msra.mxu0 0
      %4657 = vmatprep.subr.bf16.mxu0 0
      %4658 = vmatpush2.bf16.msra.mxu0 0
      %4659 = vmatprep.subr.bf16.mxu0 0
      %4660 = vmatpush2.bf16.msra.mxu0 0
      %4661 = vmatprep.subr.bf16.mxu0 0
      %4662 = vmatpush2.bf16.msra.mxu0 0
      %4663 = vmatprep.subr.bf16.mxu0 0
      %4664 = vmatpush2.bf16.msra.mxu0 0
      %4665 = vmatprep.subr.bf16.mxu0 0
      %4666 = vmatpush2.bf16.msra.mxu0 0
      %4667 = vmatprep.mubr.bf16.mxu0 0
      %4668 = vmatmul.mubr.bf16.gmra.mxu0 %v4630
      %v4669 = vpop.f32.mrf.mxu0
      %v4670 = vadd.f32 0.0, %v4669
      %v4671 = vpop.f32.mrf.mxu0
      %v4672 = vpop.f32.mrf.mxu0
      %v4673 = vpop.f32.mrf.mxu0
      %4674 = vdwg.mxu0
      %4675 = vrot.lane.b32.xlu0 %v1069, 40
      %v4676 = vpop.permute.xlu0 %4675
      %v4678 = vsel %vm1077, %v4526, 0
      %v4681 = vsel %vm1584, %v4676, 0
      %4683 = vmatprep.subr.bf16.mxu0 0
      %4684 = vmatpush1.bf16.msra.mxu0 0
      %4685 = vmatprep.subr.bf16.mxu0 0
      %4686 = vmatpush1.bf16.msra.mxu0 0
      %4687 = vmatprep.subr.bf16.mxu0 0
      %4688 = vmatpush1.bf16.msra.mxu0 0
      %4689 = vmatprep.subr.bf16.mxu0 0
      %4690 = vmatpush1.bf16.msra.mxu0 0
      %4691 = vmatprep.subr.bf16.mxu0 0
      %4692 = vmatpush1.bf16.msra.mxu0 0
      %4693 = vmatprep.subr.bf16.mxu0 0
      %4694 = vmatpush1.bf16.msra.mxu0 0
      %4695 = vmatprep.subr.bf16.mxu0 0
      %4696 = vmatpush1.bf16.msra.mxu0 0
      %4697 = vmatprep.subr.bf16.mxu0 0
      %4698 = vmatpush1.bf16.msra.mxu0 %v4681
      %4699 = vmatprep.subr.bf16.mxu0 0
      %4700 = vmatpush2.bf16.msra.mxu0 0
      %4701 = vmatprep.subr.bf16.mxu0 0
      %4702 = vmatpush2.bf16.msra.mxu0 0
      %4703 = vmatprep.subr.bf16.mxu0 0
      %4704 = vmatpush2.bf16.msra.mxu0 0
      %4705 = vmatprep.subr.bf16.mxu0 0
      %4706 = vmatpush2.bf16.msra.mxu0 0
      %4707 = vmatprep.subr.bf16.mxu0 0
      %4708 = vmatpush2.bf16.msra.mxu0 0
      %4709 = vmatprep.subr.bf16.mxu0 0
      %4710 = vmatpush2.bf16.msra.mxu0 0
      %4711 = vmatprep.subr.bf16.mxu0 0
      %4712 = vmatpush2.bf16.msra.mxu0 0
      %4713 = vmatprep.subr.bf16.mxu0 0
      %4714 = vmatpush2.bf16.msra.mxu0 0
      %4715 = vmatprep.mubr.bf16.mxu0 0
      %4716 = vmatmul.mubr.bf16.gmra.mxu0 %v4678
      %v4717 = vpop.f32.mrf.mxu0
      %v4718 = vadd.f32 0.0, %v4717
      %v4719 = vpop.f32.mrf.mxu0
      %v4720 = vpop.f32.mrf.mxu0
      %v4721 = vpop.f32.mrf.mxu0
      %4722 = vdwg.mxu0
      %4723 = vrot.lane.b32.xlu0 %v1070, 40
      %v4724 = vpop.permute.xlu0 %4723
      %v4726 = vsel %vm1077, %v4527, 0
      %v4729 = vsel %vm1584, %v4724, 0
      %4731 = vmatprep.subr.bf16.mxu0 0
      %4732 = vmatpush1.bf16.msra.mxu0 0
      %4733 = vmatprep.subr.bf16.mxu0 0
      %4734 = vmatpush1.bf16.msra.mxu0 0
      %4735 = vmatprep.subr.bf16.mxu0 0
      %4736 = vmatpush1.bf16.msra.mxu0 0
      %4737 = vmatprep.subr.bf16.mxu0 0
      %4738 = vmatpush1.bf16.msra.mxu0 0
      %4739 = vmatprep.subr.bf16.mxu0 0
      %4740 = vmatpush1.bf16.msra.mxu0 0
      %4741 = vmatprep.subr.bf16.mxu0 0
      %4742 = vmatpush1.bf16.msra.mxu0 0
      %4743 = vmatprep.subr.bf16.mxu0 0
      %4744 = vmatpush1.bf16.msra.mxu0 0
      %4745 = vmatprep.subr.bf16.mxu0 0
      %4746 = vmatpush1.bf16.msra.mxu0 %v4729
      %4747 = vmatprep.subr.bf16.mxu0 0
      %4748 = vmatpush2.bf16.msra.mxu0 0
      %4749 = vmatprep.subr.bf16.mxu0 0
      %4750 = vmatpush2.bf16.msra.mxu0 0
      %4751 = vmatprep.subr.bf16.mxu0 0
      %4752 = vmatpush2.bf16.msra.mxu0 0
      %4753 = vmatprep.subr.bf16.mxu0 0
      %4754 = vmatpush2.bf16.msra.mxu0 0
      %4755 = vmatprep.subr.bf16.mxu0 0
      %4756 = vmatpush2.bf16.msra.mxu0 0
      %4757 = vmatprep.subr.bf16.mxu0 0
      %4758 = vmatpush2.bf16.msra.mxu0 0
      %4759 = vmatprep.subr.bf16.mxu0 0
      %4760 = vmatpush2.bf16.msra.mxu0 0
      %4761 = vmatprep.subr.bf16.mxu0 0
      %4762 = vmatpush2.bf16.msra.mxu0 0
      %4763 = vmatprep.mubr.bf16.mxu0 0
      %4764 = vmatmul.mubr.bf16.gmra.mxu0 %v4726
      %v4765 = vpop.f32.mrf.mxu0
      %v4766 = vadd.f32 0.0, %v4765
      %v4767 = vpop.f32.mrf.mxu0
      %v4768 = vpop.f32.mrf.mxu0
      %v4769 = vpop.f32.mrf.mxu0
      %4770 = vdwg.mxu0
      %4771 = vrot.lane.b32.xlu0 %v1071, 40
      %v4772 = vpop.permute.xlu0 %4771
      %v4774 = vsel %vm1077, %v4528, 0
      %v4777 = vsel %vm1584, %v4772, 0
      %4779 = vmatprep.subr.bf16.mxu0 0
      %4780 = vmatpush1.bf16.msra.mxu0 0
      %4781 = vmatprep.subr.bf16.mxu0 0
      %4782 = vmatpush1.bf16.msra.mxu0 0
      %4783 = vmatprep.subr.bf16.mxu0 0
      %4784 = vmatpush1.bf16.msra.mxu0 0
      %4785 = vmatprep.subr.bf16.mxu0 0
      %4786 = vmatpush1.bf16.msra.mxu0 0
      %4787 = vmatprep.subr.bf16.mxu0 0
      %4788 = vmatpush1.bf16.msra.mxu0 0
      %4789 = vmatprep.subr.bf16.mxu0 0
      %4790 = vmatpush1.bf16.msra.mxu0 0
      %4791 = vmatprep.subr.bf16.mxu0 0
      %4792 = vmatpush1.bf16.msra.mxu0 0
      %4793 = vmatprep.subr.bf16.mxu0 0
      %4794 = vmatpush1.bf16.msra.mxu0 %v4777
      %4795 = vmatprep.subr.bf16.mxu0 0
      %4796 = vmatpush2.bf16.msra.mxu0 0
      %4797 = vmatprep.subr.bf16.mxu0 0
      %4798 = vmatpush2.bf16.msra.mxu0 0
      %4799 = vmatprep.subr.bf16.mxu0 0
      %4800 = vmatpush2.bf16.msra.mxu0 0
      %4801 = vmatprep.subr.bf16.mxu0 0
      %4802 = vmatpush2.bf16.msra.mxu0 0
      %4803 = vmatprep.subr.bf16.mxu0 0
      %4804 = vmatpush2.bf16.msra.mxu0 0
      %4805 = vmatprep.subr.bf16.mxu0 0
      %4806 = vmatpush2.bf16.msra.mxu0 0
      %4807 = vmatprep.subr.bf16.mxu0 0
      %4808 = vmatpush2.bf16.msra.mxu0 0
      %4809 = vmatprep.subr.bf16.mxu0 0
      %4810 = vmatpush2.bf16.msra.mxu0 0
      %4811 = vmatprep.mubr.bf16.mxu0 0
      %4812 = vmatmul.mubr.bf16.gmra.mxu0 %v4774
      %v4813 = vpop.f32.mrf.mxu0
      %v4814 = vadd.f32 0.0, %v4813
      %v4815 = vpop.f32.mrf.mxu0
      %v4816 = vpop.f32.mrf.mxu0
      %v4817 = vpop.f32.mrf.mxu0
      %4818 = vdwg.mxu0
      %4819 = vrot.lane.b32.xlu0 %v1072, 40
      %v4820 = vpop.permute.xlu0 %4819
      %v4822 = vsel %vm1077, %v4529, 0
      %v4825 = vsel %vm1584, %v4820, 0
      %4827 = vmatprep.subr.bf16.mxu0 0
      %4828 = vmatpush1.bf16.msra.mxu0 0
      %4829 = vmatprep.subr.bf16.mxu0 0
      %4830 = vmatpush1.bf16.msra.mxu0 0
      %4831 = vmatprep.subr.bf16.mxu0 0
      %4832 = vmatpush1.bf16.msra.mxu0 0
      %4833 = vmatprep.subr.bf16.mxu0 0
      %4834 = vmatpush1.bf16.msra.mxu0 0
      %4835 = vmatprep.subr.bf16.mxu0 0
      %4836 = vmatpush1.bf16.msra.mxu0 0
      %4837 = vmatprep.subr.bf16.mxu0 0
      %4838 = vmatpush1.bf16.msra.mxu0 0
      %4839 = vmatprep.subr.bf16.mxu0 0
      %4840 = vmatpush1.bf16.msra.mxu0 0
      %4841 = vmatprep.subr.bf16.mxu0 0
      %4842 = vmatpush1.bf16.msra.mxu0 %v4825
      %4843 = vmatprep.subr.bf16.mxu0 0
      %4844 = vmatpush2.bf16.msra.mxu0 0
      %4845 = vmatprep.subr.bf16.mxu0 0
      %4846 = vmatpush2.bf16.msra.mxu0 0
      %4847 = vmatprep.subr.bf16.mxu0 0
      %4848 = vmatpush2.bf16.msra.mxu0 0
      %4849 = vmatprep.subr.bf16.mxu0 0
      %4850 = vmatpush2.bf16.msra.mxu0 0
      %4851 = vmatprep.subr.bf16.mxu0 0
      %4852 = vmatpush2.bf16.msra.mxu0 0
      %4853 = vmatprep.subr.bf16.mxu0 0
      %4854 = vmatpush2.bf16.msra.mxu0 0
      %4855 = vmatprep.subr.bf16.mxu0 0
      %4856 = vmatpush2.bf16.msra.mxu0 0
      %4857 = vmatprep.subr.bf16.mxu0 0
      %4858 = vmatpush2.bf16.msra.mxu0 0
      %4859 = vmatprep.mubr.bf16.mxu0 0
      %4860 = vmatmul.mubr.bf16.gmra.mxu0 %v4822
      %v4861 = vpop.f32.mrf.mxu0
      %v4862 = vadd.f32 0.0, %v4861
      %v4863 = vpop.f32.mrf.mxu0
      %v4864 = vpop.f32.mrf.mxu0
      %v4865 = vpop.f32.mrf.mxu0
      %4866 = vdwg.mxu0
      %4867 = vrot.lane.b32.xlu0 %v1073, 40
      %v4868 = vpop.permute.xlu0 %4867
      %v4870 = vsel %vm1077, %v4530, 0
      %v4873 = vsel %vm1584, %v4868, 0
      %4875 = vmatprep.subr.bf16.mxu0 0
      %4876 = vmatpush1.bf16.msra.mxu0 0
      %4877 = vmatprep.subr.bf16.mxu0 0
      %4878 = vmatpush1.bf16.msra.mxu0 0
      %4879 = vmatprep.subr.bf16.mxu0 0
      %4880 = vmatpush1.bf16.msra.mxu0 0
      %4881 = vmatprep.subr.bf16.mxu0 0
      %4882 = vmatpush1.bf16.msra.mxu0 0
      %4883 = vmatprep.subr.bf16.mxu0 0
      %4884 = vmatpush1.bf16.msra.mxu0 0
      %4885 = vmatprep.subr.bf16.mxu0 0
      %4886 = vmatpush1.bf16.msra.mxu0 0
      %4887 = vmatprep.subr.bf16.mxu0 0
      %4888 = vmatpush1.bf16.msra.mxu0 0
      %4889 = vmatprep.subr.bf16.mxu0 0
      %4890 = vmatpush1.bf16.msra.mxu0 %v4873
      %4891 = vmatprep.subr.bf16.mxu0 0
      %4892 = vmatpush2.bf16.msra.mxu0 0
      %4893 = vmatprep.subr.bf16.mxu0 0
      %4894 = vmatpush2.bf16.msra.mxu0 0
      %4895 = vmatprep.subr.bf16.mxu0 0
      %4896 = vmatpush2.bf16.msra.mxu0 0
      %4897 = vmatprep.subr.bf16.mxu0 0
      %4898 = vmatpush2.bf16.msra.mxu0 0
      %4899 = vmatprep.subr.bf16.mxu0 0
      %4900 = vmatpush2.bf16.msra.mxu0 0
      %4901 = vmatprep.subr.bf16.mxu0 0
      %4902 = vmatpush2.bf16.msra.mxu0 0
      %4903 = vmatprep.subr.bf16.mxu0 0
      %4904 = vmatpush2.bf16.msra.mxu0 0
      %4905 = vmatprep.subr.bf16.mxu0 0
      %4906 = vmatpush2.bf16.msra.mxu0 0
      %4907 = vmatprep.mubr.bf16.mxu0 0
      %4908 = vmatmul.mubr.bf16.gmra.mxu0 %v4870
      %v4909 = vpop.f32.mrf.mxu0
      %v4910 = vadd.f32 0.0, %v4909
      %v4911 = vpop.f32.mrf.mxu0
      %v4912 = vpop.f32.mrf.mxu0
      %v4913 = vpop.f32.mrf.mxu0
      %4914 = vdwg.mxu0
      %v4915 = vpack.c.bf16 %v4622, %v4574
      %v4916 = vpack.c.bf16 %v4718, %v4670
      %v4917 = vpack.c.bf16 %v4814, %v4766
      %v4918 = vpack.c.bf16 %v4910, %v4862
      %v4919 = vld [vmem:[%s712 + $0xc] sm:$0xf]
      %v4921 = vsel %vm1077, %v4915, 0
      %v4924 = vsel %vm1077, %v4916, 0
      %v4927 = vsel %vm1077, %v4917, 0
      %v4930 = vsel %vm1077, %v4918, 0
      %v4933 = vsel %vm1584, %v4919, 0
      %4935 = vmatprep.subr.bf16.mxu0 0
      %4936 = vmatpush1.bf16.msra.mxu0 0
      %4937 = vmatprep.subr.bf16.mxu0 0
      %4938 = vmatpush1.bf16.msra.mxu0 0
      %4939 = vmatprep.subr.bf16.mxu0 0
      %4940 = vmatpush1.bf16.msra.mxu0 0
      %4941 = vmatprep.subr.bf16.mxu0 0
      %4942 = vmatpush1.bf16.msra.mxu0 0
      %4943 = vmatprep.subr.bf16.mxu0 0
      %4944 = vmatpush1.bf16.msra.mxu0 0
      %4945 = vmatprep.subr.bf16.mxu0 0
      %4946 = vmatpush1.bf16.msra.mxu0 0
      %4947 = vmatprep.subr.bf16.mxu0 0
      %4948 = vmatpush1.bf16.msra.mxu0 0
      %4949 = vmatprep.subr.bf16.mxu0 0
      %4950 = vmatpush1.bf16.msra.mxu0 %v4933
      %4951 = vmatprep.subr.bf16.mxu0 0
      %4952 = vmatpush2.bf16.msra.mxu0 0
      %4953 = vmatprep.subr.bf16.mxu0 0
      %4954 = vmatpush2.bf16.msra.mxu0 0
      %4955 = vmatprep.subr.bf16.mxu0 0
      %4956 = vmatpush2.bf16.msra.mxu0 0
      %4957 = vmatprep.subr.bf16.mxu0 0
      %4958 = vmatpush2.bf16.msra.mxu0 0
      %4959 = vmatprep.subr.bf16.mxu0 0
      %4960 = vmatpush2.bf16.msra.mxu0 0
      %4961 = vmatprep.subr.bf16.mxu0 0
      %4962 = vmatpush2.bf16.msra.mxu0 0
      %4963 = vmatprep.subr.bf16.mxu0 0
      %4964 = vmatpush2.bf16.msra.mxu0 0
      %4965 = vmatprep.subr.bf16.mxu0 0
      %4966 = vmatpush2.bf16.msra.mxu0 0
      %4967 = vmatprep.mubr.bf16.mxu0 0
      %4968 = vmatmul.mubr.bf16.gmra.mxu0 %v4921
      %v4969 = vpop.f32.mrf.mxu0
      %v4970 = vadd.f32 0.0, %v4969
      %v4971 = vpop.f32.mrf.mxu0
      %v4972 = vpop.f32.mrf.mxu0
      %v4973 = vadd.f32 0.0, %v4972
      %v4974 = vpop.f32.mrf.mxu0
      %4975 = vmatprep.mubr.bf16.mxu0 0
      %4976 = vmatmul.mubr.bf16.gmra.mxu0 %v4924
      %v4977 = vpop.f32.mrf.mxu0
      %v4978 = vadd.f32 0.0, %v4977
      %v4979 = vpop.f32.mrf.mxu0
      %v4980 = vpop.f32.mrf.mxu0
      %v4981 = vadd.f32 0.0, %v4980
      %v4982 = vpop.f32.mrf.mxu0
      %4983 = vmatprep.mubr.bf16.mxu0 0
      %4984 = vmatmul.mubr.bf16.gmra.mxu0 %v4927
      %v4985 = vpop.f32.mrf.mxu0
      %v4986 = vadd.f32 0.0, %v4985
      %v4987 = vpop.f32.mrf.mxu0
      %v4988 = vpop.f32.mrf.mxu0
      %v4989 = vadd.f32 0.0, %v4988
      %v4990 = vpop.f32.mrf.mxu0
      %4991 = vmatprep.mubr.bf16.mxu0 0
      %4992 = vmatmul.mubr.bf16.gmra.mxu0 %v4930
      %v4993 = vpop.f32.mrf.mxu0
      %v4994 = vadd.f32 0.0, %v4993
      %v4995 = vpop.f32.mrf.mxu0
      %v4996 = vpop.f32.mrf.mxu0
      %v4997 = vadd.f32 0.0, %v4996
      %v4998 = vpop.f32.mrf.mxu0
      %4999 = vdwg.mxu0
      %v5000 = vadd.f32 %v4011, %v4970
      %v5001 = vadd.f32 %v4012, %v4973
      %v5002 = vadd.f32 %v4013, %v4978
      %v5003 = vadd.f32 %v4014, %v4981
      %v5004 = vadd.f32 %v4015, %v4986
      %v5005 = vadd.f32 %v4016, %v4989
      %v5006 = vadd.f32 %v4017, %v4994
      %v5007 = vadd.f32 %v4018, %v4997
      %v5008 = vadd.f32 %v770, %v5000
      %v5009 = vadd.f32 %v771, %v5001
      %v5010 = vadd.f32 %v772, %v5002
      %v5011 = vadd.f32 %v773, %v5003
      %v5012 = vadd.f32 %v774, %v5004
      %v5013 = vadd.f32 %v775, %v5005
      %v5014 = vadd.f32 %v776, %v5006
      %v5015 = vadd.f32 %v777, %v5007
      %v5016 = vld [vmem:[%s715] sm:$0x1]
      %v5018 = vlaneseq
      %v5019 = vshrl.u32 %v5018, 7
      %v5020 = vsub.s32 0, %v5019
      %v5021 = vrot.slane %v5016, %v5020
      %v5023 = vadd.f32 %v5008, %v5021
      %v5024 = vadd.f32 %v5009, %v5021
      %v5025 = vadd.f32 %v5010, %v5021
      %v5026 = vadd.f32 %v5011, %v5021
      %v5027 = vadd.f32 %v5012, %v5021
      %v5028 = vadd.f32 %v5013, %v5021
      %v5029 = vadd.f32 %v5014, %v5021
      %v5030 = vadd.f32 %v5015, %v5021
      %v5031 = vld [vmem:[%s740] sm:$0x1]
      %v5032 = vld [vmem:[%s743] sm:$0x1]
      %v5033 = vsel %vm804, %v5023, 0.0
      %5034 = vadd.xlane.f32.xlu0 %v5033
      %v5035 = vpop.xlane.xlu0 %5034
      %v5036 = vsel %vm804, %v5024, 0.0
      %5037 = vadd.xlane.f32.xlu0 %v5036
      %v5038 = vpop.xlane.xlu0 %5037
      %v5039 = vsel %vm804, %v5025, 0.0
      %5040 = vadd.xlane.f32.xlu0 %v5039
      %v5041 = vpop.xlane.xlu0 %5040
      %v5042 = vsel %vm804, %v5026, 0.0
      %5043 = vadd.xlane.f32.xlu0 %v5042
      %v5044 = vpop.xlane.xlu0 %5043
      %v5045 = vsel %vm804, %v5027, 0.0
      %5046 = vadd.xlane.f32.xlu0 %v5045
      %v5047 = vpop.xlane.xlu0 %5046
      %v5048 = vsel %vm804, %v5028, 0.0
      %5049 = vadd.xlane.f32.xlu0 %v5048
      %v5050 = vpop.xlane.xlu0 %5049
      %v5051 = vsel %vm804, %v5029, 0.0
      %5052 = vadd.xlane.f32.xlu0 %v5051
      %v5053 = vpop.xlane.xlu0 %5052
      %v5054 = vsel %vm804, %v5030, 0.0
      %5055 = vadd.xlane.f32.xlu0 %v5054
      %v5056 = vpop.xlane.xlu0 %5055
      %v5057 = vmul.f32 %v5035, %v829
      %v5058 = vmul.f32 %v5038, %v829
      %v5059 = vmul.f32 %v5041, %v829
      %v5060 = vmul.f32 %v5044, %v829
      %v5061 = vmul.f32 %v5047, %v829
      %v5062 = vmul.f32 %v5050, %v829
      %v5063 = vmul.f32 %v5053, %v829
      %v5064 = vmul.f32 %v5056, %v829
      %v5065 = vmul.f32 %v5023, %v5023
      %v5066 = vmul.f32 %v5024, %v5024
      %v5067 = vmul.f32 %v5025, %v5025
      %v5068 = vmul.f32 %v5026, %v5026
      %v5069 = vmul.f32 %v5027, %v5027
      %v5070 = vmul.f32 %v5028, %v5028
      %v5071 = vmul.f32 %v5029, %v5029
      %v5072 = vmul.f32 %v5030, %v5030
      %v5073 = vsel %vm804, %v5065, 0.0
      %5074 = vadd.xlane.f32.xlu0 %v5073
      %v5075 = vpop.xlane.xlu0 %5074
      %v5076 = vsel %vm804, %v5066, 0.0
      %5077 = vadd.xlane.f32.xlu0 %v5076
      %v5078 = vpop.xlane.xlu0 %5077
      %v5079 = vsel %vm804, %v5067, 0.0
      %5080 = vadd.xlane.f32.xlu0 %v5079
      %v5081 = vpop.xlane.xlu0 %5080
      %v5082 = vsel %vm804, %v5068, 0.0
      %5083 = vadd.xlane.f32.xlu0 %v5082
      %v5084 = vpop.xlane.xlu0 %5083
      %v5085 = vsel %vm804, %v5069, 0.0
      %5086 = vadd.xlane.f32.xlu0 %v5085
      %v5087 = vpop.xlane.xlu0 %5086
      %v5088 = vsel %vm804, %v5070, 0.0
      %5089 = vadd.xlane.f32.xlu0 %v5088
      %v5090 = vpop.xlane.xlu0 %5089
      %v5091 = vsel %vm804, %v5071, 0.0
      %5092 = vadd.xlane.f32.xlu0 %v5091
      %v5093 = vpop.xlane.xlu0 %5092
      %v5094 = vsel %vm804, %v5072, 0.0
      %5095 = vadd.xlane.f32.xlu0 %v5094
      %v5096 = vpop.xlane.xlu0 %5095
      %v5097 = vmul.f32 %v5075, %v829
      %v5098 = vmul.f32 %v5078, %v829
      %v5099 = vmul.f32 %v5081, %v829
      %v5100 = vmul.f32 %v5084, %v829
      %v5101 = vmul.f32 %v5087, %v829
      %v5102 = vmul.f32 %v5090, %v829
      %v5103 = vmul.f32 %v5093, %v829
      %v5104 = vmul.f32 %v5096, %v829
      %v5105 = vmul.f32 %v5057, %v5057
      %v5106 = vmul.f32 %v5058, %v5058
      %v5107 = vmul.f32 %v5059, %v5059
      %v5108 = vmul.f32 %v5060, %v5060
      %v5109 = vmul.f32 %v5061, %v5061
      %v5110 = vmul.f32 %v5062, %v5062
      %v5111 = vmul.f32 %v5063, %v5063
      %v5112 = vmul.f32 %v5064, %v5064
      %v5113 = vsub.f32 %v5097, %v5105
      %v5114 = vsub.f32 %v5098, %v5106
      %v5115 = vsub.f32 %v5099, %v5107
      %v5116 = vsub.f32 %v5100, %v5108
      %v5117 = vsub.f32 %v5101, %v5109
      %v5118 = vsub.f32 %v5102, %v5110
      %v5119 = vsub.f32 %v5103, %v5111
      %v5120 = vsub.f32 %v5104, %v5112
      %v5121 = vmax.f32 %v5113, 0.0
      %v5122 = vmax.f32 %v5114, 0.0
      %v5123 = vmax.f32 %v5115, 0.0
      %v5124 = vmax.f32 %v5116, 0.0
      %v5125 = vmax.f32 %v5117, 0.0
      %v5126 = vmax.f32 %v5118, 0.0
      %v5127 = vmax.f32 %v5119, 0.0
      %v5128 = vmax.f32 %v5120, 0.0
      %v5129 = vsub.f32 %v5023, %v5057
      %v5130 = vsub.f32 %v5024, %v5058
      %v5131 = vsub.f32 %v5025, %v5059
      %v5132 = vsub.f32 %v5026, %v5060
      %v5133 = vsub.f32 %v5027, %v5061
      %v5134 = vsub.f32 %v5028, %v5062
      %v5135 = vsub.f32 %v5029, %v5063
      %v5136 = vsub.f32 %v5030, %v5064
      %v5137 = vadd.f32 %v5121, 1e-05
      %v5138 = vadd.f32 %v5122, 1e-05
      %v5139 = vadd.f32 %v5123, 1e-05
      %v5140 = vadd.f32 %v5124, 1e-05
      %v5141 = vadd.f32 %v5125, 1e-05
      %v5142 = vadd.f32 %v5126, 1e-05
      %v5143 = vadd.f32 %v5127, 1e-05
      %v5144 = vadd.f32 %v5128, 1e-05
      %v5145 = vrsqrt.pop %v5137
      %v5146 = vrsqrt.pop %v5138
      %v5147 = vrsqrt.pop %v5139
      %v5148 = vrsqrt.pop %v5140
      %v5149 = vrsqrt.pop %v5141
      %v5150 = vrsqrt.pop %v5142
      %v5151 = vrsqrt.pop %v5143
      %v5152 = vrsqrt.pop %v5144
      %v5153 = vmul.f32 %v5129, %v5145
      %v5154 = vmul.f32 %v5130, %v5146
      %v5155 = vmul.f32 %v5131, %v5147
      %v5156 = vmul.f32 %v5132, %v5148
      %v5157 = vmul.f32 %v5133, %v5149
      %v5158 = vmul.f32 %v5134, %v5150
      %v5159 = vmul.f32 %v5135, %v5151
      %v5160 = vmul.f32 %v5136, %v5152
      %v5162 = vlaneseq
      %v5163 = vshrl.u32 %v5162, 7
      %v5164 = vsub.s32 0, %v5163
      %v5165 = vrot.slane %v5031, %v5164
      %v5167 = vmul.f32 %v5153, %v5165
      %v5168 = vmul.f32 %v5154, %v5165
      %v5169 = vmul.f32 %v5155, %v5165
      %v5170 = vmul.f32 %v5156, %v5165
      %v5171 = vmul.f32 %v5157, %v5165
      %v5172 = vmul.f32 %v5158, %v5165
      %v5173 = vmul.f32 %v5159, %v5165
      %v5174 = vmul.f32 %v5160, %v5165
      %v5176 = vlaneseq
      %v5177 = vshrl.u32 %v5176, 7
      %v5178 = vsub.s32 0, %v5177
      %v5179 = vrot.slane %v5032, %v5178
      %v5181 = vadd.f32 %v5167, %v5179
      %v5182 = vadd.f32 %v5168, %v5179
      %v5183 = vadd.f32 %v5169, %v5179
      %v5184 = vadd.f32 %v5170, %v5179
      %v5185 = vadd.f32 %v5171, %v5179
      %v5186 = vadd.f32 %v5172, %v5179
      %v5187 = vadd.f32 %v5173, %v5179
      %v5188 = vadd.f32 %v5174, %v5179
      %v5189 = vpack.c.bf16 %v5182, %v5181
      %v5190 = vpack.c.bf16 %v5184, %v5183
      %v5191 = vpack.c.bf16 %v5186, %v5185
      %v5192 = vpack.c.bf16 %v5188, %v5187
      %v5193 = vld [vmem:[%s720] sm:$0xf]
      %v5194 = vld [vmem:[%s720 + $0x4] sm:$0xf]
      %v5195 = vld [vmem:[%s720 + $0x8] sm:$0xf]
      %v5196 = vld [vmem:[%s720 + $0xc] sm:$0xf]
      %v5197 = vld [vmem:[%s723] sm:$0x1]
      %v5199 = vlaneseq
      %v5200 = vshrl.u32 %v5199, 7
      %v5201 = vsub.s32 0, %v5200
      %v5202 = vrot.slane %v5197, %v5201
      %v5208 = vunpack.c.l.b16 %v5193
      %v5209 = vunpack.c.l.b16 %v5194
      %v5210 = vunpack.c.l.b16 %v5195
      %v5211 = vunpack.c.l.b16 %v5196
      %v5212 = vpack.c.b16 %v5209, %v5208
      %v5213 = vpack.c.b16 %v5211, %v5210
      %v5217 = vsel %vm804, %v5189, 0
      %v5220 = vsel %vm804, %v5190, 0
      %v5223 = vsel %vm804, %v5191, 0
      %v5226 = vsel %vm804, %v5192, 0
      %5228 = vmatprep.subr.bf16.mxu0 0
      %5229 = vmatpush1.bf16.msra.mxu0 0
      %5230 = vmatprep.subr.bf16.mxu0 0
      %5231 = vmatpush1.bf16.msra.mxu0 0
      %5232 = vmatprep.subr.bf16.mxu0 0
      %5233 = vmatpush1.bf16.msra.mxu0 0
      %5234 = vmatprep.subr.bf16.mxu0 0
      %5235 = vmatpush1.bf16.msra.mxu0 0
      %5236 = vmatprep.subr.bf16.mxu0 0
      %5237 = vmatpush1.bf16.msra.mxu0 0
      %5238 = vmatprep.subr.bf16.mxu0 0
      %5239 = vmatpush1.bf16.msra.mxu0 0
      %5240 = vmatprep.subr.bf16.mxu0 0
      %5241 = vmatpush1.bf16.msra.mxu0 %v5213
      %5242 = vmatprep.subr.bf16.mxu0 0
      %5243 = vmatpush1.bf16.msra.mxu0 %v5212
      %5244 = vmatprep.subr.bf16.mxu0 0
      %5245 = vmatpush2.bf16.msra.mxu0 0
      %5246 = vmatprep.subr.bf16.mxu0 0
      %5247 = vmatpush2.bf16.msra.mxu0 0
      %5248 = vmatprep.subr.bf16.mxu0 0
      %5249 = vmatpush2.bf16.msra.mxu0 0
      %5250 = vmatprep.subr.bf16.mxu0 0
      %5251 = vmatpush2.bf16.msra.mxu0 0
      %5252 = vmatprep.subr.bf16.mxu0 0
      %5253 = vmatpush2.bf16.msra.mxu0 0
      %5254 = vmatprep.subr.bf16.mxu0 0
      %5255 = vmatpush2.bf16.msra.mxu0 0
      %5256 = vmatprep.subr.bf16.mxu0 0
      %5257 = vmatpush2.bf16.msra.mxu0 0
      %5258 = vmatprep.subr.bf16.mxu0 0
      %5259 = vmatpush2.bf16.msra.mxu0 0
      %5260 = vmatprep.mubr.bf16.mxu0 0
      %5261 = vmatmul.mubr.bf16.gmra.mxu0 %v5217
      %v5262 = vpop.f32.mrf.mxu0
      %v5263 = vadd.f32 %v5202, %v5262
      %v5264 = vpop.f32.mrf.mxu0
      %v5265 = vpop.f32.mrf.mxu0
      %v5266 = vadd.f32 %v5202, %v5265
      %v5267 = vpop.f32.mrf.mxu0
      %5268 = vmatprep.mubr.bf16.mxu0 0
      %5269 = vmatmul.mubr.bf16.gmra.mxu0 %v5220
      %v5270 = vpop.f32.mrf.mxu0
      %v5271 = vadd.f32 %v5202, %v5270
      %v5272 = vpop.f32.mrf.mxu0
      %v5273 = vpop.f32.mrf.mxu0
      %v5274 = vadd.f32 %v5202, %v5273
      %v5275 = vpop.f32.mrf.mxu0
      %5276 = vmatprep.mubr.bf16.mxu0 0
      %5277 = vmatmul.mubr.bf16.gmra.mxu0 %v5223
      %v5278 = vpop.f32.mrf.mxu0
      %v5279 = vadd.f32 %v5202, %v5278
      %v5280 = vpop.f32.mrf.mxu0
      %v5281 = vpop.f32.mrf.mxu0
      %v5282 = vadd.f32 %v5202, %v5281
      %v5283 = vpop.f32.mrf.mxu0
      %5284 = vmatprep.mubr.bf16.mxu0 0
      %5285 = vmatmul.mubr.bf16.gmra.mxu0 %v5226
      %v5286 = vpop.f32.mrf.mxu0
      %v5287 = vadd.f32 %v5202, %v5286
      %v5288 = vpop.f32.mrf.mxu0
      %v5289 = vpop.f32.mrf.mxu0
      %v5290 = vadd.f32 %v5202, %v5289
      %v5291 = vpop.f32.mrf.mxu0
      %5292 = vdwg.mxu0
      %v5293 = vmax.f32 %v5263, 0.0
      %v5294 = vmax.f32 %v5266, 0.0
      %v5295 = vmax.f32 %v5271, 0.0
      %v5296 = vmax.f32 %v5274, 0.0
      %v5297 = vmax.f32 %v5279, 0.0
      %v5298 = vmax.f32 %v5282, 0.0
      %v5299 = vmax.f32 %v5287, 0.0
      %v5300 = vmax.f32 %v5290, 0.0
      %v5301 = vpack.c.bf16 %v5294, %v5293
      %v5302 = vpack.c.bf16 %v5296, %v5295
      %v5303 = vpack.c.bf16 %v5298, %v5297
      %v5304 = vpack.c.bf16 %v5300, %v5299
      %v5305 = vld [vmem:[%s728] sm:$0xf]
      %v5306 = vld [vmem:[%s728 + $0x4] sm:$0xf]
      %v5307 = vld [vmem:[%s728 + $0x8] sm:$0xf]
      %v5308 = vld [vmem:[%s728 + $0xc] sm:$0xf]
      %v5309 = vld [vmem:[%s728 + $0x10] sm:$0xf]
      %v5310 = vld [vmem:[%s728 + $0x14] sm:$0xf]
      %v5311 = vld [vmem:[%s728 + $0x18] sm:$0xf]
      %v5312 = vld [vmem:[%s728 + $0x1c] sm:$0xf]
      %v5313 = vld [vmem:[%s728 + $0x20] sm:$0xf]
      %v5314 = vld [vmem:[%s728 + $0x24] sm:$0xf]
      %v5315 = vld [vmem:[%s728 + $0x28] sm:$0xf]
      %v5316 = vld [vmem:[%s728 + $0x2c] sm:$0xf]
      %v5317 = vld [vmem:[%s728 + $0x30] sm:$0xf]
      %v5318 = vld [vmem:[%s728 + $0x34] sm:$0xf]
      %v5319 = vld [vmem:[%s728 + $0x38] sm:$0xf]
      %v5320 = vld [vmem:[%s728 + $0x3c] sm:$0xf]
      %v5321 = vld [vmem:[%s731] sm:$0x1]
      %v5323 = vlaneseq
      %v5324 = vshrl.u32 %v5323, 7
      %v5325 = vsub.s32 0, %v5324
      %v5326 = vrot.slane %v5321, %v5325
      %v5344 = vunpack.c.l.b16 %v5305
      %v5345 = vunpack.c.l.b16 %v5306
      %v5346 = vunpack.c.l.b16 %v5307
      %v5347 = vunpack.c.l.b16 %v5308
      %v5348 = vunpack.c.l.b16 %v5309
      %v5349 = vunpack.c.l.b16 %v5310
      %v5350 = vunpack.c.l.b16 %v5311
      %v5351 = vunpack.c.l.b16 %v5312
      %v5352 = vunpack.c.l.b16 %v5313
      %v5353 = vunpack.c.l.b16 %v5314
      %v5354 = vunpack.c.l.b16 %v5315
      %v5355 = vunpack.c.l.b16 %v5316
      %v5356 = vunpack.c.l.b16 %v5317
      %v5357 = vunpack.c.l.b16 %v5318
      %v5358 = vunpack.c.l.b16 %v5319
      %v5359 = vunpack.c.l.b16 %v5320
      %v5360 = vpack.c.b16 %v5345, %v5344
      %v5361 = vpack.c.b16 %v5347, %v5346
      %v5362 = vpack.c.b16 %v5349, %v5348
      %v5363 = vpack.c.b16 %v5351, %v5350
      %v5364 = vpack.c.b16 %v5353, %v5352
      %v5365 = vpack.c.b16 %v5355, %v5354
      %v5366 = vpack.c.b16 %v5357, %v5356
      %v5367 = vpack.c.b16 %v5359, %v5358
      %5376 = vmatprep.subr.bf16.mxu0 0
      %5377 = vmatpush1.bf16.msra.mxu0 %v5367
      %5378 = vmatprep.subr.bf16.mxu0 0
      %5379 = vmatpush1.bf16.msra.mxu0 %v5366
      %5380 = vmatprep.subr.bf16.mxu0 0
      %5381 = vmatpush1.bf16.msra.mxu0 %v5365
      %5382 = vmatprep.subr.bf16.mxu0 0
      %5383 = vmatpush1.bf16.msra.mxu0 %v5364
      %5384 = vmatprep.subr.bf16.mxu0 0
      %5385 = vmatpush1.bf16.msra.mxu0 %v5363
      %5386 = vmatprep.subr.bf16.mxu0 0
      %5387 = vmatpush1.bf16.msra.mxu0 %v5362
      %5388 = vmatprep.subr.bf16.mxu0 0
      %5389 = vmatpush1.bf16.msra.mxu0 %v5361
      %5390 = vmatprep.subr.bf16.mxu0 0
      %5391 = vmatpush1.bf16.msra.mxu0 %v5360
      %5392 = vmatprep.subr.bf16.mxu0 0
      %5393 = vmatpush2.bf16.msra.mxu0 0
      %5394 = vmatprep.subr.bf16.mxu0 0
      %5395 = vmatpush2.bf16.msra.mxu0 0
      %5396 = vmatprep.subr.bf16.mxu0 0
      %5397 = vmatpush2.bf16.msra.mxu0 0
      %5398 = vmatprep.subr.bf16.mxu0 0
      %5399 = vmatpush2.bf16.msra.mxu0 0
      %5400 = vmatprep.subr.bf16.mxu0 0
      %5401 = vmatpush2.bf16.msra.mxu0 0
      %5402 = vmatprep.subr.bf16.mxu0 0
      %5403 = vmatpush2.bf16.msra.mxu0 0
      %5404 = vmatprep.subr.bf16.mxu0 0
      %5405 = vmatpush2.bf16.msra.mxu0 0
      %5406 = vmatprep.subr.bf16.mxu0 0
      %5407 = vmatpush2.bf16.msra.mxu0 0
      %5408 = vmatprep.mubr.bf16.mxu0 0
      %5409 = vmatmul.mubr.bf16.gmra.mxu0 %v5301
      %v5410 = vpop.f32.mrf.mxu0
      %v5411 = vadd.f32 %v5326, %v5410
      %v5412 = vpop.f32.mrf.mxu0
      %v5413 = vpop.f32.mrf.mxu0
      %v5414 = vadd.f32 %v5326, %v5413
      %v5415 = vpop.f32.mrf.mxu0
      %5416 = vmatprep.mubr.bf16.mxu0 0
      %5417 = vmatmul.mubr.bf16.gmra.mxu0 %v5302
      %v5418 = vpop.f32.mrf.mxu0
      %v5419 = vadd.f32 %v5326, %v5418
      %v5420 = vpop.f32.mrf.mxu0
      %v5421 = vpop.f32.mrf.mxu0
      %v5422 = vadd.f32 %v5326, %v5421
      %v5423 = vpop.f32.mrf.mxu0
      %5424 = vmatprep.mubr.bf16.mxu0 0
      %5425 = vmatmul.mubr.bf16.gmra.mxu0 %v5303
      %v5426 = vpop.f32.mrf.mxu0
      %v5427 = vadd.f32 %v5326, %v5426
      %v5428 = vpop.f32.mrf.mxu0
      %v5429 = vpop.f32.mrf.mxu0
      %v5430 = vadd.f32 %v5326, %v5429
      %v5431 = vpop.f32.mrf.mxu0
      %5432 = vmatprep.mubr.bf16.mxu0 0
      %5433 = vmatmul.mubr.bf16.gmra.mxu0 %v5304
      %v5434 = vpop.f32.mrf.mxu0
      %v5435 = vadd.f32 %v5326, %v5434
      %v5436 = vpop.f32.mrf.mxu0
      %v5437 = vpop.f32.mrf.mxu0
      %v5438 = vadd.f32 %v5326, %v5437
      %v5439 = vpop.f32.mrf.mxu0
      %5440 = vdwg.mxu0
      %v5441 = vadd.f32 %v5023, %v5411
      %v5442 = vadd.f32 %v5024, %v5414
      %v5443 = vadd.f32 %v5025, %v5419
      %v5444 = vadd.f32 %v5026, %v5422
      %v5445 = vadd.f32 %v5027, %v5427
      %v5446 = vadd.f32 %v5028, %v5430
      %v5447 = vadd.f32 %v5029, %v5435
      %v5448 = vadd.f32 %v5030, %v5438
      %5449 = vst.msk [vmem:[#allocation2] sm:$0xff] %vm804, %v5441
      %5450 = vst.msk [vmem:[#allocation2 + $0x8] sm:$0xff] %vm804, %v5442
      %5451 = vst.msk [vmem:[#allocation2 + $0x10] sm:$0xff] %vm804, %v5443
      %5452 = vst.msk [vmem:[#allocation2 + $0x18] sm:$0xff] %vm804, %v5444
      %5453 = vst.msk [vmem:[#allocation2 + $0x20] sm:$0xff] %vm804, %v5445
      %5454 = vst.msk [vmem:[#allocation2 + $0x28] sm:$0xff] %vm804, %v5446
      %5455 = vst.msk [vmem:[#allocation2 + $0x30] sm:$0xff] %vm804, %v5447
      %5456 = vst.msk [vmem:[#allocation2 + $0x38] sm:$0xff] %vm804, %v5448
      %p5457 = scmp.eq.s32.totalorder %s32, 1
      // Predicated region
      $region89: #{mude_forward.5} parent=83 // pred_check
        %p5458 = pneg %p5457
      $region90: #{mude_forward.5} parent=83 // pred_check_branch
        %5460 = sbr.rel (%p5458) target = $region92
      $region91: #{mude_forward.5} parent=83 // pred_region
        %v5461 = vld [vmem:[#allocation2] sm:$0xff]
        %v5462 = vld [vmem:[#allocation2 + $0x8] sm:$0xff]
        %v5463 = vld [vmem:[#allocation2 + $0x10] sm:$0xff]
        %v5464 = vld [vmem:[#allocation2 + $0x18] sm:$0xff]
        %v5465 = vld [vmem:[#allocation2 + $0x20] sm:$0xff]
        %v5466 = vld [vmem:[#allocation2 + $0x28] sm:$0xff]
        %v5467 = vld [vmem:[#allocation2 + $0x30] sm:$0xff]
        %v5468 = vld [vmem:[#allocation2 + $0x38] sm:$0xff]
        %v5469 = vld [vmem:[%s14] sm:$0x1]
        %v5470 = vld [vmem:[%s15] sm:$0x1]
        %v5471 = vsel %vm804, %v5461, 0.0
        %5472 = vadd.xlane.f32.xlu0 %v5471
        %v5473 = vpop.xlane.xlu0 %5472
        %v5474 = vsel %vm804, %v5462, 0.0
        %5475 = vadd.xlane.f32.xlu0 %v5474
        %v5476 = vpop.xlane.xlu0 %5475
        %v5477 = vsel %vm804, %v5463, 0.0
        %5478 = vadd.xlane.f32.xlu0 %v5477
        %v5479 = vpop.xlane.xlu0 %5478
        %v5480 = vsel %vm804, %v5464, 0.0
        %5481 = vadd.xlane.f32.xlu0 %v5480
        %v5482 = vpop.xlane.xlu0 %5481
        %v5483 = vsel %vm804, %v5465, 0.0
        %5484 = vadd.xlane.f32.xlu0 %v5483
        %v5485 = vpop.xlane.xlu0 %5484
        %v5486 = vsel %vm804, %v5466, 0.0
        %5487 = vadd.xlane.f32.xlu0 %v5486
        %v5488 = vpop.xlane.xlu0 %5487
        %v5489 = vsel %vm804, %v5467, 0.0
        %5490 = vadd.xlane.f32.xlu0 %v5489
        %v5491 = vpop.xlane.xlu0 %5490
        %v5492 = vsel %vm804, %v5468, 0.0
        %5493 = vadd.xlane.f32.xlu0 %v5492
        %v5494 = vpop.xlane.xlu0 %5493
        %v5495 = vmul.f32 %v5473, %v829
        %v5496 = vmul.f32 %v5476, %v829
        %v5497 = vmul.f32 %v5479, %v829
        %v5498 = vmul.f32 %v5482, %v829
        %v5499 = vmul.f32 %v5485, %v829
        %v5500 = vmul.f32 %v5488, %v829
        %v5501 = vmul.f32 %v5491, %v829
        %v5502 = vmul.f32 %v5494, %v829
        %v5503 = vmul.f32 %v5461, %v5461
        %v5504 = vmul.f32 %v5462, %v5462
        %v5505 = vmul.f32 %v5463, %v5463
        %v5506 = vmul.f32 %v5464, %v5464
        %v5507 = vmul.f32 %v5465, %v5465
        %v5508 = vmul.f32 %v5466, %v5466
        %v5509 = vmul.f32 %v5467, %v5467
        %v5510 = vmul.f32 %v5468, %v5468
        %v5511 = vsel %vm804, %v5503, 0.0
        %5512 = vadd.xlane.f32.xlu0 %v5511
        %v5513 = vpop.xlane.xlu0 %5512
        %v5514 = vsel %vm804, %v5504, 0.0
        %5515 = vadd.xlane.f32.xlu0 %v5514
        %v5516 = vpop.xlane.xlu0 %5515
        %v5517 = vsel %vm804, %v5505, 0.0
        %5518 = vadd.xlane.f32.xlu0 %v5517
        %v5519 = vpop.xlane.xlu0 %5518
        %v5520 = vsel %vm804, %v5506, 0.0
        %5521 = vadd.xlane.f32.xlu0 %v5520
        %v5522 = vpop.xlane.xlu0 %5521
        %v5523 = vsel %vm804, %v5507, 0.0
        %5524 = vadd.xlane.f32.xlu0 %v5523
        %v5525 = vpop.xlane.xlu0 %5524
        %v5526 = vsel %vm804, %v5508, 0.0
        %5527 = vadd.xlane.f32.xlu0 %v5526
        %v5528 = vpop.xlane.xlu0 %5527
        %v5529 = vsel %vm804, %v5509, 0.0
        %5530 = vadd.xlane.f32.xlu0 %v5529
        %v5531 = vpop.xlane.xlu0 %5530
        %v5532 = vsel %vm804, %v5510, 0.0
        %5533 = vadd.xlane.f32.xlu0 %v5532
        %v5534 = vpop.xlane.xlu0 %5533
        %v5535 = vmul.f32 %v5513, %v829
        %v5536 = vmul.f32 %v5516, %v829
        %v5537 = vmul.f32 %v5519, %v829
        %v5538 = vmul.f32 %v5522, %v829
        %v5539 = vmul.f32 %v5525, %v829
        %v5540 = vmul.f32 %v5528, %v829
        %v5541 = vmul.f32 %v5531, %v829
        %v5542 = vmul.f32 %v5534, %v829
        %v5543 = vmul.f32 %v5495, %v5495
        %v5544 = vmul.f32 %v5496, %v5496
        %v5545 = vmul.f32 %v5497, %v5497
        %v5546 = vmul.f32 %v5498, %v5498
        %v5547 = vmul.f32 %v5499, %v5499
        %v5548 = vmul.f32 %v5500, %v5500
        %v5549 = vmul.f32 %v5501, %v5501
        %v5550 = vmul.f32 %v5502, %v5502
        %v5551 = vsub.f32 %v5535, %v5543
        %v5552 = vsub.f32 %v5536, %v5544
        %v5553 = vsub.f32 %v5537, %v5545
        %v5554 = vsub.f32 %v5538, %v5546
        %v5555 = vsub.f32 %v5539, %v5547
        %v5556 = vsub.f32 %v5540, %v5548
        %v5557 = vsub.f32 %v5541, %v5549
        %v5558 = vsub.f32 %v5542, %v5550
        %v5559 = vmax.f32 %v5551, 0.0
        %v5560 = vmax.f32 %v5552, 0.0
        %v5561 = vmax.f32 %v5553, 0.0
        %v5562 = vmax.f32 %v5554, 0.0
        %v5563 = vmax.f32 %v5555, 0.0
        %v5564 = vmax.f32 %v5556, 0.0
        %v5565 = vmax.f32 %v5557, 0.0
        %v5566 = vmax.f32 %v5558, 0.0
        %v5567 = vsub.f32 %v5461, %v5495
        %v5568 = vsub.f32 %v5462, %v5496
        %v5569 = vsub.f32 %v5463, %v5497
        %v5570 = vsub.f32 %v5464, %v5498
        %v5571 = vsub.f32 %v5465, %v5499
        %v5572 = vsub.f32 %v5466, %v5500
        %v5573 = vsub.f32 %v5467, %v5501
        %v5574 = vsub.f32 %v5468, %v5502
        %v5575 = vadd.f32 %v5559, 1e-05
        %v5576 = vadd.f32 %v5560, 1e-05
        %v5577 = vadd.f32 %v5561, 1e-05
        %v5578 = vadd.f32 %v5562, 1e-05
        %v5579 = vadd.f32 %v5563, 1e-05
        %v5580 = vadd.f32 %v5564, 1e-05
        %v5581 = vadd.f32 %v5565, 1e-05
        %v5582 = vadd.f32 %v5566, 1e-05
        %v5583 = vrsqrt.pop %v5575
        %v5584 = vrsqrt.pop %v5576
        %v5585 = vrsqrt.pop %v5577
        %v5586 = vrsqrt.pop %v5578
        %v5587 = vrsqrt.pop %v5579
        %v5588 = vrsqrt.pop %v5580
        %v5589 = vrsqrt.pop %v5581
        %v5590 = vrsqrt.pop %v5582
        %v5591 = vmul.f32 %v5567, %v5583
        %v5592 = vmul.f32 %v5568, %v5584
        %v5593 = vmul.f32 %v5569, %v5585
        %v5594 = vmul.f32 %v5570, %v5586
        %v5595 = vmul.f32 %v5571, %v5587
        %v5596 = vmul.f32 %v5572, %v5588
        %v5597 = vmul.f32 %v5573, %v5589
        %v5598 = vmul.f32 %v5574, %v5590
        %v5600 = vlaneseq
        %v5601 = vshrl.u32 %v5600, 7
        %v5602 = vsub.s32 0, %v5601
        %v5603 = vrot.slane %v5469, %v5602
        %v5605 = vmul.f32 %v5591, %v5603
        %v5606 = vmul.f32 %v5592, %v5603
        %v5607 = vmul.f32 %v5593, %v5603
        %v5608 = vmul.f32 %v5594, %v5603
        %v5609 = vmul.f32 %v5595, %v5603
        %v5610 = vmul.f32 %v5596, %v5603
        %v5611 = vmul.f32 %v5597, %v5603
        %v5612 = vmul.f32 %v5598, %v5603
        %v5614 = vlaneseq
        %v5615 = vshrl.u32 %v5614, 7
        %v5616 = vsub.s32 0, %v5615
        %v5617 = vrot.slane %v5470, %v5616
        %v5619 = vadd.f32 %v5605, %v5617
        %v5620 = vadd.f32 %v5606, %v5617
        %v5621 = vadd.f32 %v5607, %v5617
        %v5622 = vadd.f32 %v5608, %v5617
        %v5623 = vadd.f32 %v5609, %v5617
        %v5624 = vadd.f32 %v5610, %v5617
        %v5625 = vadd.f32 %v5611, %v5617
        %v5626 = vadd.f32 %v5612, %v5617
        %v5627 = vsel %vm804, %v5619, 0.0
        %v5628 = vrot.slane %v5627, 4
        %v5629 = vadd.f32 %v5627, %v5628
        %v5630 = vrot.slane %v5629, 2
        %v5631 = vadd.f32 %v5629, %v5630
        %v5632 = vrot.slane %v5631, 1
        %v5633 = vadd.f32 %v5631, %v5632
        %v5634 = vsel %vm804, %v5620, 0.0
        %v5635 = vrot.slane %v5634, 4
        %v5636 = vadd.f32 %v5634, %v5635
        %v5637 = vrot.slane %v5636, 2
        %v5638 = vadd.f32 %v5636, %v5637
        %v5639 = vrot.slane %v5638, 1
        %v5640 = vadd.f32 %v5638, %v5639
        %v5641 = vsel %vm804, %v5621, 0.0
        %v5642 = vrot.slane %v5641, 4
        %v5643 = vadd.f32 %v5641, %v5642
        %v5644 = vrot.slane %v5643, 2
        %v5645 = vadd.f32 %v5643, %v5644
        %v5646 = vrot.slane %v5645, 1
        %v5647 = vadd.f32 %v5645, %v5646
        %v5648 = vsel %vm804, %v5622, 0.0
        %v5649 = vrot.slane %v5648, 4
        %v5650 = vadd.f32 %v5648, %v5649
        %v5651 = vrot.slane %v5650, 2
        %v5652 = vadd.f32 %v5650, %v5651
        %v5653 = vrot.slane %v5652, 1
        %v5654 = vadd.f32 %v5652, %v5653
        %v5655 = vsel %vm804, %v5623, 0.0
        %v5656 = vrot.slane %v5655, 4
        %v5657 = vadd.f32 %v5655, %v5656
        %v5658 = vrot.slane %v5657, 2
        %v5659 = vadd.f32 %v5657, %v5658
        %v5660 = vrot.slane %v5659, 1
        %v5661 = vadd.f32 %v5659, %v5660
        %v5662 = vsel %vm804, %v5624, 0.0
        %v5663 = vrot.slane %v5662, 4
        %v5664 = vadd.f32 %v5662, %v5663
        %v5665 = vrot.slane %v5664, 2
        %v5666 = vadd.f32 %v5664, %v5665
        %v5667 = vrot.slane %v5666, 1
        %v5668 = vadd.f32 %v5666, %v5667
        %v5669 = vsel %vm804, %v5625, 0.0
        %v5670 = vrot.slane %v5669, 4
        %v5671 = vadd.f32 %v5669, %v5670
        %v5672 = vrot.slane %v5671, 2
        %v5673 = vadd.f32 %v5671, %v5672
        %v5674 = vrot.slane %v5673, 1
        %v5675 = vadd.f32 %v5673, %v5674
        %v5676 = vsel %vm804, %v5626, 0.0
        %v5677 = vrot.slane %v5676, 4
        %v5678 = vadd.f32 %v5676, %v5677
        %v5679 = vrot.slane %v5678, 2
        %v5680 = vadd.f32 %v5678, %v5679
        %v5681 = vrot.slane %v5680, 1
        %v5682 = vadd.f32 %v5680, %v5681
        %vm5691 = vcmask 1041409
        %v5692 = vsel %vm5691, %v5640, %v5633
        %vm5693 = vcmask 1042434
        %v5694 = vsel %vm5693, %v5647, %v5692
        %vm5695 = vcmask 1043459
        %v5696 = vsel %vm5695, %v5654, %v5694
        %vm5697 = vcmask 1044484
        %v5698 = vsel %vm5697, %v5661, %v5696
        %vm5699 = vcmask 1045509
        %v5700 = vsel %vm5699, %v5668, %v5698
        %vm5701 = vcmask 1046534
        %v5702 = vsel %vm5701, %v5675, %v5700
        %vm5703 = vcmask 1047559
        %v5704 = vsel %vm5703, %v5682, %v5702
        %5706 = vst.msk [vmem:[%s747] sm:$0xff] %vm804, %v5704
      $region92: #{mude_forward.5} parent=83 // pred_fallthru
        _
      %p5707 = scmp.lt.s32.totalorder %s31, 1
      %s5708 = scalar_select %p5707, %s31, 1
      %s5709 = smul.addr %s5708, 8
      %s5710 = scalar_lea.vmem %s16, %s5709
      // Predicated region
      $region93: #{mude_forward.5} parent=83 // pred_check
        %p5711 = pneg %p463
      $region94: #{mude_forward.5} parent=83 // pred_check_branch
        %5713 = sbr.rel (%p5711) target = $region96
      $region95: #{mude_forward.5} parent=83 // pred_region
        _
      $region96: #{mude_forward.5} parent=83 // pred_fallthru
        _
    $region84: #{mude_forward.5} parent=5 // pred_fallthru
      _
    %p5714 = scmp.le.s32.totalorder 2, %s22
    // Predicated region
    $region97: #{mude_forward.5} parent=5 // pred_check
      %p5715 = pneg %p5714
    $region98: #{mude_forward.5} parent=5 // pred_check_branch
      %5717 = sbr.rel (%p5715) target = $region100
    $region99: #{mude_forward.5} parent=5 // pred_region
      %s5718 = ssub.s32 %s22, 2
      // Predicated region
      $region101: #{mude_forward.5} parent=99 // pred_check
        %p5719 = pneg %p469
      $region102: #{mude_forward.5} parent=99 // pred_check_branch
        %5721 = sbr.rel (%p5719) target = $region104
      $region103: #{mude_forward.5} parent=99 // pred_region
        %p5722 = scmp.lt.s32.totalorder %s33, 1
        %s5723 = scalar_select %p5722, %s33, 1
        %s5724 = smul.addr %s5723, 8
        %s5725 = scalar_lea.vmem %s16, %s5724
      $region104: #{mude_forward.5} parent=99 // pred_fallthru
        _
    $region100: #{mude_forward.5} parent=5 // pred_fallthru
      _
  $region6: #{mude_forward.5} parent=0 // loop_footer
    %s26 = sadd.s32 1, %s22
  $region7: #{mude_forward.5} parent=0 // loop_footer_branch
    %21 = sbr.rel target = $region3
  $region8: #{mude_forward.5} parent=0 // loop_exit
    _

</llo_original>
